<compile_context>
chip_gen: v7x
topology: tpu7x:2x2x1
jax: 0.10.0
libtpu: 0.0.40
codegen_flags: <defaults>
</compile_context>

<pallas_src>
import functools

import jax
import jax.numpy as jnp
from jax.experimental import pallas as pl
from jax.experimental.pallas import tpu as pltpu


def _encoder_layer_kernel(xf_ref, mask_ref,
                          wq_ref, bq_ref, wkv_ref, bkv_ref,
                          wo_ref, bo_ref,
                          w1_ref, b1_ref, w2_ref, b2_ref,
                          gamma_ref, beta_ref,
                          out_ref,
                          kc_ref, vc_ref, *, n_head):
    S, D = xf_ref.shape                 # full-sequence activations (bf16)
    tq = out_ref.shape[0]               # query tile size
    dh = D // n_head
    scale = 1.0 / (dh ** 0.5)
    q_idx = pl.program_id(1)

    def linear(inp_bf16, w_ref, b_ref):
        # bf16 operands into the MXU, f32 accumulation, f32 bias add.
        return (jnp.dot(inp_bf16, w_ref[...],
                        preferred_element_type=jnp.float32) + b_ref[...])

    def layer_norm(v):
        mean = jnp.mean(v, axis=-1, keepdims=True)
        var = jnp.mean((v - mean) ** 2, axis=-1, keepdims=True)
        inv = jax.lax.rsqrt(var + 1e-6)
        return (v - mean) * inv * gamma_ref[...] + beta_ref[...]

    # ---- K / V projections: once per batch (q_idx == 0), cached in VMEM ----
    @pl.when(q_idx == 0)
    def _():
        kv = linear(xf_ref[...], wkv_ref, bkv_ref)      # (S, 2D) f32, fused K|V
        kc_ref[...] = kv[:, :D].reshape(S, n_head, dh).astype(jnp.bfloat16)
        vc_ref[...] = kv[:, D:].reshape(S, n_head, dh).astype(jnp.bfloat16)

    # ---- Query tile sliced out of the resident full-sequence block ----
    start = pl.multiple_of(q_idx * tq, tq)
    xq_bf = xf_ref[pl.ds(start, tq), :]                 # (tq, D) bf16
    xq = xq_bf.astype(jnp.float32)                      # residual in f32

    # 1/sqrt(dh) folded into q: tq*D mults instead of H*tq*S on the scores.
    q = linear(xq_bf, wq_ref, bq_ref) * scale           # (tq, D) f32
    q3 = q.reshape(tq, n_head, dh).astype(jnp.bfloat16)
    k3 = kc_ref[...]                                    # (S, H, dh) bf16 cached
    v3 = vc_ref[...]                                    # (S, H, dh) bf16 cached

    # scores: (H, tq, S) -- one batched matmul over all heads.
    scores = jnp.einsum("qhd,khd->hqk", q3, k3,
                        preferred_element_type=jnp.float32)

    # Key-validity mask -> additive bias (robust `< 0.5` test, no float ==).
    bias = jnp.where(mask_ref[...] < 0.5, -1e9, 0.0)    # (1, S) f32
    scores = scores + bias[None, :, :]

    # Softmax in f32; denominator reciprocal on the EUP slot.
    scores = scores - jnp.max(scores, axis=-1, keepdims=True)
    p = jnp.exp(scores)
    p = p * pl.reciprocal(jnp.sum(p, axis=-1, keepdims=True), approx=True)

    # ctx: (tq, H, dh) -> (tq, D).  The merge is an O(tq*D) relayout; kept so
    # the output projection stays a plain full-D-contraction 2-D matmul that
    # Mosaic lowers unconditionally (instead of a multi-contraction einsum).
    ctx = jnp.einsum("hqk,khd->qhd", p.astype(jnp.bfloat16), v3,
                     preferred_element_type=jnp.float32)
    ctx = ctx.reshape(tq, D)
    mha_out = linear(ctx.astype(jnp.bfloat16), wo_ref, bo_ref)

    # dropout == identity (eval); residual + shared LayerNorm.
    h1 = layer_norm(mha_out + xq)

    # ---- Position-wise feed-forward (GELU, tanh approximation) ----
    hidden = jax.nn.gelu(linear(h1.astype(jnp.bfloat16), w1_ref, b1_ref),
                         approximate=True)
    ffn_out = linear(hidden.astype(jnp.bfloat16), w2_ref, b2_ref)

    # dropout == identity (eval); residual + shared LayerNorm.
    out_ref[...] = layer_norm(ffn_out + h1).astype(out_ref.dtype)


def _tpu_vmem_capacity_bytes():
    """Best-effort per-core VMEM capacity (only used to pick tile / limit)."""
    try:
        return int(pltpu.get_tpu_info().vmem_capacity_bytes)
    except Exception:
        return 128 * 1024 * 1024        # v5e / v6e assumption


def _pick_tq(S, max_tile):
    """Largest query tile (multiple of 8, <= max_tile) that evenly divides S."""
    for t in (256, 128, 64, 32, 16, 8):
        if t <= max_tile and t <= S and S % t == 0:
            return t
    return S


def prepare_encoder_params(params):
    """One-time weight prep, hoisted out of the per-layer call:
       bf16 MXU weights, fused K|V projection, f32 biases / LayerNorm params."""
    bf16 = lambda a: jnp.asarray(a, jnp.bfloat16)
    f32 = lambda a: jnp.asarray(a, jnp.float32)
    return {
        "wq": bf16(params["wq"]),
        "bq": f32(params["bq"]),
        "wkv": bf16(jnp.concatenate([params["wk"], params["wv"]], axis=1)),
        "bkv": f32(jnp.concatenate([params["bk"], params["bv"]], axis=1)),
        "wo": bf16(params["wo"]),
        "bo": f32(params["bo"]),
        "w1": bf16(params["w1"]),
        "b1": f32(params["b1"]),
        "w2": bf16(params["w2"]),
        "b2": f32(params["b2"]),
        "gamma": f32(params["gamma"]),
        "beta": f32(params["beta"]),
    }


def encoder_layer(x, mask, prepared, n_head):
    """x: (B, S, D) float, mask: (B, 1, S) key-validity (0 = masked).
       `prepared` comes from prepare_encoder_params().  Output is bf16."""
    B, S, D = x.shape
    assert mask.shape == (B, 1, S)
    dh = D // n_head

    vmem_cap = _tpu_vmem_capacity_bytes()
    small_vmem = vmem_cap <= 80 * 1024 * 1024           # v7x: 64 MiB per TC
    tq = _pick_tq(S, max_tile=128 if small_vmem else 256)
    nq = S // tq
    vmem_limit = min(64 * 1024 * 1024, int(vmem_cap * 3 // 4))

    x_bf = x.astype(jnp.bfloat16)                       # bf16 activations in
    mask_f = mask.astype(jnp.float32)

    names = ["wq", "bq", "wkv", "bkv", "wo", "bo",
             "w1", "b1", "w2", "b2", "gamma", "beta"]
    weight_list = [prepared[n] for n in names]

    def build(single_buffer_weights):
        if single_buffer_weights:
            # Constant-index weight blocks: single-buffered (no point holding
            # two copies of blocks whose index never changes).
            weight_specs = [
                pl.BlockSpec(p.shape, lambda b, q, n=p.ndim: (0,) * n,
                             pipeline_mode=pl.Buffered(1))
                for p in weight_list
            ]
        else:
            weight_specs = [
                pl.BlockSpec(p.shape, lambda b, q, n=p.ndim: (0,) * n)
                for p in weight_list
            ]

        grid_spec = pltpu.PrefetchScalarGridSpec(
            num_scalar_prefetch=0,
            grid=(B, nq),
            in_specs=[
                pl.BlockSpec((None, S, D), lambda b, q: (b, 0, 0)),   # x (full seq)
                pl.BlockSpec((None, 1, S), lambda b, q: (b, 0, 0)),   # key mask
            ] + weight_specs,
            out_specs=pl.BlockSpec((None, tq, D), lambda b, q: (b, q, 0)),
            scratch_shapes=[
                pltpu.VMEM((S, n_head, dh), jnp.bfloat16),   # K cache (per batch)
                pltpu.VMEM((S, n_head, dh), jnp.bfloat16),   # V cache (per batch)
            ],
        )
        kernel = functools.partial(_encoder_layer_kernel, n_head=n_head)
        return pl.pallas_call(
            kernel,
            out_shape=jax.ShapeDtypeStruct((B, S, D), jnp.bfloat16),
            grid_spec=grid_spec,
            compiler_params=pltpu.CompilerParams(
                # batch parallel (megacore sharding); q "arbitrary" so the
                # K/V scratch caches legally carry across query tiles.
                dimension_semantics=("parallel", "arbitrary"),
                vmem_limit_bytes=vmem_limit,
            ),
        )

    def run(single_buffer_weights):
        out = build(single_buffer_weights)(x_bf, mask_f, *weight_list)
        return jax.block_until_ready(out)

    try:
        return run(True)
    except Exception:
        # pipeline_mode=pl.Buffered(1) not supported on this jax version for
        # top-level pallas_call blocks: fall back to default double-buffering.
        return run(False)


def _reference(x, mask, params, n_head):
    """Pure-JAX f32 reference of the same forward pass (sanity check)."""
    B, S, D = x.shape
    dh = D // n_head

    def layer_norm(v):
        mean = jnp.mean(v, -1, keepdims=True)
        var = jnp.mean((v - mean) ** 2, -1, keepdims=True)
        return (v - mean) * jax.lax.rsqrt(var + 1e-6) * params["gamma"] + params["beta"]

    def lin(v, w, b):
        return v @ w + b

    q = lin(x, params["wq"], params["bq"]).reshape(B, S, n_head, dh).transpose(0, 2, 1, 3)
    k = lin(x, params["wk"], params["bk"]).reshape(B, S, n_head, dh).transpose(0, 2, 1, 3)
    v = lin(x, params["wv"], params["bv"]).reshape(B, S, n_head, dh).transpose(0, 2, 1, 3)
    s = jnp.einsum("bhqd,bhkd->bhqk", q, k) / (dh ** 0.5)
    s = jnp.where(mask[:, None, :, :] == 0, -1e9, s)   # (B,1,1,S) broadcasts
    p = jax.nn.softmax(s, axis=-1)
    ctx = jnp.einsum("bhqk,bhkd->bhqd", p, v).transpose(0, 2, 1, 3).reshape(B, S, D)
    mha = lin(ctx, params["wo"], params["bo"])
    h1 = layer_norm(mha + x)
    ffn = lin(jax.nn.gelu(lin(h1, params["w1"], params["b1"]), approximate=True),
              params["w2"], params["b2"])
    return layer_norm(ffn + h1)


def _init_params(key, d_model, d_ff):
    ks = jax.random.split(key, 6)
    sc = 0.05
    return {
        "wq": jax.random.normal(ks[0], (d_model, d_model), jnp.float32) * sc,
        "wk": jax.random.normal(ks[1], (d_model, d_model), jnp.float32) * sc,
        "wv": jax.random.normal(ks[2], (d_model, d_model), jnp.float32) * sc,
        "wo": jax.random.normal(ks[3], (d_model, d_model), jnp.float32) * sc,
        "w1": jax.random.normal(ks[4], (d_model, d_ff), jnp.float32) * sc,
        "w2": jax.random.normal(ks[5], (d_ff, d_model), jnp.float32) * sc,
        "bq": jnp.zeros((1, d_model), jnp.float32),
        "bk": jnp.full((1, d_model), 0.01, jnp.float32),
        "bv": jnp.full((1, d_model), -0.01, jnp.float32),
        "bo": jnp.zeros((1, d_model), jnp.float32),
        "b1": jnp.full((1, d_ff), 0.02, jnp.float32),
        "b2": jnp.zeros((1, d_model), jnp.float32),
        "gamma": jnp.ones((1, d_model), jnp.float32),
        "beta": jnp.zeros((1, d_model), jnp.float32),
    }


if __name__ == "__main__":
    B, S, D, H, F = 2, 8, 32, 4, 64   # batch, seq, d_model, heads, d_ff

    key = jax.random.PRNGKey(0)
    k_x, k_p = jax.random.split(key)
    x = jax.random.normal(k_x, (B, S, D), jnp.float32)

    # Padding mask: batch 1 has its last 2 key positions masked out.
    valid = jnp.ones((B, S), jnp.float32).at[1, -2:].set(0.0)
    mask = valid[:, None, :]                      # (B, 1, S) key-validity

    params = _init_params(k_p, D, F)
    prepared = prepare_encoder_params(params)     # one-time (hoisted out of the layer call)

    out = encoder_layer(x, mask, prepared, n_head=H)
    out = jax.block_until_ready(out)

    # Kernel consumes bf16 activations; compare against the f32 reference run
    # on the same bf16-quantized input, with a tolerance covering bf16 matmul
    # operands, bf16 output and the approx softmax reciprocal.
    x_q = x.astype(jnp.bfloat16).astype(jnp.float32)
    ref = _reference(x_q, mask, params, n_head=H)

    assert out.shape == (B, S, D)
    assert out.dtype == jnp.bfloat16
    assert jnp.allclose(out.astype(jnp.float32), ref, atol=4e-2, rtol=4e-2), \
        "mismatch vs reference"

    print("KERNEL_OK")
</pallas_src>

<mosaic_0001>
module attributes {stable_mosaic.version = 11 : i64} {
  func.func @_encoder_layer_kernel(%arg0: i32, %arg1: i32, %arg2: memref<1x8x32xbf16, #tpu.memory_space<vmem>>, %arg3: memref<1x1x8xf32, #tpu.memory_space<vmem>>, %arg4: memref<32x32xbf16, #tpu.memory_space<vmem>>, %arg5: memref<1x32xf32, #tpu.memory_space<vmem>>, %arg6: memref<32x64xbf16, #tpu.memory_space<vmem>>, %arg7: memref<1x64xf32, #tpu.memory_space<vmem>>, %arg8: memref<32x32xbf16, #tpu.memory_space<vmem>>, %arg9: memref<1x32xf32, #tpu.memory_space<vmem>>, %arg10: memref<32x64xbf16, #tpu.memory_space<vmem>>, %arg11: memref<1x64xf32, #tpu.memory_space<vmem>>, %arg12: memref<64x32xbf16, #tpu.memory_space<vmem>>, %arg13: memref<1x32xf32, #tpu.memory_space<vmem>>, %arg14: memref<1x32xf32, #tpu.memory_space<vmem>>, %arg15: memref<1x32xf32, #tpu.memory_space<vmem>>, %arg16: memref<1x8x32xbf16, #tpu.memory_space<vmem>>, %arg17: memref<8x4x8xbf16, #tpu.memory_space<vmem>>, %arg18: memref<8x4x8xbf16, #tpu.memory_space<vmem>>) attributes {dimension_semantics = [#tpu.dimension_semantics<parallel>, #tpu.dimension_semantics<arbitrary>], iteration_bounds = array<i64: 2, 1>, scalar_prefetch = 0 : i64, scratch_operands = 2 : i64, tpu.core_type = #tpu.core_type<tc>, window_params = [{transform_indices = @transform_0, window_bounds = array<i64: 1, 8, 32>}, {transform_indices = @transform_1, window_bounds = array<i64: 1, 1, 8>}, {pipeline_mode = #tpu.pipeline_mode<synchronous>, transform_indices = @transform_2, window_bounds = array<i64: 32, 32>}, {pipeline_mode = #tpu.pipeline_mode<synchronous>, transform_indices = @transform_3, window_bounds = array<i64: 1, 32>}, {pipeline_mode = #tpu.pipeline_mode<synchronous>, transform_indices = @transform_4, window_bounds = array<i64: 32, 64>}, {pipeline_mode = #tpu.pipeline_mode<synchronous>, transform_indices = @transform_5, window_bounds = array<i64: 1, 64>}, {pipeline_mode = #tpu.pipeline_mode<synchronous>, transform_indices = @transform_6, window_bounds = array<i64: 32, 32>}, {pipeline_mode = #tpu.pipeline_mode<synchronous>, transform_indices = @transform_7, window_bounds = array<i64: 1, 32>}, {pipeline_mode = #tpu.pipeline_mode<synchronous>, transform_indices = @transform_8, window_bounds = array<i64: 32, 64>}, {pipeline_mode = #tpu.pipeline_mode<synchronous>, transform_indices = @transform_9, window_bounds = array<i64: 1, 64>}, {pipeline_mode = #tpu.pipeline_mode<synchronous>, transform_indices = @transform_10, window_bounds = array<i64: 64, 32>}, {pipeline_mode = #tpu.pipeline_mode<synchronous>, transform_indices = @transform_11, window_bounds = array<i64: 1, 32>}, {pipeline_mode = #tpu.pipeline_mode<synchronous>, transform_indices = @transform_12, window_bounds = array<i64: 1, 32>}, {pipeline_mode = #tpu.pipeline_mode<synchronous>, transform_indices = @transform_13, window_bounds = array<i64: 1, 32>}, {transform_indices = @transform_14, window_bounds = array<i64: 1, 8, 32>}]} {
    %c0_i32 = arith.constant 0 : i32
    %0 = arith.cmpi eq, %arg1, %c0_i32 : i32
    %1 = arith.extui %0 : i1 to i32
    %c0_i32_0 = arith.constant 0 : i32
    %2 = arith.cmpi ne, %1, %c0_i32_0 : i32
    scf.if %2 {
      %c0_63 = arith.constant 0 : index
      %c0_64 = arith.constant 0 : index
      %c0_65 = arith.constant 0 : index
      %130 = vector.load %arg2[%c0_63, %c0_64, %c0_65] : memref<1x8x32xbf16, #tpu.memory_space<vmem>>, vector<1x8x32xbf16>
      %131 = vector.shape_cast %130 : vector<1x8x32xbf16> to vector<8x32xbf16>
      %c0_66 = arith.constant 0 : index
      %c0_67 = arith.constant 0 : index
      %132 = vector.load %arg6[%c0_66, %c0_67] : memref<32x64xbf16, #tpu.memory_space<vmem>>, vector<32x64xbf16>
      %cst_68 = arith.constant dense<0.000000e+00> : vector<8x64xf32>
      %133 = tpu.matmul %131, %132, %cst_68 {dimension_numbers = #tpu.dot_dimension_numbers<[1], [0], [0], [1], [0, 0, 1, 1], [], []>} : vector<8x32xbf16>, vector<32x64xbf16>, vector<8x64xf32> -> vector<8x64xf32>
      %c0_69 = arith.constant 0 : index
      %c0_70 = arith.constant 0 : index
      %134 = vector.load %arg7[%c0_69, %c0_70] : memref<1x64xf32, #tpu.memory_space<vmem>>, vector<1x64xf32>
      %135 = vector.broadcast %134 : vector<1x64xf32> to vector<8x64xf32>
      %136 = arith.addf %133, %135 : vector<8x64xf32>
      %137 = vector.extract_strided_slice %136 {offsets = [0, 0], sizes = [8, 32], strides = [1, 1]} : vector<8x64xf32> to vector<8x32xf32>
      %138 = vector.shape_cast %137 : vector<8x32xf32> to vector<8x4x8xf32>
      %139 = arith.truncf %138 : vector<8x4x8xf32> to vector<8x4x8xbf16>
      %c0_71 = arith.constant 0 : index
      %c0_72 = arith.constant 0 : index
      %c0_73 = arith.constant 0 : index
      %140 = vector.load %arg17[%c0_71, %c0_72, %c0_73] : memref<8x4x8xbf16, #tpu.memory_space<vmem>>, vector<8x4x8xbf16>
      tpu.vector_store %arg17[%c0_71, %c0_72, %c0_73], %139 {strides = array<i32>} : memref<8x4x8xbf16, #tpu.memory_space<vmem>>, vector<8x4x8xbf16>,
      %141 = vector.extract_strided_slice %136 {offsets = [0, 32], sizes = [8, 32], strides = [1, 1]} : vector<8x64xf32> to vector<8x32xf32>
      %142 = vector.shape_cast %141 : vector<8x32xf32> to vector<8x4x8xf32>
      %143 = arith.truncf %142 : vector<8x4x8xf32> to vector<8x4x8xbf16>
      %c0_74 = arith.constant 0 : index
      %c0_75 = arith.constant 0 : index
      %c0_76 = arith.constant 0 : index
      %144 = vector.load %arg18[%c0_74, %c0_75, %c0_76] : memref<8x4x8xbf16, #tpu.memory_space<vmem>>, vector<8x4x8xbf16>
      tpu.vector_store %arg18[%c0_74, %c0_75, %c0_76], %143 {strides = array<i32>} : memref<8x4x8xbf16, #tpu.memory_space<vmem>>, vector<8x4x8xbf16>,
    } else {
    }
    %c8_i32 = arith.constant 8 : i32
    %3 = arith.muli %arg1, %c8_i32 : i32
    %4 = tpu.assume_multiple %3, 8 : i32
    %c0 = arith.constant 0 : index
    %5 = arith.index_cast %4 : i32 to index
    %c0_1 = arith.constant 0 : index
    %6 = vector.load %arg2[%c0, %5, %c0_1] : memref<1x8x32xbf16, #tpu.memory_space<vmem>>, vector<1x8x32xbf16>
    %7 = vector.shape_cast %6 : vector<1x8x32xbf16> to vector<8x32xbf16>
    %8 = arith.extf %7 : vector<8x32xbf16> to vector<8x32xf32>
    %c0_2 = arith.constant 0 : index
    %c0_3 = arith.constant 0 : index
    %9 = vector.load %arg4[%c0_2, %c0_3] : memref<32x32xbf16, #tpu.memory_space<vmem>>, vector<32x32xbf16>
    %cst = arith.constant dense<0.000000e+00> : vector<8x32xf32>
    %10 = tpu.matmul %7, %9, %cst {dimension_numbers = #tpu.dot_dimension_numbers<[1], [0], [0], [1], [0, 0, 1, 1], [], []>} : vector<8x32xbf16>, vector<32x32xbf16>, vector<8x32xf32> -> vector<8x32xf32>
    %c0_4 = arith.constant 0 : index
    %c0_5 = arith.constant 0 : index
    %11 = vector.load %arg5[%c0_4, %c0_5] : memref<1x32xf32, #tpu.memory_space<vmem>>, vector<1x32xf32>
    %12 = vector.broadcast %11 : vector<1x32xf32> to vector<8x32xf32>
    %13 = arith.addf %10, %12 : vector<8x32xf32>
    %cst_6 = arith.constant 0.353553385 : f32
    %14 = vector.broadcast %cst_6 : f32 to vector<8x32xf32>
    %15 = arith.mulf %13, %14 : vector<8x32xf32>
    %16 = vector.shape_cast %15 : vector<8x32xf32> to vector<8x4x8xf32>
    %17 = arith.truncf %16 : vector<8x4x8xf32> to vector<8x4x8xbf16>
    %c0_7 = arith.constant 0 : index
    %c0_8 = arith.constant 0 : index
    %c0_9 = arith.constant 0 : index
    %18 = vector.load %arg17[%c0_7, %c0_8, %c0_9] : memref<8x4x8xbf16, #tpu.memory_space<vmem>>, vector<8x4x8xbf16>
    %c0_10 = arith.constant 0 : index
    %c0_11 = arith.constant 0 : index
    %c0_12 = arith.constant 0 : index
    %19 = vector.load %arg18[%c0_10, %c0_11, %c0_12] : memref<8x4x8xbf16, #tpu.memory_space<vmem>>, vector<8x4x8xbf16>
    "tpu.trace_start"() <{level = 10 : i32, message = "qhd,khd->hqk"}> : () -> ()
    %cst_13 = arith.constant dense<0.000000e+00> : vector<4x8x8xf32>
    %20 = tpu.matmul %17, %18, %cst_13 {dimension_numbers = #tpu.dot_dimension_numbers<[2], [2], [0], [0], [0, 1, 0, 0, 1, 0], [1], [1]>} : vector<8x4x8xbf16>, vector<8x4x8xbf16>, vector<4x8x8xf32> -> vector<4x8x8xf32>
    "tpu.trace_stop"() : () -> ()
    %c0_14 = arith.constant 0 : index
    %c0_15 = arith.constant 0 : index
    %c0_16 = arith.constant 0 : index
    %21 = vector.load %arg3[%c0_14, %c0_15, %c0_16] : memref<1x1x8xf32, #tpu.memory_space<vmem>>, vector<1x1x8xf32>
    %22 = vector.shape_cast %21 : vector<1x1x8xf32> to vector<1x8xf32>
    %cst_17 = arith.constant 5.000000e-01 : f32
    %23 = vector.broadcast %cst_17 : f32 to vector<1x8xf32>
    %24 = arith.cmpf olt, %22, %23 : vector<1x8xf32>
    %cst_18 = arith.constant -1.000000e+09 : f32
    %cst_19 = arith.constant 0.000000e+00 : f32
    %25 = vector.broadcast %cst_18 : f32 to vector<1x8xf32>
    %26 = vector.broadcast %cst_19 : f32 to vector<1x8xf32>
    %27 = arith.select %24, %25, %26 : vector<1x8xi1>, vector<1x8xf32>
    %28 = vector.shape_cast %27 : vector<1x8xf32> to vector<1x1x8xf32>
    %29 = vector.broadcast %28 : vector<1x1x8xf32> to vector<4x8x8xf32>
    %30 = arith.addf %20, %29 : vector<4x8x8xf32>
    %cst_20 = arith.constant dense<0xFF800000> : vector<4x8xf32>
    %31 = vector.multi_reduction <maximumf>, %30, %cst_20 [2] : vector<4x8x8xf32> to vector<4x8xf32>
    %32 = vector.shape_cast %31 : vector<4x8xf32> to vector<4x8x1xf32>
    %33 = vector.broadcast %32 : vector<4x8x1xf32> to vector<4x8x8xf32>
    %34 = arith.subf %30, %33 : vector<4x8x8xf32>
    %35 = math.exp %34 : vector<4x8x8xf32>
    %cst_21 = arith.constant dense<0.000000e+00> : vector<4x8xf32>
    %36 = vector.multi_reduction <add>, %35, %cst_21 [2] : vector<4x8x8xf32> to vector<4x8xf32>
    %37 = vector.shape_cast %36 : vector<4x8xf32> to vector<4x8x1xf32>
    %38 = tpu.reciprocal %37 {approx = true} : vector<4x8x1xf32> -> vector<4x8x1xf32>
    %39 = vector.broadcast %38 : vector<4x8x1xf32> to vector<4x8x8xf32>
    %40 = arith.mulf %35, %39 : vector<4x8x8xf32>
    %41 = arith.truncf %40 : vector<4x8x8xf32> to vector<4x8x8xbf16>
    "tpu.trace_start"() <{level = 10 : i32, message = "hqk,khd->qhd"}> : () -> ()
    %cst_22 = arith.constant dense<0.000000e+00> : vector<4x8x8xf32>
    %42 = tpu.matmul %19, %41, %cst_22 {dimension_numbers = #tpu.dot_dimension_numbers<[0], [2], [2], [1], [0, 1, 0, 2, 1, 1], [1], [0]>} : vector<8x4x8xbf16>, vector<4x8x8xbf16>, vector<4x8x8xf32> -> vector<4x8x8xf32>
    %43 = tpu.transpose %42, [2, 0, 1] : vector<4x8x8xf32> -> vector<8x4x8xf32>
    "tpu.trace_stop"() : () -> ()
    %44 = vector.shape_cast %43 : vector<8x4x8xf32> to vector<8x32xf32>
    %45 = arith.truncf %44 : vector<8x32xf32> to vector<8x32xbf16>
    %c0_23 = arith.constant 0 : index
    %c0_24 = arith.constant 0 : index
    %46 = vector.load %arg8[%c0_23, %c0_24] : memref<32x32xbf16, #tpu.memory_space<vmem>>, vector<32x32xbf16>
    %cst_25 = arith.constant dense<0.000000e+00> : vector<8x32xf32>
    %47 = tpu.matmul %45, %46, %cst_25 {dimension_numbers = #tpu.dot_dimension_numbers<[1], [0], [0], [1], [0, 0, 1, 1], [], []>} : vector<8x32xbf16>, vector<32x32xbf16>, vector<8x32xf32> -> vector<8x32xf32>
    %c0_26 = arith.constant 0 : index
    %c0_27 = arith.constant 0 : index
    %48 = vector.load %arg9[%c0_26, %c0_27] : memref<1x32xf32, #tpu.memory_space<vmem>>, vector<1x32xf32>
    %49 = vector.broadcast %48 : vector<1x32xf32> to vector<8x32xf32>
    %50 = arith.addf %47, %49 : vector<8x32xf32>
    %51 = arith.addf %50, %8 : vector<8x32xf32>
    %cst_28 = arith.constant dense<0.000000e+00> : vector<8xf32>
    %52 = vector.multi_reduction <add>, %51, %cst_28 [1] : vector<8x32xf32> to vector<8xf32>
    %53 = vector.shape_cast %52 : vector<8xf32> to vector<8x1xf32>
    %cst_29 = arith.constant 3.200000e+01 : f32
    %54 = vector.broadcast %cst_29 : f32 to vector<8x1xf32>
    %55 = arith.divf %53, %54 : vector<8x1xf32>
    %56 = vector.broadcast %55 : vector<8x1xf32> to vector<8x32xf32>
    %57 = arith.subf %51, %56 : vector<8x32xf32>
    %58 = arith.mulf %57, %57 : vector<8x32xf32>
    %cst_30 = arith.constant dense<0.000000e+00> : vector<8xf32>
    %59 = vector.multi_reduction <add>, %58, %cst_30 [1] : vector<8x32xf32> to vector<8xf32>
    %60 = vector.shape_cast %59 : vector<8xf32> to vector<8x1xf32>
    %cst_31 = arith.constant 3.200000e+01 : f32
    %61 = vector.broadcast %cst_31 : f32 to vector<8x1xf32>
    %62 = arith.divf %60, %61 : vector<8x1xf32>
    %cst_32 = arith.constant 9.99999997E-7 : f32
    %63 = vector.broadcast %cst_32 : f32 to vector<8x1xf32>
    %64 = arith.addf %62, %63 : vector<8x1xf32>
    %65 = math.rsqrt %64 : vector<8x1xf32>
    %66 = vector.broadcast %55 : vector<8x1xf32> to vector<8x32xf32>
    %67 = arith.subf %51, %66 : vector<8x32xf32>
    %68 = vector.broadcast %65 : vector<8x1xf32> to vector<8x32xf32>
    %69 = arith.mulf %67, %68 : vector<8x32xf32>
    %c0_33 = arith.constant 0 : index
    %c0_34 = arith.constant 0 : index
    %70 = vector.load %arg14[%c0_33, %c0_34] : memref<1x32xf32, #tpu.memory_space<vmem>>, vector<1x32xf32>
    %71 = vector.broadcast %70 : vector<1x32xf32> to vector<8x32xf32>
    %72 = arith.mulf %69, %71 : vector<8x32xf32>
    %c0_35 = arith.constant 0 : index
    %c0_36 = arith.constant 0 : index
    %73 = vector.load %arg15[%c0_35, %c0_36] : memref<1x32xf32, #tpu.memory_space<vmem>>, vector<1x32xf32>
    %74 = vector.broadcast %73 : vector<1x32xf32> to vector<8x32xf32>
    %75 = arith.addf %72, %74 : vector<8x32xf32>
    %76 = arith.truncf %75 : vector<8x32xf32> to vector<8x32xbf16>
    %c0_37 = arith.constant 0 : index
    %c0_38 = arith.constant 0 : index
    %77 = vector.load %arg10[%c0_37, %c0_38] : memref<32x64xbf16, #tpu.memory_space<vmem>>, vector<32x64xbf16>
    %cst_39 = arith.constant dense<0.000000e+00> : vector<8x64xf32>
    %78 = tpu.matmul %76, %77, %cst_39 {dimension_numbers = #tpu.dot_dimension_numbers<[1], [0], [0], [1], [0, 0, 1, 1], [], []>} : vector<8x32xbf16>, vector<32x64xbf16>, vector<8x64xf32> -> vector<8x64xf32>
    %c0_40 = arith.constant 0 : index
    %c0_41 = arith.constant 0 : index
    %79 = vector.load %arg11[%c0_40, %c0_41] : memref<1x64xf32, #tpu.memory_space<vmem>>, vector<1x64xf32>
    %80 = vector.broadcast %79 : vector<1x64xf32> to vector<8x64xf32>
    %81 = arith.addf %78, %80 : vector<8x64xf32>
    %82 = arith.mulf %81, %81 : vector<8x64xf32>
    %83 = arith.mulf %81, %82 : vector<8x64xf32>
    %cst_42 = arith.constant 4.471500e-02 : f32
    %84 = vector.broadcast %cst_42 : f32 to vector<8x64xf32>
    %85 = arith.mulf %84, %83 : vector<8x64xf32>
    %86 = arith.addf %81, %85 : vector<8x64xf32>
    %cst_43 = arith.constant 0.797884583 : f32
    %87 = vector.broadcast %cst_43 : f32 to vector<8x64xf32>
    %88 = arith.mulf %87, %86 : vector<8x64xf32>
    %89 = math.tanh %88 : vector<8x64xf32>
    %cst_44 = arith.constant 1.000000e+00 : f32
    %90 = vector.broadcast %cst_44 : f32 to vector<8x64xf32>
    %91 = arith.addf %90, %89 : vector<8x64xf32>
    %cst_45 = arith.constant 5.000000e-01 : f32
    %92 = vector.broadcast %cst_45 : f32 to vector<8x64xf32>
    %93 = arith.mulf %92, %91 : vector<8x64xf32>
    %94 = arith.mulf %81, %93 : vector<8x64xf32>
    %95 = arith.truncf %94 : vector<8x64xf32> to vector<8x64xbf16>
    %c0_46 = arith.constant 0 : index
    %c0_47 = arith.constant 0 : index
    %96 = vector.load %arg12[%c0_46, %c0_47] : memref<64x32xbf16, #tpu.memory_space<vmem>>, vector<64x32xbf16>
    %cst_48 = arith.constant dense<0.000000e+00> : vector<8x32xf32>
    %97 = tpu.matmul %95, %96, %cst_48 {dimension_numbers = #tpu.dot_dimension_numbers<[1], [0], [0], [1], [0, 0, 1, 1], [], []>} : vector<8x64xbf16>, vector<64x32xbf16>, vector<8x32xf32> -> vector<8x32xf32>
    %c0_49 = arith.constant 0 : index
    %c0_50 = arith.constant 0 : index
    %98 = vector.load %arg13[%c0_49, %c0_50] : memref<1x32xf32, #tpu.memory_space<vmem>>, vector<1x32xf32>
    %99 = vector.broadcast %98 : vector<1x32xf32> to vector<8x32xf32>
    %100 = arith.addf %97, %99 : vector<8x32xf32>
    %101 = arith.addf %100, %75 : vector<8x32xf32>
    %cst_51 = arith.constant dense<0.000000e+00> : vector<8xf32>
    %102 = vector.multi_reduction <add>, %101, %cst_51 [1] : vector<8x32xf32> to vector<8xf32>
    %103 = vector.shape_cast %102 : vector<8xf32> to vector<8x1xf32>
    %cst_52 = arith.constant 3.200000e+01 : f32
    %104 = vector.broadcast %cst_52 : f32 to vector<8x1xf32>
    %105 = arith.divf %103, %104 : vector<8x1xf32>
    %106 = vector.broadcast %105 : vector<8x1xf32> to vector<8x32xf32>
    %107 = arith.subf %101, %106 : vector<8x32xf32>
    %108 = arith.mulf %107, %107 : vector<8x32xf32>
    %cst_53 = arith.constant dense<0.000000e+00> : vector<8xf32>
    %109 = vector.multi_reduction <add>, %108, %cst_53 [1] : vector<8x32xf32> to vector<8xf32>
    %110 = vector.shape_cast %109 : vector<8xf32> to vector<8x1xf32>
    %cst_54 = arith.constant 3.200000e+01 : f32
    %111 = vector.broadcast %cst_54 : f32 to vector<8x1xf32>
    %112 = arith.divf %110, %111 : vector<8x1xf32>
    %cst_55 = arith.constant 9.99999997E-7 : f32
    %113 = vector.broadcast %cst_55 : f32 to vector<8x1xf32>
    %114 = arith.addf %112, %113 : vector<8x1xf32>
    %115 = math.rsqrt %114 : vector<8x1xf32>
    %116 = vector.broadcast %105 : vector<8x1xf32> to vector<8x32xf32>
    %117 = arith.subf %101, %116 : vector<8x32xf32>
    %118 = vector.broadcast %115 : vector<8x1xf32> to vector<8x32xf32>
    %119 = arith.mulf %117, %118 : vector<8x32xf32>
    %c0_56 = arith.constant 0 : index
    %c0_57 = arith.constant 0 : index
    %120 = vector.load %arg14[%c0_56, %c0_57] : memref<1x32xf32, #tpu.memory_space<vmem>>, vector<1x32xf32>
    %121 = vector.broadcast %120 : vector<1x32xf32> to vector<8x32xf32>
    %122 = arith.mulf %119, %121 : vector<8x32xf32>
    %c0_58 = arith.constant 0 : index
    %c0_59 = arith.constant 0 : index
    %123 = vector.load %arg15[%c0_58, %c0_59] : memref<1x32xf32, #tpu.memory_space<vmem>>, vector<1x32xf32>
    %124 = vector.broadcast %123 : vector<1x32xf32> to vector<8x32xf32>
    %125 = arith.addf %122, %124 : vector<8x32xf32>
    %126 = arith.truncf %125 : vector<8x32xf32> to vector<8x32xbf16>
    %c0_60 = arith.constant 0 : index
    %c0_61 = arith.constant 0 : index
    %c0_62 = arith.constant 0 : index
    %127 = vector.load %arg16[%c0_60, %c0_61, %c0_62] : memref<1x8x32xbf16, #tpu.memory_space<vmem>>, vector<1x8x32xbf16>
    %128 = vector.shape_cast %127 : vector<1x8x32xbf16> to vector<8x32xbf16>
    %129 = vector.shape_cast %126 : vector<8x32xbf16> to vector<1x8x32xbf16>
    tpu.vector_store %arg16[%c0_60, %c0_61, %c0_62], %129 {strides = array<i32>} : memref<1x8x32xbf16, #tpu.memory_space<vmem>>, vector<1x8x32xbf16>,
    return
  }
  func.func @transform_0(%arg0: i32, %arg1: i32) -> (i32, i32, i32) {
    %c0_i32 = arith.constant 0 : i32
    %c0_i32_0 = arith.constant 0 : i32
    %c0_i32_1 = arith.constant 0 : i32
    return %arg0, %c0_i32, %c0_i32_0 : i32, i32, i32
  }
  func.func @transform_1(%arg0: i32, %arg1: i32) -> (i32, i32, i32) {
    %c0_i32 = arith.constant 0 : i32
    %c0_i32_0 = arith.constant 0 : i32
    %c0_i32_1 = arith.constant 0 : i32
    return %arg0, %c0_i32, %c0_i32_0 : i32, i32, i32
  }
  func.func @transform_2(%arg0: i32, %arg1: i32) -> (i32, i32) {
    %c0_i32 = arith.constant 0 : i32
    %c0_i32_0 = arith.constant 0 : i32
    %c0_i32_1 = arith.constant 0 : i32
    return %c0_i32, %c0_i32_0 : i32, i32
  }
  func.func @transform_3(%arg0: i32, %arg1: i32) -> (i32, i32) {
    %c0_i32 = arith.constant 0 : i32
    %c0_i32_0 = arith.constant 0 : i32
    %c0_i32_1 = arith.constant 0 : i32
    return %c0_i32, %c0_i32_0 : i32, i32
  }
  func.func @transform_4(%arg0: i32, %arg1: i32) -> (i32, i32) {
    %c0_i32 = arith.constant 0 : i32
    %c0_i32_0 = arith.constant 0 : i32
    %c0_i32_1 = arith.constant 0 : i32
    return %c0_i32, %c0_i32_0 : i32, i32
  }
  func.func @transform_5(%arg0: i32, %arg1: i32) -> (i32, i32) {
    %c0_i32 = arith.constant 0 : i32
    %c0_i32_0 = arith.constant 0 : i32
    %c0_i32_1 = arith.constant 0 : i32
    return %c0_i32, %c0_i32_0 : i32, i32
  }
  func.func @transform_6(%arg0: i32, %arg1: i32) -> (i32, i32) {
    %c0_i32 = arith.constant 0 : i32
    %c0_i32_0 = arith.constant 0 : i32
    %c0_i32_1 = arith.constant 0 : i32
    return %c0_i32, %c0_i32_0 : i32, i32
  }
  func.func @transform_7(%arg0: i32, %arg1: i32) -> (i32, i32) {
    %c0_i32 = arith.constant 0 : i32
    %c0_i32_0 = arith.constant 0 : i32
    %c0_i32_1 = arith.constant 0 : i32
    return %c0_i32, %c0_i32_0 : i32, i32
  }
  func.func @transform_8(%arg0: i32, %arg1: i32) -> (i32, i32) {
    %c0_i32 = arith.constant 0 : i32
    %c0_i32_0 = arith.constant 0 : i32
    %c0_i32_1 = arith.constant 0 : i32
    return %c0_i32, %c0_i32_0 : i32, i32
  }
  func.func @transform_9(%arg0: i32, %arg1: i32) -> (i32, i32) {
    %c0_i32 = arith.constant 0 : i32
    %c0_i32_0 = arith.constant 0 : i32
    %c0_i32_1 = arith.constant 0 : i32
    return %c0_i32, %c0_i32_0 : i32, i32
  }
  func.func @transform_10(%arg0: i32, %arg1: i32) -> (i32, i32) {
    %c0_i32 = arith.constant 0 : i32
    %c0_i32_0 = arith.constant 0 : i32
    %c0_i32_1 = arith.constant 0 : i32
    return %c0_i32, %c0_i32_0 : i32, i32
  }
  func.func @transform_11(%arg0: i32, %arg1: i32) -> (i32, i32) {
    %c0_i32 = arith.constant 0 : i32
    %c0_i32_0 = arith.constant 0 : i32
    %c0_i32_1 = arith.constant 0 : i32
    return %c0_i32, %c0_i32_0 : i32, i32
  }
  func.func @transform_12(%arg0: i32, %arg1: i32) -> (i32, i32) {
    %c0_i32 = arith.constant 0 : i32
    %c0_i32_0 = arith.constant 0 : i32
    %c0_i32_1 = arith.constant 0 : i32
    return %c0_i32, %c0_i32_0 : i32, i32
  }
  func.func @transform_13(%arg0: i32, %arg1: i32) -> (i32, i32) {
    %c0_i32 = arith.constant 0 : i32
    %c0_i32_0 = arith.constant 0 : i32
    %c0_i32_1 = arith.constant 0 : i32
    return %c0_i32, %c0_i32_0 : i32, i32
  }
  func.func @transform_14(%arg0: i32, %arg1: i32) -> (i32, i32, i32) {
    %c0_i32 = arith.constant 0 : i32
    %c0_i32_0 = arith.constant 0 : i32
    return %arg0, %arg1, %c0_i32 : i32, i32, i32
  }
}

module attributes {stable_mosaic.version = 11 : i64} {
  func.func @_encoder_layer_kernel(%arg0: i32, %arg1: i32, %arg2: memref<1x8x32xbf16, #tpu.memory_space<vmem>>, %arg3: memref<1x1x8xf32, #tpu.memory_space<vmem>>, %arg4: memref<32x32xbf16, #tpu.memory_space<vmem>>, %arg5: memref<1x32xf32, #tpu.memory_space<vmem>>, %arg6: memref<32x64xbf16, #tpu.memory_space<vmem>>, %arg7: memref<1x64xf32, #tpu.memory_space<vmem>>, %arg8: memref<32x32xbf16, #tpu.memory_space<vmem>>, %arg9: memref<1x32xf32, #tpu.memory_space<vmem>>, %arg10: memref<32x64xbf16, #tpu.memory_space<vmem>>, %arg11: memref<1x64xf32, #tpu.memory_space<vmem>>, %arg12: memref<64x32xbf16, #tpu.memory_space<vmem>>, %arg13: memref<1x32xf32, #tpu.memory_space<vmem>>, %arg14: memref<1x32xf32, #tpu.memory_space<vmem>>, %arg15: memref<1x32xf32, #tpu.memory_space<vmem>>, %arg16: memref<1x8x32xbf16, #tpu.memory_space<vmem>>, %arg17: memref<8x4x8xbf16, #tpu.memory_space<vmem>>, %arg18: memref<8x4x8xbf16, #tpu.memory_space<vmem>>) attributes {dimension_semantics = [#tpu.dimension_semantics<parallel>, #tpu.dimension_semantics<arbitrary>], iteration_bounds = array<i64: 2, 1>, scalar_prefetch = 0 : i64, scratch_operands = 2 : i64, tpu.core_type = #tpu.core_type<tc>, window_params = [{transform_indices = @transform_0, window_bounds = array<i64: 1, 8, 32>}, {transform_indices = @transform_1, window_bounds = array<i64: 1, 1, 8>}, {pipeline_mode = #tpu.pipeline_mode<synchronous>, transform_indices = @transform_2, window_bounds = array<i64: 32, 32>}, {pipeline_mode = #tpu.pipeline_mode<synchronous>, transform_indices = @transform_3, window_bounds = array<i64: 1, 32>}, {pipeline_mode = #tpu.pipeline_mode<synchronous>, transform_indices = @transform_4, window_bounds = array<i64: 32, 64>}, {pipeline_mode = #tpu.pipeline_mode<synchronous>, transform_indices = @transform_5, window_bounds = array<i64: 1, 64>}, {pipeline_mode = #tpu.pipeline_mode<synchronous>, transform_indices = @transform_6, window_bounds = array<i64: 32, 32>}, {pipeline_mode = #tpu.pipeline_mode<synchronous>, transform_indices = @transform_7, window_bounds = array<i64: 1, 32>}, {pipeline_mode = #tpu.pipeline_mode<synchronous>, transform_indices = @transform_8, window_bounds = array<i64: 32, 64>}, {pipeline_mode = #tpu.pipeline_mode<synchronous>, transform_indices = @transform_9, window_bounds = array<i64: 1, 64>}, {pipeline_mode = #tpu.pipeline_mode<synchronous>, transform_indices = @transform_10, window_bounds = array<i64: 64, 32>}, {pipeline_mode = #tpu.pipeline_mode<synchronous>, transform_indices = @transform_11, window_bounds = array<i64: 1, 32>}, {pipeline_mode = #tpu.pipeline_mode<synchronous>, transform_indices = @transform_12, window_bounds = array<i64: 1, 32>}, {pipeline_mode = #tpu.pipeline_mode<synchronous>, transform_indices = @transform_13, window_bounds = array<i64: 1, 32>}, {transform_indices = @transform_14, window_bounds = array<i64: 1, 8, 32>}]} {
    %c0_i32 = arith.constant 0 : i32
    %0 = arith.cmpi eq, %arg1, %c0_i32 : i32
    %1 = arith.extui %0 : i1 to i32
    %c0_i32_0 = arith.constant 0 : i32
    %2 = arith.cmpi ne, %1, %c0_i32_0 : i32
    scf.if %2 {
      %c0_63 = arith.constant 0 : index
      %c0_64 = arith.constant 0 : index
      %c0_65 = arith.constant 0 : index
      %130 = vector.load %arg2[%c0_63, %c0_64, %c0_65] : memref<1x8x32xbf16, #tpu.memory_space<vmem>>, vector<1x8x32xbf16>
      %131 = vector.shape_cast %130 : vector<1x8x32xbf16> to vector<8x32xbf16>
      %c0_66 = arith.constant 0 : index
      %c0_67 = arith.constant 0 : index
      %132 = vector.load %arg6[%c0_66, %c0_67] : memref<32x64xbf16, #tpu.memory_space<vmem>>, vector<32x64xbf16>
      %cst_68 = arith.constant dense<0.000000e+00> : vector<8x64xf32>
      %133 = tpu.matmul %131, %132, %cst_68 {dimension_numbers = #tpu.dot_dimension_numbers<[1], [0], [0], [1], [0, 0, 1, 1], [], []>} : vector<8x32xbf16>, vector<32x64xbf16>, vector<8x64xf32> -> vector<8x64xf32>
      %c0_69 = arith.constant 0 : index
      %c0_70 = arith.constant 0 : index
      %134 = vector.load %arg7[%c0_69, %c0_70] : memref<1x64xf32, #tpu.memory_space<vmem>>, vector<1x64xf32>
      %135 = vector.broadcast %134 : vector<1x64xf32> to vector<8x64xf32>
      %136 = arith.addf %133, %135 : vector<8x64xf32>
      %137 = vector.extract_strided_slice %136 {offsets = [0, 0], sizes = [8, 32], strides = [1, 1]} : vector<8x64xf32> to vector<8x32xf32>
      %138 = vector.shape_cast %137 : vector<8x32xf32> to vector<8x4x8xf32>
      %139 = arith.truncf %138 : vector<8x4x8xf32> to vector<8x4x8xbf16>
      %c0_71 = arith.constant 0 : index
      %c0_72 = arith.constant 0 : index
      %c0_73 = arith.constant 0 : index
      %140 = vector.load %arg17[%c0_71, %c0_72, %c0_73] : memref<8x4x8xbf16, #tpu.memory_space<vmem>>, vector<8x4x8xbf16>
      tpu.vector_store %arg17[%c0_71, %c0_72, %c0_73], %139 {strides = array<i32>} : memref<8x4x8xbf16, #tpu.memory_space<vmem>>, vector<8x4x8xbf16>,
      %141 = vector.extract_strided_slice %136 {offsets = [0, 32], sizes = [8, 32], strides = [1, 1]} : vector<8x64xf32> to vector<8x32xf32>
      %142 = vector.shape_cast %141 : vector<8x32xf32> to vector<8x4x8xf32>
      %143 = arith.truncf %142 : vector<8x4x8xf32> to vector<8x4x8xbf16>
      %c0_74 = arith.constant 0 : index
      %c0_75 = arith.constant 0 : index
      %c0_76 = arith.constant 0 : index
      %144 = vector.load %arg18[%c0_74, %c0_75, %c0_76] : memref<8x4x8xbf16, #tpu.memory_space<vmem>>, vector<8x4x8xbf16>
      tpu.vector_store %arg18[%c0_74, %c0_75, %c0_76], %143 {strides = array<i32>} : memref<8x4x8xbf16, #tpu.memory_space<vmem>>, vector<8x4x8xbf16>,
    } else {
    }
    %c8_i32 = arith.constant 8 : i32
    %3 = arith.muli %arg1, %c8_i32 : i32
    %4 = tpu.assume_multiple %3, 8 : i32
    %c0 = arith.constant 0 : index
    %5 = arith.index_cast %4 : i32 to index
    %c0_1 = arith.constant 0 : index
    %6 = vector.load %arg2[%c0, %5, %c0_1] : memref<1x8x32xbf16, #tpu.memory_space<vmem>>, vector<1x8x32xbf16>
    %7 = vector.shape_cast %6 : vector<1x8x32xbf16> to vector<8x32xbf16>
    %8 = arith.extf %7 : vector<8x32xbf16> to vector<8x32xf32>
    %c0_2 = arith.constant 0 : index
    %c0_3 = arith.constant 0 : index
    %9 = vector.load %arg4[%c0_2, %c0_3] : memref<32x32xbf16, #tpu.memory_space<vmem>>, vector<32x32xbf16>
    %cst = arith.constant dense<0.000000e+00> : vector<8x32xf32>
    %10 = tpu.matmul %7, %9, %cst {dimension_numbers = #tpu.dot_dimension_numbers<[1], [0], [0], [1], [0, 0, 1, 1], [], []>} : vector<8x32xbf16>, vector<32x32xbf16>, vector<8x32xf32> -> vector<8x32xf32>
    %c0_4 = arith.constant 0 : index
    %c0_5 = arith.constant 0 : index
    %11 = vector.load %arg5[%c0_4, %c0_5] : memref<1x32xf32, #tpu.memory_space<vmem>>, vector<1x32xf32>
    %12 = vector.broadcast %11 : vector<1x32xf32> to vector<8x32xf32>
    %13 = arith.addf %10, %12 : vector<8x32xf32>
    %cst_6 = arith.constant 0.353553385 : f32
    %14 = vector.broadcast %cst_6 : f32 to vector<8x32xf32>
    %15 = arith.mulf %13, %14 : vector<8x32xf32>
    %16 = vector.shape_cast %15 : vector<8x32xf32> to vector<8x4x8xf32>
    %17 = arith.truncf %16 : vector<8x4x8xf32> to vector<8x4x8xbf16>
    %c0_7 = arith.constant 0 : index
    %c0_8 = arith.constant 0 : index
    %c0_9 = arith.constant 0 : index
    %18 = vector.load %arg17[%c0_7, %c0_8, %c0_9] : memref<8x4x8xbf16, #tpu.memory_space<vmem>>, vector<8x4x8xbf16>
    %c0_10 = arith.constant 0 : index
    %c0_11 = arith.constant 0 : index
    %c0_12 = arith.constant 0 : index
    %19 = vector.load %arg18[%c0_10, %c0_11, %c0_12] : memref<8x4x8xbf16, #tpu.memory_space<vmem>>, vector<8x4x8xbf16>
    "tpu.trace_start"() <{level = 10 : i32, message = "qhd,khd->hqk"}> : () -> ()
    %cst_13 = arith.constant dense<0.000000e+00> : vector<4x8x8xf32>
    %20 = tpu.matmul %17, %18, %cst_13 {dimension_numbers = #tpu.dot_dimension_numbers<[2], [2], [0], [0], [0, 1, 0, 0, 1, 0], [1], [1]>} : vector<8x4x8xbf16>, vector<8x4x8xbf16>, vector<4x8x8xf32> -> vector<4x8x8xf32>
    "tpu.trace_stop"() : () -> ()
    %c0_14 = arith.constant 0 : index
    %c0_15 = arith.constant 0 : index
    %c0_16 = arith.constant 0 : index
    %21 = vector.load %arg3[%c0_14, %c0_15, %c0_16] : memref<1x1x8xf32, #tpu.memory_space<vmem>>, vector<1x1x8xf32>
    %22 = vector.shape_cast %21 : vector<1x1x8xf32> to vector<1x8xf32>
    %cst_17 = arith.constant 5.000000e-01 : f32
    %23 = vector.broadcast %cst_17 : f32 to vector<1x8xf32>
    %24 = arith.cmpf olt, %22, %23 : vector<1x8xf32>
    %cst_18 = arith.constant -1.000000e+09 : f32
    %cst_19 = arith.constant 0.000000e+00 : f32
    %25 = vector.broadcast %cst_18 : f32 to vector<1x8xf32>
    %26 = vector.broadcast %cst_19 : f32 to vector<1x8xf32>
    %27 = arith.select %24, %25, %26 : vector<1x8xi1>, vector<1x8xf32>
    %28 = vector.shape_cast %27 : vector<1x8xf32> to vector<1x1x8xf32>
    %29 = vector.broadcast %28 : vector<1x1x8xf32> to vector<4x8x8xf32>
    %30 = arith.addf %20, %29 : vector<4x8x8xf32>
    %cst_20 = arith.constant dense<0xFF800000> : vector<4x8xf32>
    %31 = vector.multi_reduction <maximumf>, %30, %cst_20 [2] : vector<4x8x8xf32> to vector<4x8xf32>
    %32 = vector.shape_cast %31 : vector<4x8xf32> to vector<4x8x1xf32>
    %33 = vector.broadcast %32 : vector<4x8x1xf32> to vector<4x8x8xf32>
    %34 = arith.subf %30, %33 : vector<4x8x8xf32>
    %35 = math.exp %34 : vector<4x8x8xf32>
    %cst_21 = arith.constant dense<0.000000e+00> : vector<4x8xf32>
    %36 = vector.multi_reduction <add>, %35, %cst_21 [2] : vector<4x8x8xf32> to vector<4x8xf32>
    %37 = vector.shape_cast %36 : vector<4x8xf32> to vector<4x8x1xf32>
    %38 = tpu.reciprocal %37 {approx = true} : vector<4x8x1xf32> -> vector<4x8x1xf32>
    %39 = vector.broadcast %38 : vector<4x8x1xf32> to vector<4x8x8xf32>
    %40 = arith.mulf %35, %39 : vector<4x8x8xf32>
    %41 = arith.truncf %40 : vector<4x8x8xf32> to vector<4x8x8xbf16>
    "tpu.trace_start"() <{level = 10 : i32, message = "hqk,khd->qhd"}> : () -> ()
    %cst_22 = arith.constant dense<0.000000e+00> : vector<4x8x8xf32>
    %42 = tpu.matmul %19, %41, %cst_22 {dimension_numbers = #tpu.dot_dimension_numbers<[0], [2], [2], [1], [0, 1, 0, 2, 1, 1], [1], [0]>} : vector<8x4x8xbf16>, vector<4x8x8xbf16>, vector<4x8x8xf32> -> vector<4x8x8xf32>
    %43 = tpu.transpose %42, [2, 0, 1] : vector<4x8x8xf32> -> vector<8x4x8xf32>
    "tpu.trace_stop"() : () -> ()
    %44 = vector.shape_cast %43 : vector<8x4x8xf32> to vector<8x32xf32>
    %45 = arith.truncf %44 : vector<8x32xf32> to vector<8x32xbf16>
    %c0_23 = arith.constant 0 : index
    %c0_24 = arith.constant 0 : index
    %46 = vector.load %arg8[%c0_23, %c0_24] : memref<32x32xbf16, #tpu.memory_space<vmem>>, vector<32x32xbf16>
    %cst_25 = arith.constant dense<0.000000e+00> : vector<8x32xf32>
    %47 = tpu.matmul %45, %46, %cst_25 {dimension_numbers = #tpu.dot_dimension_numbers<[1], [0], [0], [1], [0, 0, 1, 1], [], []>} : vector<8x32xbf16>, vector<32x32xbf16>, vector<8x32xf32> -> vector<8x32xf32>
    %c0_26 = arith.constant 0 : index
    %c0_27 = arith.constant 0 : index
    %48 = vector.load %arg9[%c0_26, %c0_27] : memref<1x32xf32, #tpu.memory_space<vmem>>, vector<1x32xf32>
    %49 = vector.broadcast %48 : vector<1x32xf32> to vector<8x32xf32>
    %50 = arith.addf %47, %49 : vector<8x32xf32>
    %51 = arith.addf %50, %8 : vector<8x32xf32>
    %cst_28 = arith.constant dense<0.000000e+00> : vector<8xf32>
    %52 = vector.multi_reduction <add>, %51, %cst_28 [1] : vector<8x32xf32> to vector<8xf32>
    %53 = vector.shape_cast %52 : vector<8xf32> to vector<8x1xf32>
    %cst_29 = arith.constant 3.200000e+01 : f32
    %54 = vector.broadcast %cst_29 : f32 to vector<8x1xf32>
    %55 = arith.divf %53, %54 : vector<8x1xf32>
    %56 = vector.broadcast %55 : vector<8x1xf32> to vector<8x32xf32>
    %57 = arith.subf %51, %56 : vector<8x32xf32>
    %58 = arith.mulf %57, %57 : vector<8x32xf32>
    %cst_30 = arith.constant dense<0.000000e+00> : vector<8xf32>
    %59 = vector.multi_reduction <add>, %58, %cst_30 [1] : vector<8x32xf32> to vector<8xf32>
    %60 = vector.shape_cast %59 : vector<8xf32> to vector<8x1xf32>
    %cst_31 = arith.constant 3.200000e+01 : f32
    %61 = vector.broadcast %cst_31 : f32 to vector<8x1xf32>
    %62 = arith.divf %60, %61 : vector<8x1xf32>
    %cst_32 = arith.constant 9.99999997E-7 : f32
    %63 = vector.broadcast %cst_32 : f32 to vector<8x1xf32>
    %64 = arith.addf %62, %63 : vector<8x1xf32>
    %65 = math.rsqrt %64 : vector<8x1xf32>
    %66 = vector.broadcast %55 : vector<8x1xf32> to vector<8x32xf32>
    %67 = arith.subf %51, %66 : vector<8x32xf32>
    %68 = vector.broadcast %65 : vector<8x1xf32> to vector<8x32xf32>
    %69 = arith.mulf %67, %68 : vector<8x32xf32>
    %c0_33 = arith.constant 0 : index
    %c0_34 = arith.constant 0 : index
    %70 = vector.load %arg14[%c0_33, %c0_34] : memref<1x32xf32, #tpu.memory_space<vmem>>, vector<1x32xf32>
    %71 = vector.broadcast %70 : vector<1x32xf32> to vector<8x32xf32>
    %72 = arith.mulf %69, %71 : vector<8x32xf32>
    %c0_35 = arith.constant 0 : index
    %c0_36 = arith.constant 0 : index
    %73 = vector.load %arg15[%c0_35, %c0_36] : memref<1x32xf32, #tpu.memory_space<vmem>>, vector<1x32xf32>
    %74 = vector.broadcast %73 : vector<1x32xf32> to vector<8x32xf32>
    %75 = arith.addf %72, %74 : vector<8x32xf32>
    %76 = arith.truncf %75 : vector<8x32xf32> to vector<8x32xbf16>
    %c0_37 = arith.constant 0 : index
    %c0_38 = arith.constant 0 : index
    %77 = vector.load %arg10[%c0_37, %c0_38] : memref<32x64xbf16, #tpu.memory_space<vmem>>, vector<32x64xbf16>
    %cst_39 = arith.constant dense<0.000000e+00> : vector<8x64xf32>
    %78 = tpu.matmul %76, %77, %cst_39 {dimension_numbers = #tpu.dot_dimension_numbers<[1], [0], [0], [1], [0, 0, 1, 1], [], []>} : vector<8x32xbf16>, vector<32x64xbf16>, vector<8x64xf32> -> vector<8x64xf32>
    %c0_40 = arith.constant 0 : index
    %c0_41 = arith.constant 0 : index
    %79 = vector.load %arg11[%c0_40, %c0_41] : memref<1x64xf32, #tpu.memory_space<vmem>>, vector<1x64xf32>
    %80 = vector.broadcast %79 : vector<1x64xf32> to vector<8x64xf32>
    %81 = arith.addf %78, %80 : vector<8x64xf32>
    %82 = arith.mulf %81, %81 : vector<8x64xf32>
    %83 = arith.mulf %81, %82 : vector<8x64xf32>
    %cst_42 = arith.constant 4.471500e-02 : f32
    %84 = vector.broadcast %cst_42 : f32 to vector<8x64xf32>
    %85 = arith.mulf %84, %83 : vector<8x64xf32>
    %86 = arith.addf %81, %85 : vector<8x64xf32>
    %cst_43 = arith.constant 0.797884583 : f32
    %87 = vector.broadcast %cst_43 : f32 to vector<8x64xf32>
    %88 = arith.mulf %87, %86 : vector<8x64xf32>
    %89 = math.tanh %88 : vector<8x64xf32>
    %cst_44 = arith.constant 1.000000e+00 : f32
    %90 = vector.broadcast %cst_44 : f32 to vector<8x64xf32>
    %91 = arith.addf %90, %89 : vector<8x64xf32>
    %cst_45 = arith.constant 5.000000e-01 : f32
    %92 = vector.broadcast %cst_45 : f32 to vector<8x64xf32>
    %93 = arith.mulf %92, %91 : vector<8x64xf32>
    %94 = arith.mulf %81, %93 : vector<8x64xf32>
    %95 = arith.truncf %94 : vector<8x64xf32> to vector<8x64xbf16>
    %c0_46 = arith.constant 0 : index
    %c0_47 = arith.constant 0 : index
    %96 = vector.load %arg12[%c0_46, %c0_47] : memref<64x32xbf16, #tpu.memory_space<vmem>>, vector<64x32xbf16>
    %cst_48 = arith.constant dense<0.000000e+00> : vector<8x32xf32>
    %97 = tpu.matmul %95, %96, %cst_48 {dimension_numbers = #tpu.dot_dimension_numbers<[1], [0], [0], [1], [0, 0, 1, 1], [], []>} : vector<8x64xbf16>, vector<64x32xbf16>, vector<8x32xf32> -> vector<8x32xf32>
    %c0_49 = arith.constant 0 : index
    %c0_50 = arith.constant 0 : index
    %98 = vector.load %arg13[%c0_49, %c0_50] : memref<1x32xf32, #tpu.memory_space<vmem>>, vector<1x32xf32>
    %99 = vector.broadcast %98 : vector<1x32xf32> to vector<8x32xf32>
    %100 = arith.addf %97, %99 : vector<8x32xf32>
    %101 = arith.addf %100, %75 : vector<8x32xf32>
    %cst_51 = arith.constant dense<0.000000e+00> : vector<8xf32>
    %102 = vector.multi_reduction <add>, %101, %cst_51 [1] : vector<8x32xf32> to vector<8xf32>
    %103 = vector.shape_cast %102 : vector<8xf32> to vector<8x1xf32>
    %cst_52 = arith.constant 3.200000e+01 : f32
    %104 = vector.broadcast %cst_52 : f32 to vector<8x1xf32>
    %105 = arith.divf %103, %104 : vector<8x1xf32>
    %106 = vector.broadcast %105 : vector<8x1xf32> to vector<8x32xf32>
    %107 = arith.subf %101, %106 : vector<8x32xf32>
    %108 = arith.mulf %107, %107 : vector<8x32xf32>
    %cst_53 = arith.constant dense<0.000000e+00> : vector<8xf32>
    %109 = vector.multi_reduction <add>, %108, %cst_53 [1] : vector<8x32xf32> to vector<8xf32>
    %110 = vector.shape_cast %109 : vector<8xf32> to vector<8x1xf32>
    %cst_54 = arith.constant 3.200000e+01 : f32
    %111 = vector.broadcast %cst_54 : f32 to vector<8x1xf32>
    %112 = arith.divf %110, %111 : vector<8x1xf32>
    %cst_55 = arith.constant 9.99999997E-7 : f32
    %113 = vector.broadcast %cst_55 : f32 to vector<8x1xf32>
    %114 = arith.addf %112, %113 : vector<8x1xf32>
    %115 = math.rsqrt %114 : vector<8x1xf32>
    %116 = vector.broadcast %105 : vector<8x1xf32> to vector<8x32xf32>
    %117 = arith.subf %101, %116 : vector<8x32xf32>
    %118 = vector.broadcast %115 : vector<8x1xf32> to vector<8x32xf32>
    %119 = arith.mulf %117, %118 : vector<8x32xf32>
    %c0_56 = arith.constant 0 : index
    %c0_57 = arith.constant 0 : index
    %120 = vector.load %arg14[%c0_56, %c0_57] : memref<1x32xf32, #tpu.memory_space<vmem>>, vector<1x32xf32>
    %121 = vector.broadcast %120 : vector<1x32xf32> to vector<8x32xf32>
    %122 = arith.mulf %119, %121 : vector<8x32xf32>
    %c0_58 = arith.constant 0 : index
    %c0_59 = arith.constant 0 : index
    %123 = vector.load %arg15[%c0_58, %c0_59] : memref<1x32xf32, #tpu.memory_space<vmem>>, vector<1x32xf32>
    %124 = vector.broadcast %123 : vector<1x32xf32> to vector<8x32xf32>
    %125 = arith.addf %122, %124 : vector<8x32xf32>
    %126 = arith.truncf %125 : vector<8x32xf32> to vector<8x32xbf16>
    %c0_60 = arith.constant 0 : index
    %c0_61 = arith.constant 0 : index
    %c0_62 = arith.constant 0 : index
    %127 = vector.load %arg16[%c0_60, %c0_61, %c0_62] : memref<1x8x32xbf16, #tpu.memory_space<vmem>>, vector<1x8x32xbf16>
    %128 = vector.shape_cast %127 : vector<1x8x32xbf16> to vector<8x32xbf16>
    %129 = vector.shape_cast %126 : vector<8x32xbf16> to vector<1x8x32xbf16>
    tpu.vector_store %arg16[%c0_60, %c0_61, %c0_62], %129 {strides = array<i32>} : memref<1x8x32xbf16, #tpu.memory_space<vmem>>, vector<1x8x32xbf16>,
    return
  }
  func.func @transform_0(%arg0: i32, %arg1: i32) -> (i32, i32, i32) {
    %c0_i32 = arith.constant 0 : i32
    %c0_i32_0 = arith.constant 0 : i32
    %c0_i32_1 = arith.constant 0 : i32
    return %arg0, %c0_i32, %c0_i32_0 : i32, i32, i32
  }
  func.func @transform_1(%arg0: i32, %arg1: i32) -> (i32, i32, i32) {
    %c0_i32 = arith.constant 0 : i32
    %c0_i32_0 = arith.constant 0 : i32
    %c0_i32_1 = arith.constant 0 : i32
    return %arg0, %c0_i32, %c0_i32_0 : i32, i32, i32
  }
  func.func @transform_2(%arg0: i32, %arg1: i32) -> (i32, i32) {
    %c0_i32 = arith.constant 0 : i32
    %c0_i32_0 = arith.constant 0 : i32
    %c0_i32_1 = arith.constant 0 : i32
    return %c0_i32, %c0_i32_0 : i32, i32
  }
  func.func @transform_3(%arg0: i32, %arg1: i32) -> (i32, i32) {
    %c0_i32 = arith.constant 0 : i32
    %c0_i32_0 = arith.constant 0 : i32
    %c0_i32_1 = arith.constant 0 : i32
    return %c0_i32, %c0_i32_0 : i32, i32
  }
  func.func @transform_4(%arg0: i32, %arg1: i32) -> (i32, i32) {
    %c0_i32 = arith.constant 0 : i32
    %c0_i32_0 = arith.constant 0 : i32
    %c0_i32_1 = arith.constant 0 : i32
    return %c0_i32, %c0_i32_0 : i32, i32
  }
  func.func @transform_5(%arg0: i32, %arg1: i32) -> (i32, i32) {
    %c0_i32 = arith.constant 0 : i32
    %c0_i32_0 = arith.constant 0 : i32
    %c0_i32_1 = arith.constant 0 : i32
    return %c0_i32, %c0_i32_0 : i32, i32
  }
  func.func @transform_6(%arg0: i32, %arg1: i32) -> (i32, i32) {
    %c0_i32 = arith.constant 0 : i32
    %c0_i32_0 = arith.constant 0 : i32
    %c0_i32_1 = arith.constant 0 : i32
    return %c0_i32, %c0_i32_0 : i32, i32
  }
  func.func @transform_7(%arg0: i32, %arg1: i32) -> (i32, i32) {
    %c0_i32 = arith.constant 0 : i32
    %c0_i32_0 = arith.constant 0 : i32
    %c0_i32_1 = arith.constant 0 : i32
    return %c0_i32, %c0_i32_0 : i32, i32
  }
  func.func @transform_8(%arg0: i32, %arg1: i32) -> (i32, i32) {
    %c0_i32 = arith.constant 0 : i32
    %c0_i32_0 = arith.constant 0 : i32
    %c0_i32_1 = arith.constant 0 : i32
    return %c0_i32, %c0_i32_0 : i32, i32
  }
  func.func @transform_9(%arg0: i32, %arg1: i32) -> (i32, i32) {
    %c0_i32 = arith.constant 0 : i32
    %c0_i32_0 = arith.constant 0 : i32
    %c0_i32_1 = arith.constant 0 : i32
    return %c0_i32, %c0_i32_0 : i32, i32
  }
  func.func @transform_10(%arg0: i32, %arg1: i32) -> (i32, i32) {
    %c0_i32 = arith.constant 0 : i32
    %c0_i32_0 = arith.constant 0 : i32
    %c0_i32_1 = arith.constant 0 : i32
    return %c0_i32, %c0_i32_0 : i32, i32
  }
  func.func @transform_11(%arg0: i32, %arg1: i32) -> (i32, i32) {
    %c0_i32 = arith.constant 0 : i32
    %c0_i32_0 = arith.constant 0 : i32
    %c0_i32_1 = arith.constant 0 : i32
    return %c0_i32, %c0_i32_0 : i32, i32
  }
  func.func @transform_12(%arg0: i32, %arg1: i32) -> (i32, i32) {
    %c0_i32 = arith.constant 0 : i32
    %c0_i32_0 = arith.constant 0 : i32
    %c0_i32_1 = arith.constant 0 : i32
    return %c0_i32, %c0_i32_0 : i32, i32
  }
  func.func @transform_13(%arg0: i32, %arg1: i32) -> (i32, i32) {
    %c0_i32 = arith.constant 0 : i32
    %c0_i32_0 = arith.constant 0 : i32
    %c0_i32_1 = arith.constant 0 : i32
    return %c0_i32, %c0_i32_0 : i32, i32
  }
  func.func @transform_14(%arg0: i32, %arg1: i32) -> (i32, i32, i32) {
    %c0_i32 = arith.constant 0 : i32
    %c0_i32_0 = arith.constant 0 : i32
    return %arg0, %arg1, %c0_i32 : i32, i32, i32
  }
}

</mosaic_0001>

<llo_original>
// kernel: tpu_custom_call.1
$region0: #{tpu_custom_call.1}
  #allocation0 [shape = 'u32[]', space=smem, size = 0x4, offset = 0x4, fixed_abs, tag = 'smem constant byte address 0x4 - core index']
  #allocation1 [shape = 'u32[144,128]{1,0:T(1,128)}', space=vmem, size = 0x12000, scoped, tag = 'internal scratch']
  #allocation2 [shape = 'bf16[8,4,8]{2,1,0:T(4,128)(2,1)}', space=vmem, size = 0x2000, scoped, tag = 'scratch operand']
  #allocation3 [shape = 'bf16[8,4,8]{2,1,0:T(4,128)(2,1)}', space=vmem, size = 0x2000, scoped, tag = 'scratch operand']
  %s0 = inlined_call_operand.hbm [shape: bf16[2,8,32], index: 0, kind: input, shape index: {}]
  %s1 = inlined_call_operand.hbm [shape: f32[2,1,8], index: 1, kind: input, shape index: {}]
  %s2 = inlined_call_operand.hbm [shape: bf16[32,32], index: 2, kind: input, shape index: {}]
  %s3 = inlined_call_operand.hbm [shape: f32[1,32], index: 3, kind: input, shape index: {}]
  %s4 = inlined_call_operand.hbm [shape: bf16[32,64], index: 4, kind: input, shape index: {}]
  %s5 = inlined_call_operand.hbm [shape: f32[1,64], index: 5, kind: input, shape index: {}]
  %s6 = inlined_call_operand.hbm [shape: bf16[32,32], index: 6, kind: input, shape index: {}]
  %s7 = inlined_call_operand.hbm [shape: f32[1,32], index: 7, kind: input, shape index: {}]
  %s8 = inlined_call_operand.hbm [shape: bf16[32,64], index: 8, kind: input, shape index: {}]
  %s9 = inlined_call_operand.hbm [shape: f32[1,64], index: 9, kind: input, shape index: {}]
  %s10 = inlined_call_operand.hbm [shape: bf16[64,32], index: 10, kind: input, shape index: {}]
  %s11 = inlined_call_operand.hbm [shape: f32[1,32], index: 11, kind: input, shape index: {}]
  %s12 = inlined_call_operand.hbm [shape: f32[1,32], index: 12, kind: input, shape index: {}]
  %s13 = inlined_call_operand.hbm [shape: f32[1,32], index: 13, kind: input, shape index: {}]
  %s14 = inlined_call_operand.hbm [shape: bf16[2,8,32], index: 14, kind: output, shape index: {}]
  %s15 = sld [smem:[#allocation0]]
  $region149: #{tpu_custom_call.1} parent=0
    _
  %s17 = ssub.s32 1, %s15
  %s18 = scalar_select 0, %s17, %s15
  $region1: #{tpu_custom_call.1} parent=0
    #allocation4 [shape = 'u8[4096]{0}', space=vmem, size = 0x1000, scoped, tag = 'input window, operand 0']
    #allocation5 [shape = 's32[2]{0}', space=sflag, size = 0x8, scoped, tag = 'scoped memory for tpu_custom_call.1']
    #allocation6 [shape = 's32[2]{0}', space=sflag, size = 0x8, scoped, tag = 'scoped memory for tpu_custom_call.1']
    #allocation7 [shape = 'u8[1024]{0}', space=vmem, size = 0x400, scoped, tag = 'input window, operand 1']
    #allocation8 [shape = 's32[2]{0}', space=sflag, size = 0x8, scoped, tag = 'scoped memory for tpu_custom_call.1']
    #allocation9 [shape = 'u8[8192]{0}', space=vmem, size = 0x2000, scoped, tag = 'input window, operand 2, single buffered']
    #allocation10 [shape = 'u8[512]{0}', space=vmem, size = 0x400, scoped, tag = 'input window, operand 3, single buffered']
    #allocation11 [shape = 's32[1]{0}', space=sflag, size = 0x4, scoped, tag = 'scoped memory for tpu_custom_call.1']
    #allocation12 [shape = 'u8[8192]{0}', space=vmem, size = 0x2000, scoped, tag = 'input window, operand 4, single buffered']
    #allocation13 [shape = 'u8[512]{0}', space=vmem, size = 0x400, scoped, tag = 'input window, operand 5, single buffered']
    #allocation14 [shape = 's32[1]{0}', space=sflag, size = 0x4, scoped, tag = 'scoped memory for tpu_custom_call.1']
    #allocation15 [shape = 'u8[8192]{0}', space=vmem, size = 0x2000, scoped, tag = 'input window, operand 6, single buffered']
    #allocation16 [shape = 'u8[512]{0}', space=vmem, size = 0x400, scoped, tag = 'input window, operand 7, single buffered']
    #allocation17 [shape = 's32[1]{0}', space=sflag, size = 0x4, scoped, tag = 'scoped memory for tpu_custom_call.1']
    #allocation18 [shape = 'u8[8192]{0}', space=vmem, size = 0x2000, scoped, tag = 'input window, operand 8, single buffered']
    #allocation19 [shape = 'u8[512]{0}', space=vmem, size = 0x400, scoped, tag = 'input window, operand 9, single buffered']
    #allocation20 [shape = 's32[1]{0}', space=sflag, size = 0x4, scoped, tag = 'scoped memory for tpu_custom_call.1']
    #allocation21 [shape = 'u8[16384]{0}', space=vmem, size = 0x4000, scoped, tag = 'input window, operand 10, single buffered']
    #allocation22 [shape = 'u8[512]{0}', space=vmem, size = 0x400, scoped, tag = 'input window, operand 11, single buffered']
    #allocation23 [shape = 's32[1]{0}', space=sflag, size = 0x4, scoped, tag = 'scoped memory for tpu_custom_call.1']
    #allocation24 [shape = 'u8[512]{0}', space=vmem, size = 0x400, scoped, tag = 'input window, operand 12, single buffered']
    #allocation25 [shape = 'u8[512]{0}', space=vmem, size = 0x400, scoped, tag = 'input window, operand 13, single buffered']
    #allocation26 [shape = 's32[1]{0}', space=sflag, size = 0x4, scoped, tag = 'scoped memory for tpu_custom_call.1']
    #allocation27 [shape = 'u8[4096]{0}', space=vmem, size = 0x1000, scoped, tag = 'output window, operand 0']
    %19 = vsyncpa [#allocation5], 0
    %s20 = scalar_lea.sflag [#allocation5], 1
    %21 = vsyncpa %s20, 0
    %22 = vsyncpa [#allocation8], 0
    %s23 = scalar_lea.sflag [#allocation8], 1
    %24 = vsyncpa %s23, 0
    %25 = vsyncpa [#allocation11], 0
    %26 = vsyncpa [#allocation14], 0
    %27 = vsyncpa [#allocation17], 0
    %28 = vsyncpa [#allocation20], 0
    %29 = vsyncpa [#allocation23], 0
    %30 = vsyncpa [#allocation26], 0
    %31 = vsyncpa [#allocation6], 0
    %s32 = scalar_lea.sflag [#allocation6], 1
    %33 = vsyncpa %s32, 0
    loop: start=0, step=1, limit=4
    $region2: #{tpu_custom_call.1} parent=1 // loop_pre_header
      _
    $region3: #{tpu_custom_call.1} parent=1 // loop_header
      %s35 = sphi 0, %s39
      %p36 = scmp.ge.s32.totalorder %s35, 4
      %s42 = sphi 0, %s54
      %s43 = sphi 0, %s50
      %s44 = sphi 0, %s42
      %s45 = sphi 0, %s43
      %s46 = sphi 0, %s44
      %s47 = sphi 0, %s45
      %s57 = sphi 0, %s59
      %s60 = sphi 0, %s57
      %s61 = sphi 0, %s60
      %s77 = sphi 0, %s61
      %s83 = sphi 0, %s85
      %s86 = sphi 0, %s83
      %s87 = sphi 0, %s86
      %s103 = sphi 0, %s87
      %s107 = sphi 0, %s107
      %s109 = sphi 0, %s107
      %s110 = sphi 0, %s109
      %s124 = sphi 0, %s110
      %s128 = sphi 0, %s128
      %s130 = sphi 0, %s128
      %s131 = sphi 0, %s130
      %s145 = sphi 0, %s131
      %s149 = sphi 0, %s149
      %s151 = sphi 0, %s149
      %s152 = sphi 0, %s151
      %s166 = sphi 0, %s152
      %s170 = sphi 0, %s170
      %s172 = sphi 0, %s170
      %s173 = sphi 0, %s172
      %s187 = sphi 0, %s173
      %s191 = sphi 0, %s191
      %s193 = sphi 0, %s191
      %s194 = sphi 0, %s193
      %s208 = sphi 0, %s194
      %s212 = sphi 0, %s212
      %s214 = sphi 0, %s212
      %s215 = sphi 0, %s214
      %s229 = sphi 0, %s215
      %s233 = sphi 0, %s233
      %s235 = sphi 0, %s233
      %s236 = sphi 0, %s235
      %s250 = sphi 0, %s236
      %s254 = sphi 0, %s254
      %s256 = sphi 0, %s254
      %s257 = sphi 0, %s256
      %s271 = sphi 0, %s257
      %s275 = sphi 0, %s275
      %s277 = sphi 0, %s275
      %s278 = sphi 0, %s277
      %s292 = sphi 0, %s278
      %s296 = sphi 0, %s296
      %s298 = sphi 0, %s296
      %s299 = sphi 0, %s298
      %s313 = sphi 0, %s299
      %s317 = sphi 0, %s317
      %s319 = sphi 0, %s317
      %s320 = sphi 0, %s319
      %s334 = sphi 0, %s320
      %s338 = sphi 0, %s338
      %s340 = sphi 0, %s338
      %s341 = sphi 0, %s340
      %s355 = sphi 0, %s341
      %s363 = sphi 0, %s365
      %s366 = sphi 0, %s363
      %s367 = sphi 0, %s366
      %s383 = sphi 0, %s367
    $region4: #{tpu_custom_call.1} parent=1 // loop_header_branch
      %38 = sbr.rel (%p36) target = $region8
    $region5: #{tpu_custom_call.1} parent=1 // loop_body
      %s40 = ssub.s32 %s35, 1
      %s41 = ssub.s32 %s35, 2
      %s48 = sadd.s32 1, %s43
      %p49 = scmp.ge.s32.totalorder %s48, 1
      %s50 = scalar_select %p49, 0, %s48
      %s51 = sadd.s32 1, %s42
      %s52 = scalar_select %p49, %s51, %s42
      %p53 = scmp.ge.s32.totalorder %s52, 2
      %s54 = scalar_select %p53, 0, %s52
      %s55 = ssub.s32 %s42, %s54
      %p56 = scmp.eq.s32.totalorder %s55, 0
      %s58 = sadd.s32 %s57, 1
      %s59 = scalar_select %p56, %s57, %s58
      %p62 = pneg %p56
      %p63 = scmp.eq.s32.totalorder %s35, 1
      %p64 = por %p62, %p63
      %p65 = scmp.ne.s32.totalorder %s57, %s60
      %p66 = scmp.eq.s32.totalorder %s35, 0
      %p67 = por %p65, %p66
      %p68 = scmp.ne.s32.totalorder %s57, %s60
      %p69 = scmp.eq.s32.totalorder %s40, 1
      %p70 = por %p68, %p69
      %p71 = scmp.ne.s32.totalorder %s60, %s61
      %p72 = scmp.eq.s32.totalorder %s40, 0
      %p73 = por %p71, %p72
      %p74 = scmp.ne.s32.totalorder %s60, %s61
      %p75 = scmp.eq.s32.totalorder %s41, 1
      %p76 = por %p74, %p75
      %p78 = scmp.ne.s32.totalorder %s61, %s77
      %p79 = scmp.eq.s32.totalorder %s41, 0
      %p80 = por %p78, %p79
      %s81 = ssub.s32 %s42, %s54
      %p82 = scmp.eq.s32.totalorder %s81, 0
      %s84 = sadd.s32 %s83, 1
      %s85 = scalar_select %p82, %s83, %s84
      %p88 = pneg %p82
      %p89 = scmp.eq.s32.totalorder %s35, 1
      %p90 = por %p88, %p89
      %p91 = scmp.ne.s32.totalorder %s83, %s86
      %p92 = scmp.eq.s32.totalorder %s35, 0
      %p93 = por %p91, %p92
      %p94 = scmp.ne.s32.totalorder %s83, %s86
      %p95 = scmp.eq.s32.totalorder %s40, 1
      %p96 = por %p94, %p95
      %p97 = scmp.ne.s32.totalorder %s86, %s87
      %p98 = scmp.eq.s32.totalorder %s40, 0
      %p99 = por %p97, %p98
      %p100 = scmp.ne.s32.totalorder %s86, %s87
      %p101 = scmp.eq.s32.totalorder %s41, 1
      %p102 = por %p100, %p101
      %p104 = scmp.ne.s32.totalorder %s87, %s103
      %p105 = scmp.eq.s32.totalorder %s41, 0
      %p106 = por %p104, %p105
      %s108 = sadd.s32 %s107, 1
      %p111 = scmp.eq.s32.totalorder %s35, 1
      %p112 = scmp.ne.s32.totalorder %s107, %s109
      %p113 = scmp.eq.s32.totalorder %s35, 0
      %p114 = por %p112, %p113
      %p115 = scmp.ne.s32.totalorder %s107, %s109
      %p116 = scmp.eq.s32.totalorder %s40, 1
      %p117 = por %p115, %p116
      %p118 = scmp.ne.s32.totalorder %s109, %s110
      %p119 = scmp.eq.s32.totalorder %s40, 0
      %p120 = por %p118, %p119
      %p121 = scmp.ne.s32.totalorder %s109, %s110
      %p122 = scmp.eq.s32.totalorder %s41, 1
      %p123 = por %p121, %p122
      %p125 = scmp.ne.s32.totalorder %s110, %s124
      %p126 = scmp.eq.s32.totalorder %s41, 0
      %p127 = por %p125, %p126
      %s129 = sadd.s32 %s128, 1
      %p132 = scmp.eq.s32.totalorder %s35, 1
      %p133 = scmp.ne.s32.totalorder %s128, %s130
      %p134 = scmp.eq.s32.totalorder %s35, 0
      %p135 = por %p133, %p134
      %p136 = scmp.ne.s32.totalorder %s128, %s130
      %p137 = scmp.eq.s32.totalorder %s40, 1
      %p138 = por %p136, %p137
      %p139 = scmp.ne.s32.totalorder %s130, %s131
      %p140 = scmp.eq.s32.totalorder %s40, 0
      %p141 = por %p139, %p140
      %p142 = scmp.ne.s32.totalorder %s130, %s131
      %p143 = scmp.eq.s32.totalorder %s41, 1
      %p144 = por %p142, %p143
      %p146 = scmp.ne.s32.totalorder %s131, %s145
      %p147 = scmp.eq.s32.totalorder %s41, 0
      %p148 = por %p146, %p147
      %s150 = sadd.s32 %s149, 1
      %p153 = scmp.eq.s32.totalorder %s35, 1
      %p154 = scmp.ne.s32.totalorder %s149, %s151
      %p155 = scmp.eq.s32.totalorder %s35, 0
      %p156 = por %p154, %p155
      %p157 = scmp.ne.s32.totalorder %s149, %s151
      %p158 = scmp.eq.s32.totalorder %s40, 1
      %p159 = por %p157, %p158
      %p160 = scmp.ne.s32.totalorder %s151, %s152
      %p161 = scmp.eq.s32.totalorder %s40, 0
      %p162 = por %p160, %p161
      %p163 = scmp.ne.s32.totalorder %s151, %s152
      %p164 = scmp.eq.s32.totalorder %s41, 1
      %p165 = por %p163, %p164
      %p167 = scmp.ne.s32.totalorder %s152, %s166
      %p168 = scmp.eq.s32.totalorder %s41, 0
      %p169 = por %p167, %p168
      %s171 = sadd.s32 %s170, 1
      %p174 = scmp.eq.s32.totalorder %s35, 1
      %p175 = scmp.ne.s32.totalorder %s170, %s172
      %p176 = scmp.eq.s32.totalorder %s35, 0
      %p177 = por %p175, %p176
      %p178 = scmp.ne.s32.totalorder %s170, %s172
      %p179 = scmp.eq.s32.totalorder %s40, 1
      %p180 = por %p178, %p179
      %p181 = scmp.ne.s32.totalorder %s172, %s173
      %p182 = scmp.eq.s32.totalorder %s40, 0
      %p183 = por %p181, %p182
      %p184 = scmp.ne.s32.totalorder %s172, %s173
      %p185 = scmp.eq.s32.totalorder %s41, 1
      %p186 = por %p184, %p185
      %p188 = scmp.ne.s32.totalorder %s173, %s187
      %p189 = scmp.eq.s32.totalorder %s41, 0
      %p190 = por %p188, %p189
      %s192 = sadd.s32 %s191, 1
      %p195 = scmp.eq.s32.totalorder %s35, 1
      %p196 = scmp.ne.s32.totalorder %s191, %s193
      %p197 = scmp.eq.s32.totalorder %s35, 0
      %p198 = por %p196, %p197
      %p199 = scmp.ne.s32.totalorder %s191, %s193
      %p200 = scmp.eq.s32.totalorder %s40, 1
      %p201 = por %p199, %p200
      %p202 = scmp.ne.s32.totalorder %s193, %s194
      %p203 = scmp.eq.s32.totalorder %s40, 0
      %p204 = por %p202, %p203
      %p205 = scmp.ne.s32.totalorder %s193, %s194
      %p206 = scmp.eq.s32.totalorder %s41, 1
      %p207 = por %p205, %p206
      %p209 = scmp.ne.s32.totalorder %s194, %s208
      %p210 = scmp.eq.s32.totalorder %s41, 0
      %p211 = por %p209, %p210
      %s213 = sadd.s32 %s212, 1
      %p216 = scmp.eq.s32.totalorder %s35, 1
      %p217 = scmp.ne.s32.totalorder %s212, %s214
      %p218 = scmp.eq.s32.totalorder %s35, 0
      %p219 = por %p217, %p218
      %p220 = scmp.ne.s32.totalorder %s212, %s214
      %p221 = scmp.eq.s32.totalorder %s40, 1
      %p222 = por %p220, %p221
      %p223 = scmp.ne.s32.totalorder %s214, %s215
      %p224 = scmp.eq.s32.totalorder %s40, 0
      %p225 = por %p223, %p224
      %p226 = scmp.ne.s32.totalorder %s214, %s215
      %p227 = scmp.eq.s32.totalorder %s41, 1
      %p228 = por %p226, %p227
      %p230 = scmp.ne.s32.totalorder %s215, %s229
      %p231 = scmp.eq.s32.totalorder %s41, 0
      %p232 = por %p230, %p231
      %s234 = sadd.s32 %s233, 1
      %p237 = scmp.eq.s32.totalorder %s35, 1
      %p238 = scmp.ne.s32.totalorder %s233, %s235
      %p239 = scmp.eq.s32.totalorder %s35, 0
      %p240 = por %p238, %p239
      %p241 = scmp.ne.s32.totalorder %s233, %s235
      %p242 = scmp.eq.s32.totalorder %s40, 1
      %p243 = por %p241, %p242
      %p244 = scmp.ne.s32.totalorder %s235, %s236
      %p245 = scmp.eq.s32.totalorder %s40, 0
      %p246 = por %p244, %p245
      %p247 = scmp.ne.s32.totalorder %s235, %s236
      %p248 = scmp.eq.s32.totalorder %s41, 1
      %p249 = por %p247, %p248
      %p251 = scmp.ne.s32.totalorder %s236, %s250
      %p252 = scmp.eq.s32.totalorder %s41, 0
      %p253 = por %p251, %p252
      %s255 = sadd.s32 %s254, 1
      %p258 = scmp.eq.s32.totalorder %s35, 1
      %p259 = scmp.ne.s32.totalorder %s254, %s256
      %p260 = scmp.eq.s32.totalorder %s35, 0
      %p261 = por %p259, %p260
      %p262 = scmp.ne.s32.totalorder %s254, %s256
      %p263 = scmp.eq.s32.totalorder %s40, 1
      %p264 = por %p262, %p263
      %p265 = scmp.ne.s32.totalorder %s256, %s257
      %p266 = scmp.eq.s32.totalorder %s40, 0
      %p267 = por %p265, %p266
      %p268 = scmp.ne.s32.totalorder %s256, %s257
      %p269 = scmp.eq.s32.totalorder %s41, 1
      %p270 = por %p268, %p269
      %p272 = scmp.ne.s32.totalorder %s257, %s271
      %p273 = scmp.eq.s32.totalorder %s41, 0
      %p274 = por %p272, %p273
      %s276 = sadd.s32 %s275, 1
      %p279 = scmp.eq.s32.totalorder %s35, 1
      %p280 = scmp.ne.s32.totalorder %s275, %s277
      %p281 = scmp.eq.s32.totalorder %s35, 0
      %p282 = por %p280, %p281
      %p283 = scmp.ne.s32.totalorder %s275, %s277
      %p284 = scmp.eq.s32.totalorder %s40, 1
      %p285 = por %p283, %p284
      %p286 = scmp.ne.s32.totalorder %s277, %s278
      %p287 = scmp.eq.s32.totalorder %s40, 0
      %p288 = por %p286, %p287
      %p289 = scmp.ne.s32.totalorder %s277, %s278
      %p290 = scmp.eq.s32.totalorder %s41, 1
      %p291 = por %p289, %p290
      %p293 = scmp.ne.s32.totalorder %s278, %s292
      %p294 = scmp.eq.s32.totalorder %s41, 0
      %p295 = por %p293, %p294
      %s297 = sadd.s32 %s296, 1
      %p300 = scmp.eq.s32.totalorder %s35, 1
      %p301 = scmp.ne.s32.totalorder %s296, %s298
      %p302 = scmp.eq.s32.totalorder %s35, 0
      %p303 = por %p301, %p302
      %p304 = scmp.ne.s32.totalorder %s296, %s298
      %p305 = scmp.eq.s32.totalorder %s40, 1
      %p306 = por %p304, %p305
      %p307 = scmp.ne.s32.totalorder %s298, %s299
      %p308 = scmp.eq.s32.totalorder %s40, 0
      %p309 = por %p307, %p308
      %p310 = scmp.ne.s32.totalorder %s298, %s299
      %p311 = scmp.eq.s32.totalorder %s41, 1
      %p312 = por %p310, %p311
      %p314 = scmp.ne.s32.totalorder %s299, %s313
      %p315 = scmp.eq.s32.totalorder %s41, 0
      %p316 = por %p314, %p315
      %s318 = sadd.s32 %s317, 1
      %p321 = scmp.eq.s32.totalorder %s35, 1
      %p322 = scmp.ne.s32.totalorder %s317, %s319
      %p323 = scmp.eq.s32.totalorder %s35, 0
      %p324 = por %p322, %p323
      %p325 = scmp.ne.s32.totalorder %s317, %s319
      %p326 = scmp.eq.s32.totalorder %s40, 1
      %p327 = por %p325, %p326
      %p328 = scmp.ne.s32.totalorder %s319, %s320
      %p329 = scmp.eq.s32.totalorder %s40, 0
      %p330 = por %p328, %p329
      %p331 = scmp.ne.s32.totalorder %s319, %s320
      %p332 = scmp.eq.s32.totalorder %s41, 1
      %p333 = por %p331, %p332
      %p335 = scmp.ne.s32.totalorder %s320, %s334
      %p336 = scmp.eq.s32.totalorder %s41, 0
      %p337 = por %p335, %p336
      %s339 = sadd.s32 %s338, 1
      %p342 = scmp.eq.s32.totalorder %s35, 1
      %p343 = scmp.ne.s32.totalorder %s338, %s340
      %p344 = scmp.eq.s32.totalorder %s35, 0
      %p345 = por %p343, %p344
      %p346 = scmp.ne.s32.totalorder %s338, %s340
      %p347 = scmp.eq.s32.totalorder %s40, 1
      %p348 = por %p346, %p347
      %p349 = scmp.ne.s32.totalorder %s340, %s341
      %p350 = scmp.eq.s32.totalorder %s40, 0
      %p351 = por %p349, %p350
      %p352 = scmp.ne.s32.totalorder %s340, %s341
      %p353 = scmp.eq.s32.totalorder %s41, 1
      %p354 = por %p352, %p353
      %p356 = scmp.ne.s32.totalorder %s341, %s355
      %p357 = scmp.eq.s32.totalorder %s41, 0
      %p358 = por %p356, %p357
      %s359 = ssub.s32 %s42, %s54
      %s360 = ssub.s32 %s43, %s50
      %s361 = sor.u32 %s359, %s360
      %p362 = scmp.eq.s32.totalorder %s361, 0
      %s364 = sadd.s32 %s363, 1
      %s365 = scalar_select %p362, %s363, %s364
      %p368 = pneg %p362
      %p369 = scmp.eq.s32.totalorder %s35, 1
      %p370 = por %p368, %p369
      %p371 = scmp.ne.s32.totalorder %s363, %s366
      %p372 = scmp.eq.s32.totalorder %s35, 0
      %p373 = por %p371, %p372
      %p374 = scmp.ne.s32.totalorder %s363, %s366
      %p375 = scmp.eq.s32.totalorder %s40, 1
      %p376 = por %p374, %p375
      %p377 = scmp.ne.s32.totalorder %s366, %s367
      %p378 = scmp.eq.s32.totalorder %s40, 0
      %p379 = por %p377, %p378
      %p380 = scmp.ne.s32.totalorder %s366, %s367
      %p381 = scmp.eq.s32.totalorder %s41, 1
      %p382 = por %p380, %p381
      %p384 = scmp.ne.s32.totalorder %s367, %s383
      %p385 = scmp.eq.s32.totalorder %s41, 0
      %p386 = por %p384, %p385
      %p387 = scmp.le.s32.totalorder 1, %s35
      %p388 = scmp.lt.s32.totalorder %s35, 3
      %p389 = pnand %p387, %p388
      %p390 = pneg %p389
      // Predicated region
      $region9: #{tpu_custom_call.1} parent=5 // pred_check
        _
      $region10: #{tpu_custom_call.1} parent=5 // pred_check_branch
        %392 = sbr.rel (%p389) target = $region12
      $region11: #{tpu_custom_call.1} parent=5 // pred_region
        %s393 = ssub.s32 %s35, 1
        // Predicated region
        $region13: #{tpu_custom_call.1} parent=11 // pred_check
          %p394 = pneg %p120
        $region14: #{tpu_custom_call.1} parent=11 // pred_check_branch
          %396 = sbr.rel (%p394) target = $region16
        $region15: #{tpu_custom_call.1} parent=11 // pred_region
          %s398 = ssub.s32 256, 256
          %399 = vsyncadd [#allocation8], %s398
          %s400 = sshll.u32 [#allocation9], 4
          %s401 = int_to_ptr.vmem [resolvable:$true] %s400
          %406 = dma.hbm_to_vmem [thread:$0]  %s2, 256, %s401, [#allocation8], 64, 64, 4
        $region16: #{tpu_custom_call.1} parent=11 // pred_fallthru
          _
        // Predicated region
        $region17: #{tpu_custom_call.1} parent=11 // pred_check
          %p407 = pneg %p141
        $region18: #{tpu_custom_call.1} parent=11 // pred_check_branch
          %409 = sbr.rel (%p407) target = $region20
        $region19: #{tpu_custom_call.1} parent=11 // pred_region
          %s411 = ssub.s32 16, 16
          %412 = vsyncadd [#allocation11], %s411
          %s414 = sshll.u32 [#allocation10], 4
          %s415 = int_to_ptr.vmem [resolvable:$true] %s414
          %417 = dma.hbm_to_vmem [thread:$0]  %s3, 16, %s415, [#allocation11]
        $region20: #{tpu_custom_call.1} parent=11 // pred_fallthru
          _
        // Predicated region
        $region21: #{tpu_custom_call.1} parent=11 // pred_check
          %p418 = pneg %p162
        $region22: #{tpu_custom_call.1} parent=11 // pred_check_branch
          %420 = sbr.rel (%p418) target = $region24
        $region23: #{tpu_custom_call.1} parent=11 // pred_region
          %s422 = ssub.s32 256, 256
          %423 = vsyncadd [#allocation11], %s422
          %s424 = sshll.u32 [#allocation12], 4
          %s425 = int_to_ptr.vmem [resolvable:$true] %s424
          %430 = dma.hbm_to_vmem [thread:$0]  %s4, 256, %s425, [#allocation11], 64, 64, 4
        $region24: #{tpu_custom_call.1} parent=11 // pred_fallthru
          _
        // Predicated region
        $region25: #{tpu_custom_call.1} parent=11 // pred_check
          %p431 = pneg %p183
        $region26: #{tpu_custom_call.1} parent=11 // pred_check_branch
          %433 = sbr.rel (%p431) target = $region28
        $region27: #{tpu_custom_call.1} parent=11 // pred_region
          %s435 = ssub.s32 16, 16
          %436 = vsyncadd [#allocation14], %s435
          %s438 = sshll.u32 [#allocation13], 4
          %s439 = int_to_ptr.vmem [resolvable:$true] %s438
          %441 = dma.hbm_to_vmem [thread:$0]  %s5, 16, %s439, [#allocation14]
        $region28: #{tpu_custom_call.1} parent=11 // pred_fallthru
          _
        // Predicated region
        $region29: #{tpu_custom_call.1} parent=11 // pred_check
          %p442 = pneg %p204
        $region30: #{tpu_custom_call.1} parent=11 // pred_check_branch
          %444 = sbr.rel (%p442) target = $region32
        $region31: #{tpu_custom_call.1} parent=11 // pred_region
          %s446 = ssub.s32 256, 256
          %447 = vsyncadd [#allocation14], %s446
          %s448 = sshll.u32 [#allocation15], 4
          %s449 = int_to_ptr.vmem [resolvable:$true] %s448
          %454 = dma.hbm_to_vmem [thread:$0]  %s6, 256, %s449, [#allocation14], 64, 64, 4
        $region32: #{tpu_custom_call.1} parent=11 // pred_fallthru
          _
        // Predicated region
        $region33: #{tpu_custom_call.1} parent=11 // pred_check
          %p455 = pneg %p225
        $region34: #{tpu_custom_call.1} parent=11 // pred_check_branch
          %457 = sbr.rel (%p455) target = $region36
        $region35: #{tpu_custom_call.1} parent=11 // pred_region
          %s459 = ssub.s32 16, 16
          %460 = vsyncadd [#allocation17], %s459
          %s462 = sshll.u32 [#allocation16], 4
          %s463 = int_to_ptr.vmem [resolvable:$true] %s462
          %465 = dma.hbm_to_vmem [thread:$0]  %s7, 16, %s463, [#allocation17]
        $region36: #{tpu_custom_call.1} parent=11 // pred_fallthru
          _
        // Predicated region
        $region37: #{tpu_custom_call.1} parent=11 // pred_check
          %p466 = pneg %p246
        $region38: #{tpu_custom_call.1} parent=11 // pred_check_branch
          %468 = sbr.rel (%p466) target = $region40
        $region39: #{tpu_custom_call.1} parent=11 // pred_region
          %s470 = ssub.s32 256, 256
          %471 = vsyncadd [#allocation17], %s470
          %s472 = sshll.u32 [#allocation18], 4
          %s473 = int_to_ptr.vmem [resolvable:$true] %s472
          %478 = dma.hbm_to_vmem [thread:$0]  %s8, 256, %s473, [#allocation17], 64, 64, 4
        $region40: #{tpu_custom_call.1} parent=11 // pred_fallthru
          _
        // Predicated region
        $region41: #{tpu_custom_call.1} parent=11 // pred_check
          %p479 = pneg %p267
        $region42: #{tpu_custom_call.1} parent=11 // pred_check_branch
          %481 = sbr.rel (%p479) target = $region44
        $region43: #{tpu_custom_call.1} parent=11 // pred_region
          %s483 = ssub.s32 16, 16
          %484 = vsyncadd [#allocation20], %s483
          %s486 = sshll.u32 [#allocation19], 4
          %s487 = int_to_ptr.vmem [resolvable:$true] %s486
          %489 = dma.hbm_to_vmem [thread:$0]  %s9, 16, %s487, [#allocation20]
        $region44: #{tpu_custom_call.1} parent=11 // pred_fallthru
          _
        // Predicated region
        $region45: #{tpu_custom_call.1} parent=11 // pred_check
          %p490 = pneg %p288
        $region46: #{tpu_custom_call.1} parent=11 // pred_check_branch
          %492 = sbr.rel (%p490) target = $region48
        $region47: #{tpu_custom_call.1} parent=11 // pred_region
          %s494 = ssub.s32 512, 512
          %495 = vsyncadd [#allocation20], %s494
          %s496 = sshll.u32 [#allocation21], 4
          %s497 = int_to_ptr.vmem [resolvable:$true] %s496
          %502 = dma.hbm_to_vmem [thread:$0]  %s10, 512, %s497, [#allocation20], 64, 64, 4
        $region48: #{tpu_custom_call.1} parent=11 // pred_fallthru
          _
        // Predicated region
        $region49: #{tpu_custom_call.1} parent=11 // pred_check
          %p503 = pneg %p309
        $region50: #{tpu_custom_call.1} parent=11 // pred_check_branch
          %505 = sbr.rel (%p503) target = $region52
        $region51: #{tpu_custom_call.1} parent=11 // pred_region
          %s507 = ssub.s32 16, 16
          %508 = vsyncadd [#allocation23], %s507
          %s510 = sshll.u32 [#allocation22], 4
          %s511 = int_to_ptr.vmem [resolvable:$true] %s510
          %513 = dma.hbm_to_vmem [thread:$0]  %s11, 16, %s511, [#allocation23]
        $region52: #{tpu_custom_call.1} parent=11 // pred_fallthru
          _
        // Predicated region
        $region53: #{tpu_custom_call.1} parent=11 // pred_check
          %p514 = pneg %p330
        $region54: #{tpu_custom_call.1} parent=11 // pred_check_branch
          %516 = sbr.rel (%p514) target = $region56
        $region55: #{tpu_custom_call.1} parent=11 // pred_region
          %s518 = ssub.s32 16, 16
          %519 = vsyncadd [#allocation23], %s518
          %s521 = sshll.u32 [#allocation24], 4
          %s522 = int_to_ptr.vmem [resolvable:$true] %s521
          %524 = dma.hbm_to_vmem [thread:$0]  %s12, 16, %s522, [#allocation23]
        $region56: #{tpu_custom_call.1} parent=11 // pred_fallthru
          _
        // Predicated region
        $region57: #{tpu_custom_call.1} parent=11 // pred_check
          %p525 = pneg %p351
        $region58: #{tpu_custom_call.1} parent=11 // pred_check_branch
          %527 = sbr.rel (%p525) target = $region60
        $region59: #{tpu_custom_call.1} parent=11 // pred_region
          %s529 = ssub.s32 16, 16
          %530 = vsyncadd [#allocation26], %s529
          %s532 = sshll.u32 [#allocation25], 4
          %s533 = int_to_ptr.vmem [resolvable:$true] %s532
          %535 = dma.hbm_to_vmem [thread:$0]  %s13, 16, %s533, [#allocation26]
        $region60: #{tpu_custom_call.1} parent=11 // pred_fallthru
          _
      $region12: #{tpu_custom_call.1} parent=5 // pred_fallthru
        _
      %p536 = scmp.lt.s32.totalorder %s35, 2
      // Predicated region
      $region61: #{tpu_custom_call.1} parent=5 // pred_check
        %p537 = pneg %p536
      $region62: #{tpu_custom_call.1} parent=5 // pred_check_branch
        %539 = sbr.rel (%p537) target = $region64
      $region63: #{tpu_custom_call.1} parent=5 // pred_region
        // Predicated region
        $region65: #{tpu_custom_call.1} parent=63 // pred_check
          %p540 = pneg %p67
        $region66: #{tpu_custom_call.1} parent=63 // pred_check_branch
          %542 = sbr.rel (%p540) target = $region68
        $region67: #{tpu_custom_call.1} parent=63 // pred_region
          %s543 = sand.u32 %s57, 1
          %s544 = scalar_lea.sflag [#allocation5], %s543
          %s545 = sand.u32 %s57, 1
          %s546 = smul.addr %s545, 4
          %s547 = scalar_lea.vmem [#allocation4], %s546
          %s549 = ssub.s32 64, 64
          %550 = vsyncadd %s544, %s549
          %s551 = smul.addr %s42, 64
          %s552 = scalar_lea.hbm %s0, %s551
          %s554 = sshll.u32 %s547, 4
          %s555 = int_to_ptr.vmem [resolvable:$true] %s554
          %557 = dma.hbm_to_vmem [thread:$0]  %s552, 64, %s555, %s544
        $region68: #{tpu_custom_call.1} parent=63 // pred_fallthru
          _
        // Predicated region
        $region69: #{tpu_custom_call.1} parent=63 // pred_check
          %p558 = pneg %p93
        $region70: #{tpu_custom_call.1} parent=63 // pred_check_branch
          %560 = sbr.rel (%p558) target = $region72
        $region71: #{tpu_custom_call.1} parent=63 // pred_region
          %s561 = sand.u32 %s35, 1
          %s562 = scalar_lea.sflag [#allocation8], %s561
          %s563 = sand.u32 %s83, 1
          %s564 = scalar_lea.vmem [#allocation7], %s563
          %s566 = ssub.s32 16, 16
          %567 = vsyncadd %s562, %s566
          %s568 = smul.addr %s42, 16
          %s569 = scalar_lea.hbm %s1, %s568
          %s571 = sshll.u32 %s564, 4
          %s572 = int_to_ptr.vmem [resolvable:$true] %s571
          %574 = dma.hbm_to_vmem [thread:$0]  %s569, 16, %s572, %s562
        $region72: #{tpu_custom_call.1} parent=63 // pred_fallthru
          _
      $region64: #{tpu_custom_call.1} parent=5 // pred_fallthru
        _
      %p575 = scmp.le.s32.totalorder 1, %s35
      %p576 = scmp.lt.s32.totalorder %s35, 3
      %p577 = pnand %p575, %p576
      %p578 = pneg %p577
      // Predicated region
      $region73: #{tpu_custom_call.1} parent=5 // pred_check
        _
      $region74: #{tpu_custom_call.1} parent=5 // pred_check_branch
        %580 = sbr.rel (%p577) target = $region76
      $region75: #{tpu_custom_call.1} parent=5 // pred_region
        %s581 = ssub.s32 %s35, 1
        %s582 = sand.u32 %s60, 1
        %s583 = scalar_lea.sflag [#allocation5], %s582
        %s584 = sand.u32 %s60, 1
        %s585 = smul.addr %s584, 4
        %s586 = scalar_lea.vmem [#allocation4], %s585
        // Predicated region
        $region77: #{tpu_custom_call.1} parent=75 // pred_check
          %p587 = pneg %p73
        $region78: #{tpu_custom_call.1} parent=75 // pred_check_branch
          %589 = sbr.rel (%p587) target = $region80
        $region79: #{tpu_custom_call.1} parent=75 // pred_region
          %590 = dma.done %s583, 64
        $region80: #{tpu_custom_call.1} parent=75 // pred_fallthru
          _
        %s591 = sand.u32 %s40, 1
        %s592 = scalar_lea.sflag [#allocation8], %s591
        %s593 = sand.u32 %s86, 1
        %s594 = scalar_lea.vmem [#allocation7], %s593
        // Predicated region
        $region81: #{tpu_custom_call.1} parent=75 // pred_check
          %p595 = pneg %p99
        $region82: #{tpu_custom_call.1} parent=75 // pred_check_branch
          %597 = sbr.rel (%p595) target = $region84
        $region83: #{tpu_custom_call.1} parent=75 // pred_region
          %598 = dma.done %s592, 16
        $region84: #{tpu_custom_call.1} parent=75 // pred_fallthru
          _
        // Predicated region
        $region85: #{tpu_custom_call.1} parent=75 // pred_check
          %p599 = pneg %p120
        $region86: #{tpu_custom_call.1} parent=75 // pred_check_branch
          %601 = sbr.rel (%p599) target = $region88
        $region87: #{tpu_custom_call.1} parent=75 // pred_region
          %602 = dma.done [#allocation8], 256
        $region88: #{tpu_custom_call.1} parent=75 // pred_fallthru
          _
        // Predicated region
        $region89: #{tpu_custom_call.1} parent=75 // pred_check
          %p603 = pneg %p141
        $region90: #{tpu_custom_call.1} parent=75 // pred_check_branch
          %605 = sbr.rel (%p603) target = $region92
        $region91: #{tpu_custom_call.1} parent=75 // pred_region
          %606 = dma.done [#allocation11], 16
        $region92: #{tpu_custom_call.1} parent=75 // pred_fallthru
          _
        // Predicated region
        $region93: #{tpu_custom_call.1} parent=75 // pred_check
          %p607 = pneg %p162
        $region94: #{tpu_custom_call.1} parent=75 // pred_check_branch
          %609 = sbr.rel (%p607) target = $region96
        $region95: #{tpu_custom_call.1} parent=75 // pred_region
          %610 = dma.done [#allocation11], 256
        $region96: #{tpu_custom_call.1} parent=75 // pred_fallthru
          _
        // Predicated region
        $region97: #{tpu_custom_call.1} parent=75 // pred_check
          %p611 = pneg %p183
        $region98: #{tpu_custom_call.1} parent=75 // pred_check_branch
          %613 = sbr.rel (%p611) target = $region100
        $region99: #{tpu_custom_call.1} parent=75 // pred_region
          %614 = dma.done [#allocation14], 16
        $region100: #{tpu_custom_call.1} parent=75 // pred_fallthru
          _
        // Predicated region
        $region101: #{tpu_custom_call.1} parent=75 // pred_check
          %p615 = pneg %p204
        $region102: #{tpu_custom_call.1} parent=75 // pred_check_branch
          %617 = sbr.rel (%p615) target = $region104
        $region103: #{tpu_custom_call.1} parent=75 // pred_region
          %618 = dma.done [#allocation14], 256
        $region104: #{tpu_custom_call.1} parent=75 // pred_fallthru
          _
        // Predicated region
        $region105: #{tpu_custom_call.1} parent=75 // pred_check
          %p619 = pneg %p225
        $region106: #{tpu_custom_call.1} parent=75 // pred_check_branch
          %621 = sbr.rel (%p619) target = $region108
        $region107: #{tpu_custom_call.1} parent=75 // pred_region
          %622 = dma.done [#allocation17], 16
        $region108: #{tpu_custom_call.1} parent=75 // pred_fallthru
          _
        // Predicated region
        $region109: #{tpu_custom_call.1} parent=75 // pred_check
          %p623 = pneg %p246
        $region110: #{tpu_custom_call.1} parent=75 // pred_check_branch
          %625 = sbr.rel (%p623) target = $region112
        $region111: #{tpu_custom_call.1} parent=75 // pred_region
          %626 = dma.done [#allocation17], 256
        $region112: #{tpu_custom_call.1} parent=75 // pred_fallthru
          _
        // Predicated region
        $region113: #{tpu_custom_call.1} parent=75 // pred_check
          %p627 = pneg %p267
        $region114: #{tpu_custom_call.1} parent=75 // pred_check_branch
          %629 = sbr.rel (%p627) target = $region116
        $region115: #{tpu_custom_call.1} parent=75 // pred_region
          %630 = dma.done [#allocation20], 16
        $region116: #{tpu_custom_call.1} parent=75 // pred_fallthru
          _
        // Predicated region
        $region117: #{tpu_custom_call.1} parent=75 // pred_check
          %p631 = pneg %p288
        $region118: #{tpu_custom_call.1} parent=75 // pred_check_branch
          %633 = sbr.rel (%p631) target = $region120
        $region119: #{tpu_custom_call.1} parent=75 // pred_region
          %634 = dma.done [#allocation20], 512
        $region120: #{tpu_custom_call.1} parent=75 // pred_fallthru
          _
        // Predicated region
        $region121: #{tpu_custom_call.1} parent=75 // pred_check
          %p635 = pneg %p309
        $region122: #{tpu_custom_call.1} parent=75 // pred_check_branch
          %637 = sbr.rel (%p635) target = $region124
        $region123: #{tpu_custom_call.1} parent=75 // pred_region
          %638 = dma.done [#allocation23], 16
        $region124: #{tpu_custom_call.1} parent=75 // pred_fallthru
          _
        // Predicated region
        $region125: #{tpu_custom_call.1} parent=75 // pred_check
          %p639 = pneg %p330
        $region126: #{tpu_custom_call.1} parent=75 // pred_check_branch
          %641 = sbr.rel (%p639) target = $region128
        $region127: #{tpu_custom_call.1} parent=75 // pred_region
          %642 = dma.done [#allocation23], 16
        $region128: #{tpu_custom_call.1} parent=75 // pred_fallthru
          _
        // Predicated region
        $region129: #{tpu_custom_call.1} parent=75 // pred_check
          %p643 = pneg %p351
        $region130: #{tpu_custom_call.1} parent=75 // pred_check_branch
          %645 = sbr.rel (%p643) target = $region132
        $region131: #{tpu_custom_call.1} parent=75 // pred_region
          %646 = dma.done [#allocation26], 16
        $region132: #{tpu_custom_call.1} parent=75 // pred_fallthru
          _
        %s647 = sand.u32 %s60, 1
        %s648 = scalar_lea.sflag [#allocation5], %s647
        %s649 = sand.u32 %s60, 1
        %s650 = smul.addr %s649, 4
        %s651 = scalar_lea.vmem [#allocation4], %s650
        %p652 = pneg %p73
        %p653 = pneg %p70
        %s654 = sand.u32 %s40, 1
        %s655 = scalar_lea.sflag [#allocation8], %s654
        %s656 = sand.u32 %s86, 1
        %s657 = scalar_lea.vmem [#allocation7], %s656
        %p658 = pneg %p99
        %p659 = pneg %p96
        %p660 = pneg %p120
        %p661 = pneg %p117
        %p662 = pneg %p141
        %p663 = pneg %p138
        %p664 = pneg %p162
        %p665 = pneg %p159
        %p666 = pneg %p183
        %p667 = pneg %p180
        %p668 = pneg %p204
        %p669 = pneg %p201
        %p670 = pneg %p225
        %p671 = pneg %p222
        %p672 = pneg %p246
        %p673 = pneg %p243
        %p674 = pneg %p267
        %p675 = pneg %p264
        %p676 = pneg %p288
        %p677 = pneg %p285
        %p678 = pneg %p309
        %p679 = pneg %p306
        %p680 = pneg %p330
        %p681 = pneg %p327
        %p682 = pneg %p351
        %p683 = pneg %p348
        %p684 = pneg %p379
        %p685 = pneg %p376
        %s686 = sand.u32 %s366, 1
        %s687 = scalar_lea.sflag [#allocation6], %s686
        %s688 = sand.u32 %s366, 1
        %s689 = smul.addr %s688, 4
        %s690 = scalar_lea.vmem [#allocation27], %s689
        %p692 = scmp.eq.s32.totalorder %s45, 0
        // Predicated region
        $region133: #{tpu_custom_call.1} parent=75 // pred_check
          %p693 = pneg %p692
        $region134: #{tpu_custom_call.1} parent=75 // pred_check_branch
          %695 = sbr.rel (%p693) target = $region136
        $region135: #{tpu_custom_call.1} parent=75 // pred_region
          %v696 = vld [vmem:[%s586] sm:$0xf]
          %v697 = vld [vmem:[#allocation12] sm:$0xf]
          %v698 = vld [vmem:[#allocation12 + $0x4] sm:$0xf]
          %v699 = vld [vmem:[#allocation12 + $0x8] sm:$0xf]
          %v700 = vld [vmem:[#allocation12 + $0xc] sm:$0xf]
          %v701 = vld [vmem:[#allocation13] sm:$0x1]
          %v703 = vlaneseq
          %v704 = vshrl.u32 %v703, 7
          %v705 = vsub.s32 0, %v704
          %v706 = vrot.slane %v701, %v705
          %v712 = vunpack.c.l.b16 %v697
          %v713 = vunpack.c.l.b16 %v698
          %v714 = vunpack.c.l.b16 %v699
          %v715 = vunpack.c.l.b16 %v700
          %v716 = vpack.c.b16 %v713, %v712
          %v717 = vpack.c.b16 %v715, %v714
          %vm720 = vcmask 261120
          %v722 = vsel %vm720, %v696, 0
          %724 = vmatprep.subr.bf16.mxu0 0
          %725 = vmatpush1.bf16.msra.mxu0 %v716
          %726 = vmatprep.subr.bf16.mxu0 0
          %727 = vmatpush1.bf16.msra.mxu0 %v717
          %728 = vmatprep.subr.bf16.mxu0 0
          %729 = vmatpush1.bf16.msra.mxu0 0
          %730 = vmatprep.subr.bf16.mxu0 0
          %731 = vmatpush1.bf16.msra.mxu0 0
          %732 = vmatprep.subr.bf16.mxu0 0
          %733 = vmatpush1.bf16.msra.mxu0 0
          %734 = vmatprep.subr.bf16.mxu0 0
          %735 = vmatpush1.bf16.msra.mxu0 0
          %736 = vmatprep.subr.bf16.mxu0 0
          %737 = vmatpush1.bf16.msra.mxu0 0
          %738 = vmatprep.subr.bf16.mxu0 0
          %739 = vmatpush1.bf16.msra.mxu0 0
          %740 = vmatprep.subr.bf16.mxu0 0
          %741 = vmatpush1.bf16.msra.mxu0 0
          %742 = vmatprep.subr.bf16.mxu0 0
          %743 = vmatpush1.bf16.msra.mxu0 0
          %744 = vmatprep.subr.bf16.mxu0 0
          %745 = vmatpush1.bf16.msra.mxu0 0
          %746 = vmatprep.subr.bf16.mxu0 0
          %747 = vmatpush1.bf16.msra.mxu0 0
          %748 = vmatprep.subr.bf16.mxu0 0
          %749 = vmatpush1.bf16.msra.mxu0 0
          %750 = vmatprep.subr.bf16.mxu0 0
          %751 = vmatpush1.bf16.msra.mxu0 0
          %752 = vmatprep.subr.bf16.mxu0 0
          %753 = vmatpush1.bf16.msra.mxu0 0
          %754 = vmatprep.subr.bf16.mxu0 0
          %755 = vmatpush1.bf16.msra.mxu0 0
          %756 = vmatprep.mubr.bf16.mxu0 0
          %757 = vmatmul.mubr.bf16.gmra.mrb[0].mxu0 %v722
          %v758 = vpop.f32.mrb[0].mxu0
          %v759 = vadd.f32 %v706, %v758
          %v760 = vpop.f32.mrb[0].mxu0
          %v761 = vpop.f32.mrb[0].mxu0
          %v762 = vpop.f32.mrb[0].mxu0
          %763 = vdwg.mxu0
          %765 = vrot.lane.b32.xlu0 %v759, 120
          %v766 = vpop.permute.xlu0 %765
          %768 = vrot.lane.b32.xlu0 %v759, 112
          %v769 = vpop.permute.xlu0 %768
          %771 = vrot.lane.b32.xlu0 %v759, 104
          %v772 = vpop.permute.xlu0 %771
          %v774 = vcombine.low %v759, %v769
          %v775 = vcombine.high %v759, %v769
          %v777 = vunpack.c.l.s4 1983009808
          %v778 = vunpack.c.0.s8 %v777
          %v779 = vlaneseq
          %v780 = vshrl.u32 %v779, 7
          %v781 = vsub.s32 %v778, %v780
          %v782 = vrot.slane %v774, %v781
          %v784 = vunpack.c.l.s4 1983009808
          %v785 = vunpack.c.0.s8 %v784
          %v786 = vlaneseq
          %v787 = vshrl.u32 %v786, 7
          %v788 = vsub.s32 %v785, %v787
          %v789 = vrot.slane %v775, %v788
          %v790 = vcombine.low %v766, %v772
          %v791 = vcombine.high %v766, %v772
          %v793 = vunpack.c.l.s4 1983009808
          %v794 = vunpack.c.0.s8 %v793
          %v795 = vlaneseq
          %v796 = vshrl.u32 %v795, 7
          %v797 = vsub.s32 %v794, %v796
          %v798 = vrot.slane %v790, %v797
          %v800 = vunpack.c.l.s4 1983009808
          %v801 = vunpack.c.0.s8 %v800
          %v802 = vlaneseq
          %v803 = vshrl.u32 %v802, 7
          %v804 = vsub.s32 %v801, %v803
          %v805 = vrot.slane %v791, %v804
          %v806 = vcombine.low %v782, %v798
          %v807 = vcombine.high %v782, %v798
          %v809 = vunpack.c.l.s4 1934713408
          %v810 = vunpack.c.0.s8 %v809
          %v811 = vlaneseq
          %v812 = vshrl.u32 %v811, 7
          %v813 = vsub.s32 %v810, %v812
          %v814 = vrot.slane %v806, %v813
          %v816 = vunpack.c.l.s4 1934713408
          %v817 = vunpack.c.0.s8 %v816
          %v818 = vlaneseq
          %v819 = vshrl.u32 %v818, 7
          %v820 = vsub.s32 %v817, %v819
          %v821 = vrot.slane %v807, %v820
          %v822 = vcombine.low %v789, %v805
          %v823 = vcombine.high %v789, %v805
          %v825 = vunpack.c.l.s4 1934713408
          %v826 = vunpack.c.0.s8 %v825
          %v827 = vlaneseq
          %v828 = vshrl.u32 %v827, 7
          %v829 = vsub.s32 %v826, %v828
          %v830 = vrot.slane %v822, %v829
          %v832 = vunpack.c.l.s4 1934713408
          %v833 = vunpack.c.0.s8 %v832
          %v834 = vlaneseq
          %v835 = vshrl.u32 %v834, 7
          %v836 = vsub.s32 %v833, %v835
          %v837 = vrot.slane %v823, %v836
          %v838 = vcombine.high %v814, 0.0
          %v839 = vcombine.high %v821, 0.0
          %v840 = vcombine.high %v830, 0.0
          %v841 = vcombine.high %v837, 0.0
          %v842 = vpack.c.bf16 %v814, %v814
          %v843 = vpack.c.bf16 %v838, %v838
          %v844 = vpack.c.bf16 %v821, %v821
          %v845 = vpack.c.bf16 %v839, %v839
          %v846 = vpack.c.bf16 %v830, %v830
          %v847 = vpack.c.bf16 %v840, %v840
          %v848 = vpack.c.bf16 %v837, %v837
          %v849 = vpack.c.bf16 %v841, %v841
          %vm850 = vcmask 58368
          %851 = vst.msk [vmem:[#allocation2] sm:$0x3] %vm850, %v842
          %852 = vst.msk [vmem:[#allocation2 + $0x2] sm:$0x3] %vm850, %v843
          %853 = vst.msk [vmem:[#allocation2 + $0x4] sm:$0x3] %vm850, %v844
          %854 = vst.msk [vmem:[#allocation2 + $0x6] sm:$0x3] %vm850, %v845
          %855 = vst.msk [vmem:[#allocation2 + $0x8] sm:$0x3] %vm850, %v846
          %856 = vst.msk [vmem:[#allocation2 + $0xa] sm:$0x3] %vm850, %v847
          %857 = vst.msk [vmem:[#allocation2 + $0xc] sm:$0x3] %vm850, %v848
          %858 = vst.msk [vmem:[#allocation2 + $0xe] sm:$0x3] %vm850, %v849
          %859 = vrot.lane.b32.xlu0 %v759, 96
          %v860 = vpop.permute.xlu0 %859
          %861 = vrot.lane.b32.xlu0 %v766, 96
          %v862 = vpop.permute.xlu0 %861
          %863 = vrot.lane.b32.xlu0 %v769, 96
          %v864 = vpop.permute.xlu0 %863
          %865 = vrot.lane.b32.xlu0 %v772, 96
          %v866 = vpop.permute.xlu0 %865
          %v871 = vcombine.low %v860, %v864
          %v872 = vcombine.high %v860, %v864
          %v874 = vunpack.c.l.s4 1983009808
          %v875 = vunpack.c.0.s8 %v874
          %v876 = vlaneseq
          %v877 = vshrl.u32 %v876, 7
          %v878 = vsub.s32 %v875, %v877
          %v879 = vrot.slane %v871, %v878
          %v881 = vunpack.c.l.s4 1983009808
          %v882 = vunpack.c.0.s8 %v881
          %v883 = vlaneseq
          %v884 = vshrl.u32 %v883, 7
          %v885 = vsub.s32 %v882, %v884
          %v886 = vrot.slane %v872, %v885
          %v887 = vcombine.low %v862, %v866
          %v888 = vcombine.high %v862, %v866
          %v890 = vunpack.c.l.s4 1983009808
          %v891 = vunpack.c.0.s8 %v890
          %v892 = vlaneseq
          %v893 = vshrl.u32 %v892, 7
          %v894 = vsub.s32 %v891, %v893
          %v895 = vrot.slane %v887, %v894
          %v897 = vunpack.c.l.s4 1983009808
          %v898 = vunpack.c.0.s8 %v897
          %v899 = vlaneseq
          %v900 = vshrl.u32 %v899, 7
          %v901 = vsub.s32 %v898, %v900
          %v902 = vrot.slane %v888, %v901
          %v903 = vcombine.low %v879, %v895
          %v904 = vcombine.high %v879, %v895
          %v906 = vunpack.c.l.s4 1934713408
          %v907 = vunpack.c.0.s8 %v906
          %v908 = vlaneseq
          %v909 = vshrl.u32 %v908, 7
          %v910 = vsub.s32 %v907, %v909
          %v911 = vrot.slane %v903, %v910
          %v913 = vunpack.c.l.s4 1934713408
          %v914 = vunpack.c.0.s8 %v913
          %v915 = vlaneseq
          %v916 = vshrl.u32 %v915, 7
          %v917 = vsub.s32 %v914, %v916
          %v918 = vrot.slane %v904, %v917
          %v919 = vcombine.low %v886, %v902
          %v920 = vcombine.high %v886, %v902
          %v922 = vunpack.c.l.s4 1934713408
          %v923 = vunpack.c.0.s8 %v922
          %v924 = vlaneseq
          %v925 = vshrl.u32 %v924, 7
          %v926 = vsub.s32 %v923, %v925
          %v927 = vrot.slane %v919, %v926
          %v929 = vunpack.c.l.s4 1934713408
          %v930 = vunpack.c.0.s8 %v929
          %v931 = vlaneseq
          %v932 = vshrl.u32 %v931, 7
          %v933 = vsub.s32 %v930, %v932
          %v934 = vrot.slane %v920, %v933
          %v935 = vcombine.high %v911, 0.0
          %v936 = vcombine.high %v918, 0.0
          %v937 = vcombine.high %v927, 0.0
          %v938 = vcombine.high %v934, 0.0
          %v939 = vpack.c.bf16 %v911, %v911
          %v940 = vpack.c.bf16 %v935, %v935
          %v941 = vpack.c.bf16 %v918, %v918
          %v942 = vpack.c.bf16 %v936, %v936
          %v943 = vpack.c.bf16 %v927, %v927
          %v944 = vpack.c.bf16 %v937, %v937
          %v945 = vpack.c.bf16 %v934, %v934
          %v946 = vpack.c.bf16 %v938, %v938
          %947 = vst.msk [vmem:[#allocation3] sm:$0x3] %vm850, %v939
          %948 = vst.msk [vmem:[#allocation3 + $0x2] sm:$0x3] %vm850, %v940
          %949 = vst.msk [vmem:[#allocation3 + $0x4] sm:$0x3] %vm850, %v941
          %950 = vst.msk [vmem:[#allocation3 + $0x6] sm:$0x3] %vm850, %v942
          %951 = vst.msk [vmem:[#allocation3 + $0x8] sm:$0x3] %vm850, %v943
          %952 = vst.msk [vmem:[#allocation3 + $0xa] sm:$0x3] %vm850, %v944
          %953 = vst.msk [vmem:[#allocation3 + $0xc] sm:$0x3] %vm850, %v945
          %954 = vst.msk [vmem:[#allocation3 + $0xe] sm:$0x3] %vm850, %v946
        $region136: #{tpu_custom_call.1} parent=75 // pred_fallthru
          _
        %s955 = smul.u32 %s45, 8
        %s956 = sshra.s32 %s955, 3
        %s957 = sand.u32 %s955, 7
        %s958 = smul.addr %s956, 4
        %s959 = scalar_lea.vmem %s586, %s958 [#allocation4]
        %v960 = vld [vmem:[%s959] sm:$0xf]
        %v961 = vunpack.c.l.bf16 %v960
        %v962 = vld [vmem:[#allocation9] sm:$0xf]
        %v963 = vld [vmem:[#allocation9 + $0x4] sm:$0xf]
        %v964 = vld [vmem:[#allocation9 + $0x8] sm:$0xf]
        %v965 = vld [vmem:[#allocation9 + $0xc] sm:$0xf]
        %v966 = vld [vmem:[#allocation10] sm:$0x1]
        %v968 = vlaneseq
        %v969 = vshrl.u32 %v968, 7
        %v970 = vsub.s32 0, %v969
        %v971 = vrot.slane %v966, %v970
        %v977 = vunpack.c.l.b16 %v962
        %v978 = vunpack.c.l.b16 %v963
        %v979 = vunpack.c.l.b16 %v964
        %v980 = vunpack.c.l.b16 %v965
        %v981 = vpack.c.b16 %v978, %v977
        %v982 = vpack.c.b16 %v980, %v979
        %vm985 = vcmask 261120
        %v987 = vsel %vm985, %v960, 0
        %989 = vmatprep.subr.bf16.mxu0 0
        %990 = vmatpush1.bf16.msra.mxu0 %v981
        %991 = vmatprep.subr.bf16.mxu0 0
        %992 = vmatpush1.bf16.msra.mxu0 %v982
        %993 = vmatprep.subr.bf16.mxu0 0
        %994 = vmatpush1.bf16.msra.mxu0 0
        %995 = vmatprep.subr.bf16.mxu0 0
        %996 = vmatpush1.bf16.msra.mxu0 0
        %997 = vmatprep.subr.bf16.mxu0 0
        %998 = vmatpush1.bf16.msra.mxu0 0
        %999 = vmatprep.subr.bf16.mxu0 0
        %1000 = vmatpush1.bf16.msra.mxu0 0
        %1001 = vmatprep.subr.bf16.mxu0 0
        %1002 = vmatpush1.bf16.msra.mxu0 0
        %1003 = vmatprep.subr.bf16.mxu0 0
        %1004 = vmatpush1.bf16.msra.mxu0 0
        %1005 = vmatprep.subr.bf16.mxu0 0
        %1006 = vmatpush1.bf16.msra.mxu0 0
        %1007 = vmatprep.subr.bf16.mxu0 0
        %1008 = vmatpush1.bf16.msra.mxu0 0
        %1009 = vmatprep.subr.bf16.mxu0 0
        %1010 = vmatpush1.bf16.msra.mxu0 0
        %1011 = vmatprep.subr.bf16.mxu0 0
        %1012 = vmatpush1.bf16.msra.mxu0 0
        %1013 = vmatprep.subr.bf16.mxu0 0
        %1014 = vmatpush1.bf16.msra.mxu0 0
        %1015 = vmatprep.subr.bf16.mxu0 0
        %1016 = vmatpush1.bf16.msra.mxu0 0
        %1017 = vmatprep.subr.bf16.mxu0 0
        %1018 = vmatpush1.bf16.msra.mxu0 0
        %1019 = vmatprep.subr.bf16.mxu0 0
        %1020 = vmatpush1.bf16.msra.mxu0 0
        %1021 = vmatprep.mubr.bf16.mxu0 0
        %1022 = vmatmul.mubr.bf16.gmra.mrb[0].mxu0 %v987
        %v1023 = vpop.f32.mrb[0].mxu0
        %v1024 = vadd.f32 %v971, %v1023
        %v1025 = vpop.f32.mrb[0].mxu0
        %v1026 = vpop.f32.mrb[0].mxu0
        %v1027 = vpop.f32.mrb[0].mxu0
        %1028 = vdwg.mxu0
        %v1029 = vmul.f32 %v1024, 0.35355338
        %1031 = vrot.lane.b32.xlu0 %v1029, 120
        %v1032 = vpop.permute.xlu0 %1031
        %1034 = vrot.lane.b32.xlu0 %v1029, 112
        %v1035 = vpop.permute.xlu0 %1034
        %1037 = vrot.lane.b32.xlu0 %v1029, 104
        %v1038 = vpop.permute.xlu0 %1037
        %v1040 = vcombine.low %v1029, %v1035
        %v1041 = vcombine.high %v1029, %v1035
        %v1043 = vunpack.c.l.s4 1983009808
        %v1044 = vunpack.c.0.s8 %v1043
        %v1045 = vlaneseq
        %v1046 = vshrl.u32 %v1045, 7
        %v1047 = vsub.s32 %v1044, %v1046
        %v1048 = vrot.slane %v1040, %v1047
        %v1050 = vunpack.c.l.s4 1983009808
        %v1051 = vunpack.c.0.s8 %v1050
        %v1052 = vlaneseq
        %v1053 = vshrl.u32 %v1052, 7
        %v1054 = vsub.s32 %v1051, %v1053
        %v1055 = vrot.slane %v1041, %v1054
        %v1056 = vcombine.low %v1032, %v1038
        %v1057 = vcombine.high %v1032, %v1038
        %v1059 = vunpack.c.l.s4 1983009808
        %v1060 = vunpack.c.0.s8 %v1059
        %v1061 = vlaneseq
        %v1062 = vshrl.u32 %v1061, 7
        %v1063 = vsub.s32 %v1060, %v1062
        %v1064 = vrot.slane %v1056, %v1063
        %v1066 = vunpack.c.l.s4 1983009808
        %v1067 = vunpack.c.0.s8 %v1066
        %v1068 = vlaneseq
        %v1069 = vshrl.u32 %v1068, 7
        %v1070 = vsub.s32 %v1067, %v1069
        %v1071 = vrot.slane %v1057, %v1070
        %v1072 = vcombine.low %v1048, %v1064
        %v1073 = vcombine.high %v1048, %v1064
        %v1075 = vunpack.c.l.s4 1934713408
        %v1076 = vunpack.c.0.s8 %v1075
        %v1077 = vlaneseq
        %v1078 = vshrl.u32 %v1077, 7
        %v1079 = vsub.s32 %v1076, %v1078
        %v1080 = vrot.slane %v1072, %v1079
        %v1082 = vunpack.c.l.s4 1934713408
        %v1083 = vunpack.c.0.s8 %v1082
        %v1084 = vlaneseq
        %v1085 = vshrl.u32 %v1084, 7
        %v1086 = vsub.s32 %v1083, %v1085
        %v1087 = vrot.slane %v1073, %v1086
        %v1088 = vcombine.low %v1055, %v1071
        %v1089 = vcombine.high %v1055, %v1071
        %v1091 = vunpack.c.l.s4 1934713408
        %v1092 = vunpack.c.0.s8 %v1091
        %v1093 = vlaneseq
        %v1094 = vshrl.u32 %v1093, 7
        %v1095 = vsub.s32 %v1092, %v1094
        %v1096 = vrot.slane %v1088, %v1095
        %v1098 = vunpack.c.l.s4 1934713408
        %v1099 = vunpack.c.0.s8 %v1098
        %v1100 = vlaneseq
        %v1101 = vshrl.u32 %v1100, 7
        %v1102 = vsub.s32 %v1099, %v1101
        %v1103 = vrot.slane %v1089, %v1102
        %v1104 = vcombine.high %v1080, 0.0
        %v1105 = vcombine.high %v1087, 0.0
        %v1106 = vcombine.high %v1096, 0.0
        %v1107 = vcombine.high %v1103, 0.0
        %v1108 = vpack.c.bf16 %v1080, %v1080
        %v1109 = vpack.c.bf16 %v1104, %v1104
        %v1110 = vpack.c.bf16 %v1087, %v1087
        %v1111 = vpack.c.bf16 %v1105, %v1105
        %v1112 = vpack.c.bf16 %v1096, %v1096
        %v1113 = vpack.c.bf16 %v1106, %v1106
        %v1114 = vpack.c.bf16 %v1103, %v1103
        %v1115 = vpack.c.bf16 %v1107, %v1107
        %v1116 = vld [vmem:[#allocation2] sm:$0x3]
        %v1117 = vld [vmem:[#allocation2 + $0x2] sm:$0x3]
        %v1118 = vld [vmem:[#allocation2 + $0x4] sm:$0x3]
        %v1119 = vld [vmem:[#allocation2 + $0x6] sm:$0x3]
        %v1120 = vld [vmem:[#allocation2 + $0x8] sm:$0x3]
        %v1121 = vld [vmem:[#allocation2 + $0xa] sm:$0x3]
        %v1122 = vld [vmem:[#allocation2 + $0xc] sm:$0x3]
        %v1123 = vld [vmem:[#allocation2 + $0xe] sm:$0x3]
        %v1124 = vld [vmem:[#allocation3] sm:$0x3]
        %v1125 = vld [vmem:[#allocation3 + $0x2] sm:$0x3]
        %v1126 = vld [vmem:[#allocation3 + $0x4] sm:$0x3]
        %v1127 = vld [vmem:[#allocation3 + $0x6] sm:$0x3]
        %v1128 = vld [vmem:[#allocation3 + $0x8] sm:$0x3]
        %v1129 = vld [vmem:[#allocation3 + $0xa] sm:$0x3]
        %v1130 = vld [vmem:[#allocation3 + $0xc] sm:$0x3]
        %v1131 = vld [vmem:[#allocation3 + $0xe] sm:$0x3]
        %v1132 = vld [vmem:[%s594] sm:$0x1]
        %vm1133 = vcmp.lt.f32.partialorder %v1132, 0.5
        %v1134 = vsel %vm1133, -1e+09, 0.0
        %v1136 = vlaneseq
        %v1137 = vshrl.u32 %v1136, 7
        %v1138 = vsub.s32 0, %v1137
        %v1139 = vrot.slane %v1134, %v1138
        %v1141 = vcombine.low %v1108, %v1112
        %v1143 = vunpack.c.l.s4 1983009808
        %v1144 = vunpack.c.0.s8 %v1143
        %v1145 = vlaneseq
        %v1146 = vshrl.u32 %v1145, 7
        %v1147 = vsub.s32 %v1144, %v1146
        %v1148 = vrot.slane %v1141, %v1147
        %v1149 = vcombine.low %v1110, %v1114
        %v1151 = vunpack.c.l.s4 1983009808
        %v1152 = vunpack.c.0.s8 %v1151
        %v1153 = vlaneseq
        %v1154 = vshrl.u32 %v1153, 7
        %v1155 = vsub.s32 %v1152, %v1154
        %v1156 = vrot.slane %v1149, %v1155
        %v1157 = vcombine.low %v1148, %v1156
        %v1159 = vunpack.c.l.s4 1934713408
        %v1160 = vunpack.c.0.s8 %v1159
        %v1161 = vlaneseq
        %v1162 = vshrl.u32 %v1161, 7
        %v1163 = vsub.s32 %v1160, %v1162
        %v1164 = vrot.slane %v1157, %v1163
        %v1165 = vcombine.high %v1164, 0
        %v1166 = vcombine.low %v1109, %v1113
        %v1168 = vunpack.c.l.s4 1983009808
        %v1169 = vunpack.c.0.s8 %v1168
        %v1170 = vlaneseq
        %v1171 = vshrl.u32 %v1170, 7
        %v1172 = vsub.s32 %v1169, %v1171
        %v1173 = vrot.slane %v1166, %v1172
        %v1174 = vcombine.low %v1111, %v1115
        %v1176 = vunpack.c.l.s4 1983009808
        %v1177 = vunpack.c.0.s8 %v1176
        %v1178 = vlaneseq
        %v1179 = vshrl.u32 %v1178, 7
        %v1180 = vsub.s32 %v1177, %v1179
        %v1181 = vrot.slane %v1174, %v1180
        %v1182 = vcombine.low %v1173, %v1181
        %v1184 = vunpack.c.l.s4 1934713408
        %v1185 = vunpack.c.0.s8 %v1184
        %v1186 = vlaneseq
        %v1187 = vshrl.u32 %v1186, 7
        %v1188 = vsub.s32 %v1185, %v1187
        %v1189 = vrot.slane %v1182, %v1188
        %v1190 = vcombine.high %v1189, 0
        %v1193 = vpack.i.b16 %v1189, %v1164
        %v1194 = vshrl.u32 %v1164, 16
        %v1195 = vshrl.u32 %v1189, 16
        %v1196 = vpack.i.b16 %v1195, %v1194
        %v1199 = vpack.i.b16 %v1190, %v1165
        %v1200 = vshrl.u32 %v1165, 16
        %v1201 = vshrl.u32 %v1190, 16
        %v1202 = vpack.i.b16 %v1201, %v1200
        %1203 = vxpose.xlu0.c.b16.start [1/8] %v1116, 128
        %1204 = vxpose.xlu0.c.b16.cont [2/8] 0, 128
        %1205 = vxpose.xlu0.c.b16.cont [3/8] 0, 128
        %1206 = vxpose.xlu0.c.b16.cont [4/8] 0, 128
        %1207 = vxpose.xlu0.c.b16.cont [5/8] 0, 128
        %1208 = vxpose.xlu0.c.b16.cont [6/8] 0, 128
        %1209 = vxpose.xlu0.c.b16.cont [7/8] 0, 128
        %1210 = vxpose.xlu0.c.b16.end [8/8] 0, 128
        %v1211 = vpop.trf.xlu0
        %v1212 = vpop.trf.xlu0
        %v1213 = vpop.trf.xlu0
        %v1214 = vpop.trf.xlu0
        %v1215 = vpop.trf.xlu0
        %v1216 = vpop.trf.xlu0
        %v1217 = vpop.trf.xlu0
        %v1218 = vpop.trf.xlu0
        %1219 = vxpose.xlu0.c.b16.start [1/8] %v1117, 128
        %1220 = vxpose.xlu0.c.b16.cont [2/8] 0, 128
        %1221 = vxpose.xlu0.c.b16.cont [3/8] 0, 128
        %1222 = vxpose.xlu0.c.b16.cont [4/8] 0, 128
        %1223 = vxpose.xlu0.c.b16.cont [5/8] 0, 128
        %1224 = vxpose.xlu0.c.b16.cont [6/8] 0, 128
        %1225 = vxpose.xlu0.c.b16.cont [7/8] 0, 128
        %1226 = vxpose.xlu0.c.b16.end [8/8] 0, 128
        %v1227 = vpop.trf.xlu0
        %v1228 = vpop.trf.xlu0
        %v1229 = vpop.trf.xlu0
        %v1230 = vpop.trf.xlu0
        %v1231 = vpop.trf.xlu0
        %v1232 = vpop.trf.xlu0
        %v1233 = vpop.trf.xlu0
        %v1234 = vpop.trf.xlu0
        %1235 = vxpose.xlu0.c.b16.start [1/8] %v1118, 128
        %1236 = vxpose.xlu0.c.b16.cont [2/8] 0, 128
        %1237 = vxpose.xlu0.c.b16.cont [3/8] 0, 128
        %1238 = vxpose.xlu0.c.b16.cont [4/8] 0, 128
        %1239 = vxpose.xlu0.c.b16.cont [5/8] 0, 128
        %1240 = vxpose.xlu0.c.b16.cont [6/8] 0, 128
        %1241 = vxpose.xlu0.c.b16.cont [7/8] 0, 128
        %1242 = vxpose.xlu0.c.b16.end [8/8] 0, 128
        %v1243 = vpop.trf.xlu0
        %v1244 = vpop.trf.xlu0
        %v1245 = vpop.trf.xlu0
        %v1246 = vpop.trf.xlu0
        %v1247 = vpop.trf.xlu0
        %v1248 = vpop.trf.xlu0
        %v1249 = vpop.trf.xlu0
        %v1250 = vpop.trf.xlu0
        %1251 = vxpose.xlu0.c.b16.start [1/8] %v1119, 128
        %1252 = vxpose.xlu0.c.b16.cont [2/8] 0, 128
        %1253 = vxpose.xlu0.c.b16.cont [3/8] 0, 128
        %1254 = vxpose.xlu0.c.b16.cont [4/8] 0, 128
        %1255 = vxpose.xlu0.c.b16.cont [5/8] 0, 128
        %1256 = vxpose.xlu0.c.b16.cont [6/8] 0, 128
        %1257 = vxpose.xlu0.c.b16.cont [7/8] 0, 128
        %1258 = vxpose.xlu0.c.b16.end [8/8] 0, 128
        %v1259 = vpop.trf.xlu0
        %v1260 = vpop.trf.xlu0
        %v1261 = vpop.trf.xlu0
        %v1262 = vpop.trf.xlu0
        %v1263 = vpop.trf.xlu0
        %v1264 = vpop.trf.xlu0
        %v1265 = vpop.trf.xlu0
        %v1266 = vpop.trf.xlu0
        %1267 = vxpose.xlu0.c.b16.start [1/8] %v1120, 128
        %1268 = vxpose.xlu0.c.b16.cont [2/8] 0, 128
        %1269 = vxpose.xlu0.c.b16.cont [3/8] 0, 128
        %1270 = vxpose.xlu0.c.b16.cont [4/8] 0, 128
        %1271 = vxpose.xlu0.c.b16.cont [5/8] 0, 128
        %1272 = vxpose.xlu0.c.b16.cont [6/8] 0, 128
        %1273 = vxpose.xlu0.c.b16.cont [7/8] 0, 128
        %1274 = vxpose.xlu0.c.b16.end [8/8] 0, 128
        %v1275 = vpop.trf.xlu0
        %v1276 = vpop.trf.xlu0
        %v1277 = vpop.trf.xlu0
        %v1278 = vpop.trf.xlu0
        %v1279 = vpop.trf.xlu0
        %v1280 = vpop.trf.xlu0
        %v1281 = vpop.trf.xlu0
        %v1282 = vpop.trf.xlu0
        %1283 = vxpose.xlu0.c.b16.start [1/8] %v1121, 128
        %1284 = vxpose.xlu0.c.b16.cont [2/8] 0, 128
        %1285 = vxpose.xlu0.c.b16.cont [3/8] 0, 128
        %1286 = vxpose.xlu0.c.b16.cont [4/8] 0, 128
        %1287 = vxpose.xlu0.c.b16.cont [5/8] 0, 128
        %1288 = vxpose.xlu0.c.b16.cont [6/8] 0, 128
        %1289 = vxpose.xlu0.c.b16.cont [7/8] 0, 128
        %1290 = vxpose.xlu0.c.b16.end [8/8] 0, 128
        %v1291 = vpop.trf.xlu0
        %v1292 = vpop.trf.xlu0
        %v1293 = vpop.trf.xlu0
        %v1294 = vpop.trf.xlu0
        %v1295 = vpop.trf.xlu0
        %v1296 = vpop.trf.xlu0
        %v1297 = vpop.trf.xlu0
        %v1298 = vpop.trf.xlu0
        %1299 = vxpose.xlu0.c.b16.start [1/8] %v1122, 128
        %1300 = vxpose.xlu0.c.b16.cont [2/8] 0, 128
        %1301 = vxpose.xlu0.c.b16.cont [3/8] 0, 128
        %1302 = vxpose.xlu0.c.b16.cont [4/8] 0, 128
        %1303 = vxpose.xlu0.c.b16.cont [5/8] 0, 128
        %1304 = vxpose.xlu0.c.b16.cont [6/8] 0, 128
        %1305 = vxpose.xlu0.c.b16.cont [7/8] 0, 128
        %1306 = vxpose.xlu0.c.b16.end [8/8] 0, 128
        %v1307 = vpop.trf.xlu0
        %v1308 = vpop.trf.xlu0
        %v1309 = vpop.trf.xlu0
        %v1310 = vpop.trf.xlu0
        %v1311 = vpop.trf.xlu0
        %v1312 = vpop.trf.xlu0
        %v1313 = vpop.trf.xlu0
        %v1314 = vpop.trf.xlu0
        %1315 = vxpose.xlu0.c.b16.start [1/8] %v1123, 128
        %1316 = vxpose.xlu0.c.b16.cont [2/8] 0, 128
        %1317 = vxpose.xlu0.c.b16.cont [3/8] 0, 128
        %1318 = vxpose.xlu0.c.b16.cont [4/8] 0, 128
        %1319 = vxpose.xlu0.c.b16.cont [5/8] 0, 128
        %1320 = vxpose.xlu0.c.b16.cont [6/8] 0, 128
        %1321 = vxpose.xlu0.c.b16.cont [7/8] 0, 128
        %1322 = vxpose.xlu0.c.b16.end [8/8] 0, 128
        %v1323 = vpop.trf.xlu0
        %v1324 = vpop.trf.xlu0
        %v1325 = vpop.trf.xlu0
        %v1326 = vpop.trf.xlu0
        %v1327 = vpop.trf.xlu0
        %v1328 = vpop.trf.xlu0
        %v1329 = vpop.trf.xlu0
        %v1330 = vpop.trf.xlu0
        %v1331 = vcombine.low %v1211, %v1275
        %v1333 = vunpack.c.l.s4 1983009808
        %v1334 = vunpack.c.0.s8 %v1333
        %v1335 = vlaneseq
        %v1336 = vshrl.u32 %v1335, 7
        %v1337 = vsub.s32 %v1334, %v1336
        %v1338 = vrot.slane %v1331, %v1337
        %v1339 = vcombine.low %v1243, %v1307
        %v1341 = vunpack.c.l.s4 1983009808
        %v1342 = vunpack.c.0.s8 %v1341
        %v1343 = vlaneseq
        %v1344 = vshrl.u32 %v1343, 7
        %v1345 = vsub.s32 %v1342, %v1344
        %v1346 = vrot.slane %v1339, %v1345
        %v1347 = vcombine.low %v1338, %v1346
        %v1348 = vcombine.high %v1338, %v1346
        %v1350 = vunpack.c.l.s4 1934713408
        %v1351 = vunpack.c.0.s8 %v1350
        %v1352 = vlaneseq
        %v1353 = vshrl.u32 %v1352, 7
        %v1354 = vsub.s32 %v1351, %v1353
        %v1355 = vrot.slane %v1347, %v1354
        %v1357 = vunpack.c.l.s4 1934713408
        %v1358 = vunpack.c.0.s8 %v1357
        %v1359 = vlaneseq
        %v1360 = vshrl.u32 %v1359, 7
        %v1361 = vsub.s32 %v1358, %v1360
        %v1362 = vrot.slane %v1348, %v1361
        %v1363 = vcombine.high %v1355, 0
        %v1364 = vcombine.high %v1362, 0
        %v1365 = vcombine.low %v1227, %v1291
        %v1367 = vunpack.c.l.s4 1983009808
        %v1368 = vunpack.c.0.s8 %v1367
        %v1369 = vlaneseq
        %v1370 = vshrl.u32 %v1369, 7
        %v1371 = vsub.s32 %v1368, %v1370
        %v1372 = vrot.slane %v1365, %v1371
        %v1373 = vcombine.low %v1259, %v1323
        %v1375 = vunpack.c.l.s4 1983009808
        %v1376 = vunpack.c.0.s8 %v1375
        %v1377 = vlaneseq
        %v1378 = vshrl.u32 %v1377, 7
        %v1379 = vsub.s32 %v1376, %v1378
        %v1380 = vrot.slane %v1373, %v1379
        %v1381 = vcombine.low %v1372, %v1380
        %v1382 = vcombine.high %v1372, %v1380
        %v1384 = vunpack.c.l.s4 1934713408
        %v1385 = vunpack.c.0.s8 %v1384
        %v1386 = vlaneseq
        %v1387 = vshrl.u32 %v1386, 7
        %v1388 = vsub.s32 %v1385, %v1387
        %v1389 = vrot.slane %v1381, %v1388
        %v1391 = vunpack.c.l.s4 1934713408
        %v1392 = vunpack.c.0.s8 %v1391
        %v1393 = vlaneseq
        %v1394 = vshrl.u32 %v1393, 7
        %v1395 = vsub.s32 %v1392, %v1394
        %v1396 = vrot.slane %v1382, %v1395
        %v1397 = vcombine.high %v1389, 0
        %v1398 = vcombine.high %v1396, 0
        %v1401 = vpack.i.b16 %v1389, %v1355
        %v1403 = vshrl.u32 %v1355, 16
        %v1404 = vshrl.u32 %v1389, 16
        %v1405 = vpack.i.b16 %v1404, %v1403
        %v1409 = vpack.i.b16 %v1397, %v1363
        %v1411 = vshrl.u32 %v1363, 16
        %v1412 = vshrl.u32 %v1397, 16
        %v1413 = vpack.i.b16 %v1412, %v1411
        %v1417 = vpack.i.b16 %v1396, %v1362
        %v1419 = vshrl.u32 %v1362, 16
        %v1420 = vshrl.u32 %v1396, 16
        %v1421 = vpack.i.b16 %v1420, %v1419
        %v1425 = vpack.i.b16 %v1398, %v1364
        %v1427 = vshrl.u32 %v1364, 16
        %v1428 = vshrl.u32 %v1398, 16
        %v1429 = vpack.i.b16 %v1428, %v1427
        %1431 = vxpose.xlu0.c.b16.start [1/8] %v1401, 128
        %1432 = vxpose.xlu0.c.b16.cont [2/8] 0, 128
        %1433 = vxpose.xlu0.c.b16.cont [3/8] 0, 128
        %1434 = vxpose.xlu0.c.b16.cont [4/8] 0, 128
        %1435 = vxpose.xlu0.c.b16.cont [5/8] 0, 128
        %1436 = vxpose.xlu0.c.b16.cont [6/8] 0, 128
        %1437 = vxpose.xlu0.c.b16.cont [7/8] 0, 128
        %1438 = vxpose.xlu0.c.b16.end [8/8] 0, 128
        %v1439 = vpop.trf.xlu0
        %v1440 = vpop.trf.xlu0
        %v1441 = vpop.trf.xlu0
        %v1442 = vpop.trf.xlu0
        %v1443 = vpop.trf.xlu0
        %v1444 = vpop.trf.xlu0
        %v1445 = vpop.trf.xlu0
        %v1446 = vpop.trf.xlu0
        %1447 = vxpose.xlu0.c.b16.start [1/8] %v1405, 128
        %1448 = vxpose.xlu0.c.b16.cont [2/8] 0, 128
        %1449 = vxpose.xlu0.c.b16.cont [3/8] 0, 128
        %1450 = vxpose.xlu0.c.b16.cont [4/8] 0, 128
        %1451 = vxpose.xlu0.c.b16.cont [5/8] 0, 128
        %1452 = vxpose.xlu0.c.b16.cont [6/8] 0, 128
        %1453 = vxpose.xlu0.c.b16.cont [7/8] 0, 128
        %1454 = vxpose.xlu0.c.b16.end [8/8] 0, 128
        %v1455 = vpop.trf.xlu0
        %v1456 = vpop.trf.xlu0
        %v1457 = vpop.trf.xlu0
        %v1458 = vpop.trf.xlu0
        %v1459 = vpop.trf.xlu0
        %v1460 = vpop.trf.xlu0
        %v1461 = vpop.trf.xlu0
        %v1462 = vpop.trf.xlu0
        %1463 = vxpose.xlu0.c.b16.start [1/8] %v1409, 128
        %1464 = vxpose.xlu0.c.b16.cont [2/8] 0, 128
        %1465 = vxpose.xlu0.c.b16.cont [3/8] 0, 128
        %1466 = vxpose.xlu0.c.b16.cont [4/8] 0, 128
        %1467 = vxpose.xlu0.c.b16.cont [5/8] 0, 128
        %1468 = vxpose.xlu0.c.b16.cont [6/8] 0, 128
        %1469 = vxpose.xlu0.c.b16.cont [7/8] 0, 128
        %1470 = vxpose.xlu0.c.b16.end [8/8] 0, 128
        %v1471 = vpop.trf.xlu0
        %v1472 = vpop.trf.xlu0
        %v1473 = vpop.trf.xlu0
        %v1474 = vpop.trf.xlu0
        %v1475 = vpop.trf.xlu0
        %v1476 = vpop.trf.xlu0
        %v1477 = vpop.trf.xlu0
        %v1478 = vpop.trf.xlu0
        %1479 = vxpose.xlu0.c.b16.start [1/8] %v1413, 128
        %1480 = vxpose.xlu0.c.b16.cont [2/8] 0, 128
        %1481 = vxpose.xlu0.c.b16.cont [3/8] 0, 128
        %1482 = vxpose.xlu0.c.b16.cont [4/8] 0, 128
        %1483 = vxpose.xlu0.c.b16.cont [5/8] 0, 128
        %1484 = vxpose.xlu0.c.b16.cont [6/8] 0, 128
        %1485 = vxpose.xlu0.c.b16.cont [7/8] 0, 128
        %1486 = vxpose.xlu0.c.b16.end [8/8] 0, 128
        %v1487 = vpop.trf.xlu0
        %v1488 = vpop.trf.xlu0
        %v1489 = vpop.trf.xlu0
        %v1490 = vpop.trf.xlu0
        %v1491 = vpop.trf.xlu0
        %v1492 = vpop.trf.xlu0
        %v1493 = vpop.trf.xlu0
        %v1494 = vpop.trf.xlu0
        %1495 = vxpose.xlu0.c.b16.start [1/8] %v1417, 128
        %1496 = vxpose.xlu0.c.b16.cont [2/8] 0, 128
        %1497 = vxpose.xlu0.c.b16.cont [3/8] 0, 128
        %1498 = vxpose.xlu0.c.b16.cont [4/8] 0, 128
        %1499 = vxpose.xlu0.c.b16.cont [5/8] 0, 128
        %1500 = vxpose.xlu0.c.b16.cont [6/8] 0, 128
        %1501 = vxpose.xlu0.c.b16.cont [7/8] 0, 128
        %1502 = vxpose.xlu0.c.b16.end [8/8] 0, 128
        %v1503 = vpop.trf.xlu0
        %v1504 = vpop.trf.xlu0
        %v1505 = vpop.trf.xlu0
        %v1506 = vpop.trf.xlu0
        %v1507 = vpop.trf.xlu0
        %v1508 = vpop.trf.xlu0
        %v1509 = vpop.trf.xlu0
        %v1510 = vpop.trf.xlu0
        %1511 = vxpose.xlu0.c.b16.start [1/8] %v1421, 128
        %1512 = vxpose.xlu0.c.b16.cont [2/8] 0, 128
        %1513 = vxpose.xlu0.c.b16.cont [3/8] 0, 128
        %1514 = vxpose.xlu0.c.b16.cont [4/8] 0, 128
        %1515 = vxpose.xlu0.c.b16.cont [5/8] 0, 128
        %1516 = vxpose.xlu0.c.b16.cont [6/8] 0, 128
        %1517 = vxpose.xlu0.c.b16.cont [7/8] 0, 128
        %1518 = vxpose.xlu0.c.b16.end [8/8] 0, 128
        %v1519 = vpop.trf.xlu0
        %v1520 = vpop.trf.xlu0
        %v1521 = vpop.trf.xlu0
        %v1522 = vpop.trf.xlu0
        %v1523 = vpop.trf.xlu0
        %v1524 = vpop.trf.xlu0
        %v1525 = vpop.trf.xlu0
        %v1526 = vpop.trf.xlu0
        %1527 = vxpose.xlu0.c.b16.start [1/8] %v1425, 128
        %1528 = vxpose.xlu0.c.b16.cont [2/8] 0, 128
        %1529 = vxpose.xlu0.c.b16.cont [3/8] 0, 128
        %1530 = vxpose.xlu0.c.b16.cont [4/8] 0, 128
        %1531 = vxpose.xlu0.c.b16.cont [5/8] 0, 128
        %1532 = vxpose.xlu0.c.b16.cont [6/8] 0, 128
        %1533 = vxpose.xlu0.c.b16.cont [7/8] 0, 128
        %1534 = vxpose.xlu0.c.b16.end [8/8] 0, 128
        %v1535 = vpop.trf.xlu0
        %v1536 = vpop.trf.xlu0
        %v1537 = vpop.trf.xlu0
        %v1538 = vpop.trf.xlu0
        %v1539 = vpop.trf.xlu0
        %v1540 = vpop.trf.xlu0
        %v1541 = vpop.trf.xlu0
        %v1542 = vpop.trf.xlu0
        %1543 = vxpose.xlu0.c.b16.start [1/8] %v1429, 128
        %1544 = vxpose.xlu0.c.b16.cont [2/8] 0, 128
        %1545 = vxpose.xlu0.c.b16.cont [3/8] 0, 128
        %1546 = vxpose.xlu0.c.b16.cont [4/8] 0, 128
        %1547 = vxpose.xlu0.c.b16.cont [5/8] 0, 128
        %1548 = vxpose.xlu0.c.b16.cont [6/8] 0, 128
        %1549 = vxpose.xlu0.c.b16.cont [7/8] 0, 128
        %1550 = vxpose.xlu0.c.b16.end [8/8] 0, 128
        %v1551 = vpop.trf.xlu0
        %v1552 = vpop.trf.xlu0
        %v1553 = vpop.trf.xlu0
        %v1554 = vpop.trf.xlu0
        %v1555 = vpop.trf.xlu0
        %v1556 = vpop.trf.xlu0
        %v1557 = vpop.trf.xlu0
        %v1558 = vpop.trf.xlu0
        %v1559 = vcombine.low %v1439, %v1503
        %v1561 = vunpack.c.l.s4 1983009808
        %v1562 = vunpack.c.0.s8 %v1561
        %v1563 = vlaneseq
        %v1564 = vshrl.u32 %v1563, 7
        %v1565 = vsub.s32 %v1562, %v1564
        %v1566 = vrot.slane %v1559, %v1565
        %v1567 = vcombine.low %v1471, %v1535
        %v1569 = vunpack.c.l.s4 1983009808
        %v1570 = vunpack.c.0.s8 %v1569
        %v1571 = vlaneseq
        %v1572 = vshrl.u32 %v1571, 7
        %v1573 = vsub.s32 %v1570, %v1572
        %v1574 = vrot.slane %v1567, %v1573
        %v1575 = vcombine.low %v1566, %v1574
        %v1577 = vunpack.c.l.s4 1934713408
        %v1578 = vunpack.c.0.s8 %v1577
        %v1579 = vlaneseq
        %v1580 = vshrl.u32 %v1579, 7
        %v1581 = vsub.s32 %v1578, %v1580
        %v1582 = vrot.slane %v1575, %v1581
        %v1583 = vcombine.high %v1582, 0
        %v1584 = vcombine.low %v1455, %v1519
        %v1586 = vunpack.c.l.s4 1983009808
        %v1587 = vunpack.c.0.s8 %v1586
        %v1588 = vlaneseq
        %v1589 = vshrl.u32 %v1588, 7
        %v1590 = vsub.s32 %v1587, %v1589
        %v1591 = vrot.slane %v1584, %v1590
        %v1592 = vcombine.low %v1487, %v1551
        %v1594 = vunpack.c.l.s4 1983009808
        %v1595 = vunpack.c.0.s8 %v1594
        %v1596 = vlaneseq
        %v1597 = vshrl.u32 %v1596, 7
        %v1598 = vsub.s32 %v1595, %v1597
        %v1599 = vrot.slane %v1592, %v1598
        %v1600 = vcombine.low %v1591, %v1599
        %v1602 = vunpack.c.l.s4 1934713408
        %v1603 = vunpack.c.0.s8 %v1602
        %v1604 = vlaneseq
        %v1605 = vshrl.u32 %v1604, 7
        %v1606 = vsub.s32 %v1603, %v1605
        %v1607 = vrot.slane %v1600, %v1606
        %v1608 = vcombine.high %v1607, 0
        %v1611 = vpack.i.b16 %v1607, %v1582
        %v1612 = vshrl.u32 %v1582, 16
        %v1613 = vshrl.u32 %v1607, 16
        %v1614 = vpack.i.b16 %v1613, %v1612
        %v1617 = vpack.i.b16 %v1608, %v1583
        %v1618 = vshrl.u32 %v1583, 16
        %v1619 = vshrl.u32 %v1608, 16
        %v1620 = vpack.i.b16 %v1619, %v1618
        %vm1621 = vcmask 64512
        %v1623 = vsel %vm1621, %v1193, 0
        %vm1625 = vcmask 1043456
        %v1627 = vsel %vm1625, %v1611, 0
        %1629 = vmatprep.subr.bf16.mxu0 0
        %1630 = vmatpush1.bf16.msra.mxu0 %v1627
        %1631 = vmatprep.subr.bf16.mxu0 0
        %1632 = vmatpush1.bf16.msra.mxu0 0
        %1633 = vmatprep.subr.bf16.mxu0 0
        %1634 = vmatpush1.bf16.msra.mxu0 0
        %1635 = vmatprep.subr.bf16.mxu0 0
        %1636 = vmatpush1.bf16.msra.mxu0 0
        %1637 = vmatprep.subr.bf16.mxu0 0
        %1638 = vmatpush1.bf16.msra.mxu0 0
        %1639 = vmatprep.subr.bf16.mxu0 0
        %1640 = vmatpush1.bf16.msra.mxu0 0
        %1641 = vmatprep.subr.bf16.mxu0 0
        %1642 = vmatpush1.bf16.msra.mxu0 0
        %1643 = vmatprep.subr.bf16.mxu0 0
        %1644 = vmatpush1.bf16.msra.mxu0 0
        %1645 = vmatprep.subr.bf16.mxu0 0
        %1646 = vmatpush1.bf16.msra.mxu0 0
        %1647 = vmatprep.subr.bf16.mxu0 0
        %1648 = vmatpush1.bf16.msra.mxu0 0
        %1649 = vmatprep.subr.bf16.mxu0 0
        %1650 = vmatpush1.bf16.msra.mxu0 0
        %1651 = vmatprep.subr.bf16.mxu0 0
        %1652 = vmatpush1.bf16.msra.mxu0 0
        %1653 = vmatprep.subr.bf16.mxu0 0
        %1654 = vmatpush1.bf16.msra.mxu0 0
        %1655 = vmatprep.subr.bf16.mxu0 0
        %1656 = vmatpush1.bf16.msra.mxu0 0
        %1657 = vmatprep.subr.bf16.mxu0 0
        %1658 = vmatpush1.bf16.msra.mxu0 0
        %1659 = vmatprep.subr.bf16.mxu0 0
        %1660 = vmatpush1.bf16.msra.mxu0 0
        %1661 = vmatprep.mubr.bf16.mxu0 0
        %1662 = vmatmul.mubr.bf16.gmra.mrb[0].mxu0 %v1623
        %v1663 = vpop.f32.mrb[0].mxu0
        %v1664 = vadd.f32 %v1139, %v1663
        %v1665 = vpop.f32.mrb[0].mxu0
        %v1666 = vpop.f32.mrb[0].mxu0
        %v1667 = vpop.f32.mrb[0].mxu0
        %1668 = vdwg.mxu0
        %v1670 = vsel %vm1621, %v1196, 0
        %v1673 = vsel %vm1625, %v1614, 0
        %1675 = vmatprep.subr.bf16.mxu0 0
        %1676 = vmatpush1.bf16.msra.mxu0 %v1673
        %1677 = vmatprep.subr.bf16.mxu0 0
        %1678 = vmatpush1.bf16.msra.mxu0 0
        %1679 = vmatprep.subr.bf16.mxu0 0
        %1680 = vmatpush1.bf16.msra.mxu0 0
        %1681 = vmatprep.subr.bf16.mxu0 0
        %1682 = vmatpush1.bf16.msra.mxu0 0
        %1683 = vmatprep.subr.bf16.mxu0 0
        %1684 = vmatpush1.bf16.msra.mxu0 0
        %1685 = vmatprep.subr.bf16.mxu0 0
        %1686 = vmatpush1.bf16.msra.mxu0 0
        %1687 = vmatprep.subr.bf16.mxu0 0
        %1688 = vmatpush1.bf16.msra.mxu0 0
        %1689 = vmatprep.subr.bf16.mxu0 0
        %1690 = vmatpush1.bf16.msra.mxu0 0
        %1691 = vmatprep.subr.bf16.mxu0 0
        %1692 = vmatpush1.bf16.msra.mxu0 0
        %1693 = vmatprep.subr.bf16.mxu0 0
        %1694 = vmatpush1.bf16.msra.mxu0 0
        %1695 = vmatprep.subr.bf16.mxu0 0
        %1696 = vmatpush1.bf16.msra.mxu0 0
        %1697 = vmatprep.subr.bf16.mxu0 0
        %1698 = vmatpush1.bf16.msra.mxu0 0
        %1699 = vmatprep.subr.bf16.mxu0 0
        %1700 = vmatpush1.bf16.msra.mxu0 0
        %1701 = vmatprep.subr.bf16.mxu0 0
        %1702 = vmatpush1.bf16.msra.mxu0 0
        %1703 = vmatprep.subr.bf16.mxu0 0
        %1704 = vmatpush1.bf16.msra.mxu0 0
        %1705 = vmatprep.subr.bf16.mxu0 0
        %1706 = vmatpush1.bf16.msra.mxu0 0
        %1707 = vmatprep.mubr.bf16.mxu0 0
        %1708 = vmatmul.mubr.bf16.gmra.mrb[0].mxu0 %v1670
        %v1709 = vpop.f32.mrb[0].mxu0
        %v1710 = vadd.f32 %v1139, %v1709
        %v1711 = vpop.f32.mrb[0].mxu0
        %v1712 = vpop.f32.mrb[0].mxu0
        %v1713 = vpop.f32.mrb[0].mxu0
        %1714 = vdwg.mxu0
        %v1716 = vsel %vm1621, %v1199, 0
        %v1719 = vsel %vm1625, %v1617, 0
        %1721 = vmatprep.subr.bf16.mxu0 0
        %1722 = vmatpush1.bf16.msra.mxu0 %v1719
        %1723 = vmatprep.subr.bf16.mxu0 0
        %1724 = vmatpush1.bf16.msra.mxu0 0
        %1725 = vmatprep.subr.bf16.mxu0 0
        %1726 = vmatpush1.bf16.msra.mxu0 0
        %1727 = vmatprep.subr.bf16.mxu0 0
        %1728 = vmatpush1.bf16.msra.mxu0 0
        %1729 = vmatprep.subr.bf16.mxu0 0
        %1730 = vmatpush1.bf16.msra.mxu0 0
        %1731 = vmatprep.subr.bf16.mxu0 0
        %1732 = vmatpush1.bf16.msra.mxu0 0
        %1733 = vmatprep.subr.bf16.mxu0 0
        %1734 = vmatpush1.bf16.msra.mxu0 0
        %1735 = vmatprep.subr.bf16.mxu0 0
        %1736 = vmatpush1.bf16.msra.mxu0 0
        %1737 = vmatprep.subr.bf16.mxu0 0
        %1738 = vmatpush1.bf16.msra.mxu0 0
        %1739 = vmatprep.subr.bf16.mxu0 0
        %1740 = vmatpush1.bf16.msra.mxu0 0
        %1741 = vmatprep.subr.bf16.mxu0 0
        %1742 = vmatpush1.bf16.msra.mxu0 0
        %1743 = vmatprep.subr.bf16.mxu0 0
        %1744 = vmatpush1.bf16.msra.mxu0 0
        %1745 = vmatprep.subr.bf16.mxu0 0
        %1746 = vmatpush1.bf16.msra.mxu0 0
        %1747 = vmatprep.subr.bf16.mxu0 0
        %1748 = vmatpush1.bf16.msra.mxu0 0
        %1749 = vmatprep.subr.bf16.mxu0 0
        %1750 = vmatpush1.bf16.msra.mxu0 0
        %1751 = vmatprep.subr.bf16.mxu0 0
        %1752 = vmatpush1.bf16.msra.mxu0 0
        %1753 = vmatprep.mubr.bf16.mxu0 0
        %1754 = vmatmul.mubr.bf16.gmra.mrb[0].mxu0 %v1716
        %v1755 = vpop.f32.mrb[0].mxu0
        %v1756 = vadd.f32 %v1139, %v1755
        %v1757 = vpop.f32.mrb[0].mxu0
        %v1758 = vpop.f32.mrb[0].mxu0
        %v1759 = vpop.f32.mrb[0].mxu0
        %1760 = vdwg.mxu0
        %v1762 = vsel %vm1621, %v1202, 0
        %v1765 = vsel %vm1625, %v1620, 0
        %1767 = vmatprep.subr.bf16.mxu0 0
        %1768 = vmatpush1.bf16.msra.mxu0 %v1765
        %1769 = vmatprep.subr.bf16.mxu0 0
        %1770 = vmatpush1.bf16.msra.mxu0 0
        %1771 = vmatprep.subr.bf16.mxu0 0
        %1772 = vmatpush1.bf16.msra.mxu0 0
        %1773 = vmatprep.subr.bf16.mxu0 0
        %1774 = vmatpush1.bf16.msra.mxu0 0
        %1775 = vmatprep.subr.bf16.mxu0 0
        %1776 = vmatpush1.bf16.msra.mxu0 0
        %1777 = vmatprep.subr.bf16.mxu0 0
        %1778 = vmatpush1.bf16.msra.mxu0 0
        %1779 = vmatprep.subr.bf16.mxu0 0
        %1780 = vmatpush1.bf16.msra.mxu0 0
        %1781 = vmatprep.subr.bf16.mxu0 0
        %1782 = vmatpush1.bf16.msra.mxu0 0
        %1783 = vmatprep.subr.bf16.mxu0 0
        %1784 = vmatpush1.bf16.msra.mxu0 0
        %1785 = vmatprep.subr.bf16.mxu0 0
        %1786 = vmatpush1.bf16.msra.mxu0 0
        %1787 = vmatprep.subr.bf16.mxu0 0
        %1788 = vmatpush1.bf16.msra.mxu0 0
        %1789 = vmatprep.subr.bf16.mxu0 0
        %1790 = vmatpush1.bf16.msra.mxu0 0
        %1791 = vmatprep.subr.bf16.mxu0 0
        %1792 = vmatpush1.bf16.msra.mxu0 0
        %1793 = vmatprep.subr.bf16.mxu0 0
        %1794 = vmatpush1.bf16.msra.mxu0 0
        %1795 = vmatprep.subr.bf16.mxu0 0
        %1796 = vmatpush1.bf16.msra.mxu0 0
        %1797 = vmatprep.subr.bf16.mxu0 0
        %1798 = vmatpush1.bf16.msra.mxu0 0
        %1799 = vmatprep.mubr.bf16.mxu0 0
        %1800 = vmatmul.mubr.bf16.gmra.mrb[0].mxu0 %v1762
        %v1801 = vpop.f32.mrb[0].mxu0
        %v1802 = vadd.f32 %v1139, %v1801
        %v1803 = vpop.f32.mrb[0].mxu0
        %v1804 = vpop.f32.mrb[0].mxu0
        %v1805 = vpop.f32.mrb[0].mxu0
        %1806 = vdwg.mxu0
        %v1807 = vsel %vm1621, %v1664, -inf
        %1808 = vmax.xlane.f32.xlu0 %v1807
        %v1809 = vpop.xlane.xlu0 %1808
        %v1810 = vsel %vm1621, %v1710, -inf
        %1811 = vmax.xlane.f32.xlu0 %v1810
        %v1812 = vpop.xlane.xlu0 %1811
        %v1813 = vsel %vm1621, %v1756, -inf
        %1814 = vmax.xlane.f32.xlu0 %v1813
        %v1815 = vpop.xlane.xlu0 %1814
        %v1816 = vsel %vm1621, %v1802, -inf
        %1817 = vmax.xlane.f32.xlu0 %v1816
        %v1818 = vpop.xlane.xlu0 %1817
        %v1819 = vsub.f32 %v1664, %v1809
        %v1820 = vsub.f32 %v1710, %v1812
        %v1821 = vsub.f32 %v1756, %v1815
        %v1822 = vsub.f32 %v1802, %v1818
        %v1823 = vmul.f32 %v1819, 1.442695
        %v1824 = vpow.pop %v1823
        %v1825 = vmul.f32 %v1820, 1.442695
        %v1826 = vpow.pop %v1825
        %v1827 = vmul.f32 %v1821, 1.442695
        %v1828 = vpow.pop %v1827
        %v1829 = vmul.f32 %v1822, 1.442695
        %v1830 = vpow.pop %v1829
        %v1831 = vsel %vm1621, %v1824, 0.0
        %1832 = vadd.xlane.f32.xlu0 %v1831
        %v1833 = vpop.xlane.xlu0 %1832
        %v1834 = vsel %vm1621, %v1826, 0.0
        %1835 = vadd.xlane.f32.xlu0 %v1834
        %v1836 = vpop.xlane.xlu0 %1835
        %v1837 = vsel %vm1621, %v1828, 0.0
        %1838 = vadd.xlane.f32.xlu0 %v1837
        %v1839 = vpop.xlane.xlu0 %1838
        %v1840 = vsel %vm1621, %v1830, 0.0
        %1841 = vadd.xlane.f32.xlu0 %v1840
        %v1842 = vpop.xlane.xlu0 %1841
        %v1843 = vrcp.pop %v1833
        %v1844 = vrcp.pop %v1836
        %v1845 = vrcp.pop %v1839
        %v1846 = vrcp.pop %v1842
        %v1847 = vmul.f32 %v1824, %v1843
        %v1848 = vmul.f32 %v1826, %v1844
        %v1849 = vmul.f32 %v1828, %v1845
        %v1850 = vmul.f32 %v1830, %v1846
        %v1851 = vpack.c.bf16 %v1847, %v1847
        %v1852 = vpack.c.bf16 %v1848, %v1848
        %v1853 = vpack.c.bf16 %v1849, %v1849
        %v1854 = vpack.c.bf16 %v1850, %v1850
        %1855 = vxpose.xlu0.c.b16.start [1/8] %v1124, 128
        %1856 = vxpose.xlu0.c.b16.cont [2/8] 0, 128
        %1857 = vxpose.xlu0.c.b16.cont [3/8] 0, 128
        %1858 = vxpose.xlu0.c.b16.cont [4/8] 0, 128
        %1859 = vxpose.xlu0.c.b16.cont [5/8] 0, 128
        %1860 = vxpose.xlu0.c.b16.cont [6/8] 0, 128
        %1861 = vxpose.xlu0.c.b16.cont [7/8] 0, 128
        %1862 = vxpose.xlu0.c.b16.end [8/8] 0, 128
        %v1863 = vpop.trf.xlu0
        %v1864 = vpop.trf.xlu0
        %v1865 = vpop.trf.xlu0
        %v1866 = vpop.trf.xlu0
        %v1867 = vpop.trf.xlu0
        %v1868 = vpop.trf.xlu0
        %v1869 = vpop.trf.xlu0
        %v1870 = vpop.trf.xlu0
        %1871 = vxpose.xlu0.c.b16.start [1/8] %v1125, 128
        %1872 = vxpose.xlu0.c.b16.cont [2/8] 0, 128
        %1873 = vxpose.xlu0.c.b16.cont [3/8] 0, 128
        %1874 = vxpose.xlu0.c.b16.cont [4/8] 0, 128
        %1875 = vxpose.xlu0.c.b16.cont [5/8] 0, 128
        %1876 = vxpose.xlu0.c.b16.cont [6/8] 0, 128
        %1877 = vxpose.xlu0.c.b16.cont [7/8] 0, 128
        %1878 = vxpose.xlu0.c.b16.end [8/8] 0, 128
        %v1879 = vpop.trf.xlu0
        %v1880 = vpop.trf.xlu0
        %v1881 = vpop.trf.xlu0
        %v1882 = vpop.trf.xlu0
        %v1883 = vpop.trf.xlu0
        %v1884 = vpop.trf.xlu0
        %v1885 = vpop.trf.xlu0
        %v1886 = vpop.trf.xlu0
        %1887 = vxpose.xlu0.c.b16.start [1/8] %v1126, 128
        %1888 = vxpose.xlu0.c.b16.cont [2/8] 0, 128
        %1889 = vxpose.xlu0.c.b16.cont [3/8] 0, 128
        %1890 = vxpose.xlu0.c.b16.cont [4/8] 0, 128
        %1891 = vxpose.xlu0.c.b16.cont [5/8] 0, 128
        %1892 = vxpose.xlu0.c.b16.cont [6/8] 0, 128
        %1893 = vxpose.xlu0.c.b16.cont [7/8] 0, 128
        %1894 = vxpose.xlu0.c.b16.end [8/8] 0, 128
        %v1895 = vpop.trf.xlu0
        %v1896 = vpop.trf.xlu0
        %v1897 = vpop.trf.xlu0
        %v1898 = vpop.trf.xlu0
        %v1899 = vpop.trf.xlu0
        %v1900 = vpop.trf.xlu0
        %v1901 = vpop.trf.xlu0
        %v1902 = vpop.trf.xlu0
        %1903 = vxpose.xlu0.c.b16.start [1/8] %v1127, 128
        %1904 = vxpose.xlu0.c.b16.cont [2/8] 0, 128
        %1905 = vxpose.xlu0.c.b16.cont [3/8] 0, 128
        %1906 = vxpose.xlu0.c.b16.cont [4/8] 0, 128
        %1907 = vxpose.xlu0.c.b16.cont [5/8] 0, 128
        %1908 = vxpose.xlu0.c.b16.cont [6/8] 0, 128
        %1909 = vxpose.xlu0.c.b16.cont [7/8] 0, 128
        %1910 = vxpose.xlu0.c.b16.end [8/8] 0, 128
        %v1911 = vpop.trf.xlu0
        %v1912 = vpop.trf.xlu0
        %v1913 = vpop.trf.xlu0
        %v1914 = vpop.trf.xlu0
        %v1915 = vpop.trf.xlu0
        %v1916 = vpop.trf.xlu0
        %v1917 = vpop.trf.xlu0
        %v1918 = vpop.trf.xlu0
        %1919 = vxpose.xlu0.c.b16.start [1/8] %v1128, 128
        %1920 = vxpose.xlu0.c.b16.cont [2/8] 0, 128
        %1921 = vxpose.xlu0.c.b16.cont [3/8] 0, 128
        %1922 = vxpose.xlu0.c.b16.cont [4/8] 0, 128
        %1923 = vxpose.xlu0.c.b16.cont [5/8] 0, 128
        %1924 = vxpose.xlu0.c.b16.cont [6/8] 0, 128
        %1925 = vxpose.xlu0.c.b16.cont [7/8] 0, 128
        %1926 = vxpose.xlu0.c.b16.end [8/8] 0, 128
        %v1927 = vpop.trf.xlu0
        %v1928 = vpop.trf.xlu0
        %v1929 = vpop.trf.xlu0
        %v1930 = vpop.trf.xlu0
        %v1931 = vpop.trf.xlu0
        %v1932 = vpop.trf.xlu0
        %v1933 = vpop.trf.xlu0
        %v1934 = vpop.trf.xlu0
        %1935 = vxpose.xlu0.c.b16.start [1/8] %v1129, 128
        %1936 = vxpose.xlu0.c.b16.cont [2/8] 0, 128
        %1937 = vxpose.xlu0.c.b16.cont [3/8] 0, 128
        %1938 = vxpose.xlu0.c.b16.cont [4/8] 0, 128
        %1939 = vxpose.xlu0.c.b16.cont [5/8] 0, 128
        %1940 = vxpose.xlu0.c.b16.cont [6/8] 0, 128
        %1941 = vxpose.xlu0.c.b16.cont [7/8] 0, 128
        %1942 = vxpose.xlu0.c.b16.end [8/8] 0, 128
        %v1943 = vpop.trf.xlu0
        %v1944 = vpop.trf.xlu0
        %v1945 = vpop.trf.xlu0
        %v1946 = vpop.trf.xlu0
        %v1947 = vpop.trf.xlu0
        %v1948 = vpop.trf.xlu0
        %v1949 = vpop.trf.xlu0
        %v1950 = vpop.trf.xlu0
        %1951 = vxpose.xlu0.c.b16.start [1/8] %v1130, 128
        %1952 = vxpose.xlu0.c.b16.cont [2/8] 0, 128
        %1953 = vxpose.xlu0.c.b16.cont [3/8] 0, 128
        %1954 = vxpose.xlu0.c.b16.cont [4/8] 0, 128
        %1955 = vxpose.xlu0.c.b16.cont [5/8] 0, 128
        %1956 = vxpose.xlu0.c.b16.cont [6/8] 0, 128
        %1957 = vxpose.xlu0.c.b16.cont [7/8] 0, 128
        %1958 = vxpose.xlu0.c.b16.end [8/8] 0, 128
        %v1959 = vpop.trf.xlu0
        %v1960 = vpop.trf.xlu0
        %v1961 = vpop.trf.xlu0
        %v1962 = vpop.trf.xlu0
        %v1963 = vpop.trf.xlu0
        %v1964 = vpop.trf.xlu0
        %v1965 = vpop.trf.xlu0
        %v1966 = vpop.trf.xlu0
        %1967 = vxpose.xlu0.c.b16.start [1/8] %v1131, 128
        %1968 = vxpose.xlu0.c.b16.cont [2/8] 0, 128
        %1969 = vxpose.xlu0.c.b16.cont [3/8] 0, 128
        %1970 = vxpose.xlu0.c.b16.cont [4/8] 0, 128
        %1971 = vxpose.xlu0.c.b16.cont [5/8] 0, 128
        %1972 = vxpose.xlu0.c.b16.cont [6/8] 0, 128
        %1973 = vxpose.xlu0.c.b16.cont [7/8] 0, 128
        %1974 = vxpose.xlu0.c.b16.end [8/8] 0, 128
        %v1975 = vpop.trf.xlu0
        %v1976 = vpop.trf.xlu0
        %v1977 = vpop.trf.xlu0
        %v1978 = vpop.trf.xlu0
        %v1979 = vpop.trf.xlu0
        %v1980 = vpop.trf.xlu0
        %v1981 = vpop.trf.xlu0
        %v1982 = vpop.trf.xlu0
        %v1983 = vcombine.low %v1863, %v1927
        %v1985 = vunpack.c.l.s4 1983009808
        %v1986 = vunpack.c.0.s8 %v1985
        %v1987 = vlaneseq
        %v1988 = vshrl.u32 %v1987, 7
        %v1989 = vsub.s32 %v1986, %v1988
        %v1990 = vrot.slane %v1983, %v1989
        %v1991 = vcombine.low %v1895, %v1959
        %v1993 = vunpack.c.l.s4 1983009808
        %v1994 = vunpack.c.0.s8 %v1993
        %v1995 = vlaneseq
        %v1996 = vshrl.u32 %v1995, 7
        %v1997 = vsub.s32 %v1994, %v1996
        %v1998 = vrot.slane %v1991, %v1997
        %v1999 = vcombine.low %v1990, %v1998
        %v2000 = vcombine.high %v1990, %v1998
        %v2002 = vunpack.c.l.s4 1934713408
        %v2003 = vunpack.c.0.s8 %v2002
        %v2004 = vlaneseq
        %v2005 = vshrl.u32 %v2004, 7
        %v2006 = vsub.s32 %v2003, %v2005
        %v2007 = vrot.slane %v1999, %v2006
        %v2009 = vunpack.c.l.s4 1934713408
        %v2010 = vunpack.c.0.s8 %v2009
        %v2011 = vlaneseq
        %v2012 = vshrl.u32 %v2011, 7
        %v2013 = vsub.s32 %v2010, %v2012
        %v2014 = vrot.slane %v2000, %v2013
        %v2015 = vcombine.high %v2007, 0
        %v2016 = vcombine.high %v2014, 0
        %v2017 = vcombine.low %v1879, %v1943
        %v2019 = vunpack.c.l.s4 1983009808
        %v2020 = vunpack.c.0.s8 %v2019
        %v2021 = vlaneseq
        %v2022 = vshrl.u32 %v2021, 7
        %v2023 = vsub.s32 %v2020, %v2022
        %v2024 = vrot.slane %v2017, %v2023
        %v2025 = vcombine.low %v1911, %v1975
        %v2027 = vunpack.c.l.s4 1983009808
        %v2028 = vunpack.c.0.s8 %v2027
        %v2029 = vlaneseq
        %v2030 = vshrl.u32 %v2029, 7
        %v2031 = vsub.s32 %v2028, %v2030
        %v2032 = vrot.slane %v2025, %v2031
        %v2033 = vcombine.low %v2024, %v2032
        %v2034 = vcombine.high %v2024, %v2032
        %v2036 = vunpack.c.l.s4 1934713408
        %v2037 = vunpack.c.0.s8 %v2036
        %v2038 = vlaneseq
        %v2039 = vshrl.u32 %v2038, 7
        %v2040 = vsub.s32 %v2037, %v2039
        %v2041 = vrot.slane %v2033, %v2040
        %v2043 = vunpack.c.l.s4 1934713408
        %v2044 = vunpack.c.0.s8 %v2043
        %v2045 = vlaneseq
        %v2046 = vshrl.u32 %v2045, 7
        %v2047 = vsub.s32 %v2044, %v2046
        %v2048 = vrot.slane %v2034, %v2047
        %v2049 = vcombine.high %v2041, 0
        %v2050 = vcombine.high %v2048, 0
        %v2053 = vpack.i.b16 %v2041, %v2007
        %v2055 = vshrl.u32 %v2007, 16
        %v2056 = vshrl.u32 %v2041, 16
        %v2057 = vpack.i.b16 %v2056, %v2055
        %v2061 = vpack.i.b16 %v2049, %v2015
        %v2063 = vshrl.u32 %v2015, 16
        %v2064 = vshrl.u32 %v2049, 16
        %v2065 = vpack.i.b16 %v2064, %v2063
        %v2069 = vpack.i.b16 %v2048, %v2014
        %v2071 = vshrl.u32 %v2014, 16
        %v2072 = vshrl.u32 %v2048, 16
        %v2073 = vpack.i.b16 %v2072, %v2071
        %v2077 = vpack.i.b16 %v2050, %v2016
        %v2079 = vshrl.u32 %v2016, 16
        %v2080 = vshrl.u32 %v2050, 16
        %v2081 = vpack.i.b16 %v2080, %v2079
        %2083 = vxpose.xlu0.c.b16.start [1/8] %v2053, 128
        %2084 = vxpose.xlu0.c.b16.cont [2/8] 0, 128
        %2085 = vxpose.xlu0.c.b16.cont [3/8] 0, 128
        %2086 = vxpose.xlu0.c.b16.cont [4/8] 0, 128
        %2087 = vxpose.xlu0.c.b16.cont [5/8] 0, 128
        %2088 = vxpose.xlu0.c.b16.cont [6/8] 0, 128
        %2089 = vxpose.xlu0.c.b16.cont [7/8] 0, 128
        %2090 = vxpose.xlu0.c.b16.end [8/8] 0, 128
        %v2091 = vpop.trf.xlu0
        %v2092 = vpop.trf.xlu0
        %v2093 = vpop.trf.xlu0
        %v2094 = vpop.trf.xlu0
        %v2095 = vpop.trf.xlu0
        %v2096 = vpop.trf.xlu0
        %v2097 = vpop.trf.xlu0
        %v2098 = vpop.trf.xlu0
        %2099 = vxpose.xlu0.c.b16.start [1/8] %v2057, 128
        %2100 = vxpose.xlu0.c.b16.cont [2/8] 0, 128
        %2101 = vxpose.xlu0.c.b16.cont [3/8] 0, 128
        %2102 = vxpose.xlu0.c.b16.cont [4/8] 0, 128
        %2103 = vxpose.xlu0.c.b16.cont [5/8] 0, 128
        %2104 = vxpose.xlu0.c.b16.cont [6/8] 0, 128
        %2105 = vxpose.xlu0.c.b16.cont [7/8] 0, 128
        %2106 = vxpose.xlu0.c.b16.end [8/8] 0, 128
        %v2107 = vpop.trf.xlu0
        %v2108 = vpop.trf.xlu0
        %v2109 = vpop.trf.xlu0
        %v2110 = vpop.trf.xlu0
        %v2111 = vpop.trf.xlu0
        %v2112 = vpop.trf.xlu0
        %v2113 = vpop.trf.xlu0
        %v2114 = vpop.trf.xlu0
        %2115 = vxpose.xlu0.c.b16.start [1/8] %v2061, 128
        %2116 = vxpose.xlu0.c.b16.cont [2/8] 0, 128
        %2117 = vxpose.xlu0.c.b16.cont [3/8] 0, 128
        %2118 = vxpose.xlu0.c.b16.cont [4/8] 0, 128
        %2119 = vxpose.xlu0.c.b16.cont [5/8] 0, 128
        %2120 = vxpose.xlu0.c.b16.cont [6/8] 0, 128
        %2121 = vxpose.xlu0.c.b16.cont [7/8] 0, 128
        %2122 = vxpose.xlu0.c.b16.end [8/8] 0, 128
        %v2123 = vpop.trf.xlu0
        %v2124 = vpop.trf.xlu0
        %v2125 = vpop.trf.xlu0
        %v2126 = vpop.trf.xlu0
        %v2127 = vpop.trf.xlu0
        %v2128 = vpop.trf.xlu0
        %v2129 = vpop.trf.xlu0
        %v2130 = vpop.trf.xlu0
        %2131 = vxpose.xlu0.c.b16.start [1/8] %v2065, 128
        %2132 = vxpose.xlu0.c.b16.cont [2/8] 0, 128
        %2133 = vxpose.xlu0.c.b16.cont [3/8] 0, 128
        %2134 = vxpose.xlu0.c.b16.cont [4/8] 0, 128
        %2135 = vxpose.xlu0.c.b16.cont [5/8] 0, 128
        %2136 = vxpose.xlu0.c.b16.cont [6/8] 0, 128
        %2137 = vxpose.xlu0.c.b16.cont [7/8] 0, 128
        %2138 = vxpose.xlu0.c.b16.end [8/8] 0, 128
        %v2139 = vpop.trf.xlu0
        %v2140 = vpop.trf.xlu0
        %v2141 = vpop.trf.xlu0
        %v2142 = vpop.trf.xlu0
        %v2143 = vpop.trf.xlu0
        %v2144 = vpop.trf.xlu0
        %v2145 = vpop.trf.xlu0
        %v2146 = vpop.trf.xlu0
        %2147 = vxpose.xlu0.c.b16.start [1/8] %v2069, 128
        %2148 = vxpose.xlu0.c.b16.cont [2/8] 0, 128
        %2149 = vxpose.xlu0.c.b16.cont [3/8] 0, 128
        %2150 = vxpose.xlu0.c.b16.cont [4/8] 0, 128
        %2151 = vxpose.xlu0.c.b16.cont [5/8] 0, 128
        %2152 = vxpose.xlu0.c.b16.cont [6/8] 0, 128
        %2153 = vxpose.xlu0.c.b16.cont [7/8] 0, 128
        %2154 = vxpose.xlu0.c.b16.end [8/8] 0, 128
        %v2155 = vpop.trf.xlu0
        %v2156 = vpop.trf.xlu0
        %v2157 = vpop.trf.xlu0
        %v2158 = vpop.trf.xlu0
        %v2159 = vpop.trf.xlu0
        %v2160 = vpop.trf.xlu0
        %v2161 = vpop.trf.xlu0
        %v2162 = vpop.trf.xlu0
        %2163 = vxpose.xlu0.c.b16.start [1/8] %v2073, 128
        %2164 = vxpose.xlu0.c.b16.cont [2/8] 0, 128
        %2165 = vxpose.xlu0.c.b16.cont [3/8] 0, 128
        %2166 = vxpose.xlu0.c.b16.cont [4/8] 0, 128
        %2167 = vxpose.xlu0.c.b16.cont [5/8] 0, 128
        %2168 = vxpose.xlu0.c.b16.cont [6/8] 0, 128
        %2169 = vxpose.xlu0.c.b16.cont [7/8] 0, 128
        %2170 = vxpose.xlu0.c.b16.end [8/8] 0, 128
        %v2171 = vpop.trf.xlu0
        %v2172 = vpop.trf.xlu0
        %v2173 = vpop.trf.xlu0
        %v2174 = vpop.trf.xlu0
        %v2175 = vpop.trf.xlu0
        %v2176 = vpop.trf.xlu0
        %v2177 = vpop.trf.xlu0
        %v2178 = vpop.trf.xlu0
        %2179 = vxpose.xlu0.c.b16.start [1/8] %v2077, 128
        %2180 = vxpose.xlu0.c.b16.cont [2/8] 0, 128
        %2181 = vxpose.xlu0.c.b16.cont [3/8] 0, 128
        %2182 = vxpose.xlu0.c.b16.cont [4/8] 0, 128
        %2183 = vxpose.xlu0.c.b16.cont [5/8] 0, 128
        %2184 = vxpose.xlu0.c.b16.cont [6/8] 0, 128
        %2185 = vxpose.xlu0.c.b16.cont [7/8] 0, 128
        %2186 = vxpose.xlu0.c.b16.end [8/8] 0, 128
        %v2187 = vpop.trf.xlu0
        %v2188 = vpop.trf.xlu0
        %v2189 = vpop.trf.xlu0
        %v2190 = vpop.trf.xlu0
        %v2191 = vpop.trf.xlu0
        %v2192 = vpop.trf.xlu0
        %v2193 = vpop.trf.xlu0
        %v2194 = vpop.trf.xlu0
        %2195 = vxpose.xlu0.c.b16.start [1/8] %v2081, 128
        %2196 = vxpose.xlu0.c.b16.cont [2/8] 0, 128
        %2197 = vxpose.xlu0.c.b16.cont [3/8] 0, 128
        %2198 = vxpose.xlu0.c.b16.cont [4/8] 0, 128
        %2199 = vxpose.xlu0.c.b16.cont [5/8] 0, 128
        %2200 = vxpose.xlu0.c.b16.cont [6/8] 0, 128
        %2201 = vxpose.xlu0.c.b16.cont [7/8] 0, 128
        %2202 = vxpose.xlu0.c.b16.end [8/8] 0, 128
        %v2203 = vpop.trf.xlu0
        %v2204 = vpop.trf.xlu0
        %v2205 = vpop.trf.xlu0
        %v2206 = vpop.trf.xlu0
        %v2207 = vpop.trf.xlu0
        %v2208 = vpop.trf.xlu0
        %v2209 = vpop.trf.xlu0
        %v2210 = vpop.trf.xlu0
        %v2211 = vcombine.low %v2091, %v2155
        %v2213 = vunpack.c.l.s4 1983009808
        %v2214 = vunpack.c.0.s8 %v2213
        %v2215 = vlaneseq
        %v2216 = vshrl.u32 %v2215, 7
        %v2217 = vsub.s32 %v2214, %v2216
        %v2218 = vrot.slane %v2211, %v2217
        %v2219 = vcombine.low %v2123, %v2187
        %v2221 = vunpack.c.l.s4 1983009808
        %v2222 = vunpack.c.0.s8 %v2221
        %v2223 = vlaneseq
        %v2224 = vshrl.u32 %v2223, 7
        %v2225 = vsub.s32 %v2222, %v2224
        %v2226 = vrot.slane %v2219, %v2225
        %v2227 = vcombine.low %v2218, %v2226
        %v2229 = vunpack.c.l.s4 1934713408
        %v2230 = vunpack.c.0.s8 %v2229
        %v2231 = vlaneseq
        %v2232 = vshrl.u32 %v2231, 7
        %v2233 = vsub.s32 %v2230, %v2232
        %v2234 = vrot.slane %v2227, %v2233
        %v2235 = vcombine.high %v2234, 0
        %v2236 = vcombine.low %v2107, %v2171
        %v2238 = vunpack.c.l.s4 1983009808
        %v2239 = vunpack.c.0.s8 %v2238
        %v2240 = vlaneseq
        %v2241 = vshrl.u32 %v2240, 7
        %v2242 = vsub.s32 %v2239, %v2241
        %v2243 = vrot.slane %v2236, %v2242
        %v2244 = vcombine.low %v2139, %v2203
        %v2246 = vunpack.c.l.s4 1983009808
        %v2247 = vunpack.c.0.s8 %v2246
        %v2248 = vlaneseq
        %v2249 = vshrl.u32 %v2248, 7
        %v2250 = vsub.s32 %v2247, %v2249
        %v2251 = vrot.slane %v2244, %v2250
        %v2252 = vcombine.low %v2243, %v2251
        %v2254 = vunpack.c.l.s4 1934713408
        %v2255 = vunpack.c.0.s8 %v2254
        %v2256 = vlaneseq
        %v2257 = vshrl.u32 %v2256, 7
        %v2258 = vsub.s32 %v2255, %v2257
        %v2259 = vrot.slane %v2252, %v2258
        %v2260 = vcombine.high %v2259, 0
        %v2263 = vpack.i.b16 %v2259, %v2234
        %v2264 = vshrl.u32 %v2234, 16
        %v2265 = vshrl.u32 %v2259, 16
        %v2266 = vpack.i.b16 %v2265, %v2264
        %v2269 = vpack.i.b16 %v2260, %v2235
        %v2270 = vshrl.u32 %v2235, 16
        %v2271 = vshrl.u32 %v2260, 16
        %v2272 = vpack.i.b16 %v2271, %v2270
        %v2274 = vsel %vm1621, %v2263, 0
        %v2277 = vsel %vm1621, %v1851, 0
        %2279 = vmatprep.subr.bf16.mxu0 0
        %2280 = vmatpush1.bf16.xpose.msra.mxu0 %v2277
        %2281 = vmatprep.subr.bf16.mxu0 0
        %2282 = vmatpush1.bf16.xpose.msra.mxu0 0
        %2283 = vmatprep.subr.bf16.mxu0 0
        %2284 = vmatpush1.bf16.xpose.msra.mxu0 0
        %2285 = vmatprep.subr.bf16.mxu0 0
        %2286 = vmatpush1.bf16.xpose.msra.mxu0 0
        %2287 = vmatprep.subr.bf16.mxu0 0
        %2288 = vmatpush1.bf16.xpose.msra.mxu0 0
        %2289 = vmatprep.subr.bf16.mxu0 0
        %2290 = vmatpush1.bf16.xpose.msra.mxu0 0
        %2291 = vmatprep.subr.bf16.mxu0 0
        %2292 = vmatpush1.bf16.xpose.msra.mxu0 0
        %2293 = vmatprep.subr.bf16.mxu0 0
        %2294 = vmatpush1.bf16.xpose.msra.mxu0 0
        %2295 = vmatprep.subr.bf16.mxu0 0
        %2296 = vmatpush1.bf16.xpose.msra.mxu0 0
        %2297 = vmatprep.subr.bf16.mxu0 0
        %2298 = vmatpush1.bf16.xpose.msra.mxu0 0
        %2299 = vmatprep.subr.bf16.mxu0 0
        %2300 = vmatpush1.bf16.xpose.msra.mxu0 0
        %2301 = vmatprep.subr.bf16.mxu0 0
        %2302 = vmatpush1.bf16.xpose.msra.mxu0 0
        %2303 = vmatprep.subr.bf16.mxu0 0
        %2304 = vmatpush1.bf16.xpose.msra.mxu0 0
        %2305 = vmatprep.subr.bf16.mxu0 0
        %2306 = vmatpush1.bf16.xpose.msra.mxu0 0
        %2307 = vmatprep.subr.bf16.mxu0 0
        %2308 = vmatpush1.bf16.xpose.msra.mxu0 0
        %2309 = vmatprep.subr.bf16.mxu0 0
        %2310 = vmatpush1.bf16.xpose.msra.mxu0 0
        %2311 = vmatprep.mubr.bf16.mxu0 0
        %2312 = vmatmul.mubr.bf16.gmra.mrb[0].mxu0 %v2274
        %v2313 = vpop.f32.mrb[0].mxu0
        %v2314 = vadd.f32 0.0, %v2313
        %v2315 = vpop.f32.mrb[0].mxu0
        %v2316 = vpop.f32.mrb[0].mxu0
        %v2317 = vpop.f32.mrb[0].mxu0
        %2318 = vdwg.mxu0
        %v2320 = vsel %vm1621, %v2266, 0
        %v2323 = vsel %vm1621, %v1852, 0
        %2325 = vmatprep.subr.bf16.mxu0 0
        %2326 = vmatpush1.bf16.xpose.msra.mxu0 %v2323
        %2327 = vmatprep.subr.bf16.mxu0 0
        %2328 = vmatpush1.bf16.xpose.msra.mxu0 0
        %2329 = vmatprep.subr.bf16.mxu0 0
        %2330 = vmatpush1.bf16.xpose.msra.mxu0 0
        %2331 = vmatprep.subr.bf16.mxu0 0
        %2332 = vmatpush1.bf16.xpose.msra.mxu0 0
        %2333 = vmatprep.subr.bf16.mxu0 0
        %2334 = vmatpush1.bf16.xpose.msra.mxu0 0
        %2335 = vmatprep.subr.bf16.mxu0 0
        %2336 = vmatpush1.bf16.xpose.msra.mxu0 0
        %2337 = vmatprep.subr.bf16.mxu0 0
        %2338 = vmatpush1.bf16.xpose.msra.mxu0 0
        %2339 = vmatprep.subr.bf16.mxu0 0
        %2340 = vmatpush1.bf16.xpose.msra.mxu0 0
        %2341 = vmatprep.subr.bf16.mxu0 0
        %2342 = vmatpush1.bf16.xpose.msra.mxu0 0
        %2343 = vmatprep.subr.bf16.mxu0 0
        %2344 = vmatpush1.bf16.xpose.msra.mxu0 0
        %2345 = vmatprep.subr.bf16.mxu0 0
        %2346 = vmatpush1.bf16.xpose.msra.mxu0 0
        %2347 = vmatprep.subr.bf16.mxu0 0
        %2348 = vmatpush1.bf16.xpose.msra.mxu0 0
        %2349 = vmatprep.subr.bf16.mxu0 0
        %2350 = vmatpush1.bf16.xpose.msra.mxu0 0
        %2351 = vmatprep.subr.bf16.mxu0 0
        %2352 = vmatpush1.bf16.xpose.msra.mxu0 0
        %2353 = vmatprep.subr.bf16.mxu0 0
        %2354 = vmatpush1.bf16.xpose.msra.mxu0 0
        %2355 = vmatprep.subr.bf16.mxu0 0
        %2356 = vmatpush1.bf16.xpose.msra.mxu0 0
        %2357 = vmatprep.mubr.bf16.mxu0 0
        %2358 = vmatmul.mubr.bf16.gmra.mrb[0].mxu0 %v2320
        %v2359 = vpop.f32.mrb[0].mxu0
        %v2360 = vadd.f32 0.0, %v2359
        %v2361 = vpop.f32.mrb[0].mxu0
        %v2362 = vpop.f32.mrb[0].mxu0
        %v2363 = vpop.f32.mrb[0].mxu0
        %2364 = vdwg.mxu0
        %v2366 = vsel %vm1621, %v2269, 0
        %v2369 = vsel %vm1621, %v1853, 0
        %2371 = vmatprep.subr.bf16.mxu0 0
        %2372 = vmatpush1.bf16.xpose.msra.mxu0 %v2369
        %2373 = vmatprep.subr.bf16.mxu0 0
        %2374 = vmatpush1.bf16.xpose.msra.mxu0 0
        %2375 = vmatprep.subr.bf16.mxu0 0
        %2376 = vmatpush1.bf16.xpose.msra.mxu0 0
        %2377 = vmatprep.subr.bf16.mxu0 0
        %2378 = vmatpush1.bf16.xpose.msra.mxu0 0
        %2379 = vmatprep.subr.bf16.mxu0 0
        %2380 = vmatpush1.bf16.xpose.msra.mxu0 0
        %2381 = vmatprep.subr.bf16.mxu0 0
        %2382 = vmatpush1.bf16.xpose.msra.mxu0 0
        %2383 = vmatprep.subr.bf16.mxu0 0
        %2384 = vmatpush1.bf16.xpose.msra.mxu0 0
        %2385 = vmatprep.subr.bf16.mxu0 0
        %2386 = vmatpush1.bf16.xpose.msra.mxu0 0
        %2387 = vmatprep.subr.bf16.mxu0 0
        %2388 = vmatpush1.bf16.xpose.msra.mxu0 0
        %2389 = vmatprep.subr.bf16.mxu0 0
        %2390 = vmatpush1.bf16.xpose.msra.mxu0 0
        %2391 = vmatprep.subr.bf16.mxu0 0
        %2392 = vmatpush1.bf16.xpose.msra.mxu0 0
        %2393 = vmatprep.subr.bf16.mxu0 0
        %2394 = vmatpush1.bf16.xpose.msra.mxu0 0
        %2395 = vmatprep.subr.bf16.mxu0 0
        %2396 = vmatpush1.bf16.xpose.msra.mxu0 0
        %2397 = vmatprep.subr.bf16.mxu0 0
        %2398 = vmatpush1.bf16.xpose.msra.mxu0 0
        %2399 = vmatprep.subr.bf16.mxu0 0
        %2400 = vmatpush1.bf16.xpose.msra.mxu0 0
        %2401 = vmatprep.subr.bf16.mxu0 0
        %2402 = vmatpush1.bf16.xpose.msra.mxu0 0
        %2403 = vmatprep.mubr.bf16.mxu0 0
        %2404 = vmatmul.mubr.bf16.gmra.mrb[0].mxu0 %v2366
        %v2405 = vpop.f32.mrb[0].mxu0
        %v2406 = vadd.f32 0.0, %v2405
        %v2407 = vpop.f32.mrb[0].mxu0
        %v2408 = vpop.f32.mrb[0].mxu0
        %v2409 = vpop.f32.mrb[0].mxu0
        %2410 = vdwg.mxu0
        %v2412 = vsel %vm1621, %v2272, 0
        %v2415 = vsel %vm1621, %v1854, 0
        %2417 = vmatprep.subr.bf16.mxu0 0
        %2418 = vmatpush1.bf16.xpose.msra.mxu0 %v2415
        %2419 = vmatprep.subr.bf16.mxu0 0
        %2420 = vmatpush1.bf16.xpose.msra.mxu0 0
        %2421 = vmatprep.subr.bf16.mxu0 0
        %2422 = vmatpush1.bf16.xpose.msra.mxu0 0
        %2423 = vmatprep.subr.bf16.mxu0 0
        %2424 = vmatpush1.bf16.xpose.msra.mxu0 0
        %2425 = vmatprep.subr.bf16.mxu0 0
        %2426 = vmatpush1.bf16.xpose.msra.mxu0 0
        %2427 = vmatprep.subr.bf16.mxu0 0
        %2428 = vmatpush1.bf16.xpose.msra.mxu0 0
        %2429 = vmatprep.subr.bf16.mxu0 0
        %2430 = vmatpush1.bf16.xpose.msra.mxu0 0
        %2431 = vmatprep.subr.bf16.mxu0 0
        %2432 = vmatpush1.bf16.xpose.msra.mxu0 0
        %2433 = vmatprep.subr.bf16.mxu0 0
        %2434 = vmatpush1.bf16.xpose.msra.mxu0 0
        %2435 = vmatprep.subr.bf16.mxu0 0
        %2436 = vmatpush1.bf16.xpose.msra.mxu0 0
        %2437 = vmatprep.subr.bf16.mxu0 0
        %2438 = vmatpush1.bf16.xpose.msra.mxu0 0
        %2439 = vmatprep.subr.bf16.mxu0 0
        %2440 = vmatpush1.bf16.xpose.msra.mxu0 0
        %2441 = vmatprep.subr.bf16.mxu0 0
        %2442 = vmatpush1.bf16.xpose.msra.mxu0 0
        %2443 = vmatprep.subr.bf16.mxu0 0
        %2444 = vmatpush1.bf16.xpose.msra.mxu0 0
        %2445 = vmatprep.subr.bf16.mxu0 0
        %2446 = vmatpush1.bf16.xpose.msra.mxu0 0
        %2447 = vmatprep.subr.bf16.mxu0 0
        %2448 = vmatpush1.bf16.xpose.msra.mxu0 0
        %2449 = vmatprep.mubr.bf16.mxu0 0
        %2450 = vmatmul.mubr.bf16.gmra.mrb[0].mxu0 %v2412
        %v2451 = vpop.f32.mrb[0].mxu0
        %v2452 = vadd.f32 0.0, %v2451
        %v2453 = vpop.f32.mrb[0].mxu0
        %v2454 = vpop.f32.mrb[0].mxu0
        %v2455 = vpop.f32.mrb[0].mxu0
        %2456 = vdwg.mxu0
        %2457 = vxpose.xlu0.b32.start [1/16] %v2314, 128
        %2458 = vxpose.xlu0.b32.cont [2/16] 0.0, 128
        %2459 = vxpose.xlu0.b32.cont [3/16] 0.0, 128
        %2460 = vxpose.xlu0.b32.cont [4/16] 0.0, 128
        %2461 = vxpose.xlu0.b32.cont [5/16] 0.0, 128
        %2462 = vxpose.xlu0.b32.cont [6/16] 0.0, 128
        %2463 = vxpose.xlu0.b32.cont [7/16] 0.0, 128
        %2464 = vxpose.xlu0.b32.cont [8/16] 0.0, 128
        %2465 = vxpose.xlu0.b32.cont [9/16] 0.0, 128
        %2466 = vxpose.xlu0.b32.cont [10/16] 0.0, 128
        %2467 = vxpose.xlu0.b32.cont [11/16] 0.0, 128
        %2468 = vxpose.xlu0.b32.cont [12/16] 0.0, 128
        %2469 = vxpose.xlu0.b32.cont [13/16] 0.0, 128
        %2470 = vxpose.xlu0.b32.cont [14/16] 0.0, 128
        %2471 = vxpose.xlu0.b32.cont [15/16] 0.0, 128
        %2472 = vxpose.xlu0.b32.end [16/16] 0.0, 128
        %v2473 = vpop.trf.xlu0
        %v2474 = vpop.trf.xlu0
        %v2475 = vpop.trf.xlu0
        %v2476 = vpop.trf.xlu0
        %v2477 = vpop.trf.xlu0
        %v2478 = vpop.trf.xlu0
        %v2479 = vpop.trf.xlu0
        %v2480 = vpop.trf.xlu0
        %v2481 = vpop.trf.xlu0
        %v2482 = vpop.trf.xlu0
        %v2483 = vpop.trf.xlu0
        %v2484 = vpop.trf.xlu0
        %v2485 = vpop.trf.xlu0
        %v2486 = vpop.trf.xlu0
        %v2487 = vpop.trf.xlu0
        %v2488 = vpop.trf.xlu0
        %2489 = vxpose.xlu0.b32.start [1/16] %v2360, 128
        %2490 = vxpose.xlu0.b32.cont [2/16] 0.0, 128
        %2491 = vxpose.xlu0.b32.cont [3/16] 0.0, 128
        %2492 = vxpose.xlu0.b32.cont [4/16] 0.0, 128
        %2493 = vxpose.xlu0.b32.cont [5/16] 0.0, 128
        %2494 = vxpose.xlu0.b32.cont [6/16] 0.0, 128
        %2495 = vxpose.xlu0.b32.cont [7/16] 0.0, 128
        %2496 = vxpose.xlu0.b32.cont [8/16] 0.0, 128
        %2497 = vxpose.xlu0.b32.cont [9/16] 0.0, 128
        %2498 = vxpose.xlu0.b32.cont [10/16] 0.0, 128
        %2499 = vxpose.xlu0.b32.cont [11/16] 0.0, 128
        %2500 = vxpose.xlu0.b32.cont [12/16] 0.0, 128
        %2501 = vxpose.xlu0.b32.cont [13/16] 0.0, 128
        %2502 = vxpose.xlu0.b32.cont [14/16] 0.0, 128
        %2503 = vxpose.xlu0.b32.cont [15/16] 0.0, 128
        %2504 = vxpose.xlu0.b32.end [16/16] 0.0, 128
        %v2505 = vpop.trf.xlu0
        %v2506 = vpop.trf.xlu0
        %v2507 = vpop.trf.xlu0
        %v2508 = vpop.trf.xlu0
        %v2509 = vpop.trf.xlu0
        %v2510 = vpop.trf.xlu0
        %v2511 = vpop.trf.xlu0
        %v2512 = vpop.trf.xlu0
        %v2513 = vpop.trf.xlu0
        %v2514 = vpop.trf.xlu0
        %v2515 = vpop.trf.xlu0
        %v2516 = vpop.trf.xlu0
        %v2517 = vpop.trf.xlu0
        %v2518 = vpop.trf.xlu0
        %v2519 = vpop.trf.xlu0
        %v2520 = vpop.trf.xlu0
        %2521 = vxpose.xlu0.b32.start [1/16] %v2406, 128
        %2522 = vxpose.xlu0.b32.cont [2/16] 0.0, 128
        %2523 = vxpose.xlu0.b32.cont [3/16] 0.0, 128
        %2524 = vxpose.xlu0.b32.cont [4/16] 0.0, 128
        %2525 = vxpose.xlu0.b32.cont [5/16] 0.0, 128
        %2526 = vxpose.xlu0.b32.cont [6/16] 0.0, 128
        %2527 = vxpose.xlu0.b32.cont [7/16] 0.0, 128
        %2528 = vxpose.xlu0.b32.cont [8/16] 0.0, 128
        %2529 = vxpose.xlu0.b32.cont [9/16] 0.0, 128
        %2530 = vxpose.xlu0.b32.cont [10/16] 0.0, 128
        %2531 = vxpose.xlu0.b32.cont [11/16] 0.0, 128
        %2532 = vxpose.xlu0.b32.cont [12/16] 0.0, 128
        %2533 = vxpose.xlu0.b32.cont [13/16] 0.0, 128
        %2534 = vxpose.xlu0.b32.cont [14/16] 0.0, 128
        %2535 = vxpose.xlu0.b32.cont [15/16] 0.0, 128
        %2536 = vxpose.xlu0.b32.end [16/16] 0.0, 128
        %v2537 = vpop.trf.xlu0
        %v2538 = vpop.trf.xlu0
        %v2539 = vpop.trf.xlu0
        %v2540 = vpop.trf.xlu0
        %v2541 = vpop.trf.xlu0
        %v2542 = vpop.trf.xlu0
        %v2543 = vpop.trf.xlu0
        %v2544 = vpop.trf.xlu0
        %v2545 = vpop.trf.xlu0
        %v2546 = vpop.trf.xlu0
        %v2547 = vpop.trf.xlu0
        %v2548 = vpop.trf.xlu0
        %v2549 = vpop.trf.xlu0
        %v2550 = vpop.trf.xlu0
        %v2551 = vpop.trf.xlu0
        %v2552 = vpop.trf.xlu0
        %2553 = vxpose.xlu0.b32.start [1/16] %v2452, 128
        %2554 = vxpose.xlu0.b32.cont [2/16] 0.0, 128
        %2555 = vxpose.xlu0.b32.cont [3/16] 0.0, 128
        %2556 = vxpose.xlu0.b32.cont [4/16] 0.0, 128
        %2557 = vxpose.xlu0.b32.cont [5/16] 0.0, 128
        %2558 = vxpose.xlu0.b32.cont [6/16] 0.0, 128
        %2559 = vxpose.xlu0.b32.cont [7/16] 0.0, 128
        %2560 = vxpose.xlu0.b32.cont [8/16] 0.0, 128
        %2561 = vxpose.xlu0.b32.cont [9/16] 0.0, 128
        %2562 = vxpose.xlu0.b32.cont [10/16] 0.0, 128
        %2563 = vxpose.xlu0.b32.cont [11/16] 0.0, 128
        %2564 = vxpose.xlu0.b32.cont [12/16] 0.0, 128
        %2565 = vxpose.xlu0.b32.cont [13/16] 0.0, 128
        %2566 = vxpose.xlu0.b32.cont [14/16] 0.0, 128
        %2567 = vxpose.xlu0.b32.cont [15/16] 0.0, 128
        %2568 = vxpose.xlu0.b32.end [16/16] 0.0, 128
        %v2569 = vpop.trf.xlu0
        %v2570 = vpop.trf.xlu0
        %v2571 = vpop.trf.xlu0
        %v2572 = vpop.trf.xlu0
        %v2573 = vpop.trf.xlu0
        %v2574 = vpop.trf.xlu0
        %v2575 = vpop.trf.xlu0
        %v2576 = vpop.trf.xlu0
        %v2577 = vpop.trf.xlu0
        %v2578 = vpop.trf.xlu0
        %v2579 = vpop.trf.xlu0
        %v2580 = vpop.trf.xlu0
        %v2581 = vpop.trf.xlu0
        %v2582 = vpop.trf.xlu0
        %v2583 = vpop.trf.xlu0
        %v2584 = vpop.trf.xlu0
        %v2585 = vcombine.low %v2473, %v2537
        %v2586 = vcombine.high %v2473, %v2537
        %v2588 = vunpack.c.l.s4 1983009808
        %v2589 = vunpack.c.0.s8 %v2588
        %v2590 = vlaneseq
        %v2591 = vshrl.u32 %v2590, 7
        %v2592 = vsub.s32 %v2589, %v2591
        %v2593 = vrot.slane %v2585, %v2592
        %v2595 = vunpack.c.l.s4 1983009808
        %v2596 = vunpack.c.0.s8 %v2595
        %v2597 = vlaneseq
        %v2598 = vshrl.u32 %v2597, 7
        %v2599 = vsub.s32 %v2596, %v2598
        %v2600 = vrot.slane %v2586, %v2599
        %v2601 = vcombine.low %v2505, %v2569
        %v2602 = vcombine.high %v2505, %v2569
        %v2604 = vunpack.c.l.s4 1983009808
        %v2605 = vunpack.c.0.s8 %v2604
        %v2606 = vlaneseq
        %v2607 = vshrl.u32 %v2606, 7
        %v2608 = vsub.s32 %v2605, %v2607
        %v2609 = vrot.slane %v2601, %v2608
        %v2611 = vunpack.c.l.s4 1983009808
        %v2612 = vunpack.c.0.s8 %v2611
        %v2613 = vlaneseq
        %v2614 = vshrl.u32 %v2613, 7
        %v2615 = vsub.s32 %v2612, %v2614
        %v2616 = vrot.slane %v2602, %v2615
        %v2617 = vcombine.low %v2593, %v2609
        %v2618 = vcombine.high %v2593, %v2609
        %v2620 = vunpack.c.l.s4 1934713408
        %v2621 = vunpack.c.0.s8 %v2620
        %v2622 = vlaneseq
        %v2623 = vshrl.u32 %v2622, 7
        %v2624 = vsub.s32 %v2621, %v2623
        %v2625 = vrot.slane %v2617, %v2624
        %v2627 = vunpack.c.l.s4 1934713408
        %v2628 = vunpack.c.0.s8 %v2627
        %v2629 = vlaneseq
        %v2630 = vshrl.u32 %v2629, 7
        %v2631 = vsub.s32 %v2628, %v2630
        %v2632 = vrot.slane %v2618, %v2631
        %v2633 = vcombine.low %v2600, %v2616
        %v2634 = vcombine.high %v2600, %v2616
        %v2636 = vunpack.c.l.s4 1934713408
        %v2637 = vunpack.c.0.s8 %v2636
        %v2638 = vlaneseq
        %v2639 = vshrl.u32 %v2638, 7
        %v2640 = vsub.s32 %v2637, %v2639
        %v2641 = vrot.slane %v2633, %v2640
        %v2643 = vunpack.c.l.s4 1934713408
        %v2644 = vunpack.c.0.s8 %v2643
        %v2645 = vlaneseq
        %v2646 = vshrl.u32 %v2645, 7
        %v2647 = vsub.s32 %v2644, %v2646
        %v2648 = vrot.slane %v2634, %v2647
        %v2649 = vcombine.high %v2625, 0.0
        %v2650 = vcombine.high %v2632, 0.0
        %v2651 = vcombine.high %v2641, 0.0
        %v2652 = vcombine.high %v2648, 0.0
        %v2653 = vcombine.low %v2625, %v2632
        %v2655 = vunpack.c.l.s4 1983009808
        %v2656 = vunpack.c.0.s8 %v2655
        %v2657 = vlaneseq
        %v2658 = vshrl.u32 %v2657, 7
        %v2659 = vsub.s32 %v2656, %v2658
        %v2660 = vrot.slane %v2653, %v2659
        %v2661 = vcombine.low %v2649, %v2650
        %v2663 = vunpack.c.l.s4 1983009808
        %v2664 = vunpack.c.0.s8 %v2663
        %v2665 = vlaneseq
        %v2666 = vshrl.u32 %v2665, 7
        %v2667 = vsub.s32 %v2664, %v2666
        %v2668 = vrot.slane %v2661, %v2667
        %v2669 = vcombine.low %v2641, %v2648
        %v2671 = vunpack.c.l.s4 1983009808
        %v2672 = vunpack.c.0.s8 %v2671
        %v2673 = vlaneseq
        %v2674 = vshrl.u32 %v2673, 7
        %v2675 = vsub.s32 %v2672, %v2674
        %v2676 = vrot.slane %v2669, %v2675
        %v2677 = vcombine.low %v2651, %v2652
        %v2679 = vunpack.c.l.s4 1983009808
        %v2680 = vunpack.c.0.s8 %v2679
        %v2681 = vlaneseq
        %v2682 = vshrl.u32 %v2681, 7
        %v2683 = vsub.s32 %v2680, %v2682
        %v2684 = vrot.slane %v2677, %v2683
        %v2685 = vcombine.low %v2660, %v2668
        %v2686 = vcombine.high %v2660, %v2668
        %v2688 = vunpack.c.l.s4 1934713408
        %v2689 = vunpack.c.0.s8 %v2688
        %v2690 = vlaneseq
        %v2691 = vshrl.u32 %v2690, 7
        %v2692 = vsub.s32 %v2689, %v2691
        %v2693 = vrot.slane %v2685, %v2692
        %v2695 = vunpack.c.l.s4 1934713408
        %v2696 = vunpack.c.0.s8 %v2695
        %v2697 = vlaneseq
        %v2698 = vshrl.u32 %v2697, 7
        %v2699 = vsub.s32 %v2696, %v2698
        %v2700 = vrot.slane %v2686, %v2699
        %v2701 = vcombine.low %v2676, %v2684
        %v2702 = vcombine.high %v2676, %v2684
        %v2704 = vunpack.c.l.s4 1934713408
        %v2705 = vunpack.c.0.s8 %v2704
        %v2706 = vlaneseq
        %v2707 = vshrl.u32 %v2706, 7
        %v2708 = vsub.s32 %v2705, %v2707
        %v2709 = vrot.slane %v2701, %v2708
        %v2711 = vunpack.c.l.s4 1934713408
        %v2712 = vunpack.c.0.s8 %v2711
        %v2713 = vlaneseq
        %v2714 = vshrl.u32 %v2713, 7
        %v2715 = vsub.s32 %v2712, %v2714
        %v2716 = vrot.slane %v2702, %v2715
        %v2717 = vcombine.low %v2693, %v2709
        %v2718 = vcombine.high %v2693, %v2709
        %v2719 = vcombine.low %v2700, %v2716
        %v2720 = vcombine.high %v2700, %v2716
        %2722 = vrot.lane.b32.xlu0 %v2718, 8
        %v2723 = vpop.permute.xlu0 %2722
        %2726 = vrot.lane.b32.xlu0 %v2719, 16
        %v2727 = vpop.permute.xlu0 %2726
        %2730 = vrot.lane.b32.xlu0 %v2720, 24
        %v2731 = vpop.permute.xlu0 %2730
        %v2733 = vsel %vm1621, %v2717, %v2723
        %vm2734 = vcmask 130048
        %v2735 = vsel %vm2734, %v2733, %v2727
        %vm2736 = vcmask 195584
        %v2737 = vsel %vm2736, %v2735, %v2731
        %v2738 = vpack.c.bf16 %v2737, %v2737
        %v2739 = vld [vmem:[#allocation15] sm:$0xf]
        %v2740 = vld [vmem:[#allocation15 + $0x4] sm:$0xf]
        %v2741 = vld [vmem:[#allocation15 + $0x8] sm:$0xf]
        %v2742 = vld [vmem:[#allocation15 + $0xc] sm:$0xf]
        %v2743 = vld [vmem:[#allocation16] sm:$0x1]
        %v2745 = vlaneseq
        %v2746 = vshrl.u32 %v2745, 7
        %v2747 = vsub.s32 0, %v2746
        %v2748 = vrot.slane %v2743, %v2747
        %v2754 = vunpack.c.l.b16 %v2739
        %v2755 = vunpack.c.l.b16 %v2740
        %v2756 = vunpack.c.l.b16 %v2741
        %v2757 = vunpack.c.l.b16 %v2742
        %v2758 = vpack.c.b16 %v2755, %v2754
        %v2759 = vpack.c.b16 %v2757, %v2756
        %v2763 = vsel %vm985, %v2738, 0
        %2765 = vmatprep.subr.bf16.mxu0 0
        %2766 = vmatpush1.bf16.msra.mxu0 %v2758
        %2767 = vmatprep.subr.bf16.mxu0 0
        %2768 = vmatpush1.bf16.msra.mxu0 %v2759
        %2769 = vmatprep.subr.bf16.mxu0 0
        %2770 = vmatpush1.bf16.msra.mxu0 0
        %2771 = vmatprep.subr.bf16.mxu0 0
        %2772 = vmatpush1.bf16.msra.mxu0 0
        %2773 = vmatprep.subr.bf16.mxu0 0
        %2774 = vmatpush1.bf16.msra.mxu0 0
        %2775 = vmatprep.subr.bf16.mxu0 0
        %2776 = vmatpush1.bf16.msra.mxu0 0
        %2777 = vmatprep.subr.bf16.mxu0 0
        %2778 = vmatpush1.bf16.msra.mxu0 0
        %2779 = vmatprep.subr.bf16.mxu0 0
        %2780 = vmatpush1.bf16.msra.mxu0 0
        %2781 = vmatprep.subr.bf16.mxu0 0
        %2782 = vmatpush1.bf16.msra.mxu0 0
        %2783 = vmatprep.subr.bf16.mxu0 0
        %2784 = vmatpush1.bf16.msra.mxu0 0
        %2785 = vmatprep.subr.bf16.mxu0 0
        %2786 = vmatpush1.bf16.msra.mxu0 0
        %2787 = vmatprep.subr.bf16.mxu0 0
        %2788 = vmatpush1.bf16.msra.mxu0 0
        %2789 = vmatprep.subr.bf16.mxu0 0
        %2790 = vmatpush1.bf16.msra.mxu0 0
        %2791 = vmatprep.subr.bf16.mxu0 0
        %2792 = vmatpush1.bf16.msra.mxu0 0
        %2793 = vmatprep.subr.bf16.mxu0 0
        %2794 = vmatpush1.bf16.msra.mxu0 0
        %2795 = vmatprep.subr.bf16.mxu0 0
        %2796 = vmatpush1.bf16.msra.mxu0 0
        %2797 = vmatprep.mubr.bf16.mxu0 0
        %2798 = vmatmul.mubr.bf16.gmra.mrb[0].mxu0 %v2763
        %v2799 = vpop.f32.mrb[0].mxu0
        %v2800 = vadd.f32 %v2748, %v2799
        %v2801 = vpop.f32.mrb[0].mxu0
        %v2802 = vpop.f32.mrb[0].mxu0
        %v2803 = vpop.f32.mrb[0].mxu0
        %2804 = vdwg.mxu0
        %v2805 = vadd.f32 %v2800, %v961
        %v2806 = vsel %vm985, %v2805, 0.0
        %2807 = vadd.xlane.f32.xlu0 %v2806
        %v2808 = vpop.xlane.xlu0 %2807
        %v2809 = vrcp.pop 32.0
        %v2810 = vmul.f32 %v2808, %v2809
        %v2811 = vsub.f32 %v2805, %v2810
        %v2812 = vmul.f32 %v2811, %v2811
        %v2813 = vsel %vm985, %v2812, 0.0
        %2814 = vadd.xlane.f32.xlu0 %v2813
        %v2815 = vpop.xlane.xlu0 %2814
        %v2816 = vmul.f32 %v2815, %v2809
        %v2817 = vadd.f32 %v2816, 1e-06
        %v2818 = vrsqrt.pop %v2817
        %v2819 = vmul.f32 %v2811, %v2818
        %v2820 = vld [vmem:[#allocation24] sm:$0x1]
        %v2822 = vlaneseq
        %v2823 = vshrl.u32 %v2822, 7
        %v2824 = vsub.s32 0, %v2823
        %v2825 = vrot.slane %v2820, %v2824
        %v2827 = vmul.f32 %v2819, %v2825
        %v2828 = vld [vmem:[#allocation25] sm:$0x1]
        %v2830 = vlaneseq
        %v2831 = vshrl.u32 %v2830, 7
        %v2832 = vsub.s32 0, %v2831
        %v2833 = vrot.slane %v2828, %v2832
        %v2835 = vadd.f32 %v2827, %v2833
        %v2836 = vpack.c.bf16 %v2835, %v2835
        %v2837 = vld [vmem:[#allocation18] sm:$0xf]
        %v2838 = vld [vmem:[#allocation18 + $0x4] sm:$0xf]
        %v2839 = vld [vmem:[#allocation18 + $0x8] sm:$0xf]
        %v2840 = vld [vmem:[#allocation18 + $0xc] sm:$0xf]
        %v2841 = vld [vmem:[#allocation19] sm:$0x1]
        %v2843 = vlaneseq
        %v2844 = vshrl.u32 %v2843, 7
        %v2845 = vsub.s32 0, %v2844
        %v2846 = vrot.slane %v2841, %v2845
        %v2852 = vunpack.c.l.b16 %v2837
        %v2853 = vunpack.c.l.b16 %v2838
        %v2854 = vunpack.c.l.b16 %v2839
        %v2855 = vunpack.c.l.b16 %v2840
        %v2856 = vpack.c.b16 %v2853, %v2852
        %v2857 = vpack.c.b16 %v2855, %v2854
        %v2861 = vsel %vm985, %v2836, 0
        %2863 = vmatprep.subr.bf16.mxu0 0
        %2864 = vmatpush1.bf16.msra.mxu0 %v2856
        %2865 = vmatprep.subr.bf16.mxu0 0
        %2866 = vmatpush1.bf16.msra.mxu0 %v2857
        %2867 = vmatprep.subr.bf16.mxu0 0
        %2868 = vmatpush1.bf16.msra.mxu0 0
        %2869 = vmatprep.subr.bf16.mxu0 0
        %2870 = vmatpush1.bf16.msra.mxu0 0
        %2871 = vmatprep.subr.bf16.mxu0 0
        %2872 = vmatpush1.bf16.msra.mxu0 0
        %2873 = vmatprep.subr.bf16.mxu0 0
        %2874 = vmatpush1.bf16.msra.mxu0 0
        %2875 = vmatprep.subr.bf16.mxu0 0
        %2876 = vmatpush1.bf16.msra.mxu0 0
        %2877 = vmatprep.subr.bf16.mxu0 0
        %2878 = vmatpush1.bf16.msra.mxu0 0
        %2879 = vmatprep.subr.bf16.mxu0 0
        %2880 = vmatpush1.bf16.msra.mxu0 0
        %2881 = vmatprep.subr.bf16.mxu0 0
        %2882 = vmatpush1.bf16.msra.mxu0 0
        %2883 = vmatprep.subr.bf16.mxu0 0
        %2884 = vmatpush1.bf16.msra.mxu0 0
        %2885 = vmatprep.subr.bf16.mxu0 0
        %2886 = vmatpush1.bf16.msra.mxu0 0
        %2887 = vmatprep.subr.bf16.mxu0 0
        %2888 = vmatpush1.bf16.msra.mxu0 0
        %2889 = vmatprep.subr.bf16.mxu0 0
        %2890 = vmatpush1.bf16.msra.mxu0 0
        %2891 = vmatprep.subr.bf16.mxu0 0
        %2892 = vmatpush1.bf16.msra.mxu0 0
        %2893 = vmatprep.subr.bf16.mxu0 0
        %2894 = vmatpush1.bf16.msra.mxu0 0
        %2895 = vmatprep.mubr.bf16.mxu0 0
        %2896 = vmatmul.mubr.bf16.gmra.mrb[0].mxu0 %v2861
        %v2897 = vpop.f32.mrb[0].mxu0
        %v2898 = vadd.f32 %v2846, %v2897
        %v2899 = vpop.f32.mrb[0].mxu0
        %v2900 = vpop.f32.mrb[0].mxu0
        %v2901 = vpop.f32.mrb[0].mxu0
        %2902 = vdwg.mxu0
        %v2903 = vmul.f32 %v2898, %v2898
        %v2904 = vmul.f32 %v2898, %v2903
        %v2905 = vmul.f32 %v2904, 0.044715
        %v2906 = vadd.f32 %v2898, %v2905
        %v2907 = vmul.f32 %v2906, 0.7978846
        %v2908 = vtanh.pop %v2907
        %v2909 = vadd.f32 %v2908, 1.0
        %v2910 = vmul.f32 %v2909, 0.5
        %v2911 = vmul.f32 %v2898, %v2910
        %v2912 = vpack.c.bf16 %v2911, %v2911
        %v2913 = vld [vmem:[#allocation21] sm:$0xf]
        %v2914 = vld [vmem:[#allocation21 + $0x4] sm:$0xf]
        %v2915 = vld [vmem:[#allocation21 + $0x8] sm:$0xf]
        %v2916 = vld [vmem:[#allocation21 + $0xc] sm:$0xf]
        %v2917 = vld [vmem:[#allocation21 + $0x10] sm:$0xf]
        %v2918 = vld [vmem:[#allocation21 + $0x14] sm:$0xf]
        %v2919 = vld [vmem:[#allocation21 + $0x18] sm:$0xf]
        %v2920 = vld [vmem:[#allocation21 + $0x1c] sm:$0xf]
        %v2921 = vld [vmem:[#allocation22] sm:$0x1]
        %v2923 = vlaneseq
        %v2924 = vshrl.u32 %v2923, 7
        %v2925 = vsub.s32 0, %v2924
        %v2926 = vrot.slane %v2921, %v2925
        %v2936 = vunpack.c.l.b16 %v2913
        %v2937 = vunpack.c.l.b16 %v2914
        %v2938 = vunpack.c.l.b16 %v2915
        %v2939 = vunpack.c.l.b16 %v2916
        %v2940 = vunpack.c.l.b16 %v2917
        %v2941 = vunpack.c.l.b16 %v2918
        %v2942 = vunpack.c.l.b16 %v2919
        %v2943 = vunpack.c.l.b16 %v2920
        %v2944 = vpack.c.b16 %v2937, %v2936
        %v2945 = vpack.c.b16 %v2939, %v2938
        %v2946 = vpack.c.b16 %v2941, %v2940
        %v2947 = vpack.c.b16 %v2943, %v2942
        %vm2952 = vcmask 523264
        %v2954 = vsel %vm2952, %v2912, 0
        %2956 = vmatprep.subr.bf16.mxu0 0
        %2957 = vmatpush1.bf16.msra.mxu0 %v2944
        %2958 = vmatprep.subr.bf16.mxu0 0
        %2959 = vmatpush1.bf16.msra.mxu0 %v2945
        %2960 = vmatprep.subr.bf16.mxu0 0
        %2961 = vmatpush1.bf16.msra.mxu0 %v2946
        %2962 = vmatprep.subr.bf16.mxu0 0
        %2963 = vmatpush1.bf16.msra.mxu0 %v2947
        %2964 = vmatprep.subr.bf16.mxu0 0
        %2965 = vmatpush1.bf16.msra.mxu0 0
        %2966 = vmatprep.subr.bf16.mxu0 0
        %2967 = vmatpush1.bf16.msra.mxu0 0
        %2968 = vmatprep.subr.bf16.mxu0 0
        %2969 = vmatpush1.bf16.msra.mxu0 0
        %2970 = vmatprep.subr.bf16.mxu0 0
        %2971 = vmatpush1.bf16.msra.mxu0 0
        %2972 = vmatprep.subr.bf16.mxu0 0
        %2973 = vmatpush1.bf16.msra.mxu0 0
        %2974 = vmatprep.subr.bf16.mxu0 0
        %2975 = vmatpush1.bf16.msra.mxu0 0
        %2976 = vmatprep.subr.bf16.mxu0 0
        %2977 = vmatpush1.bf16.msra.mxu0 0
        %2978 = vmatprep.subr.bf16.mxu0 0
        %2979 = vmatpush1.bf16.msra.mxu0 0
        %2980 = vmatprep.subr.bf16.mxu0 0
        %2981 = vmatpush1.bf16.msra.mxu0 0
        %2982 = vmatprep.subr.bf16.mxu0 0
        %2983 = vmatpush1.bf16.msra.mxu0 0
        %2984 = vmatprep.subr.bf16.mxu0 0
        %2985 = vmatpush1.bf16.msra.mxu0 0
        %2986 = vmatprep.subr.bf16.mxu0 0
        %2987 = vmatpush1.bf16.msra.mxu0 0
        %2988 = vmatprep.mubr.bf16.mxu0 0
        %2989 = vmatmul.mubr.bf16.gmra.mrb[0].mxu0 %v2954
        %v2990 = vpop.f32.mrb[0].mxu0
        %v2991 = vadd.f32 %v2926, %v2990
        %v2992 = vpop.f32.mrb[0].mxu0
        %v2993 = vpop.f32.mrb[0].mxu0
        %v2994 = vpop.f32.mrb[0].mxu0
        %2995 = vdwg.mxu0
        %v2996 = vadd.f32 %v2991, %v2835
        %v2997 = vsel %vm985, %v2996, 0.0
        %2998 = vadd.xlane.f32.xlu0 %v2997
        %v2999 = vpop.xlane.xlu0 %2998
        %v3000 = vmul.f32 %v2999, %v2809
        %v3001 = vsub.f32 %v2996, %v3000
        %v3002 = vmul.f32 %v3001, %v3001
        %v3003 = vsel %vm985, %v3002, 0.0
        %3004 = vadd.xlane.f32.xlu0 %v3003
        %v3005 = vpop.xlane.xlu0 %3004
        %v3006 = vmul.f32 %v3005, %v2809
        %v3007 = vadd.f32 %v3006, 1e-06
        %v3008 = vrsqrt.pop %v3007
        %v3009 = vmul.f32 %v3001, %v3008
        %v3010 = vmul.f32 %v3009, %v2825
        %v3011 = vadd.f32 %v3010, %v2833
        %v3012 = vpack.c.bf16 %v3011, %v3011
        %vm3013 = vcmask 257024
        %3014 = vst.msk [vmem:[%s690] sm:$0xf] %vm3013, %v3012
        %s3015 = sand.u32 %s366, 1
        %s3016 = scalar_lea.sflag [#allocation6], %s3015
        %s3017 = sand.u32 %s366, 1
        %s3018 = smul.addr %s3017, 4
        %s3019 = scalar_lea.vmem [#allocation27], %s3018
        // Predicated region
        $region137: #{tpu_custom_call.1} parent=75 // pred_check
          %p3020 = pneg %p376
        $region138: #{tpu_custom_call.1} parent=75 // pred_check_branch
          %3022 = sbr.rel (%p3020) target = $region140
        $region139: #{tpu_custom_call.1} parent=75 // pred_region
          %s3024 = ssub.s32 64, 64
          %3025 = vsyncadd %s3016, %s3024
          %s3026 = sadd.s32 %s45, %s44
          %s3027 = smul.addr %s3026, 64
          %s3028 = scalar_lea.hbm %s14, %s3027
          %s3030 = sshll.u32 %s3019, 4
          %s3031 = int_to_ptr.vmem [resolvable:$true] %s3030
          %3033 = dma.vmem_to_hbm [thread:$0]  %s3031, 64, %s3028, %s3016
        $region140: #{tpu_custom_call.1} parent=75 // pred_fallthru
          _
      $region76: #{tpu_custom_call.1} parent=5 // pred_fallthru
        _
      %p3034 = scmp.le.s32.totalorder 2, %s35
      // Predicated region
      $region141: #{tpu_custom_call.1} parent=5 // pred_check
        %p3035 = pneg %p3034
      $region142: #{tpu_custom_call.1} parent=5 // pred_check_branch
        %3037 = sbr.rel (%p3035) target = $region144
      $region143: #{tpu_custom_call.1} parent=5 // pred_region
        %s3038 = ssub.s32 %s35, 2
        // Predicated region
        $region145: #{tpu_custom_call.1} parent=143 // pred_check
          %p3039 = pneg %p382
        $region146: #{tpu_custom_call.1} parent=143 // pred_check_branch
          %3041 = sbr.rel (%p3039) target = $region148
        $region147: #{tpu_custom_call.1} parent=143 // pred_region
          %s3042 = sand.u32 %s367, 1
          %s3043 = scalar_lea.sflag [#allocation6], %s3042
          %s3044 = sand.u32 %s367, 1
          %s3045 = smul.addr %s3044, 4
          %s3046 = scalar_lea.vmem [#allocation27], %s3045
          %3047 = dma.done %s3043, 64
        $region148: #{tpu_custom_call.1} parent=143 // pred_fallthru
          _
      $region144: #{tpu_custom_call.1} parent=5 // pred_fallthru
        _
    $region6: #{tpu_custom_call.1} parent=1 // loop_footer
      %s39 = sadd.s32 1, %s35
    $region7: #{tpu_custom_call.1} parent=1 // loop_footer_branch
      %34 = sbr.rel target = $region3
    $region8: #{tpu_custom_call.1} parent=1 // loop_exit
      _
    %3048 = vsyncpa [#allocation5], 1
    %s3049 = scalar_lea.sflag [#allocation5], 1
    %3050 = vsyncpa %s3049, 1
    %3051 = vsyncpa [#allocation8], 1
    %s3052 = scalar_lea.sflag [#allocation8], 1
    %3053 = vsyncpa %s3052, 1
    %3054 = vsyncpa [#allocation11], 1
    %3055 = vsyncpa [#allocation14], 1
    %3056 = vsyncpa [#allocation17], 1
    %3057 = vsyncpa [#allocation20], 1
    %3058 = vsyncpa [#allocation23], 1
    %3059 = vsyncpa [#allocation26], 1
    %3060 = vsyncpa [#allocation6], 1
    %s3061 = scalar_lea.sflag [#allocation6], 1
    %3062 = vsyncpa %s3061, 1

// kernel: tpu_custom_call.1
$region0: #{tpu_custom_call.1}
  #allocation0 [shape = 'u32[]', space=smem, size = 0x4, offset = 0x4, fixed_abs, tag = 'smem constant byte address 0x4 - core index']
  #allocation1 [shape = 'u32[144,128]{1,0:T(1,128)}', space=vmem, size = 0x12000, scoped, tag = 'internal scratch']
  #allocation2 [shape = 'bf16[8,4,8]{2,1,0:T(4,128)(2,1)}', space=vmem, size = 0x2000, scoped, tag = 'scratch operand']
  #allocation3 [shape = 'bf16[8,4,8]{2,1,0:T(4,128)(2,1)}', space=vmem, size = 0x2000, scoped, tag = 'scratch operand']
  %s0 = inlined_call_operand.hbm [shape: bf16[2,8,32], index: 0, kind: input, shape index: {}]
  %s1 = inlined_call_operand.hbm [shape: f32[2,1,8], index: 1, kind: input, shape index: {}]
  %s2 = inlined_call_operand.hbm [shape: bf16[32,32], index: 2, kind: input, shape index: {}]
  %s3 = inlined_call_operand.hbm [shape: f32[1,32], index: 3, kind: input, shape index: {}]
  %s4 = inlined_call_operand.hbm [shape: bf16[32,64], index: 4, kind: input, shape index: {}]
  %s5 = inlined_call_operand.hbm [shape: f32[1,64], index: 5, kind: input, shape index: {}]
  %s6 = inlined_call_operand.hbm [shape: bf16[32,32], index: 6, kind: input, shape index: {}]
  %s7 = inlined_call_operand.hbm [shape: f32[1,32], index: 7, kind: input, shape index: {}]
  %s8 = inlined_call_operand.hbm [shape: bf16[32,64], index: 8, kind: input, shape index: {}]
  %s9 = inlined_call_operand.hbm [shape: f32[1,64], index: 9, kind: input, shape index: {}]
  %s10 = inlined_call_operand.hbm [shape: bf16[64,32], index: 10, kind: input, shape index: {}]
  %s11 = inlined_call_operand.hbm [shape: f32[1,32], index: 11, kind: input, shape index: {}]
  %s12 = inlined_call_operand.hbm [shape: f32[1,32], index: 12, kind: input, shape index: {}]
  %s13 = inlined_call_operand.hbm [shape: f32[1,32], index: 13, kind: input, shape index: {}]
  %s14 = inlined_call_operand.hbm [shape: bf16[2,8,32], index: 14, kind: output, shape index: {}]
  %s15 = sld [smem:[#allocation0]]
  $region149: #{tpu_custom_call.1} parent=0
    _
  %s17 = ssub.s32 1, %s15
  %s18 = scalar_select 0, %s17, %s15
  $region1: #{tpu_custom_call.1} parent=0
    #allocation4 [shape = 'u8[4096]{0}', space=vmem, size = 0x1000, scoped, tag = 'input window, operand 0']
    #allocation5 [shape = 's32[2]{0}', space=sflag, size = 0x8, scoped, tag = 'scoped memory for tpu_custom_call.1']
    #allocation6 [shape = 's32[2]{0}', space=sflag, size = 0x8, scoped, tag = 'scoped memory for tpu_custom_call.1']
    #allocation7 [shape = 'u8[1024]{0}', space=vmem, size = 0x400, scoped, tag = 'input window, operand 1']
    #allocation8 [shape = 's32[2]{0}', space=sflag, size = 0x8, scoped, tag = 'scoped memory for tpu_custom_call.1']
    #allocation9 [shape = 'u8[8192]{0}', space=vmem, size = 0x2000, scoped, tag = 'input window, operand 2, single buffered']
    #allocation10 [shape = 'u8[512]{0}', space=vmem, size = 0x400, scoped, tag = 'input window, operand 3, single buffered']
    #allocation11 [shape = 's32[1]{0}', space=sflag, size = 0x4, scoped, tag = 'scoped memory for tpu_custom_call.1']
    #allocation12 [shape = 'u8[8192]{0}', space=vmem, size = 0x2000, scoped, tag = 'input window, operand 4, single buffered']
    #allocation13 [shape = 'u8[512]{0}', space=vmem, size = 0x400, scoped, tag = 'input window, operand 5, single buffered']
    #allocation14 [shape = 's32[1]{0}', space=sflag, size = 0x4, scoped, tag = 'scoped memory for tpu_custom_call.1']
    #allocation15 [shape = 'u8[8192]{0}', space=vmem, size = 0x2000, scoped, tag = 'input window, operand 6, single buffered']
    #allocation16 [shape = 'u8[512]{0}', space=vmem, size = 0x400, scoped, tag = 'input window, operand 7, single buffered']
    #allocation17 [shape = 's32[1]{0}', space=sflag, size = 0x4, scoped, tag = 'scoped memory for tpu_custom_call.1']
    #allocation18 [shape = 'u8[8192]{0}', space=vmem, size = 0x2000, scoped, tag = 'input window, operand 8, single buffered']
    #allocation19 [shape = 'u8[512]{0}', space=vmem, size = 0x400, scoped, tag = 'input window, operand 9, single buffered']
    #allocation20 [shape = 's32[1]{0}', space=sflag, size = 0x4, scoped, tag = 'scoped memory for tpu_custom_call.1']
    #allocation21 [shape = 'u8[16384]{0}', space=vmem, size = 0x4000, scoped, tag = 'input window, operand 10, single buffered']
    #allocation22 [shape = 'u8[512]{0}', space=vmem, size = 0x400, scoped, tag = 'input window, operand 11, single buffered']
    #allocation23 [shape = 's32[1]{0}', space=sflag, size = 0x4, scoped, tag = 'scoped memory for tpu_custom_call.1']
    #allocation24 [shape = 'u8[512]{0}', space=vmem, size = 0x400, scoped, tag = 'input window, operand 12, single buffered']
    #allocation25 [shape = 'u8[512]{0}', space=vmem, size = 0x400, scoped, tag = 'input window, operand 13, single buffered']
    #allocation26 [shape = 's32[1]{0}', space=sflag, size = 0x4, scoped, tag = 'scoped memory for tpu_custom_call.1']
    #allocation27 [shape = 'u8[4096]{0}', space=vmem, size = 0x1000, scoped, tag = 'output window, operand 0']
    %19 = vsyncpa [#allocation5], 0
    %s20 = scalar_lea.sflag [#allocation5], 1
    %21 = vsyncpa %s20, 0
    %22 = vsyncpa [#allocation8], 0
    %s23 = scalar_lea.sflag [#allocation8], 1
    %24 = vsyncpa %s23, 0
    %25 = vsyncpa [#allocation11], 0
    %26 = vsyncpa [#allocation14], 0
    %27 = vsyncpa [#allocation17], 0
    %28 = vsyncpa [#allocation20], 0
    %29 = vsyncpa [#allocation23], 0
    %30 = vsyncpa [#allocation26], 0
    %31 = vsyncpa [#allocation6], 0
    %s32 = scalar_lea.sflag [#allocation6], 1
    %33 = vsyncpa %s32, 0
    loop: start=0, step=1, limit=4
    $region2: #{tpu_custom_call.1} parent=1 // loop_pre_header
      _
    $region3: #{tpu_custom_call.1} parent=1 // loop_header
      %s35 = sphi 0, %s39
      %p36 = scmp.ge.s32.totalorder %s35, 4
      %s42 = sphi 0, %s54
      %s43 = sphi 0, %s50
      %s44 = sphi 0, %s42
      %s45 = sphi 0, %s43
      %s46 = sphi 0, %s44
      %s47 = sphi 0, %s45
      %s57 = sphi 0, %s59
      %s60 = sphi 0, %s57
      %s61 = sphi 0, %s60
      %s77 = sphi 0, %s61
      %s83 = sphi 0, %s85
      %s86 = sphi 0, %s83
      %s87 = sphi 0, %s86
      %s103 = sphi 0, %s87
      %s107 = sphi 0, %s107
      %s109 = sphi 0, %s107
      %s110 = sphi 0, %s109
      %s124 = sphi 0, %s110
      %s128 = sphi 0, %s128
      %s130 = sphi 0, %s128
      %s131 = sphi 0, %s130
      %s145 = sphi 0, %s131
      %s149 = sphi 0, %s149
      %s151 = sphi 0, %s149
      %s152 = sphi 0, %s151
      %s166 = sphi 0, %s152
      %s170 = sphi 0, %s170
      %s172 = sphi 0, %s170
      %s173 = sphi 0, %s172
      %s187 = sphi 0, %s173
      %s191 = sphi 0, %s191
      %s193 = sphi 0, %s191
      %s194 = sphi 0, %s193
      %s208 = sphi 0, %s194
      %s212 = sphi 0, %s212
      %s214 = sphi 0, %s212
      %s215 = sphi 0, %s214
      %s229 = sphi 0, %s215
      %s233 = sphi 0, %s233
      %s235 = sphi 0, %s233
      %s236 = sphi 0, %s235
      %s250 = sphi 0, %s236
      %s254 = sphi 0, %s254
      %s256 = sphi 0, %s254
      %s257 = sphi 0, %s256
      %s271 = sphi 0, %s257
      %s275 = sphi 0, %s275
      %s277 = sphi 0, %s275
      %s278 = sphi 0, %s277
      %s292 = sphi 0, %s278
      %s296 = sphi 0, %s296
      %s298 = sphi 0, %s296
      %s299 = sphi 0, %s298
      %s313 = sphi 0, %s299
      %s317 = sphi 0, %s317
      %s319 = sphi 0, %s317
      %s320 = sphi 0, %s319
      %s334 = sphi 0, %s320
      %s338 = sphi 0, %s338
      %s340 = sphi 0, %s338
      %s341 = sphi 0, %s340
      %s355 = sphi 0, %s341
      %s363 = sphi 0, %s365
      %s366 = sphi 0, %s363
      %s367 = sphi 0, %s366
      %s383 = sphi 0, %s367
    $region4: #{tpu_custom_call.1} parent=1 // loop_header_branch
      %38 = sbr.rel (%p36) target = $region8
    $region5: #{tpu_custom_call.1} parent=1 // loop_body
      %s40 = ssub.s32 %s35, 1
      %s41 = ssub.s32 %s35, 2
      %s48 = sadd.s32 1, %s43
      %p49 = scmp.ge.s32.totalorder %s48, 1
      %s50 = scalar_select %p49, 0, %s48
      %s51 = sadd.s32 1, %s42
      %s52 = scalar_select %p49, %s51, %s42
      %p53 = scmp.ge.s32.totalorder %s52, 2
      %s54 = scalar_select %p53, 0, %s52
      %s55 = ssub.s32 %s42, %s54
      %p56 = scmp.eq.s32.totalorder %s55, 0
      %s58 = sadd.s32 %s57, 1
      %s59 = scalar_select %p56, %s57, %s58
      %p62 = pneg %p56
      %p63 = scmp.eq.s32.totalorder %s35, 1
      %p64 = por %p62, %p63
      %p65 = scmp.ne.s32.totalorder %s57, %s60
      %p66 = scmp.eq.s32.totalorder %s35, 0
      %p67 = por %p65, %p66
      %p68 = scmp.ne.s32.totalorder %s57, %s60
      %p69 = scmp.eq.s32.totalorder %s40, 1
      %p70 = por %p68, %p69
      %p71 = scmp.ne.s32.totalorder %s60, %s61
      %p72 = scmp.eq.s32.totalorder %s40, 0
      %p73 = por %p71, %p72
      %p74 = scmp.ne.s32.totalorder %s60, %s61
      %p75 = scmp.eq.s32.totalorder %s41, 1
      %p76 = por %p74, %p75
      %p78 = scmp.ne.s32.totalorder %s61, %s77
      %p79 = scmp.eq.s32.totalorder %s41, 0
      %p80 = por %p78, %p79
      %s81 = ssub.s32 %s42, %s54
      %p82 = scmp.eq.s32.totalorder %s81, 0
      %s84 = sadd.s32 %s83, 1
      %s85 = scalar_select %p82, %s83, %s84
      %p88 = pneg %p82
      %p89 = scmp.eq.s32.totalorder %s35, 1
      %p90 = por %p88, %p89
      %p91 = scmp.ne.s32.totalorder %s83, %s86
      %p92 = scmp.eq.s32.totalorder %s35, 0
      %p93 = por %p91, %p92
      %p94 = scmp.ne.s32.totalorder %s83, %s86
      %p95 = scmp.eq.s32.totalorder %s40, 1
      %p96 = por %p94, %p95
      %p97 = scmp.ne.s32.totalorder %s86, %s87
      %p98 = scmp.eq.s32.totalorder %s40, 0
      %p99 = por %p97, %p98
      %p100 = scmp.ne.s32.totalorder %s86, %s87
      %p101 = scmp.eq.s32.totalorder %s41, 1
      %p102 = por %p100, %p101
      %p104 = scmp.ne.s32.totalorder %s87, %s103
      %p105 = scmp.eq.s32.totalorder %s41, 0
      %p106 = por %p104, %p105
      %s108 = sadd.s32 %s107, 1
      %p111 = scmp.eq.s32.totalorder %s35, 1
      %p112 = scmp.ne.s32.totalorder %s107, %s109
      %p113 = scmp.eq.s32.totalorder %s35, 0
      %p114 = por %p112, %p113
      %p115 = scmp.ne.s32.totalorder %s107, %s109
      %p116 = scmp.eq.s32.totalorder %s40, 1
      %p117 = por %p115, %p116
      %p118 = scmp.ne.s32.totalorder %s109, %s110
      %p119 = scmp.eq.s32.totalorder %s40, 0
      %p120 = por %p118, %p119
      %p121 = scmp.ne.s32.totalorder %s109, %s110
      %p122 = scmp.eq.s32.totalorder %s41, 1
      %p123 = por %p121, %p122
      %p125 = scmp.ne.s32.totalorder %s110, %s124
      %p126 = scmp.eq.s32.totalorder %s41, 0
      %p127 = por %p125, %p126
      %s129 = sadd.s32 %s128, 1
      %p132 = scmp.eq.s32.totalorder %s35, 1
      %p133 = scmp.ne.s32.totalorder %s128, %s130
      %p134 = scmp.eq.s32.totalorder %s35, 0
      %p135 = por %p133, %p134
      %p136 = scmp.ne.s32.totalorder %s128, %s130
      %p137 = scmp.eq.s32.totalorder %s40, 1
      %p138 = por %p136, %p137
      %p139 = scmp.ne.s32.totalorder %s130, %s131
      %p140 = scmp.eq.s32.totalorder %s40, 0
      %p141 = por %p139, %p140
      %p142 = scmp.ne.s32.totalorder %s130, %s131
      %p143 = scmp.eq.s32.totalorder %s41, 1
      %p144 = por %p142, %p143
      %p146 = scmp.ne.s32.totalorder %s131, %s145
      %p147 = scmp.eq.s32.totalorder %s41, 0
      %p148 = por %p146, %p147
      %s150 = sadd.s32 %s149, 1
      %p153 = scmp.eq.s32.totalorder %s35, 1
      %p154 = scmp.ne.s32.totalorder %s149, %s151
      %p155 = scmp.eq.s32.totalorder %s35, 0
      %p156 = por %p154, %p155
      %p157 = scmp.ne.s32.totalorder %s149, %s151
      %p158 = scmp.eq.s32.totalorder %s40, 1
      %p159 = por %p157, %p158
      %p160 = scmp.ne.s32.totalorder %s151, %s152
      %p161 = scmp.eq.s32.totalorder %s40, 0
      %p162 = por %p160, %p161
      %p163 = scmp.ne.s32.totalorder %s151, %s152
      %p164 = scmp.eq.s32.totalorder %s41, 1
      %p165 = por %p163, %p164
      %p167 = scmp.ne.s32.totalorder %s152, %s166
      %p168 = scmp.eq.s32.totalorder %s41, 0
      %p169 = por %p167, %p168
      %s171 = sadd.s32 %s170, 1
      %p174 = scmp.eq.s32.totalorder %s35, 1
      %p175 = scmp.ne.s32.totalorder %s170, %s172
      %p176 = scmp.eq.s32.totalorder %s35, 0
      %p177 = por %p175, %p176
      %p178 = scmp.ne.s32.totalorder %s170, %s172
      %p179 = scmp.eq.s32.totalorder %s40, 1
      %p180 = por %p178, %p179
      %p181 = scmp.ne.s32.totalorder %s172, %s173
      %p182 = scmp.eq.s32.totalorder %s40, 0
      %p183 = por %p181, %p182
      %p184 = scmp.ne.s32.totalorder %s172, %s173
      %p185 = scmp.eq.s32.totalorder %s41, 1
      %p186 = por %p184, %p185
      %p188 = scmp.ne.s32.totalorder %s173, %s187
      %p189 = scmp.eq.s32.totalorder %s41, 0
      %p190 = por %p188, %p189
      %s192 = sadd.s32 %s191, 1
      %p195 = scmp.eq.s32.totalorder %s35, 1
      %p196 = scmp.ne.s32.totalorder %s191, %s193
      %p197 = scmp.eq.s32.totalorder %s35, 0
      %p198 = por %p196, %p197
      %p199 = scmp.ne.s32.totalorder %s191, %s193
      %p200 = scmp.eq.s32.totalorder %s40, 1
      %p201 = por %p199, %p200
      %p202 = scmp.ne.s32.totalorder %s193, %s194
      %p203 = scmp.eq.s32.totalorder %s40, 0
      %p204 = por %p202, %p203
      %p205 = scmp.ne.s32.totalorder %s193, %s194
      %p206 = scmp.eq.s32.totalorder %s41, 1
      %p207 = por %p205, %p206
      %p209 = scmp.ne.s32.totalorder %s194, %s208
      %p210 = scmp.eq.s32.totalorder %s41, 0
      %p211 = por %p209, %p210
      %s213 = sadd.s32 %s212, 1
      %p216 = scmp.eq.s32.totalorder %s35, 1
      %p217 = scmp.ne.s32.totalorder %s212, %s214
      %p218 = scmp.eq.s32.totalorder %s35, 0
      %p219 = por %p217, %p218
      %p220 = scmp.ne.s32.totalorder %s212, %s214
      %p221 = scmp.eq.s32.totalorder %s40, 1
      %p222 = por %p220, %p221
      %p223 = scmp.ne.s32.totalorder %s214, %s215
      %p224 = scmp.eq.s32.totalorder %s40, 0
      %p225 = por %p223, %p224
      %p226 = scmp.ne.s32.totalorder %s214, %s215
      %p227 = scmp.eq.s32.totalorder %s41, 1
      %p228 = por %p226, %p227
      %p230 = scmp.ne.s32.totalorder %s215, %s229
      %p231 = scmp.eq.s32.totalorder %s41, 0
      %p232 = por %p230, %p231
      %s234 = sadd.s32 %s233, 1
      %p237 = scmp.eq.s32.totalorder %s35, 1
      %p238 = scmp.ne.s32.totalorder %s233, %s235
      %p239 = scmp.eq.s32.totalorder %s35, 0
      %p240 = por %p238, %p239
      %p241 = scmp.ne.s32.totalorder %s233, %s235
      %p242 = scmp.eq.s32.totalorder %s40, 1
      %p243 = por %p241, %p242
      %p244 = scmp.ne.s32.totalorder %s235, %s236
      %p245 = scmp.eq.s32.totalorder %s40, 0
      %p246 = por %p244, %p245
      %p247 = scmp.ne.s32.totalorder %s235, %s236
      %p248 = scmp.eq.s32.totalorder %s41, 1
      %p249 = por %p247, %p248
      %p251 = scmp.ne.s32.totalorder %s236, %s250
      %p252 = scmp.eq.s32.totalorder %s41, 0
      %p253 = por %p251, %p252
      %s255 = sadd.s32 %s254, 1
      %p258 = scmp.eq.s32.totalorder %s35, 1
      %p259 = scmp.ne.s32.totalorder %s254, %s256
      %p260 = scmp.eq.s32.totalorder %s35, 0
      %p261 = por %p259, %p260
      %p262 = scmp.ne.s32.totalorder %s254, %s256
      %p263 = scmp.eq.s32.totalorder %s40, 1
      %p264 = por %p262, %p263
      %p265 = scmp.ne.s32.totalorder %s256, %s257
      %p266 = scmp.eq.s32.totalorder %s40, 0
      %p267 = por %p265, %p266
      %p268 = scmp.ne.s32.totalorder %s256, %s257
      %p269 = scmp.eq.s32.totalorder %s41, 1
      %p270 = por %p268, %p269
      %p272 = scmp.ne.s32.totalorder %s257, %s271
      %p273 = scmp.eq.s32.totalorder %s41, 0
      %p274 = por %p272, %p273
      %s276 = sadd.s32 %s275, 1
      %p279 = scmp.eq.s32.totalorder %s35, 1
      %p280 = scmp.ne.s32.totalorder %s275, %s277
      %p281 = scmp.eq.s32.totalorder %s35, 0
      %p282 = por %p280, %p281
      %p283 = scmp.ne.s32.totalorder %s275, %s277
      %p284 = scmp.eq.s32.totalorder %s40, 1
      %p285 = por %p283, %p284
      %p286 = scmp.ne.s32.totalorder %s277, %s278
      %p287 = scmp.eq.s32.totalorder %s40, 0
      %p288 = por %p286, %p287
      %p289 = scmp.ne.s32.totalorder %s277, %s278
      %p290 = scmp.eq.s32.totalorder %s41, 1
      %p291 = por %p289, %p290
      %p293 = scmp.ne.s32.totalorder %s278, %s292
      %p294 = scmp.eq.s32.totalorder %s41, 0
      %p295 = por %p293, %p294
      %s297 = sadd.s32 %s296, 1
      %p300 = scmp.eq.s32.totalorder %s35, 1
      %p301 = scmp.ne.s32.totalorder %s296, %s298
      %p302 = scmp.eq.s32.totalorder %s35, 0
      %p303 = por %p301, %p302
      %p304 = scmp.ne.s32.totalorder %s296, %s298
      %p305 = scmp.eq.s32.totalorder %s40, 1
      %p306 = por %p304, %p305
      %p307 = scmp.ne.s32.totalorder %s298, %s299
      %p308 = scmp.eq.s32.totalorder %s40, 0
      %p309 = por %p307, %p308
      %p310 = scmp.ne.s32.totalorder %s298, %s299
      %p311 = scmp.eq.s32.totalorder %s41, 1
      %p312 = por %p310, %p311
      %p314 = scmp.ne.s32.totalorder %s299, %s313
      %p315 = scmp.eq.s32.totalorder %s41, 0
      %p316 = por %p314, %p315
      %s318 = sadd.s32 %s317, 1
      %p321 = scmp.eq.s32.totalorder %s35, 1
      %p322 = scmp.ne.s32.totalorder %s317, %s319
      %p323 = scmp.eq.s32.totalorder %s35, 0
      %p324 = por %p322, %p323
      %p325 = scmp.ne.s32.totalorder %s317, %s319
      %p326 = scmp.eq.s32.totalorder %s40, 1
      %p327 = por %p325, %p326
      %p328 = scmp.ne.s32.totalorder %s319, %s320
      %p329 = scmp.eq.s32.totalorder %s40, 0
      %p330 = por %p328, %p329
      %p331 = scmp.ne.s32.totalorder %s319, %s320
      %p332 = scmp.eq.s32.totalorder %s41, 1
      %p333 = por %p331, %p332
      %p335 = scmp.ne.s32.totalorder %s320, %s334
      %p336 = scmp.eq.s32.totalorder %s41, 0
      %p337 = por %p335, %p336
      %s339 = sadd.s32 %s338, 1
      %p342 = scmp.eq.s32.totalorder %s35, 1
      %p343 = scmp.ne.s32.totalorder %s338, %s340
      %p344 = scmp.eq.s32.totalorder %s35, 0
      %p345 = por %p343, %p344
      %p346 = scmp.ne.s32.totalorder %s338, %s340
      %p347 = scmp.eq.s32.totalorder %s40, 1
      %p348 = por %p346, %p347
      %p349 = scmp.ne.s32.totalorder %s340, %s341
      %p350 = scmp.eq.s32.totalorder %s40, 0
      %p351 = por %p349, %p350
      %p352 = scmp.ne.s32.totalorder %s340, %s341
      %p353 = scmp.eq.s32.totalorder %s41, 1
      %p354 = por %p352, %p353
      %p356 = scmp.ne.s32.totalorder %s341, %s355
      %p357 = scmp.eq.s32.totalorder %s41, 0
      %p358 = por %p356, %p357
      %s359 = ssub.s32 %s42, %s54
      %s360 = ssub.s32 %s43, %s50
      %s361 = sor.u32 %s359, %s360
      %p362 = scmp.eq.s32.totalorder %s361, 0
      %s364 = sadd.s32 %s363, 1
      %s365 = scalar_select %p362, %s363, %s364
      %p368 = pneg %p362
      %p369 = scmp.eq.s32.totalorder %s35, 1
      %p370 = por %p368, %p369
      %p371 = scmp.ne.s32.totalorder %s363, %s366
      %p372 = scmp.eq.s32.totalorder %s35, 0
      %p373 = por %p371, %p372
      %p374 = scmp.ne.s32.totalorder %s363, %s366
      %p375 = scmp.eq.s32.totalorder %s40, 1
      %p376 = por %p374, %p375
      %p377 = scmp.ne.s32.totalorder %s366, %s367
      %p378 = scmp.eq.s32.totalorder %s40, 0
      %p379 = por %p377, %p378
      %p380 = scmp.ne.s32.totalorder %s366, %s367
      %p381 = scmp.eq.s32.totalorder %s41, 1
      %p382 = por %p380, %p381
      %p384 = scmp.ne.s32.totalorder %s367, %s383
      %p385 = scmp.eq.s32.totalorder %s41, 0
      %p386 = por %p384, %p385
      %p387 = scmp.le.s32.totalorder 1, %s35
      %p388 = scmp.lt.s32.totalorder %s35, 3
      %p389 = pnand %p387, %p388
      %p390 = pneg %p389
      // Predicated region
      $region9: #{tpu_custom_call.1} parent=5 // pred_check
        _
      $region10: #{tpu_custom_call.1} parent=5 // pred_check_branch
        %392 = sbr.rel (%p389) target = $region12
      $region11: #{tpu_custom_call.1} parent=5 // pred_region
        %s393 = ssub.s32 %s35, 1
        // Predicated region
        $region13: #{tpu_custom_call.1} parent=11 // pred_check
          %p394 = pneg %p120
        $region14: #{tpu_custom_call.1} parent=11 // pred_check_branch
          %396 = sbr.rel (%p394) target = $region16
        $region15: #{tpu_custom_call.1} parent=11 // pred_region
          %s398 = ssub.s32 256, 256
          %399 = vsyncadd [#allocation8], %s398
          %s400 = sshll.u32 [#allocation9], 4
          %s401 = int_to_ptr.vmem [resolvable:$true] %s400
          %406 = dma.hbm_to_vmem [thread:$0]  %s2, 256, %s401, [#allocation8], 64, 64, 4
        $region16: #{tpu_custom_call.1} parent=11 // pred_fallthru
          _
        // Predicated region
        $region17: #{tpu_custom_call.1} parent=11 // pred_check
          %p407 = pneg %p141
        $region18: #{tpu_custom_call.1} parent=11 // pred_check_branch
          %409 = sbr.rel (%p407) target = $region20
        $region19: #{tpu_custom_call.1} parent=11 // pred_region
          %s411 = ssub.s32 16, 16
          %412 = vsyncadd [#allocation11], %s411
          %s414 = sshll.u32 [#allocation10], 4
          %s415 = int_to_ptr.vmem [resolvable:$true] %s414
          %417 = dma.hbm_to_vmem [thread:$0]  %s3, 16, %s415, [#allocation11]
        $region20: #{tpu_custom_call.1} parent=11 // pred_fallthru
          _
        // Predicated region
        $region21: #{tpu_custom_call.1} parent=11 // pred_check
          %p418 = pneg %p162
        $region22: #{tpu_custom_call.1} parent=11 // pred_check_branch
          %420 = sbr.rel (%p418) target = $region24
        $region23: #{tpu_custom_call.1} parent=11 // pred_region
          %s422 = ssub.s32 256, 256
          %423 = vsyncadd [#allocation11], %s422
          %s424 = sshll.u32 [#allocation12], 4
          %s425 = int_to_ptr.vmem [resolvable:$true] %s424
          %430 = dma.hbm_to_vmem [thread:$0]  %s4, 256, %s425, [#allocation11], 64, 64, 4
        $region24: #{tpu_custom_call.1} parent=11 // pred_fallthru
          _
        // Predicated region
        $region25: #{tpu_custom_call.1} parent=11 // pred_check
          %p431 = pneg %p183
        $region26: #{tpu_custom_call.1} parent=11 // pred_check_branch
          %433 = sbr.rel (%p431) target = $region28
        $region27: #{tpu_custom_call.1} parent=11 // pred_region
          %s435 = ssub.s32 16, 16
          %436 = vsyncadd [#allocation14], %s435
          %s438 = sshll.u32 [#allocation13], 4
          %s439 = int_to_ptr.vmem [resolvable:$true] %s438
          %441 = dma.hbm_to_vmem [thread:$0]  %s5, 16, %s439, [#allocation14]
        $region28: #{tpu_custom_call.1} parent=11 // pred_fallthru
          _
        // Predicated region
        $region29: #{tpu_custom_call.1} parent=11 // pred_check
          %p442 = pneg %p204
        $region30: #{tpu_custom_call.1} parent=11 // pred_check_branch
          %444 = sbr.rel (%p442) target = $region32
        $region31: #{tpu_custom_call.1} parent=11 // pred_region
          %s446 = ssub.s32 256, 256
          %447 = vsyncadd [#allocation14], %s446
          %s448 = sshll.u32 [#allocation15], 4
          %s449 = int_to_ptr.vmem [resolvable:$true] %s448
          %454 = dma.hbm_to_vmem [thread:$0]  %s6, 256, %s449, [#allocation14], 64, 64, 4
        $region32: #{tpu_custom_call.1} parent=11 // pred_fallthru
          _
        // Predicated region
        $region33: #{tpu_custom_call.1} parent=11 // pred_check
          %p455 = pneg %p225
        $region34: #{tpu_custom_call.1} parent=11 // pred_check_branch
          %457 = sbr.rel (%p455) target = $region36
        $region35: #{tpu_custom_call.1} parent=11 // pred_region
          %s459 = ssub.s32 16, 16
          %460 = vsyncadd [#allocation17], %s459
          %s462 = sshll.u32 [#allocation16], 4
          %s463 = int_to_ptr.vmem [resolvable:$true] %s462
          %465 = dma.hbm_to_vmem [thread:$0]  %s7, 16, %s463, [#allocation17]
        $region36: #{tpu_custom_call.1} parent=11 // pred_fallthru
          _
        // Predicated region
        $region37: #{tpu_custom_call.1} parent=11 // pred_check
          %p466 = pneg %p246
        $region38: #{tpu_custom_call.1} parent=11 // pred_check_branch
          %468 = sbr.rel (%p466) target = $region40
        $region39: #{tpu_custom_call.1} parent=11 // pred_region
          %s470 = ssub.s32 256, 256
          %471 = vsyncadd [#allocation17], %s470
          %s472 = sshll.u32 [#allocation18], 4
          %s473 = int_to_ptr.vmem [resolvable:$true] %s472
          %478 = dma.hbm_to_vmem [thread:$0]  %s8, 256, %s473, [#allocation17], 64, 64, 4
        $region40: #{tpu_custom_call.1} parent=11 // pred_fallthru
          _
        // Predicated region
        $region41: #{tpu_custom_call.1} parent=11 // pred_check
          %p479 = pneg %p267
        $region42: #{tpu_custom_call.1} parent=11 // pred_check_branch
          %481 = sbr.rel (%p479) target = $region44
        $region43: #{tpu_custom_call.1} parent=11 // pred_region
          %s483 = ssub.s32 16, 16
          %484 = vsyncadd [#allocation20], %s483
          %s486 = sshll.u32 [#allocation19], 4
          %s487 = int_to_ptr.vmem [resolvable:$true] %s486
          %489 = dma.hbm_to_vmem [thread:$0]  %s9, 16, %s487, [#allocation20]
        $region44: #{tpu_custom_call.1} parent=11 // pred_fallthru
          _
        // Predicated region
        $region45: #{tpu_custom_call.1} parent=11 // pred_check
          %p490 = pneg %p288
        $region46: #{tpu_custom_call.1} parent=11 // pred_check_branch
          %492 = sbr.rel (%p490) target = $region48
        $region47: #{tpu_custom_call.1} parent=11 // pred_region
          %s494 = ssub.s32 512, 512
          %495 = vsyncadd [#allocation20], %s494
          %s496 = sshll.u32 [#allocation21], 4
          %s497 = int_to_ptr.vmem [resolvable:$true] %s496
          %502 = dma.hbm_to_vmem [thread:$0]  %s10, 512, %s497, [#allocation20], 64, 64, 4
        $region48: #{tpu_custom_call.1} parent=11 // pred_fallthru
          _
        // Predicated region
        $region49: #{tpu_custom_call.1} parent=11 // pred_check
          %p503 = pneg %p309
        $region50: #{tpu_custom_call.1} parent=11 // pred_check_branch
          %505 = sbr.rel (%p503) target = $region52
        $region51: #{tpu_custom_call.1} parent=11 // pred_region
          %s507 = ssub.s32 16, 16
          %508 = vsyncadd [#allocation23], %s507
          %s510 = sshll.u32 [#allocation22], 4
          %s511 = int_to_ptr.vmem [resolvable:$true] %s510
          %513 = dma.hbm_to_vmem [thread:$0]  %s11, 16, %s511, [#allocation23]
        $region52: #{tpu_custom_call.1} parent=11 // pred_fallthru
          _
        // Predicated region
        $region53: #{tpu_custom_call.1} parent=11 // pred_check
          %p514 = pneg %p330
        $region54: #{tpu_custom_call.1} parent=11 // pred_check_branch
          %516 = sbr.rel (%p514) target = $region56
        $region55: #{tpu_custom_call.1} parent=11 // pred_region
          %s518 = ssub.s32 16, 16
          %519 = vsyncadd [#allocation23], %s518
          %s521 = sshll.u32 [#allocation24], 4
          %s522 = int_to_ptr.vmem [resolvable:$true] %s521
          %524 = dma.hbm_to_vmem [thread:$0]  %s12, 16, %s522, [#allocation23]
        $region56: #{tpu_custom_call.1} parent=11 // pred_fallthru
          _
        // Predicated region
        $region57: #{tpu_custom_call.1} parent=11 // pred_check
          %p525 = pneg %p351
        $region58: #{tpu_custom_call.1} parent=11 // pred_check_branch
          %527 = sbr.rel (%p525) target = $region60
        $region59: #{tpu_custom_call.1} parent=11 // pred_region
          %s529 = ssub.s32 16, 16
          %530 = vsyncadd [#allocation26], %s529
          %s532 = sshll.u32 [#allocation25], 4
          %s533 = int_to_ptr.vmem [resolvable:$true] %s532
          %535 = dma.hbm_to_vmem [thread:$0]  %s13, 16, %s533, [#allocation26]
        $region60: #{tpu_custom_call.1} parent=11 // pred_fallthru
          _
      $region12: #{tpu_custom_call.1} parent=5 // pred_fallthru
        _
      %p536 = scmp.lt.s32.totalorder %s35, 2
      // Predicated region
      $region61: #{tpu_custom_call.1} parent=5 // pred_check
        %p537 = pneg %p536
      $region62: #{tpu_custom_call.1} parent=5 // pred_check_branch
        %539 = sbr.rel (%p537) target = $region64
      $region63: #{tpu_custom_call.1} parent=5 // pred_region
        // Predicated region
        $region65: #{tpu_custom_call.1} parent=63 // pred_check
          %p540 = pneg %p67
        $region66: #{tpu_custom_call.1} parent=63 // pred_check_branch
          %542 = sbr.rel (%p540) target = $region68
        $region67: #{tpu_custom_call.1} parent=63 // pred_region
          %s543 = sand.u32 %s57, 1
          %s544 = scalar_lea.sflag [#allocation5], %s543
          %s545 = sand.u32 %s57, 1
          %s546 = smul.addr %s545, 4
          %s547 = scalar_lea.vmem [#allocation4], %s546
          %s549 = ssub.s32 64, 64
          %550 = vsyncadd %s544, %s549
          %s551 = smul.addr %s42, 64
          %s552 = scalar_lea.hbm %s0, %s551
          %s554 = sshll.u32 %s547, 4
          %s555 = int_to_ptr.vmem [resolvable:$true] %s554
          %557 = dma.hbm_to_vmem [thread:$0]  %s552, 64, %s555, %s544
        $region68: #{tpu_custom_call.1} parent=63 // pred_fallthru
          _
        // Predicated region
        $region69: #{tpu_custom_call.1} parent=63 // pred_check
          %p558 = pneg %p93
        $region70: #{tpu_custom_call.1} parent=63 // pred_check_branch
          %560 = sbr.rel (%p558) target = $region72
        $region71: #{tpu_custom_call.1} parent=63 // pred_region
          %s561 = sand.u32 %s35, 1
          %s562 = scalar_lea.sflag [#allocation8], %s561
          %s563 = sand.u32 %s83, 1
          %s564 = scalar_lea.vmem [#allocation7], %s563
          %s566 = ssub.s32 16, 16
          %567 = vsyncadd %s562, %s566
          %s568 = smul.addr %s42, 16
          %s569 = scalar_lea.hbm %s1, %s568
          %s571 = sshll.u32 %s564, 4
          %s572 = int_to_ptr.vmem [resolvable:$true] %s571
          %574 = dma.hbm_to_vmem [thread:$0]  %s569, 16, %s572, %s562
        $region72: #{tpu_custom_call.1} parent=63 // pred_fallthru
          _
      $region64: #{tpu_custom_call.1} parent=5 // pred_fallthru
        _
      %p575 = scmp.le.s32.totalorder 1, %s35
      %p576 = scmp.lt.s32.totalorder %s35, 3
      %p577 = pnand %p575, %p576
      %p578 = pneg %p577
      // Predicated region
      $region73: #{tpu_custom_call.1} parent=5 // pred_check
        _
      $region74: #{tpu_custom_call.1} parent=5 // pred_check_branch
        %580 = sbr.rel (%p577) target = $region76
      $region75: #{tpu_custom_call.1} parent=5 // pred_region
        %s581 = ssub.s32 %s35, 1
        %s582 = sand.u32 %s60, 1
        %s583 = scalar_lea.sflag [#allocation5], %s582
        %s584 = sand.u32 %s60, 1
        %s585 = smul.addr %s584, 4
        %s586 = scalar_lea.vmem [#allocation4], %s585
        // Predicated region
        $region77: #{tpu_custom_call.1} parent=75 // pred_check
          %p587 = pneg %p73
        $region78: #{tpu_custom_call.1} parent=75 // pred_check_branch
          %589 = sbr.rel (%p587) target = $region80
        $region79: #{tpu_custom_call.1} parent=75 // pred_region
          %590 = dma.done %s583, 64
        $region80: #{tpu_custom_call.1} parent=75 // pred_fallthru
          _
        %s591 = sand.u32 %s40, 1
        %s592 = scalar_lea.sflag [#allocation8], %s591
        %s593 = sand.u32 %s86, 1
        %s594 = scalar_lea.vmem [#allocation7], %s593
        // Predicated region
        $region81: #{tpu_custom_call.1} parent=75 // pred_check
          %p595 = pneg %p99
        $region82: #{tpu_custom_call.1} parent=75 // pred_check_branch
          %597 = sbr.rel (%p595) target = $region84
        $region83: #{tpu_custom_call.1} parent=75 // pred_region
          %598 = dma.done %s592, 16
        $region84: #{tpu_custom_call.1} parent=75 // pred_fallthru
          _
        // Predicated region
        $region85: #{tpu_custom_call.1} parent=75 // pred_check
          %p599 = pneg %p120
        $region86: #{tpu_custom_call.1} parent=75 // pred_check_branch
          %601 = sbr.rel (%p599) target = $region88
        $region87: #{tpu_custom_call.1} parent=75 // pred_region
          %602 = dma.done [#allocation8], 256
        $region88: #{tpu_custom_call.1} parent=75 // pred_fallthru
          _
        // Predicated region
        $region89: #{tpu_custom_call.1} parent=75 // pred_check
          %p603 = pneg %p141
        $region90: #{tpu_custom_call.1} parent=75 // pred_check_branch
          %605 = sbr.rel (%p603) target = $region92
        $region91: #{tpu_custom_call.1} parent=75 // pred_region
          %606 = dma.done [#allocation11], 16
        $region92: #{tpu_custom_call.1} parent=75 // pred_fallthru
          _
        // Predicated region
        $region93: #{tpu_custom_call.1} parent=75 // pred_check
          %p607 = pneg %p162
        $region94: #{tpu_custom_call.1} parent=75 // pred_check_branch
          %609 = sbr.rel (%p607) target = $region96
        $region95: #{tpu_custom_call.1} parent=75 // pred_region
          %610 = dma.done [#allocation11], 256
        $region96: #{tpu_custom_call.1} parent=75 // pred_fallthru
          _
        // Predicated region
        $region97: #{tpu_custom_call.1} parent=75 // pred_check
          %p611 = pneg %p183
        $region98: #{tpu_custom_call.1} parent=75 // pred_check_branch
          %613 = sbr.rel (%p611) target = $region100
        $region99: #{tpu_custom_call.1} parent=75 // pred_region
          %614 = dma.done [#allocation14], 16
        $region100: #{tpu_custom_call.1} parent=75 // pred_fallthru
          _
        // Predicated region
        $region101: #{tpu_custom_call.1} parent=75 // pred_check
          %p615 = pneg %p204
        $region102: #{tpu_custom_call.1} parent=75 // pred_check_branch
          %617 = sbr.rel (%p615) target = $region104
        $region103: #{tpu_custom_call.1} parent=75 // pred_region
          %618 = dma.done [#allocation14], 256
        $region104: #{tpu_custom_call.1} parent=75 // pred_fallthru
          _
        // Predicated region
        $region105: #{tpu_custom_call.1} parent=75 // pred_check
          %p619 = pneg %p225
        $region106: #{tpu_custom_call.1} parent=75 // pred_check_branch
          %621 = sbr.rel (%p619) target = $region108
        $region107: #{tpu_custom_call.1} parent=75 // pred_region
          %622 = dma.done [#allocation17], 16
        $region108: #{tpu_custom_call.1} parent=75 // pred_fallthru
          _
        // Predicated region
        $region109: #{tpu_custom_call.1} parent=75 // pred_check
          %p623 = pneg %p246
        $region110: #{tpu_custom_call.1} parent=75 // pred_check_branch
          %625 = sbr.rel (%p623) target = $region112
        $region111: #{tpu_custom_call.1} parent=75 // pred_region
          %626 = dma.done [#allocation17], 256
        $region112: #{tpu_custom_call.1} parent=75 // pred_fallthru
          _
        // Predicated region
        $region113: #{tpu_custom_call.1} parent=75 // pred_check
          %p627 = pneg %p267
        $region114: #{tpu_custom_call.1} parent=75 // pred_check_branch
          %629 = sbr.rel (%p627) target = $region116
        $region115: #{tpu_custom_call.1} parent=75 // pred_region
          %630 = dma.done [#allocation20], 16
        $region116: #{tpu_custom_call.1} parent=75 // pred_fallthru
          _
        // Predicated region
        $region117: #{tpu_custom_call.1} parent=75 // pred_check
          %p631 = pneg %p288
        $region118: #{tpu_custom_call.1} parent=75 // pred_check_branch
          %633 = sbr.rel (%p631) target = $region120
        $region119: #{tpu_custom_call.1} parent=75 // pred_region
          %634 = dma.done [#allocation20], 512
        $region120: #{tpu_custom_call.1} parent=75 // pred_fallthru
          _
        // Predicated region
        $region121: #{tpu_custom_call.1} parent=75 // pred_check
          %p635 = pneg %p309
        $region122: #{tpu_custom_call.1} parent=75 // pred_check_branch
          %637 = sbr.rel (%p635) target = $region124
        $region123: #{tpu_custom_call.1} parent=75 // pred_region
          %638 = dma.done [#allocation23], 16
        $region124: #{tpu_custom_call.1} parent=75 // pred_fallthru
          _
        // Predicated region
        $region125: #{tpu_custom_call.1} parent=75 // pred_check
          %p639 = pneg %p330
        $region126: #{tpu_custom_call.1} parent=75 // pred_check_branch
          %641 = sbr.rel (%p639) target = $region128
        $region127: #{tpu_custom_call.1} parent=75 // pred_region
          %642 = dma.done [#allocation23], 16
        $region128: #{tpu_custom_call.1} parent=75 // pred_fallthru
          _
        // Predicated region
        $region129: #{tpu_custom_call.1} parent=75 // pred_check
          %p643 = pneg %p351
        $region130: #{tpu_custom_call.1} parent=75 // pred_check_branch
          %645 = sbr.rel (%p643) target = $region132
        $region131: #{tpu_custom_call.1} parent=75 // pred_region
          %646 = dma.done [#allocation26], 16
        $region132: #{tpu_custom_call.1} parent=75 // pred_fallthru
          _
        %s647 = sand.u32 %s60, 1
        %s648 = scalar_lea.sflag [#allocation5], %s647
        %s649 = sand.u32 %s60, 1
        %s650 = smul.addr %s649, 4
        %s651 = scalar_lea.vmem [#allocation4], %s650
        %p652 = pneg %p73
        %p653 = pneg %p70
        %s654 = sand.u32 %s40, 1
        %s655 = scalar_lea.sflag [#allocation8], %s654
        %s656 = sand.u32 %s86, 1
        %s657 = scalar_lea.vmem [#allocation7], %s656
        %p658 = pneg %p99
        %p659 = pneg %p96
        %p660 = pneg %p120
        %p661 = pneg %p117
        %p662 = pneg %p141
        %p663 = pneg %p138
        %p664 = pneg %p162
        %p665 = pneg %p159
        %p666 = pneg %p183
        %p667 = pneg %p180
        %p668 = pneg %p204
        %p669 = pneg %p201
        %p670 = pneg %p225
        %p671 = pneg %p222
        %p672 = pneg %p246
        %p673 = pneg %p243
        %p674 = pneg %p267
        %p675 = pneg %p264
        %p676 = pneg %p288
        %p677 = pneg %p285
        %p678 = pneg %p309
        %p679 = pneg %p306
        %p680 = pneg %p330
        %p681 = pneg %p327
        %p682 = pneg %p351
        %p683 = pneg %p348
        %p684 = pneg %p379
        %p685 = pneg %p376
        %s686 = sand.u32 %s366, 1
        %s687 = scalar_lea.sflag [#allocation6], %s686
        %s688 = sand.u32 %s366, 1
        %s689 = smul.addr %s688, 4
        %s690 = scalar_lea.vmem [#allocation27], %s689
        %p692 = scmp.eq.s32.totalorder %s45, 0
        // Predicated region
        $region133: #{tpu_custom_call.1} parent=75 // pred_check
          %p693 = pneg %p692
        $region134: #{tpu_custom_call.1} parent=75 // pred_check_branch
          %695 = sbr.rel (%p693) target = $region136
        $region135: #{tpu_custom_call.1} parent=75 // pred_region
          %v696 = vld [vmem:[%s586] sm:$0xf]
          %v697 = vld [vmem:[#allocation12] sm:$0xf]
          %v698 = vld [vmem:[#allocation12 + $0x4] sm:$0xf]
          %v699 = vld [vmem:[#allocation12 + $0x8] sm:$0xf]
          %v700 = vld [vmem:[#allocation12 + $0xc] sm:$0xf]
          %v701 = vld [vmem:[#allocation13] sm:$0x1]
          %v703 = vlaneseq
          %v704 = vshrl.u32 %v703, 7
          %v705 = vsub.s32 0, %v704
          %v706 = vrot.slane %v701, %v705
          %v712 = vunpack.c.l.b16 %v697
          %v713 = vunpack.c.l.b16 %v698
          %v714 = vunpack.c.l.b16 %v699
          %v715 = vunpack.c.l.b16 %v700
          %v716 = vpack.c.b16 %v713, %v712
          %v717 = vpack.c.b16 %v715, %v714
          %vm720 = vcmask 261120
          %v722 = vsel %vm720, %v696, 0
          %724 = vmatprep.subr.bf16.mxu0 0
          %725 = vmatpush1.bf16.msra.mxu0 %v716
          %726 = vmatprep.subr.bf16.mxu0 0
          %727 = vmatpush1.bf16.msra.mxu0 %v717
          %728 = vmatprep.subr.bf16.mxu0 0
          %729 = vmatpush1.bf16.msra.mxu0 0
          %730 = vmatprep.subr.bf16.mxu0 0
          %731 = vmatpush1.bf16.msra.mxu0 0
          %732 = vmatprep.subr.bf16.mxu0 0
          %733 = vmatpush1.bf16.msra.mxu0 0
          %734 = vmatprep.subr.bf16.mxu0 0
          %735 = vmatpush1.bf16.msra.mxu0 0
          %736 = vmatprep.subr.bf16.mxu0 0
          %737 = vmatpush1.bf16.msra.mxu0 0
          %738 = vmatprep.subr.bf16.mxu0 0
          %739 = vmatpush1.bf16.msra.mxu0 0
          %740 = vmatprep.subr.bf16.mxu0 0
          %741 = vmatpush1.bf16.msra.mxu0 0
          %742 = vmatprep.subr.bf16.mxu0 0
          %743 = vmatpush1.bf16.msra.mxu0 0
          %744 = vmatprep.subr.bf16.mxu0 0
          %745 = vmatpush1.bf16.msra.mxu0 0
          %746 = vmatprep.subr.bf16.mxu0 0
          %747 = vmatpush1.bf16.msra.mxu0 0
          %748 = vmatprep.subr.bf16.mxu0 0
          %749 = vmatpush1.bf16.msra.mxu0 0
          %750 = vmatprep.subr.bf16.mxu0 0
          %751 = vmatpush1.bf16.msra.mxu0 0
          %752 = vmatprep.subr.bf16.mxu0 0
          %753 = vmatpush1.bf16.msra.mxu0 0
          %754 = vmatprep.subr.bf16.mxu0 0
          %755 = vmatpush1.bf16.msra.mxu0 0
          %756 = vmatprep.mubr.bf16.mxu0 0
          %757 = vmatmul.mubr.bf16.gmra.mrb[0].mxu0 %v722
          %v758 = vpop.f32.mrb[0].mxu0
          %v759 = vadd.f32 %v706, %v758
          %v760 = vpop.f32.mrb[0].mxu0
          %v761 = vpop.f32.mrb[0].mxu0
          %v762 = vpop.f32.mrb[0].mxu0
          %763 = vdwg.mxu0
          %765 = vrot.lane.b32.xlu0 %v759, 120
          %v766 = vpop.permute.xlu0 %765
          %768 = vrot.lane.b32.xlu0 %v759, 112
          %v769 = vpop.permute.xlu0 %768
          %771 = vrot.lane.b32.xlu0 %v759, 104
          %v772 = vpop.permute.xlu0 %771
          %v774 = vcombine.low %v759, %v769
          %v775 = vcombine.high %v759, %v769
          %v777 = vunpack.c.l.s4 1983009808
          %v778 = vunpack.c.0.s8 %v777
          %v779 = vlaneseq
          %v780 = vshrl.u32 %v779, 7
          %v781 = vsub.s32 %v778, %v780
          %v782 = vrot.slane %v774, %v781
          %v784 = vunpack.c.l.s4 1983009808
          %v785 = vunpack.c.0.s8 %v784
          %v786 = vlaneseq
          %v787 = vshrl.u32 %v786, 7
          %v788 = vsub.s32 %v785, %v787
          %v789 = vrot.slane %v775, %v788
          %v790 = vcombine.low %v766, %v772
          %v791 = vcombine.high %v766, %v772
          %v793 = vunpack.c.l.s4 1983009808
          %v794 = vunpack.c.0.s8 %v793
          %v795 = vlaneseq
          %v796 = vshrl.u32 %v795, 7
          %v797 = vsub.s32 %v794, %v796
          %v798 = vrot.slane %v790, %v797
          %v800 = vunpack.c.l.s4 1983009808
          %v801 = vunpack.c.0.s8 %v800
          %v802 = vlaneseq
          %v803 = vshrl.u32 %v802, 7
          %v804 = vsub.s32 %v801, %v803
          %v805 = vrot.slane %v791, %v804
          %v806 = vcombine.low %v782, %v798
          %v807 = vcombine.high %v782, %v798
          %v809 = vunpack.c.l.s4 1934713408
          %v810 = vunpack.c.0.s8 %v809
          %v811 = vlaneseq
          %v812 = vshrl.u32 %v811, 7
          %v813 = vsub.s32 %v810, %v812
          %v814 = vrot.slane %v806, %v813
          %v816 = vunpack.c.l.s4 1934713408
          %v817 = vunpack.c.0.s8 %v816
          %v818 = vlaneseq
          %v819 = vshrl.u32 %v818, 7
          %v820 = vsub.s32 %v817, %v819
          %v821 = vrot.slane %v807, %v820
          %v822 = vcombine.low %v789, %v805
          %v823 = vcombine.high %v789, %v805
          %v825 = vunpack.c.l.s4 1934713408
          %v826 = vunpack.c.0.s8 %v825
          %v827 = vlaneseq
          %v828 = vshrl.u32 %v827, 7
          %v829 = vsub.s32 %v826, %v828
          %v830 = vrot.slane %v822, %v829
          %v832 = vunpack.c.l.s4 1934713408
          %v833 = vunpack.c.0.s8 %v832
          %v834 = vlaneseq
          %v835 = vshrl.u32 %v834, 7
          %v836 = vsub.s32 %v833, %v835
          %v837 = vrot.slane %v823, %v836
          %v838 = vcombine.high %v814, 0.0
          %v839 = vcombine.high %v821, 0.0
          %v840 = vcombine.high %v830, 0.0
          %v841 = vcombine.high %v837, 0.0
          %v842 = vpack.c.bf16 %v814, %v814
          %v843 = vpack.c.bf16 %v838, %v838
          %v844 = vpack.c.bf16 %v821, %v821
          %v845 = vpack.c.bf16 %v839, %v839
          %v846 = vpack.c.bf16 %v830, %v830
          %v847 = vpack.c.bf16 %v840, %v840
          %v848 = vpack.c.bf16 %v837, %v837
          %v849 = vpack.c.bf16 %v841, %v841
          %vm850 = vcmask 58368
          %851 = vst.msk [vmem:[#allocation2] sm:$0x3] %vm850, %v842
          %852 = vst.msk [vmem:[#allocation2 + $0x2] sm:$0x3] %vm850, %v843
          %853 = vst.msk [vmem:[#allocation2 + $0x4] sm:$0x3] %vm850, %v844
          %854 = vst.msk [vmem:[#allocation2 + $0x6] sm:$0x3] %vm850, %v845
          %855 = vst.msk [vmem:[#allocation2 + $0x8] sm:$0x3] %vm850, %v846
          %856 = vst.msk [vmem:[#allocation2 + $0xa] sm:$0x3] %vm850, %v847
          %857 = vst.msk [vmem:[#allocation2 + $0xc] sm:$0x3] %vm850, %v848
          %858 = vst.msk [vmem:[#allocation2 + $0xe] sm:$0x3] %vm850, %v849
          %859 = vrot.lane.b32.xlu0 %v759, 96
          %v860 = vpop.permute.xlu0 %859
          %861 = vrot.lane.b32.xlu0 %v766, 96
          %v862 = vpop.permute.xlu0 %861
          %863 = vrot.lane.b32.xlu0 %v769, 96
          %v864 = vpop.permute.xlu0 %863
          %865 = vrot.lane.b32.xlu0 %v772, 96
          %v866 = vpop.permute.xlu0 %865
          %v871 = vcombine.low %v860, %v864
          %v872 = vcombine.high %v860, %v864
          %v874 = vunpack.c.l.s4 1983009808
          %v875 = vunpack.c.0.s8 %v874
          %v876 = vlaneseq
          %v877 = vshrl.u32 %v876, 7
          %v878 = vsub.s32 %v875, %v877
          %v879 = vrot.slane %v871, %v878
          %v881 = vunpack.c.l.s4 1983009808
          %v882 = vunpack.c.0.s8 %v881
          %v883 = vlaneseq
          %v884 = vshrl.u32 %v883, 7
          %v885 = vsub.s32 %v882, %v884
          %v886 = vrot.slane %v872, %v885
          %v887 = vcombine.low %v862, %v866
          %v888 = vcombine.high %v862, %v866
          %v890 = vunpack.c.l.s4 1983009808
          %v891 = vunpack.c.0.s8 %v890
          %v892 = vlaneseq
          %v893 = vshrl.u32 %v892, 7
          %v894 = vsub.s32 %v891, %v893
          %v895 = vrot.slane %v887, %v894
          %v897 = vunpack.c.l.s4 1983009808
          %v898 = vunpack.c.0.s8 %v897
          %v899 = vlaneseq
          %v900 = vshrl.u32 %v899, 7
          %v901 = vsub.s32 %v898, %v900
          %v902 = vrot.slane %v888, %v901
          %v903 = vcombine.low %v879, %v895
          %v904 = vcombine.high %v879, %v895
          %v906 = vunpack.c.l.s4 1934713408
          %v907 = vunpack.c.0.s8 %v906
          %v908 = vlaneseq
          %v909 = vshrl.u32 %v908, 7
          %v910 = vsub.s32 %v907, %v909
          %v911 = vrot.slane %v903, %v910
          %v913 = vunpack.c.l.s4 1934713408
          %v914 = vunpack.c.0.s8 %v913
          %v915 = vlaneseq
          %v916 = vshrl.u32 %v915, 7
          %v917 = vsub.s32 %v914, %v916
          %v918 = vrot.slane %v904, %v917
          %v919 = vcombine.low %v886, %v902
          %v920 = vcombine.high %v886, %v902
          %v922 = vunpack.c.l.s4 1934713408
          %v923 = vunpack.c.0.s8 %v922
          %v924 = vlaneseq
          %v925 = vshrl.u32 %v924, 7
          %v926 = vsub.s32 %v923, %v925
          %v927 = vrot.slane %v919, %v926
          %v929 = vunpack.c.l.s4 1934713408
          %v930 = vunpack.c.0.s8 %v929
          %v931 = vlaneseq
          %v932 = vshrl.u32 %v931, 7
          %v933 = vsub.s32 %v930, %v932
          %v934 = vrot.slane %v920, %v933
          %v935 = vcombine.high %v911, 0.0
          %v936 = vcombine.high %v918, 0.0
          %v937 = vcombine.high %v927, 0.0
          %v938 = vcombine.high %v934, 0.0
          %v939 = vpack.c.bf16 %v911, %v911
          %v940 = vpack.c.bf16 %v935, %v935
          %v941 = vpack.c.bf16 %v918, %v918
          %v942 = vpack.c.bf16 %v936, %v936
          %v943 = vpack.c.bf16 %v927, %v927
          %v944 = vpack.c.bf16 %v937, %v937
          %v945 = vpack.c.bf16 %v934, %v934
          %v946 = vpack.c.bf16 %v938, %v938
          %947 = vst.msk [vmem:[#allocation3] sm:$0x3] %vm850, %v939
          %948 = vst.msk [vmem:[#allocation3 + $0x2] sm:$0x3] %vm850, %v940
          %949 = vst.msk [vmem:[#allocation3 + $0x4] sm:$0x3] %vm850, %v941
          %950 = vst.msk [vmem:[#allocation3 + $0x6] sm:$0x3] %vm850, %v942
          %951 = vst.msk [vmem:[#allocation3 + $0x8] sm:$0x3] %vm850, %v943
          %952 = vst.msk [vmem:[#allocation3 + $0xa] sm:$0x3] %vm850, %v944
          %953 = vst.msk [vmem:[#allocation3 + $0xc] sm:$0x3] %vm850, %v945
          %954 = vst.msk [vmem:[#allocation3 + $0xe] sm:$0x3] %vm850, %v946
        $region136: #{tpu_custom_call.1} parent=75 // pred_fallthru
          _
        %s955 = smul.u32 %s45, 8
        %s956 = sshra.s32 %s955, 3
        %s957 = sand.u32 %s955, 7
        %s958 = smul.addr %s956, 4
        %s959 = scalar_lea.vmem %s586, %s958 [#allocation4]
        %v960 = vld [vmem:[%s959] sm:$0xf]
        %v961 = vunpack.c.l.bf16 %v960
        %v962 = vld [vmem:[#allocation9] sm:$0xf]
        %v963 = vld [vmem:[#allocation9 + $0x4] sm:$0xf]
        %v964 = vld [vmem:[#allocation9 + $0x8] sm:$0xf]
        %v965 = vld [vmem:[#allocation9 + $0xc] sm:$0xf]
        %v966 = vld [vmem:[#allocation10] sm:$0x1]
        %v968 = vlaneseq
        %v969 = vshrl.u32 %v968, 7
        %v970 = vsub.s32 0, %v969
        %v971 = vrot.slane %v966, %v970
        %v977 = vunpack.c.l.b16 %v962
        %v978 = vunpack.c.l.b16 %v963
        %v979 = vunpack.c.l.b16 %v964
        %v980 = vunpack.c.l.b16 %v965
        %v981 = vpack.c.b16 %v978, %v977
        %v982 = vpack.c.b16 %v980, %v979
        %vm985 = vcmask 261120
        %v987 = vsel %vm985, %v960, 0
        %989 = vmatprep.subr.bf16.mxu0 0
        %990 = vmatpush1.bf16.msra.mxu0 %v981
        %991 = vmatprep.subr.bf16.mxu0 0
        %992 = vmatpush1.bf16.msra.mxu0 %v982
        %993 = vmatprep.subr.bf16.mxu0 0
        %994 = vmatpush1.bf16.msra.mxu0 0
        %995 = vmatprep.subr.bf16.mxu0 0
        %996 = vmatpush1.bf16.msra.mxu0 0
        %997 = vmatprep.subr.bf16.mxu0 0
        %998 = vmatpush1.bf16.msra.mxu0 0
        %999 = vmatprep.subr.bf16.mxu0 0
        %1000 = vmatpush1.bf16.msra.mxu0 0
        %1001 = vmatprep.subr.bf16.mxu0 0
        %1002 = vmatpush1.bf16.msra.mxu0 0
        %1003 = vmatprep.subr.bf16.mxu0 0
        %1004 = vmatpush1.bf16.msra.mxu0 0
        %1005 = vmatprep.subr.bf16.mxu0 0
        %1006 = vmatpush1.bf16.msra.mxu0 0
        %1007 = vmatprep.subr.bf16.mxu0 0
        %1008 = vmatpush1.bf16.msra.mxu0 0
        %1009 = vmatprep.subr.bf16.mxu0 0
        %1010 = vmatpush1.bf16.msra.mxu0 0
        %1011 = vmatprep.subr.bf16.mxu0 0
        %1012 = vmatpush1.bf16.msra.mxu0 0
        %1013 = vmatprep.subr.bf16.mxu0 0
        %1014 = vmatpush1.bf16.msra.mxu0 0
        %1015 = vmatprep.subr.bf16.mxu0 0
        %1016 = vmatpush1.bf16.msra.mxu0 0
        %1017 = vmatprep.subr.bf16.mxu0 0
        %1018 = vmatpush1.bf16.msra.mxu0 0
        %1019 = vmatprep.subr.bf16.mxu0 0
        %1020 = vmatpush1.bf16.msra.mxu0 0
        %1021 = vmatprep.mubr.bf16.mxu0 0
        %1022 = vmatmul.mubr.bf16.gmra.mrb[0].mxu0 %v987
        %v1023 = vpop.f32.mrb[0].mxu0
        %v1024 = vadd.f32 %v971, %v1023
        %v1025 = vpop.f32.mrb[0].mxu0
        %v1026 = vpop.f32.mrb[0].mxu0
        %v1027 = vpop.f32.mrb[0].mxu0
        %1028 = vdwg.mxu0
        %v1029 = vmul.f32 %v1024, 0.35355338
        %1031 = vrot.lane.b32.xlu0 %v1029, 120
        %v1032 = vpop.permute.xlu0 %1031
        %1034 = vrot.lane.b32.xlu0 %v1029, 112
        %v1035 = vpop.permute.xlu0 %1034
        %1037 = vrot.lane.b32.xlu0 %v1029, 104
        %v1038 = vpop.permute.xlu0 %1037
        %v1040 = vcombine.low %v1029, %v1035
        %v1041 = vcombine.high %v1029, %v1035
        %v1043 = vunpack.c.l.s4 1983009808
        %v1044 = vunpack.c.0.s8 %v1043
        %v1045 = vlaneseq
        %v1046 = vshrl.u32 %v1045, 7
        %v1047 = vsub.s32 %v1044, %v1046
        %v1048 = vrot.slane %v1040, %v1047
        %v1050 = vunpack.c.l.s4 1983009808
        %v1051 = vunpack.c.0.s8 %v1050
        %v1052 = vlaneseq
        %v1053 = vshrl.u32 %v1052, 7
        %v1054 = vsub.s32 %v1051, %v1053
        %v1055 = vrot.slane %v1041, %v1054
        %v1056 = vcombine.low %v1032, %v1038
        %v1057 = vcombine.high %v1032, %v1038
        %v1059 = vunpack.c.l.s4 1983009808
        %v1060 = vunpack.c.0.s8 %v1059
        %v1061 = vlaneseq
        %v1062 = vshrl.u32 %v1061, 7
        %v1063 = vsub.s32 %v1060, %v1062
        %v1064 = vrot.slane %v1056, %v1063
        %v1066 = vunpack.c.l.s4 1983009808
        %v1067 = vunpack.c.0.s8 %v1066
        %v1068 = vlaneseq
        %v1069 = vshrl.u32 %v1068, 7
        %v1070 = vsub.s32 %v1067, %v1069
        %v1071 = vrot.slane %v1057, %v1070
        %v1072 = vcombine.low %v1048, %v1064
        %v1073 = vcombine.high %v1048, %v1064
        %v1075 = vunpack.c.l.s4 1934713408
        %v1076 = vunpack.c.0.s8 %v1075
        %v1077 = vlaneseq
        %v1078 = vshrl.u32 %v1077, 7
        %v1079 = vsub.s32 %v1076, %v1078
        %v1080 = vrot.slane %v1072, %v1079
        %v1082 = vunpack.c.l.s4 1934713408
        %v1083 = vunpack.c.0.s8 %v1082
        %v1084 = vlaneseq
        %v1085 = vshrl.u32 %v1084, 7
        %v1086 = vsub.s32 %v1083, %v1085
        %v1087 = vrot.slane %v1073, %v1086
        %v1088 = vcombine.low %v1055, %v1071
        %v1089 = vcombine.high %v1055, %v1071
        %v1091 = vunpack.c.l.s4 1934713408
        %v1092 = vunpack.c.0.s8 %v1091
        %v1093 = vlaneseq
        %v1094 = vshrl.u32 %v1093, 7
        %v1095 = vsub.s32 %v1092, %v1094
        %v1096 = vrot.slane %v1088, %v1095
        %v1098 = vunpack.c.l.s4 1934713408
        %v1099 = vunpack.c.0.s8 %v1098
        %v1100 = vlaneseq
        %v1101 = vshrl.u32 %v1100, 7
        %v1102 = vsub.s32 %v1099, %v1101
        %v1103 = vrot.slane %v1089, %v1102
        %v1104 = vcombine.high %v1080, 0.0
        %v1105 = vcombine.high %v1087, 0.0
        %v1106 = vcombine.high %v1096, 0.0
        %v1107 = vcombine.high %v1103, 0.0
        %v1108 = vpack.c.bf16 %v1080, %v1080
        %v1109 = vpack.c.bf16 %v1104, %v1104
        %v1110 = vpack.c.bf16 %v1087, %v1087
        %v1111 = vpack.c.bf16 %v1105, %v1105
        %v1112 = vpack.c.bf16 %v1096, %v1096
        %v1113 = vpack.c.bf16 %v1106, %v1106
        %v1114 = vpack.c.bf16 %v1103, %v1103
        %v1115 = vpack.c.bf16 %v1107, %v1107
        %v1116 = vld [vmem:[#allocation2] sm:$0x3]
        %v1117 = vld [vmem:[#allocation2 + $0x2] sm:$0x3]
        %v1118 = vld [vmem:[#allocation2 + $0x4] sm:$0x3]
        %v1119 = vld [vmem:[#allocation2 + $0x6] sm:$0x3]
        %v1120 = vld [vmem:[#allocation2 + $0x8] sm:$0x3]
        %v1121 = vld [vmem:[#allocation2 + $0xa] sm:$0x3]
        %v1122 = vld [vmem:[#allocation2 + $0xc] sm:$0x3]
        %v1123 = vld [vmem:[#allocation2 + $0xe] sm:$0x3]
        %v1124 = vld [vmem:[#allocation3] sm:$0x3]
        %v1125 = vld [vmem:[#allocation3 + $0x2] sm:$0x3]
        %v1126 = vld [vmem:[#allocation3 + $0x4] sm:$0x3]
        %v1127 = vld [vmem:[#allocation3 + $0x6] sm:$0x3]
        %v1128 = vld [vmem:[#allocation3 + $0x8] sm:$0x3]
        %v1129 = vld [vmem:[#allocation3 + $0xa] sm:$0x3]
        %v1130 = vld [vmem:[#allocation3 + $0xc] sm:$0x3]
        %v1131 = vld [vmem:[#allocation3 + $0xe] sm:$0x3]
        %v1132 = vld [vmem:[%s594] sm:$0x1]
        %vm1133 = vcmp.lt.f32.partialorder %v1132, 0.5
        %v1134 = vsel %vm1133, -1e+09, 0.0
        %v1136 = vlaneseq
        %v1137 = vshrl.u32 %v1136, 7
        %v1138 = vsub.s32 0, %v1137
        %v1139 = vrot.slane %v1134, %v1138
        %v1141 = vcombine.low %v1108, %v1112
        %v1143 = vunpack.c.l.s4 1983009808
        %v1144 = vunpack.c.0.s8 %v1143
        %v1145 = vlaneseq
        %v1146 = vshrl.u32 %v1145, 7
        %v1147 = vsub.s32 %v1144, %v1146
        %v1148 = vrot.slane %v1141, %v1147
        %v1149 = vcombine.low %v1110, %v1114
        %v1151 = vunpack.c.l.s4 1983009808
        %v1152 = vunpack.c.0.s8 %v1151
        %v1153 = vlaneseq
        %v1154 = vshrl.u32 %v1153, 7
        %v1155 = vsub.s32 %v1152, %v1154
        %v1156 = vrot.slane %v1149, %v1155
        %v1157 = vcombine.low %v1148, %v1156
        %v1159 = vunpack.c.l.s4 1934713408
        %v1160 = vunpack.c.0.s8 %v1159
        %v1161 = vlaneseq
        %v1162 = vshrl.u32 %v1161, 7
        %v1163 = vsub.s32 %v1160, %v1162
        %v1164 = vrot.slane %v1157, %v1163
        %v1165 = vcombine.high %v1164, 0
        %v1166 = vcombine.low %v1109, %v1113
        %v1168 = vunpack.c.l.s4 1983009808
        %v1169 = vunpack.c.0.s8 %v1168
        %v1170 = vlaneseq
        %v1171 = vshrl.u32 %v1170, 7
        %v1172 = vsub.s32 %v1169, %v1171
        %v1173 = vrot.slane %v1166, %v1172
        %v1174 = vcombine.low %v1111, %v1115
        %v1176 = vunpack.c.l.s4 1983009808
        %v1177 = vunpack.c.0.s8 %v1176
        %v1178 = vlaneseq
        %v1179 = vshrl.u32 %v1178, 7
        %v1180 = vsub.s32 %v1177, %v1179
        %v1181 = vrot.slane %v1174, %v1180
        %v1182 = vcombine.low %v1173, %v1181
        %v1184 = vunpack.c.l.s4 1934713408
        %v1185 = vunpack.c.0.s8 %v1184
        %v1186 = vlaneseq
        %v1187 = vshrl.u32 %v1186, 7
        %v1188 = vsub.s32 %v1185, %v1187
        %v1189 = vrot.slane %v1182, %v1188
        %v1190 = vcombine.high %v1189, 0
        %v1193 = vpack.i.b16 %v1189, %v1164
        %v1194 = vshrl.u32 %v1164, 16
        %v1195 = vshrl.u32 %v1189, 16
        %v1196 = vpack.i.b16 %v1195, %v1194
        %v1199 = vpack.i.b16 %v1190, %v1165
        %v1200 = vshrl.u32 %v1165, 16
        %v1201 = vshrl.u32 %v1190, 16
        %v1202 = vpack.i.b16 %v1201, %v1200
        %1203 = vxpose.xlu0.c.b16.start [1/8] %v1116, 128
        %1204 = vxpose.xlu0.c.b16.cont [2/8] 0, 128
        %1205 = vxpose.xlu0.c.b16.cont [3/8] 0, 128
        %1206 = vxpose.xlu0.c.b16.cont [4/8] 0, 128
        %1207 = vxpose.xlu0.c.b16.cont [5/8] 0, 128
        %1208 = vxpose.xlu0.c.b16.cont [6/8] 0, 128
        %1209 = vxpose.xlu0.c.b16.cont [7/8] 0, 128
        %1210 = vxpose.xlu0.c.b16.end [8/8] 0, 128
        %v1211 = vpop.trf.xlu0
        %v1212 = vpop.trf.xlu0
        %v1213 = vpop.trf.xlu0
        %v1214 = vpop.trf.xlu0
        %v1215 = vpop.trf.xlu0
        %v1216 = vpop.trf.xlu0
        %v1217 = vpop.trf.xlu0
        %v1218 = vpop.trf.xlu0
        %1219 = vxpose.xlu0.c.b16.start [1/8] %v1117, 128
        %1220 = vxpose.xlu0.c.b16.cont [2/8] 0, 128
        %1221 = vxpose.xlu0.c.b16.cont [3/8] 0, 128
        %1222 = vxpose.xlu0.c.b16.cont [4/8] 0, 128
        %1223 = vxpose.xlu0.c.b16.cont [5/8] 0, 128
        %1224 = vxpose.xlu0.c.b16.cont [6/8] 0, 128
        %1225 = vxpose.xlu0.c.b16.cont [7/8] 0, 128
        %1226 = vxpose.xlu0.c.b16.end [8/8] 0, 128
        %v1227 = vpop.trf.xlu0
        %v1228 = vpop.trf.xlu0
        %v1229 = vpop.trf.xlu0
        %v1230 = vpop.trf.xlu0
        %v1231 = vpop.trf.xlu0
        %v1232 = vpop.trf.xlu0
        %v1233 = vpop.trf.xlu0
        %v1234 = vpop.trf.xlu0
        %1235 = vxpose.xlu0.c.b16.start [1/8] %v1118, 128
        %1236 = vxpose.xlu0.c.b16.cont [2/8] 0, 128
        %1237 = vxpose.xlu0.c.b16.cont [3/8] 0, 128
        %1238 = vxpose.xlu0.c.b16.cont [4/8] 0, 128
        %1239 = vxpose.xlu0.c.b16.cont [5/8] 0, 128
        %1240 = vxpose.xlu0.c.b16.cont [6/8] 0, 128
        %1241 = vxpose.xlu0.c.b16.cont [7/8] 0, 128
        %1242 = vxpose.xlu0.c.b16.end [8/8] 0, 128
        %v1243 = vpop.trf.xlu0
        %v1244 = vpop.trf.xlu0
        %v1245 = vpop.trf.xlu0
        %v1246 = vpop.trf.xlu0
        %v1247 = vpop.trf.xlu0
        %v1248 = vpop.trf.xlu0
        %v1249 = vpop.trf.xlu0
        %v1250 = vpop.trf.xlu0
        %1251 = vxpose.xlu0.c.b16.start [1/8] %v1119, 128
        %1252 = vxpose.xlu0.c.b16.cont [2/8] 0, 128
        %1253 = vxpose.xlu0.c.b16.cont [3/8] 0, 128
        %1254 = vxpose.xlu0.c.b16.cont [4/8] 0, 128
        %1255 = vxpose.xlu0.c.b16.cont [5/8] 0, 128
        %1256 = vxpose.xlu0.c.b16.cont [6/8] 0, 128
        %1257 = vxpose.xlu0.c.b16.cont [7/8] 0, 128
        %1258 = vxpose.xlu0.c.b16.end [8/8] 0, 128
        %v1259 = vpop.trf.xlu0
        %v1260 = vpop.trf.xlu0
        %v1261 = vpop.trf.xlu0
        %v1262 = vpop.trf.xlu0
        %v1263 = vpop.trf.xlu0
        %v1264 = vpop.trf.xlu0
        %v1265 = vpop.trf.xlu0
        %v1266 = vpop.trf.xlu0
        %1267 = vxpose.xlu0.c.b16.start [1/8] %v1120, 128
        %1268 = vxpose.xlu0.c.b16.cont [2/8] 0, 128
        %1269 = vxpose.xlu0.c.b16.cont [3/8] 0, 128
        %1270 = vxpose.xlu0.c.b16.cont [4/8] 0, 128
        %1271 = vxpose.xlu0.c.b16.cont [5/8] 0, 128
        %1272 = vxpose.xlu0.c.b16.cont [6/8] 0, 128
        %1273 = vxpose.xlu0.c.b16.cont [7/8] 0, 128
        %1274 = vxpose.xlu0.c.b16.end [8/8] 0, 128
        %v1275 = vpop.trf.xlu0
        %v1276 = vpop.trf.xlu0
        %v1277 = vpop.trf.xlu0
        %v1278 = vpop.trf.xlu0
        %v1279 = vpop.trf.xlu0
        %v1280 = vpop.trf.xlu0
        %v1281 = vpop.trf.xlu0
        %v1282 = vpop.trf.xlu0
        %1283 = vxpose.xlu0.c.b16.start [1/8] %v1121, 128
        %1284 = vxpose.xlu0.c.b16.cont [2/8] 0, 128
        %1285 = vxpose.xlu0.c.b16.cont [3/8] 0, 128
        %1286 = vxpose.xlu0.c.b16.cont [4/8] 0, 128
        %1287 = vxpose.xlu0.c.b16.cont [5/8] 0, 128
        %1288 = vxpose.xlu0.c.b16.cont [6/8] 0, 128
        %1289 = vxpose.xlu0.c.b16.cont [7/8] 0, 128
        %1290 = vxpose.xlu0.c.b16.end [8/8] 0, 128
        %v1291 = vpop.trf.xlu0
        %v1292 = vpop.trf.xlu0
        %v1293 = vpop.trf.xlu0
        %v1294 = vpop.trf.xlu0
        %v1295 = vpop.trf.xlu0
        %v1296 = vpop.trf.xlu0
        %v1297 = vpop.trf.xlu0
        %v1298 = vpop.trf.xlu0
        %1299 = vxpose.xlu0.c.b16.start [1/8] %v1122, 128
        %1300 = vxpose.xlu0.c.b16.cont [2/8] 0, 128
        %1301 = vxpose.xlu0.c.b16.cont [3/8] 0, 128
        %1302 = vxpose.xlu0.c.b16.cont [4/8] 0, 128
        %1303 = vxpose.xlu0.c.b16.cont [5/8] 0, 128
        %1304 = vxpose.xlu0.c.b16.cont [6/8] 0, 128
        %1305 = vxpose.xlu0.c.b16.cont [7/8] 0, 128
        %1306 = vxpose.xlu0.c.b16.end [8/8] 0, 128
        %v1307 = vpop.trf.xlu0
        %v1308 = vpop.trf.xlu0
        %v1309 = vpop.trf.xlu0
        %v1310 = vpop.trf.xlu0
        %v1311 = vpop.trf.xlu0
        %v1312 = vpop.trf.xlu0
        %v1313 = vpop.trf.xlu0
        %v1314 = vpop.trf.xlu0
        %1315 = vxpose.xlu0.c.b16.start [1/8] %v1123, 128
        %1316 = vxpose.xlu0.c.b16.cont [2/8] 0, 128
        %1317 = vxpose.xlu0.c.b16.cont [3/8] 0, 128
        %1318 = vxpose.xlu0.c.b16.cont [4/8] 0, 128
        %1319 = vxpose.xlu0.c.b16.cont [5/8] 0, 128
        %1320 = vxpose.xlu0.c.b16.cont [6/8] 0, 128
        %1321 = vxpose.xlu0.c.b16.cont [7/8] 0, 128
        %1322 = vxpose.xlu0.c.b16.end [8/8] 0, 128
        %v1323 = vpop.trf.xlu0
        %v1324 = vpop.trf.xlu0
        %v1325 = vpop.trf.xlu0
        %v1326 = vpop.trf.xlu0
        %v1327 = vpop.trf.xlu0
        %v1328 = vpop.trf.xlu0
        %v1329 = vpop.trf.xlu0
        %v1330 = vpop.trf.xlu0
        %v1331 = vcombine.low %v1211, %v1275
        %v1333 = vunpack.c.l.s4 1983009808
        %v1334 = vunpack.c.0.s8 %v1333
        %v1335 = vlaneseq
        %v1336 = vshrl.u32 %v1335, 7
        %v1337 = vsub.s32 %v1334, %v1336
        %v1338 = vrot.slane %v1331, %v1337
        %v1339 = vcombine.low %v1243, %v1307
        %v1341 = vunpack.c.l.s4 1983009808
        %v1342 = vunpack.c.0.s8 %v1341
        %v1343 = vlaneseq
        %v1344 = vshrl.u32 %v1343, 7
        %v1345 = vsub.s32 %v1342, %v1344
        %v1346 = vrot.slane %v1339, %v1345
        %v1347 = vcombine.low %v1338, %v1346
        %v1348 = vcombine.high %v1338, %v1346
        %v1350 = vunpack.c.l.s4 1934713408
        %v1351 = vunpack.c.0.s8 %v1350
        %v1352 = vlaneseq
        %v1353 = vshrl.u32 %v1352, 7
        %v1354 = vsub.s32 %v1351, %v1353
        %v1355 = vrot.slane %v1347, %v1354
        %v1357 = vunpack.c.l.s4 1934713408
        %v1358 = vunpack.c.0.s8 %v1357
        %v1359 = vlaneseq
        %v1360 = vshrl.u32 %v1359, 7
        %v1361 = vsub.s32 %v1358, %v1360
        %v1362 = vrot.slane %v1348, %v1361
        %v1363 = vcombine.high %v1355, 0
        %v1364 = vcombine.high %v1362, 0
        %v1365 = vcombine.low %v1227, %v1291
        %v1367 = vunpack.c.l.s4 1983009808
        %v1368 = vunpack.c.0.s8 %v1367
        %v1369 = vlaneseq
        %v1370 = vshrl.u32 %v1369, 7
        %v1371 = vsub.s32 %v1368, %v1370
        %v1372 = vrot.slane %v1365, %v1371
        %v1373 = vcombine.low %v1259, %v1323
        %v1375 = vunpack.c.l.s4 1983009808
        %v1376 = vunpack.c.0.s8 %v1375
        %v1377 = vlaneseq
        %v1378 = vshrl.u32 %v1377, 7
        %v1379 = vsub.s32 %v1376, %v1378
        %v1380 = vrot.slane %v1373, %v1379
        %v1381 = vcombine.low %v1372, %v1380
        %v1382 = vcombine.high %v1372, %v1380
        %v1384 = vunpack.c.l.s4 1934713408
        %v1385 = vunpack.c.0.s8 %v1384
        %v1386 = vlaneseq
        %v1387 = vshrl.u32 %v1386, 7
        %v1388 = vsub.s32 %v1385, %v1387
        %v1389 = vrot.slane %v1381, %v1388
        %v1391 = vunpack.c.l.s4 1934713408
        %v1392 = vunpack.c.0.s8 %v1391
        %v1393 = vlaneseq
        %v1394 = vshrl.u32 %v1393, 7
        %v1395 = vsub.s32 %v1392, %v1394
        %v1396 = vrot.slane %v1382, %v1395
        %v1397 = vcombine.high %v1389, 0
        %v1398 = vcombine.high %v1396, 0
        %v1401 = vpack.i.b16 %v1389, %v1355
        %v1403 = vshrl.u32 %v1355, 16
        %v1404 = vshrl.u32 %v1389, 16
        %v1405 = vpack.i.b16 %v1404, %v1403
        %v1409 = vpack.i.b16 %v1397, %v1363
        %v1411 = vshrl.u32 %v1363, 16
        %v1412 = vshrl.u32 %v1397, 16
        %v1413 = vpack.i.b16 %v1412, %v1411
        %v1417 = vpack.i.b16 %v1396, %v1362
        %v1419 = vshrl.u32 %v1362, 16
        %v1420 = vshrl.u32 %v1396, 16
        %v1421 = vpack.i.b16 %v1420, %v1419
        %v1425 = vpack.i.b16 %v1398, %v1364
        %v1427 = vshrl.u32 %v1364, 16
        %v1428 = vshrl.u32 %v1398, 16
        %v1429 = vpack.i.b16 %v1428, %v1427
        %1431 = vxpose.xlu0.c.b16.start [1/8] %v1401, 128
        %1432 = vxpose.xlu0.c.b16.cont [2/8] 0, 128
        %1433 = vxpose.xlu0.c.b16.cont [3/8] 0, 128
        %1434 = vxpose.xlu0.c.b16.cont [4/8] 0, 128
        %1435 = vxpose.xlu0.c.b16.cont [5/8] 0, 128
        %1436 = vxpose.xlu0.c.b16.cont [6/8] 0, 128
        %1437 = vxpose.xlu0.c.b16.cont [7/8] 0, 128
        %1438 = vxpose.xlu0.c.b16.end [8/8] 0, 128
        %v1439 = vpop.trf.xlu0
        %v1440 = vpop.trf.xlu0
        %v1441 = vpop.trf.xlu0
        %v1442 = vpop.trf.xlu0
        %v1443 = vpop.trf.xlu0
        %v1444 = vpop.trf.xlu0
        %v1445 = vpop.trf.xlu0
        %v1446 = vpop.trf.xlu0
        %1447 = vxpose.xlu0.c.b16.start [1/8] %v1405, 128
        %1448 = vxpose.xlu0.c.b16.cont [2/8] 0, 128
        %1449 = vxpose.xlu0.c.b16.cont [3/8] 0, 128
        %1450 = vxpose.xlu0.c.b16.cont [4/8] 0, 128
        %1451 = vxpose.xlu0.c.b16.cont [5/8] 0, 128
        %1452 = vxpose.xlu0.c.b16.cont [6/8] 0, 128
        %1453 = vxpose.xlu0.c.b16.cont [7/8] 0, 128
        %1454 = vxpose.xlu0.c.b16.end [8/8] 0, 128
        %v1455 = vpop.trf.xlu0
        %v1456 = vpop.trf.xlu0
        %v1457 = vpop.trf.xlu0
        %v1458 = vpop.trf.xlu0
        %v1459 = vpop.trf.xlu0
        %v1460 = vpop.trf.xlu0
        %v1461 = vpop.trf.xlu0
        %v1462 = vpop.trf.xlu0
        %1463 = vxpose.xlu0.c.b16.start [1/8] %v1409, 128
        %1464 = vxpose.xlu0.c.b16.cont [2/8] 0, 128
        %1465 = vxpose.xlu0.c.b16.cont [3/8] 0, 128
        %1466 = vxpose.xlu0.c.b16.cont [4/8] 0, 128
        %1467 = vxpose.xlu0.c.b16.cont [5/8] 0, 128
        %1468 = vxpose.xlu0.c.b16.cont [6/8] 0, 128
        %1469 = vxpose.xlu0.c.b16.cont [7/8] 0, 128
        %1470 = vxpose.xlu0.c.b16.end [8/8] 0, 128
        %v1471 = vpop.trf.xlu0
        %v1472 = vpop.trf.xlu0
        %v1473 = vpop.trf.xlu0
        %v1474 = vpop.trf.xlu0
        %v1475 = vpop.trf.xlu0
        %v1476 = vpop.trf.xlu0
        %v1477 = vpop.trf.xlu0
        %v1478 = vpop.trf.xlu0
        %1479 = vxpose.xlu0.c.b16.start [1/8] %v1413, 128
        %1480 = vxpose.xlu0.c.b16.cont [2/8] 0, 128
        %1481 = vxpose.xlu0.c.b16.cont [3/8] 0, 128
        %1482 = vxpose.xlu0.c.b16.cont [4/8] 0, 128
        %1483 = vxpose.xlu0.c.b16.cont [5/8] 0, 128
        %1484 = vxpose.xlu0.c.b16.cont [6/8] 0, 128
        %1485 = vxpose.xlu0.c.b16.cont [7/8] 0, 128
        %1486 = vxpose.xlu0.c.b16.end [8/8] 0, 128
        %v1487 = vpop.trf.xlu0
        %v1488 = vpop.trf.xlu0
        %v1489 = vpop.trf.xlu0
        %v1490 = vpop.trf.xlu0
        %v1491 = vpop.trf.xlu0
        %v1492 = vpop.trf.xlu0
        %v1493 = vpop.trf.xlu0
        %v1494 = vpop.trf.xlu0
        %1495 = vxpose.xlu0.c.b16.start [1/8] %v1417, 128
        %1496 = vxpose.xlu0.c.b16.cont [2/8] 0, 128
        %1497 = vxpose.xlu0.c.b16.cont [3/8] 0, 128
        %1498 = vxpose.xlu0.c.b16.cont [4/8] 0, 128
        %1499 = vxpose.xlu0.c.b16.cont [5/8] 0, 128
        %1500 = vxpose.xlu0.c.b16.cont [6/8] 0, 128
        %1501 = vxpose.xlu0.c.b16.cont [7/8] 0, 128
        %1502 = vxpose.xlu0.c.b16.end [8/8] 0, 128
        %v1503 = vpop.trf.xlu0
        %v1504 = vpop.trf.xlu0
        %v1505 = vpop.trf.xlu0
        %v1506 = vpop.trf.xlu0
        %v1507 = vpop.trf.xlu0
        %v1508 = vpop.trf.xlu0
        %v1509 = vpop.trf.xlu0
        %v1510 = vpop.trf.xlu0
        %1511 = vxpose.xlu0.c.b16.start [1/8] %v1421, 128
        %1512 = vxpose.xlu0.c.b16.cont [2/8] 0, 128
        %1513 = vxpose.xlu0.c.b16.cont [3/8] 0, 128
        %1514 = vxpose.xlu0.c.b16.cont [4/8] 0, 128
        %1515 = vxpose.xlu0.c.b16.cont [5/8] 0, 128
        %1516 = vxpose.xlu0.c.b16.cont [6/8] 0, 128
        %1517 = vxpose.xlu0.c.b16.cont [7/8] 0, 128
        %1518 = vxpose.xlu0.c.b16.end [8/8] 0, 128
        %v1519 = vpop.trf.xlu0
        %v1520 = vpop.trf.xlu0
        %v1521 = vpop.trf.xlu0
        %v1522 = vpop.trf.xlu0
        %v1523 = vpop.trf.xlu0
        %v1524 = vpop.trf.xlu0
        %v1525 = vpop.trf.xlu0
        %v1526 = vpop.trf.xlu0
        %1527 = vxpose.xlu0.c.b16.start [1/8] %v1425, 128
        %1528 = vxpose.xlu0.c.b16.cont [2/8] 0, 128
        %1529 = vxpose.xlu0.c.b16.cont [3/8] 0, 128
        %1530 = vxpose.xlu0.c.b16.cont [4/8] 0, 128
        %1531 = vxpose.xlu0.c.b16.cont [5/8] 0, 128
        %1532 = vxpose.xlu0.c.b16.cont [6/8] 0, 128
        %1533 = vxpose.xlu0.c.b16.cont [7/8] 0, 128
        %1534 = vxpose.xlu0.c.b16.end [8/8] 0, 128
        %v1535 = vpop.trf.xlu0
        %v1536 = vpop.trf.xlu0
        %v1537 = vpop.trf.xlu0
        %v1538 = vpop.trf.xlu0
        %v1539 = vpop.trf.xlu0
        %v1540 = vpop.trf.xlu0
        %v1541 = vpop.trf.xlu0
        %v1542 = vpop.trf.xlu0
        %1543 = vxpose.xlu0.c.b16.start [1/8] %v1429, 128
        %1544 = vxpose.xlu0.c.b16.cont [2/8] 0, 128
        %1545 = vxpose.xlu0.c.b16.cont [3/8] 0, 128
        %1546 = vxpose.xlu0.c.b16.cont [4/8] 0, 128
        %1547 = vxpose.xlu0.c.b16.cont [5/8] 0, 128
        %1548 = vxpose.xlu0.c.b16.cont [6/8] 0, 128
        %1549 = vxpose.xlu0.c.b16.cont [7/8] 0, 128
        %1550 = vxpose.xlu0.c.b16.end [8/8] 0, 128
        %v1551 = vpop.trf.xlu0
        %v1552 = vpop.trf.xlu0
        %v1553 = vpop.trf.xlu0
        %v1554 = vpop.trf.xlu0
        %v1555 = vpop.trf.xlu0
        %v1556 = vpop.trf.xlu0
        %v1557 = vpop.trf.xlu0
        %v1558 = vpop.trf.xlu0
        %v1559 = vcombine.low %v1439, %v1503
        %v1561 = vunpack.c.l.s4 1983009808
        %v1562 = vunpack.c.0.s8 %v1561
        %v1563 = vlaneseq
        %v1564 = vshrl.u32 %v1563, 7
        %v1565 = vsub.s32 %v1562, %v1564
        %v1566 = vrot.slane %v1559, %v1565
        %v1567 = vcombine.low %v1471, %v1535
        %v1569 = vunpack.c.l.s4 1983009808
        %v1570 = vunpack.c.0.s8 %v1569
        %v1571 = vlaneseq
        %v1572 = vshrl.u32 %v1571, 7
        %v1573 = vsub.s32 %v1570, %v1572
        %v1574 = vrot.slane %v1567, %v1573
        %v1575 = vcombine.low %v1566, %v1574
        %v1577 = vunpack.c.l.s4 1934713408
        %v1578 = vunpack.c.0.s8 %v1577
        %v1579 = vlaneseq
        %v1580 = vshrl.u32 %v1579, 7
        %v1581 = vsub.s32 %v1578, %v1580
        %v1582 = vrot.slane %v1575, %v1581
        %v1583 = vcombine.high %v1582, 0
        %v1584 = vcombine.low %v1455, %v1519
        %v1586 = vunpack.c.l.s4 1983009808
        %v1587 = vunpack.c.0.s8 %v1586
        %v1588 = vlaneseq
        %v1589 = vshrl.u32 %v1588, 7
        %v1590 = vsub.s32 %v1587, %v1589
        %v1591 = vrot.slane %v1584, %v1590
        %v1592 = vcombine.low %v1487, %v1551
        %v1594 = vunpack.c.l.s4 1983009808
        %v1595 = vunpack.c.0.s8 %v1594
        %v1596 = vlaneseq
        %v1597 = vshrl.u32 %v1596, 7
        %v1598 = vsub.s32 %v1595, %v1597
        %v1599 = vrot.slane %v1592, %v1598
        %v1600 = vcombine.low %v1591, %v1599
        %v1602 = vunpack.c.l.s4 1934713408
        %v1603 = vunpack.c.0.s8 %v1602
        %v1604 = vlaneseq
        %v1605 = vshrl.u32 %v1604, 7
        %v1606 = vsub.s32 %v1603, %v1605
        %v1607 = vrot.slane %v1600, %v1606
        %v1608 = vcombine.high %v1607, 0
        %v1611 = vpack.i.b16 %v1607, %v1582
        %v1612 = vshrl.u32 %v1582, 16
        %v1613 = vshrl.u32 %v1607, 16
        %v1614 = vpack.i.b16 %v1613, %v1612
        %v1617 = vpack.i.b16 %v1608, %v1583
        %v1618 = vshrl.u32 %v1583, 16
        %v1619 = vshrl.u32 %v1608, 16
        %v1620 = vpack.i.b16 %v1619, %v1618
        %vm1621 = vcmask 64512
        %v1623 = vsel %vm1621, %v1193, 0
        %vm1625 = vcmask 1043456
        %v1627 = vsel %vm1625, %v1611, 0
        %1629 = vmatprep.subr.bf16.mxu0 0
        %1630 = vmatpush1.bf16.msra.mxu0 %v1627
        %1631 = vmatprep.subr.bf16.mxu0 0
        %1632 = vmatpush1.bf16.msra.mxu0 0
        %1633 = vmatprep.subr.bf16.mxu0 0
        %1634 = vmatpush1.bf16.msra.mxu0 0
        %1635 = vmatprep.subr.bf16.mxu0 0
        %1636 = vmatpush1.bf16.msra.mxu0 0
        %1637 = vmatprep.subr.bf16.mxu0 0
        %1638 = vmatpush1.bf16.msra.mxu0 0
        %1639 = vmatprep.subr.bf16.mxu0 0
        %1640 = vmatpush1.bf16.msra.mxu0 0
        %1641 = vmatprep.subr.bf16.mxu0 0
        %1642 = vmatpush1.bf16.msra.mxu0 0
        %1643 = vmatprep.subr.bf16.mxu0 0
        %1644 = vmatpush1.bf16.msra.mxu0 0
        %1645 = vmatprep.subr.bf16.mxu0 0
        %1646 = vmatpush1.bf16.msra.mxu0 0
        %1647 = vmatprep.subr.bf16.mxu0 0
        %1648 = vmatpush1.bf16.msra.mxu0 0
        %1649 = vmatprep.subr.bf16.mxu0 0
        %1650 = vmatpush1.bf16.msra.mxu0 0
        %1651 = vmatprep.subr.bf16.mxu0 0
        %1652 = vmatpush1.bf16.msra.mxu0 0
        %1653 = vmatprep.subr.bf16.mxu0 0
        %1654 = vmatpush1.bf16.msra.mxu0 0
        %1655 = vmatprep.subr.bf16.mxu0 0
        %1656 = vmatpush1.bf16.msra.mxu0 0
        %1657 = vmatprep.subr.bf16.mxu0 0
        %1658 = vmatpush1.bf16.msra.mxu0 0
        %1659 = vmatprep.subr.bf16.mxu0 0
        %1660 = vmatpush1.bf16.msra.mxu0 0
        %1661 = vmatprep.mubr.bf16.mxu0 0
        %1662 = vmatmul.mubr.bf16.gmra.mrb[0].mxu0 %v1623
        %v1663 = vpop.f32.mrb[0].mxu0
        %v1664 = vadd.f32 %v1139, %v1663
        %v1665 = vpop.f32.mrb[0].mxu0
        %v1666 = vpop.f32.mrb[0].mxu0
        %v1667 = vpop.f32.mrb[0].mxu0
        %1668 = vdwg.mxu0
        %v1670 = vsel %vm1621, %v1196, 0
        %v1673 = vsel %vm1625, %v1614, 0
        %1675 = vmatprep.subr.bf16.mxu0 0
        %1676 = vmatpush1.bf16.msra.mxu0 %v1673
        %1677 = vmatprep.subr.bf16.mxu0 0
        %1678 = vmatpush1.bf16.msra.mxu0 0
        %1679 = vmatprep.subr.bf16.mxu0 0
        %1680 = vmatpush1.bf16.msra.mxu0 0
        %1681 = vmatprep.subr.bf16.mxu0 0
        %1682 = vmatpush1.bf16.msra.mxu0 0
        %1683 = vmatprep.subr.bf16.mxu0 0
        %1684 = vmatpush1.bf16.msra.mxu0 0
        %1685 = vmatprep.subr.bf16.mxu0 0
        %1686 = vmatpush1.bf16.msra.mxu0 0
        %1687 = vmatprep.subr.bf16.mxu0 0
        %1688 = vmatpush1.bf16.msra.mxu0 0
        %1689 = vmatprep.subr.bf16.mxu0 0
        %1690 = vmatpush1.bf16.msra.mxu0 0
        %1691 = vmatprep.subr.bf16.mxu0 0
        %1692 = vmatpush1.bf16.msra.mxu0 0
        %1693 = vmatprep.subr.bf16.mxu0 0
        %1694 = vmatpush1.bf16.msra.mxu0 0
        %1695 = vmatprep.subr.bf16.mxu0 0
        %1696 = vmatpush1.bf16.msra.mxu0 0
        %1697 = vmatprep.subr.bf16.mxu0 0
        %1698 = vmatpush1.bf16.msra.mxu0 0
        %1699 = vmatprep.subr.bf16.mxu0 0
        %1700 = vmatpush1.bf16.msra.mxu0 0
        %1701 = vmatprep.subr.bf16.mxu0 0
        %1702 = vmatpush1.bf16.msra.mxu0 0
        %1703 = vmatprep.subr.bf16.mxu0 0
        %1704 = vmatpush1.bf16.msra.mxu0 0
        %1705 = vmatprep.subr.bf16.mxu0 0
        %1706 = vmatpush1.bf16.msra.mxu0 0
        %1707 = vmatprep.mubr.bf16.mxu0 0
        %1708 = vmatmul.mubr.bf16.gmra.mrb[0].mxu0 %v1670
        %v1709 = vpop.f32.mrb[0].mxu0
        %v1710 = vadd.f32 %v1139, %v1709
        %v1711 = vpop.f32.mrb[0].mxu0
        %v1712 = vpop.f32.mrb[0].mxu0
        %v1713 = vpop.f32.mrb[0].mxu0
        %1714 = vdwg.mxu0
        %v1716 = vsel %vm1621, %v1199, 0
        %v1719 = vsel %vm1625, %v1617, 0
        %1721 = vmatprep.subr.bf16.mxu0 0
        %1722 = vmatpush1.bf16.msra.mxu0 %v1719
        %1723 = vmatprep.subr.bf16.mxu0 0
        %1724 = vmatpush1.bf16.msra.mxu0 0
        %1725 = vmatprep.subr.bf16.mxu0 0
        %1726 = vmatpush1.bf16.msra.mxu0 0
        %1727 = vmatprep.subr.bf16.mxu0 0
        %1728 = vmatpush1.bf16.msra.mxu0 0
        %1729 = vmatprep.subr.bf16.mxu0 0
        %1730 = vmatpush1.bf16.msra.mxu0 0
        %1731 = vmatprep.subr.bf16.mxu0 0
        %1732 = vmatpush1.bf16.msra.mxu0 0
        %1733 = vmatprep.subr.bf16.mxu0 0
        %1734 = vmatpush1.bf16.msra.mxu0 0
        %1735 = vmatprep.subr.bf16.mxu0 0
        %1736 = vmatpush1.bf16.msra.mxu0 0
        %1737 = vmatprep.subr.bf16.mxu0 0
        %1738 = vmatpush1.bf16.msra.mxu0 0
        %1739 = vmatprep.subr.bf16.mxu0 0
        %1740 = vmatpush1.bf16.msra.mxu0 0
        %1741 = vmatprep.subr.bf16.mxu0 0
        %1742 = vmatpush1.bf16.msra.mxu0 0
        %1743 = vmatprep.subr.bf16.mxu0 0
        %1744 = vmatpush1.bf16.msra.mxu0 0
        %1745 = vmatprep.subr.bf16.mxu0 0
        %1746 = vmatpush1.bf16.msra.mxu0 0
        %1747 = vmatprep.subr.bf16.mxu0 0
        %1748 = vmatpush1.bf16.msra.mxu0 0
        %1749 = vmatprep.subr.bf16.mxu0 0
        %1750 = vmatpush1.bf16.msra.mxu0 0
        %1751 = vmatprep.subr.bf16.mxu0 0
        %1752 = vmatpush1.bf16.msra.mxu0 0
        %1753 = vmatprep.mubr.bf16.mxu0 0
        %1754 = vmatmul.mubr.bf16.gmra.mrb[0].mxu0 %v1716
        %v1755 = vpop.f32.mrb[0].mxu0
        %v1756 = vadd.f32 %v1139, %v1755
        %v1757 = vpop.f32.mrb[0].mxu0
        %v1758 = vpop.f32.mrb[0].mxu0
        %v1759 = vpop.f32.mrb[0].mxu0
        %1760 = vdwg.mxu0
        %v1762 = vsel %vm1621, %v1202, 0
        %v1765 = vsel %vm1625, %v1620, 0
        %1767 = vmatprep.subr.bf16.mxu0 0
        %1768 = vmatpush1.bf16.msra.mxu0 %v1765
        %1769 = vmatprep.subr.bf16.mxu0 0
        %1770 = vmatpush1.bf16.msra.mxu0 0
        %1771 = vmatprep.subr.bf16.mxu0 0
        %1772 = vmatpush1.bf16.msra.mxu0 0
        %1773 = vmatprep.subr.bf16.mxu0 0
        %1774 = vmatpush1.bf16.msra.mxu0 0
        %1775 = vmatprep.subr.bf16.mxu0 0
        %1776 = vmatpush1.bf16.msra.mxu0 0
        %1777 = vmatprep.subr.bf16.mxu0 0
        %1778 = vmatpush1.bf16.msra.mxu0 0
        %1779 = vmatprep.subr.bf16.mxu0 0
        %1780 = vmatpush1.bf16.msra.mxu0 0
        %1781 = vmatprep.subr.bf16.mxu0 0
        %1782 = vmatpush1.bf16.msra.mxu0 0
        %1783 = vmatprep.subr.bf16.mxu0 0
        %1784 = vmatpush1.bf16.msra.mxu0 0
        %1785 = vmatprep.subr.bf16.mxu0 0
        %1786 = vmatpush1.bf16.msra.mxu0 0
        %1787 = vmatprep.subr.bf16.mxu0 0
        %1788 = vmatpush1.bf16.msra.mxu0 0
        %1789 = vmatprep.subr.bf16.mxu0 0
        %1790 = vmatpush1.bf16.msra.mxu0 0
        %1791 = vmatprep.subr.bf16.mxu0 0
        %1792 = vmatpush1.bf16.msra.mxu0 0
        %1793 = vmatprep.subr.bf16.mxu0 0
        %1794 = vmatpush1.bf16.msra.mxu0 0
        %1795 = vmatprep.subr.bf16.mxu0 0
        %1796 = vmatpush1.bf16.msra.mxu0 0
        %1797 = vmatprep.subr.bf16.mxu0 0
        %1798 = vmatpush1.bf16.msra.mxu0 0
        %1799 = vmatprep.mubr.bf16.mxu0 0
        %1800 = vmatmul.mubr.bf16.gmra.mrb[0].mxu0 %v1762
        %v1801 = vpop.f32.mrb[0].mxu0
        %v1802 = vadd.f32 %v1139, %v1801
        %v1803 = vpop.f32.mrb[0].mxu0
        %v1804 = vpop.f32.mrb[0].mxu0
        %v1805 = vpop.f32.mrb[0].mxu0
        %1806 = vdwg.mxu0
        %v1807 = vsel %vm1621, %v1664, -inf
        %1808 = vmax.xlane.f32.xlu0 %v1807
        %v1809 = vpop.xlane.xlu0 %1808
        %v1810 = vsel %vm1621, %v1710, -inf
        %1811 = vmax.xlane.f32.xlu0 %v1810
        %v1812 = vpop.xlane.xlu0 %1811
        %v1813 = vsel %vm1621, %v1756, -inf
        %1814 = vmax.xlane.f32.xlu0 %v1813
        %v1815 = vpop.xlane.xlu0 %1814
        %v1816 = vsel %vm1621, %v1802, -inf
        %1817 = vmax.xlane.f32.xlu0 %v1816
        %v1818 = vpop.xlane.xlu0 %1817
        %v1819 = vsub.f32 %v1664, %v1809
        %v1820 = vsub.f32 %v1710, %v1812
        %v1821 = vsub.f32 %v1756, %v1815
        %v1822 = vsub.f32 %v1802, %v1818
        %v1823 = vmul.f32 %v1819, 1.442695
        %v1824 = vpow.pop %v1823
        %v1825 = vmul.f32 %v1820, 1.442695
        %v1826 = vpow.pop %v1825
        %v1827 = vmul.f32 %v1821, 1.442695
        %v1828 = vpow.pop %v1827
        %v1829 = vmul.f32 %v1822, 1.442695
        %v1830 = vpow.pop %v1829
        %v1831 = vsel %vm1621, %v1824, 0.0
        %1832 = vadd.xlane.f32.xlu0 %v1831
        %v1833 = vpop.xlane.xlu0 %1832
        %v1834 = vsel %vm1621, %v1826, 0.0
        %1835 = vadd.xlane.f32.xlu0 %v1834
        %v1836 = vpop.xlane.xlu0 %1835
        %v1837 = vsel %vm1621, %v1828, 0.0
        %1838 = vadd.xlane.f32.xlu0 %v1837
        %v1839 = vpop.xlane.xlu0 %1838
        %v1840 = vsel %vm1621, %v1830, 0.0
        %1841 = vadd.xlane.f32.xlu0 %v1840
        %v1842 = vpop.xlane.xlu0 %1841
        %v1843 = vrcp.pop %v1833
        %v1844 = vrcp.pop %v1836
        %v1845 = vrcp.pop %v1839
        %v1846 = vrcp.pop %v1842
        %v1847 = vmul.f32 %v1824, %v1843
        %v1848 = vmul.f32 %v1826, %v1844
        %v1849 = vmul.f32 %v1828, %v1845
        %v1850 = vmul.f32 %v1830, %v1846
        %v1851 = vpack.c.bf16 %v1847, %v1847
        %v1852 = vpack.c.bf16 %v1848, %v1848
        %v1853 = vpack.c.bf16 %v1849, %v1849
        %v1854 = vpack.c.bf16 %v1850, %v1850
        %1855 = vxpose.xlu0.c.b16.start [1/8] %v1124, 128
        %1856 = vxpose.xlu0.c.b16.cont [2/8] 0, 128
        %1857 = vxpose.xlu0.c.b16.cont [3/8] 0, 128
        %1858 = vxpose.xlu0.c.b16.cont [4/8] 0, 128
        %1859 = vxpose.xlu0.c.b16.cont [5/8] 0, 128
        %1860 = vxpose.xlu0.c.b16.cont [6/8] 0, 128
        %1861 = vxpose.xlu0.c.b16.cont [7/8] 0, 128
        %1862 = vxpose.xlu0.c.b16.end [8/8] 0, 128
        %v1863 = vpop.trf.xlu0
        %v1864 = vpop.trf.xlu0
        %v1865 = vpop.trf.xlu0
        %v1866 = vpop.trf.xlu0
        %v1867 = vpop.trf.xlu0
        %v1868 = vpop.trf.xlu0
        %v1869 = vpop.trf.xlu0
        %v1870 = vpop.trf.xlu0
        %1871 = vxpose.xlu0.c.b16.start [1/8] %v1125, 128
        %1872 = vxpose.xlu0.c.b16.cont [2/8] 0, 128
        %1873 = vxpose.xlu0.c.b16.cont [3/8] 0, 128
        %1874 = vxpose.xlu0.c.b16.cont [4/8] 0, 128
        %1875 = vxpose.xlu0.c.b16.cont [5/8] 0, 128
        %1876 = vxpose.xlu0.c.b16.cont [6/8] 0, 128
        %1877 = vxpose.xlu0.c.b16.cont [7/8] 0, 128
        %1878 = vxpose.xlu0.c.b16.end [8/8] 0, 128
        %v1879 = vpop.trf.xlu0
        %v1880 = vpop.trf.xlu0
        %v1881 = vpop.trf.xlu0
        %v1882 = vpop.trf.xlu0
        %v1883 = vpop.trf.xlu0
        %v1884 = vpop.trf.xlu0
        %v1885 = vpop.trf.xlu0
        %v1886 = vpop.trf.xlu0
        %1887 = vxpose.xlu0.c.b16.start [1/8] %v1126, 128
        %1888 = vxpose.xlu0.c.b16.cont [2/8] 0, 128
        %1889 = vxpose.xlu0.c.b16.cont [3/8] 0, 128
        %1890 = vxpose.xlu0.c.b16.cont [4/8] 0, 128
        %1891 = vxpose.xlu0.c.b16.cont [5/8] 0, 128
        %1892 = vxpose.xlu0.c.b16.cont [6/8] 0, 128
        %1893 = vxpose.xlu0.c.b16.cont [7/8] 0, 128
        %1894 = vxpose.xlu0.c.b16.end [8/8] 0, 128
        %v1895 = vpop.trf.xlu0
        %v1896 = vpop.trf.xlu0
        %v1897 = vpop.trf.xlu0
        %v1898 = vpop.trf.xlu0
        %v1899 = vpop.trf.xlu0
        %v1900 = vpop.trf.xlu0
        %v1901 = vpop.trf.xlu0
        %v1902 = vpop.trf.xlu0
        %1903 = vxpose.xlu0.c.b16.start [1/8] %v1127, 128
        %1904 = vxpose.xlu0.c.b16.cont [2/8] 0, 128
        %1905 = vxpose.xlu0.c.b16.cont [3/8] 0, 128
        %1906 = vxpose.xlu0.c.b16.cont [4/8] 0, 128
        %1907 = vxpose.xlu0.c.b16.cont [5/8] 0, 128
        %1908 = vxpose.xlu0.c.b16.cont [6/8] 0, 128
        %1909 = vxpose.xlu0.c.b16.cont [7/8] 0, 128
        %1910 = vxpose.xlu0.c.b16.end [8/8] 0, 128
        %v1911 = vpop.trf.xlu0
        %v1912 = vpop.trf.xlu0
        %v1913 = vpop.trf.xlu0
        %v1914 = vpop.trf.xlu0
        %v1915 = vpop.trf.xlu0
        %v1916 = vpop.trf.xlu0
        %v1917 = vpop.trf.xlu0
        %v1918 = vpop.trf.xlu0
        %1919 = vxpose.xlu0.c.b16.start [1/8] %v1128, 128
        %1920 = vxpose.xlu0.c.b16.cont [2/8] 0, 128
        %1921 = vxpose.xlu0.c.b16.cont [3/8] 0, 128
        %1922 = vxpose.xlu0.c.b16.cont [4/8] 0, 128
        %1923 = vxpose.xlu0.c.b16.cont [5/8] 0, 128
        %1924 = vxpose.xlu0.c.b16.cont [6/8] 0, 128
        %1925 = vxpose.xlu0.c.b16.cont [7/8] 0, 128
        %1926 = vxpose.xlu0.c.b16.end [8/8] 0, 128
        %v1927 = vpop.trf.xlu0
        %v1928 = vpop.trf.xlu0
        %v1929 = vpop.trf.xlu0
        %v1930 = vpop.trf.xlu0
        %v1931 = vpop.trf.xlu0
        %v1932 = vpop.trf.xlu0
        %v1933 = vpop.trf.xlu0
        %v1934 = vpop.trf.xlu0
        %1935 = vxpose.xlu0.c.b16.start [1/8] %v1129, 128
        %1936 = vxpose.xlu0.c.b16.cont [2/8] 0, 128
        %1937 = vxpose.xlu0.c.b16.cont [3/8] 0, 128
        %1938 = vxpose.xlu0.c.b16.cont [4/8] 0, 128
        %1939 = vxpose.xlu0.c.b16.cont [5/8] 0, 128
        %1940 = vxpose.xlu0.c.b16.cont [6/8] 0, 128
        %1941 = vxpose.xlu0.c.b16.cont [7/8] 0, 128
        %1942 = vxpose.xlu0.c.b16.end [8/8] 0, 128
        %v1943 = vpop.trf.xlu0
        %v1944 = vpop.trf.xlu0
        %v1945 = vpop.trf.xlu0
        %v1946 = vpop.trf.xlu0
        %v1947 = vpop.trf.xlu0
        %v1948 = vpop.trf.xlu0
        %v1949 = vpop.trf.xlu0
        %v1950 = vpop.trf.xlu0
        %1951 = vxpose.xlu0.c.b16.start [1/8] %v1130, 128
        %1952 = vxpose.xlu0.c.b16.cont [2/8] 0, 128
        %1953 = vxpose.xlu0.c.b16.cont [3/8] 0, 128
        %1954 = vxpose.xlu0.c.b16.cont [4/8] 0, 128
        %1955 = vxpose.xlu0.c.b16.cont [5/8] 0, 128
        %1956 = vxpose.xlu0.c.b16.cont [6/8] 0, 128
        %1957 = vxpose.xlu0.c.b16.cont [7/8] 0, 128
        %1958 = vxpose.xlu0.c.b16.end [8/8] 0, 128
        %v1959 = vpop.trf.xlu0
        %v1960 = vpop.trf.xlu0
        %v1961 = vpop.trf.xlu0
        %v1962 = vpop.trf.xlu0
        %v1963 = vpop.trf.xlu0
        %v1964 = vpop.trf.xlu0
        %v1965 = vpop.trf.xlu0
        %v1966 = vpop.trf.xlu0
        %1967 = vxpose.xlu0.c.b16.start [1/8] %v1131, 128
        %1968 = vxpose.xlu0.c.b16.cont [2/8] 0, 128
        %1969 = vxpose.xlu0.c.b16.cont [3/8] 0, 128
        %1970 = vxpose.xlu0.c.b16.cont [4/8] 0, 128
        %1971 = vxpose.xlu0.c.b16.cont [5/8] 0, 128
        %1972 = vxpose.xlu0.c.b16.cont [6/8] 0, 128
        %1973 = vxpose.xlu0.c.b16.cont [7/8] 0, 128
        %1974 = vxpose.xlu0.c.b16.end [8/8] 0, 128
        %v1975 = vpop.trf.xlu0
        %v1976 = vpop.trf.xlu0
        %v1977 = vpop.trf.xlu0
        %v1978 = vpop.trf.xlu0
        %v1979 = vpop.trf.xlu0
        %v1980 = vpop.trf.xlu0
        %v1981 = vpop.trf.xlu0
        %v1982 = vpop.trf.xlu0
        %v1983 = vcombine.low %v1863, %v1927
        %v1985 = vunpack.c.l.s4 1983009808
        %v1986 = vunpack.c.0.s8 %v1985
        %v1987 = vlaneseq
        %v1988 = vshrl.u32 %v1987, 7
        %v1989 = vsub.s32 %v1986, %v1988
        %v1990 = vrot.slane %v1983, %v1989
        %v1991 = vcombine.low %v1895, %v1959
        %v1993 = vunpack.c.l.s4 1983009808
        %v1994 = vunpack.c.0.s8 %v1993
        %v1995 = vlaneseq
        %v1996 = vshrl.u32 %v1995, 7
        %v1997 = vsub.s32 %v1994, %v1996
        %v1998 = vrot.slane %v1991, %v1997
        %v1999 = vcombine.low %v1990, %v1998
        %v2000 = vcombine.high %v1990, %v1998
        %v2002 = vunpack.c.l.s4 1934713408
        %v2003 = vunpack.c.0.s8 %v2002
        %v2004 = vlaneseq
        %v2005 = vshrl.u32 %v2004, 7
        %v2006 = vsub.s32 %v2003, %v2005
        %v2007 = vrot.slane %v1999, %v2006
        %v2009 = vunpack.c.l.s4 1934713408
        %v2010 = vunpack.c.0.s8 %v2009
        %v2011 = vlaneseq
        %v2012 = vshrl.u32 %v2011, 7
        %v2013 = vsub.s32 %v2010, %v2012
        %v2014 = vrot.slane %v2000, %v2013
        %v2015 = vcombine.high %v2007, 0
        %v2016 = vcombine.high %v2014, 0
        %v2017 = vcombine.low %v1879, %v1943
        %v2019 = vunpack.c.l.s4 1983009808
        %v2020 = vunpack.c.0.s8 %v2019
        %v2021 = vlaneseq
        %v2022 = vshrl.u32 %v2021, 7
        %v2023 = vsub.s32 %v2020, %v2022
        %v2024 = vrot.slane %v2017, %v2023
        %v2025 = vcombine.low %v1911, %v1975
        %v2027 = vunpack.c.l.s4 1983009808
        %v2028 = vunpack.c.0.s8 %v2027
        %v2029 = vlaneseq
        %v2030 = vshrl.u32 %v2029, 7
        %v2031 = vsub.s32 %v2028, %v2030
        %v2032 = vrot.slane %v2025, %v2031
        %v2033 = vcombine.low %v2024, %v2032
        %v2034 = vcombine.high %v2024, %v2032
        %v2036 = vunpack.c.l.s4 1934713408
        %v2037 = vunpack.c.0.s8 %v2036
        %v2038 = vlaneseq
        %v2039 = vshrl.u32 %v2038, 7
        %v2040 = vsub.s32 %v2037, %v2039
        %v2041 = vrot.slane %v2033, %v2040
        %v2043 = vunpack.c.l.s4 1934713408
        %v2044 = vunpack.c.0.s8 %v2043
        %v2045 = vlaneseq
        %v2046 = vshrl.u32 %v2045, 7
        %v2047 = vsub.s32 %v2044, %v2046
        %v2048 = vrot.slane %v2034, %v2047
        %v2049 = vcombine.high %v2041, 0
        %v2050 = vcombine.high %v2048, 0
        %v2053 = vpack.i.b16 %v2041, %v2007
        %v2055 = vshrl.u32 %v2007, 16
        %v2056 = vshrl.u32 %v2041, 16
        %v2057 = vpack.i.b16 %v2056, %v2055
        %v2061 = vpack.i.b16 %v2049, %v2015
        %v2063 = vshrl.u32 %v2015, 16
        %v2064 = vshrl.u32 %v2049, 16
        %v2065 = vpack.i.b16 %v2064, %v2063
        %v2069 = vpack.i.b16 %v2048, %v2014
        %v2071 = vshrl.u32 %v2014, 16
        %v2072 = vshrl.u32 %v2048, 16
        %v2073 = vpack.i.b16 %v2072, %v2071
        %v2077 = vpack.i.b16 %v2050, %v2016
        %v2079 = vshrl.u32 %v2016, 16
        %v2080 = vshrl.u32 %v2050, 16
        %v2081 = vpack.i.b16 %v2080, %v2079
        %2083 = vxpose.xlu0.c.b16.start [1/8] %v2053, 128
        %2084 = vxpose.xlu0.c.b16.cont [2/8] 0, 128
        %2085 = vxpose.xlu0.c.b16.cont [3/8] 0, 128
        %2086 = vxpose.xlu0.c.b16.cont [4/8] 0, 128
        %2087 = vxpose.xlu0.c.b16.cont [5/8] 0, 128
        %2088 = vxpose.xlu0.c.b16.cont [6/8] 0, 128
        %2089 = vxpose.xlu0.c.b16.cont [7/8] 0, 128
        %2090 = vxpose.xlu0.c.b16.end [8/8] 0, 128
        %v2091 = vpop.trf.xlu0
        %v2092 = vpop.trf.xlu0
        %v2093 = vpop.trf.xlu0
        %v2094 = vpop.trf.xlu0
        %v2095 = vpop.trf.xlu0
        %v2096 = vpop.trf.xlu0
        %v2097 = vpop.trf.xlu0
        %v2098 = vpop.trf.xlu0
        %2099 = vxpose.xlu0.c.b16.start [1/8] %v2057, 128
        %2100 = vxpose.xlu0.c.b16.cont [2/8] 0, 128
        %2101 = vxpose.xlu0.c.b16.cont [3/8] 0, 128
        %2102 = vxpose.xlu0.c.b16.cont [4/8] 0, 128
        %2103 = vxpose.xlu0.c.b16.cont [5/8] 0, 128
        %2104 = vxpose.xlu0.c.b16.cont [6/8] 0, 128
        %2105 = vxpose.xlu0.c.b16.cont [7/8] 0, 128
        %2106 = vxpose.xlu0.c.b16.end [8/8] 0, 128
        %v2107 = vpop.trf.xlu0
        %v2108 = vpop.trf.xlu0
        %v2109 = vpop.trf.xlu0
        %v2110 = vpop.trf.xlu0
        %v2111 = vpop.trf.xlu0
        %v2112 = vpop.trf.xlu0
        %v2113 = vpop.trf.xlu0
        %v2114 = vpop.trf.xlu0
        %2115 = vxpose.xlu0.c.b16.start [1/8] %v2061, 128
        %2116 = vxpose.xlu0.c.b16.cont [2/8] 0, 128
        %2117 = vxpose.xlu0.c.b16.cont [3/8] 0, 128
        %2118 = vxpose.xlu0.c.b16.cont [4/8] 0, 128
        %2119 = vxpose.xlu0.c.b16.cont [5/8] 0, 128
        %2120 = vxpose.xlu0.c.b16.cont [6/8] 0, 128
        %2121 = vxpose.xlu0.c.b16.cont [7/8] 0, 128
        %2122 = vxpose.xlu0.c.b16.end [8/8] 0, 128
        %v2123 = vpop.trf.xlu0
        %v2124 = vpop.trf.xlu0
        %v2125 = vpop.trf.xlu0
        %v2126 = vpop.trf.xlu0
        %v2127 = vpop.trf.xlu0
        %v2128 = vpop.trf.xlu0
        %v2129 = vpop.trf.xlu0
        %v2130 = vpop.trf.xlu0
        %2131 = vxpose.xlu0.c.b16.start [1/8] %v2065, 128
        %2132 = vxpose.xlu0.c.b16.cont [2/8] 0, 128
        %2133 = vxpose.xlu0.c.b16.cont [3/8] 0, 128
        %2134 = vxpose.xlu0.c.b16.cont [4/8] 0, 128
        %2135 = vxpose.xlu0.c.b16.cont [5/8] 0, 128
        %2136 = vxpose.xlu0.c.b16.cont [6/8] 0, 128
        %2137 = vxpose.xlu0.c.b16.cont [7/8] 0, 128
        %2138 = vxpose.xlu0.c.b16.end [8/8] 0, 128
        %v2139 = vpop.trf.xlu0
        %v2140 = vpop.trf.xlu0
        %v2141 = vpop.trf.xlu0
        %v2142 = vpop.trf.xlu0
        %v2143 = vpop.trf.xlu0
        %v2144 = vpop.trf.xlu0
        %v2145 = vpop.trf.xlu0
        %v2146 = vpop.trf.xlu0
        %2147 = vxpose.xlu0.c.b16.start [1/8] %v2069, 128
        %2148 = vxpose.xlu0.c.b16.cont [2/8] 0, 128
        %2149 = vxpose.xlu0.c.b16.cont [3/8] 0, 128
        %2150 = vxpose.xlu0.c.b16.cont [4/8] 0, 128
        %2151 = vxpose.xlu0.c.b16.cont [5/8] 0, 128
        %2152 = vxpose.xlu0.c.b16.cont [6/8] 0, 128
        %2153 = vxpose.xlu0.c.b16.cont [7/8] 0, 128
        %2154 = vxpose.xlu0.c.b16.end [8/8] 0, 128
        %v2155 = vpop.trf.xlu0
        %v2156 = vpop.trf.xlu0
        %v2157 = vpop.trf.xlu0
        %v2158 = vpop.trf.xlu0
        %v2159 = vpop.trf.xlu0
        %v2160 = vpop.trf.xlu0
        %v2161 = vpop.trf.xlu0
        %v2162 = vpop.trf.xlu0
        %2163 = vxpose.xlu0.c.b16.start [1/8] %v2073, 128
        %2164 = vxpose.xlu0.c.b16.cont [2/8] 0, 128
        %2165 = vxpose.xlu0.c.b16.cont [3/8] 0, 128
        %2166 = vxpose.xlu0.c.b16.cont [4/8] 0, 128
        %2167 = vxpose.xlu0.c.b16.cont [5/8] 0, 128
        %2168 = vxpose.xlu0.c.b16.cont [6/8] 0, 128
        %2169 = vxpose.xlu0.c.b16.cont [7/8] 0, 128
        %2170 = vxpose.xlu0.c.b16.end [8/8] 0, 128
        %v2171 = vpop.trf.xlu0
        %v2172 = vpop.trf.xlu0
        %v2173 = vpop.trf.xlu0
        %v2174 = vpop.trf.xlu0
        %v2175 = vpop.trf.xlu0
        %v2176 = vpop.trf.xlu0
        %v2177 = vpop.trf.xlu0
        %v2178 = vpop.trf.xlu0
        %2179 = vxpose.xlu0.c.b16.start [1/8] %v2077, 128
        %2180 = vxpose.xlu0.c.b16.cont [2/8] 0, 128
        %2181 = vxpose.xlu0.c.b16.cont [3/8] 0, 128
        %2182 = vxpose.xlu0.c.b16.cont [4/8] 0, 128
        %2183 = vxpose.xlu0.c.b16.cont [5/8] 0, 128
        %2184 = vxpose.xlu0.c.b16.cont [6/8] 0, 128
        %2185 = vxpose.xlu0.c.b16.cont [7/8] 0, 128
        %2186 = vxpose.xlu0.c.b16.end [8/8] 0, 128
        %v2187 = vpop.trf.xlu0
        %v2188 = vpop.trf.xlu0
        %v2189 = vpop.trf.xlu0
        %v2190 = vpop.trf.xlu0
        %v2191 = vpop.trf.xlu0
        %v2192 = vpop.trf.xlu0
        %v2193 = vpop.trf.xlu0
        %v2194 = vpop.trf.xlu0
        %2195 = vxpose.xlu0.c.b16.start [1/8] %v2081, 128
        %2196 = vxpose.xlu0.c.b16.cont [2/8] 0, 128
        %2197 = vxpose.xlu0.c.b16.cont [3/8] 0, 128
        %2198 = vxpose.xlu0.c.b16.cont [4/8] 0, 128
        %2199 = vxpose.xlu0.c.b16.cont [5/8] 0, 128
        %2200 = vxpose.xlu0.c.b16.cont [6/8] 0, 128
        %2201 = vxpose.xlu0.c.b16.cont [7/8] 0, 128
        %2202 = vxpose.xlu0.c.b16.end [8/8] 0, 128
        %v2203 = vpop.trf.xlu0
        %v2204 = vpop.trf.xlu0
        %v2205 = vpop.trf.xlu0
        %v2206 = vpop.trf.xlu0
        %v2207 = vpop.trf.xlu0
        %v2208 = vpop.trf.xlu0
        %v2209 = vpop.trf.xlu0
        %v2210 = vpop.trf.xlu0
        %v2211 = vcombine.low %v2091, %v2155
        %v2213 = vunpack.c.l.s4 1983009808
        %v2214 = vunpack.c.0.s8 %v2213
        %v2215 = vlaneseq
        %v2216 = vshrl.u32 %v2215, 7
        %v2217 = vsub.s32 %v2214, %v2216
        %v2218 = vrot.slane %v2211, %v2217
        %v2219 = vcombine.low %v2123, %v2187
        %v2221 = vunpack.c.l.s4 1983009808
        %v2222 = vunpack.c.0.s8 %v2221
        %v2223 = vlaneseq
        %v2224 = vshrl.u32 %v2223, 7
        %v2225 = vsub.s32 %v2222, %v2224
        %v2226 = vrot.slane %v2219, %v2225
        %v2227 = vcombine.low %v2218, %v2226
        %v2229 = vunpack.c.l.s4 1934713408
        %v2230 = vunpack.c.0.s8 %v2229
        %v2231 = vlaneseq
        %v2232 = vshrl.u32 %v2231, 7
        %v2233 = vsub.s32 %v2230, %v2232
        %v2234 = vrot.slane %v2227, %v2233
        %v2235 = vcombine.high %v2234, 0
        %v2236 = vcombine.low %v2107, %v2171
        %v2238 = vunpack.c.l.s4 1983009808
        %v2239 = vunpack.c.0.s8 %v2238
        %v2240 = vlaneseq
        %v2241 = vshrl.u32 %v2240, 7
        %v2242 = vsub.s32 %v2239, %v2241
        %v2243 = vrot.slane %v2236, %v2242
        %v2244 = vcombine.low %v2139, %v2203
        %v2246 = vunpack.c.l.s4 1983009808
        %v2247 = vunpack.c.0.s8 %v2246
        %v2248 = vlaneseq
        %v2249 = vshrl.u32 %v2248, 7
        %v2250 = vsub.s32 %v2247, %v2249
        %v2251 = vrot.slane %v2244, %v2250
        %v2252 = vcombine.low %v2243, %v2251
        %v2254 = vunpack.c.l.s4 1934713408
        %v2255 = vunpack.c.0.s8 %v2254
        %v2256 = vlaneseq
        %v2257 = vshrl.u32 %v2256, 7
        %v2258 = vsub.s32 %v2255, %v2257
        %v2259 = vrot.slane %v2252, %v2258
        %v2260 = vcombine.high %v2259, 0
        %v2263 = vpack.i.b16 %v2259, %v2234
        %v2264 = vshrl.u32 %v2234, 16
        %v2265 = vshrl.u32 %v2259, 16
        %v2266 = vpack.i.b16 %v2265, %v2264
        %v2269 = vpack.i.b16 %v2260, %v2235
        %v2270 = vshrl.u32 %v2235, 16
        %v2271 = vshrl.u32 %v2260, 16
        %v2272 = vpack.i.b16 %v2271, %v2270
        %v2274 = vsel %vm1621, %v2263, 0
        %v2277 = vsel %vm1621, %v1851, 0
        %2279 = vmatprep.subr.bf16.mxu0 0
        %2280 = vmatpush1.bf16.xpose.msra.mxu0 %v2277
        %2281 = vmatprep.subr.bf16.mxu0 0
        %2282 = vmatpush1.bf16.xpose.msra.mxu0 0
        %2283 = vmatprep.subr.bf16.mxu0 0
        %2284 = vmatpush1.bf16.xpose.msra.mxu0 0
        %2285 = vmatprep.subr.bf16.mxu0 0
        %2286 = vmatpush1.bf16.xpose.msra.mxu0 0
        %2287 = vmatprep.subr.bf16.mxu0 0
        %2288 = vmatpush1.bf16.xpose.msra.mxu0 0
        %2289 = vmatprep.subr.bf16.mxu0 0
        %2290 = vmatpush1.bf16.xpose.msra.mxu0 0
        %2291 = vmatprep.subr.bf16.mxu0 0
        %2292 = vmatpush1.bf16.xpose.msra.mxu0 0
        %2293 = vmatprep.subr.bf16.mxu0 0
        %2294 = vmatpush1.bf16.xpose.msra.mxu0 0
        %2295 = vmatprep.subr.bf16.mxu0 0
        %2296 = vmatpush1.bf16.xpose.msra.mxu0 0
        %2297 = vmatprep.subr.bf16.mxu0 0
        %2298 = vmatpush1.bf16.xpose.msra.mxu0 0
        %2299 = vmatprep.subr.bf16.mxu0 0
        %2300 = vmatpush1.bf16.xpose.msra.mxu0 0
        %2301 = vmatprep.subr.bf16.mxu0 0
        %2302 = vmatpush1.bf16.xpose.msra.mxu0 0
        %2303 = vmatprep.subr.bf16.mxu0 0
        %2304 = vmatpush1.bf16.xpose.msra.mxu0 0
        %2305 = vmatprep.subr.bf16.mxu0 0
        %2306 = vmatpush1.bf16.xpose.msra.mxu0 0
        %2307 = vmatprep.subr.bf16.mxu0 0
        %2308 = vmatpush1.bf16.xpose.msra.mxu0 0
        %2309 = vmatprep.subr.bf16.mxu0 0
        %2310 = vmatpush1.bf16.xpose.msra.mxu0 0
        %2311 = vmatprep.mubr.bf16.mxu0 0
        %2312 = vmatmul.mubr.bf16.gmra.mrb[0].mxu0 %v2274
        %v2313 = vpop.f32.mrb[0].mxu0
        %v2314 = vadd.f32 0.0, %v2313
        %v2315 = vpop.f32.mrb[0].mxu0
        %v2316 = vpop.f32.mrb[0].mxu0
        %v2317 = vpop.f32.mrb[0].mxu0
        %2318 = vdwg.mxu0
        %v2320 = vsel %vm1621, %v2266, 0
        %v2323 = vsel %vm1621, %v1852, 0
        %2325 = vmatprep.subr.bf16.mxu0 0
        %2326 = vmatpush1.bf16.xpose.msra.mxu0 %v2323
        %2327 = vmatprep.subr.bf16.mxu0 0
        %2328 = vmatpush1.bf16.xpose.msra.mxu0 0
        %2329 = vmatprep.subr.bf16.mxu0 0
        %2330 = vmatpush1.bf16.xpose.msra.mxu0 0
        %2331 = vmatprep.subr.bf16.mxu0 0
        %2332 = vmatpush1.bf16.xpose.msra.mxu0 0
        %2333 = vmatprep.subr.bf16.mxu0 0
        %2334 = vmatpush1.bf16.xpose.msra.mxu0 0
        %2335 = vmatprep.subr.bf16.mxu0 0
        %2336 = vmatpush1.bf16.xpose.msra.mxu0 0
        %2337 = vmatprep.subr.bf16.mxu0 0
        %2338 = vmatpush1.bf16.xpose.msra.mxu0 0
        %2339 = vmatprep.subr.bf16.mxu0 0
        %2340 = vmatpush1.bf16.xpose.msra.mxu0 0
        %2341 = vmatprep.subr.bf16.mxu0 0
        %2342 = vmatpush1.bf16.xpose.msra.mxu0 0
        %2343 = vmatprep.subr.bf16.mxu0 0
        %2344 = vmatpush1.bf16.xpose.msra.mxu0 0
        %2345 = vmatprep.subr.bf16.mxu0 0
        %2346 = vmatpush1.bf16.xpose.msra.mxu0 0
        %2347 = vmatprep.subr.bf16.mxu0 0
        %2348 = vmatpush1.bf16.xpose.msra.mxu0 0
        %2349 = vmatprep.subr.bf16.mxu0 0
        %2350 = vmatpush1.bf16.xpose.msra.mxu0 0
        %2351 = vmatprep.subr.bf16.mxu0 0
        %2352 = vmatpush1.bf16.xpose.msra.mxu0 0
        %2353 = vmatprep.subr.bf16.mxu0 0
        %2354 = vmatpush1.bf16.xpose.msra.mxu0 0
        %2355 = vmatprep.subr.bf16.mxu0 0
        %2356 = vmatpush1.bf16.xpose.msra.mxu0 0
        %2357 = vmatprep.mubr.bf16.mxu0 0
        %2358 = vmatmul.mubr.bf16.gmra.mrb[0].mxu0 %v2320
        %v2359 = vpop.f32.mrb[0].mxu0
        %v2360 = vadd.f32 0.0, %v2359
        %v2361 = vpop.f32.mrb[0].mxu0
        %v2362 = vpop.f32.mrb[0].mxu0
        %v2363 = vpop.f32.mrb[0].mxu0
        %2364 = vdwg.mxu0
        %v2366 = vsel %vm1621, %v2269, 0
        %v2369 = vsel %vm1621, %v1853, 0
        %2371 = vmatprep.subr.bf16.mxu0 0
        %2372 = vmatpush1.bf16.xpose.msra.mxu0 %v2369
        %2373 = vmatprep.subr.bf16.mxu0 0
        %2374 = vmatpush1.bf16.xpose.msra.mxu0 0
        %2375 = vmatprep.subr.bf16.mxu0 0
        %2376 = vmatpush1.bf16.xpose.msra.mxu0 0
        %2377 = vmatprep.subr.bf16.mxu0 0
        %2378 = vmatpush1.bf16.xpose.msra.mxu0 0
        %2379 = vmatprep.subr.bf16.mxu0 0
        %2380 = vmatpush1.bf16.xpose.msra.mxu0 0
        %2381 = vmatprep.subr.bf16.mxu0 0
        %2382 = vmatpush1.bf16.xpose.msra.mxu0 0
        %2383 = vmatprep.subr.bf16.mxu0 0
        %2384 = vmatpush1.bf16.xpose.msra.mxu0 0
        %2385 = vmatprep.subr.bf16.mxu0 0
        %2386 = vmatpush1.bf16.xpose.msra.mxu0 0
        %2387 = vmatprep.subr.bf16.mxu0 0
        %2388 = vmatpush1.bf16.xpose.msra.mxu0 0
        %2389 = vmatprep.subr.bf16.mxu0 0
        %2390 = vmatpush1.bf16.xpose.msra.mxu0 0
        %2391 = vmatprep.subr.bf16.mxu0 0
        %2392 = vmatpush1.bf16.xpose.msra.mxu0 0
        %2393 = vmatprep.subr.bf16.mxu0 0
        %2394 = vmatpush1.bf16.xpose.msra.mxu0 0
        %2395 = vmatprep.subr.bf16.mxu0 0
        %2396 = vmatpush1.bf16.xpose.msra.mxu0 0
        %2397 = vmatprep.subr.bf16.mxu0 0
        %2398 = vmatpush1.bf16.xpose.msra.mxu0 0
        %2399 = vmatprep.subr.bf16.mxu0 0
        %2400 = vmatpush1.bf16.xpose.msra.mxu0 0
        %2401 = vmatprep.subr.bf16.mxu0 0
        %2402 = vmatpush1.bf16.xpose.msra.mxu0 0
        %2403 = vmatprep.mubr.bf16.mxu0 0
        %2404 = vmatmul.mubr.bf16.gmra.mrb[0].mxu0 %v2366
        %v2405 = vpop.f32.mrb[0].mxu0
        %v2406 = vadd.f32 0.0, %v2405
        %v2407 = vpop.f32.mrb[0].mxu0
        %v2408 = vpop.f32.mrb[0].mxu0
        %v2409 = vpop.f32.mrb[0].mxu0
        %2410 = vdwg.mxu0
        %v2412 = vsel %vm1621, %v2272, 0
        %v2415 = vsel %vm1621, %v1854, 0
        %2417 = vmatprep.subr.bf16.mxu0 0
        %2418 = vmatpush1.bf16.xpose.msra.mxu0 %v2415
        %2419 = vmatprep.subr.bf16.mxu0 0
        %2420 = vmatpush1.bf16.xpose.msra.mxu0 0
        %2421 = vmatprep.subr.bf16.mxu0 0
        %2422 = vmatpush1.bf16.xpose.msra.mxu0 0
        %2423 = vmatprep.subr.bf16.mxu0 0
        %2424 = vmatpush1.bf16.xpose.msra.mxu0 0
        %2425 = vmatprep.subr.bf16.mxu0 0
        %2426 = vmatpush1.bf16.xpose.msra.mxu0 0
        %2427 = vmatprep.subr.bf16.mxu0 0
        %2428 = vmatpush1.bf16.xpose.msra.mxu0 0
        %2429 = vmatprep.subr.bf16.mxu0 0
        %2430 = vmatpush1.bf16.xpose.msra.mxu0 0
        %2431 = vmatprep.subr.bf16.mxu0 0
        %2432 = vmatpush1.bf16.xpose.msra.mxu0 0
        %2433 = vmatprep.subr.bf16.mxu0 0
        %2434 = vmatpush1.bf16.xpose.msra.mxu0 0
        %2435 = vmatprep.subr.bf16.mxu0 0
        %2436 = vmatpush1.bf16.xpose.msra.mxu0 0
        %2437 = vmatprep.subr.bf16.mxu0 0
        %2438 = vmatpush1.bf16.xpose.msra.mxu0 0
        %2439 = vmatprep.subr.bf16.mxu0 0
        %2440 = vmatpush1.bf16.xpose.msra.mxu0 0
        %2441 = vmatprep.subr.bf16.mxu0 0
        %2442 = vmatpush1.bf16.xpose.msra.mxu0 0
        %2443 = vmatprep.subr.bf16.mxu0 0
        %2444 = vmatpush1.bf16.xpose.msra.mxu0 0
        %2445 = vmatprep.subr.bf16.mxu0 0
        %2446 = vmatpush1.bf16.xpose.msra.mxu0 0
        %2447 = vmatprep.subr.bf16.mxu0 0
        %2448 = vmatpush1.bf16.xpose.msra.mxu0 0
        %2449 = vmatprep.mubr.bf16.mxu0 0
        %2450 = vmatmul.mubr.bf16.gmra.mrb[0].mxu0 %v2412
        %v2451 = vpop.f32.mrb[0].mxu0
        %v2452 = vadd.f32 0.0, %v2451
        %v2453 = vpop.f32.mrb[0].mxu0
        %v2454 = vpop.f32.mrb[0].mxu0
        %v2455 = vpop.f32.mrb[0].mxu0
        %2456 = vdwg.mxu0
        %2457 = vxpose.xlu0.b32.start [1/16] %v2314, 128
        %2458 = vxpose.xlu0.b32.cont [2/16] 0.0, 128
        %2459 = vxpose.xlu0.b32.cont [3/16] 0.0, 128
        %2460 = vxpose.xlu0.b32.cont [4/16] 0.0, 128
        %2461 = vxpose.xlu0.b32.cont [5/16] 0.0, 128
        %2462 = vxpose.xlu0.b32.cont [6/16] 0.0, 128
        %2463 = vxpose.xlu0.b32.cont [7/16] 0.0, 128
        %2464 = vxpose.xlu0.b32.cont [8/16] 0.0, 128
        %2465 = vxpose.xlu0.b32.cont [9/16] 0.0, 128
        %2466 = vxpose.xlu0.b32.cont [10/16] 0.0, 128
        %2467 = vxpose.xlu0.b32.cont [11/16] 0.0, 128
        %2468 = vxpose.xlu0.b32.cont [12/16] 0.0, 128
        %2469 = vxpose.xlu0.b32.cont [13/16] 0.0, 128
        %2470 = vxpose.xlu0.b32.cont [14/16] 0.0, 128
        %2471 = vxpose.xlu0.b32.cont [15/16] 0.0, 128
        %2472 = vxpose.xlu0.b32.end [16/16] 0.0, 128
        %v2473 = vpop.trf.xlu0
        %v2474 = vpop.trf.xlu0
        %v2475 = vpop.trf.xlu0
        %v2476 = vpop.trf.xlu0
        %v2477 = vpop.trf.xlu0
        %v2478 = vpop.trf.xlu0
        %v2479 = vpop.trf.xlu0
        %v2480 = vpop.trf.xlu0
        %v2481 = vpop.trf.xlu0
        %v2482 = vpop.trf.xlu0
        %v2483 = vpop.trf.xlu0
        %v2484 = vpop.trf.xlu0
        %v2485 = vpop.trf.xlu0
        %v2486 = vpop.trf.xlu0
        %v2487 = vpop.trf.xlu0
        %v2488 = vpop.trf.xlu0
        %2489 = vxpose.xlu0.b32.start [1/16] %v2360, 128
        %2490 = vxpose.xlu0.b32.cont [2/16] 0.0, 128
        %2491 = vxpose.xlu0.b32.cont [3/16] 0.0, 128
        %2492 = vxpose.xlu0.b32.cont [4/16] 0.0, 128
        %2493 = vxpose.xlu0.b32.cont [5/16] 0.0, 128
        %2494 = vxpose.xlu0.b32.cont [6/16] 0.0, 128
        %2495 = vxpose.xlu0.b32.cont [7/16] 0.0, 128
        %2496 = vxpose.xlu0.b32.cont [8/16] 0.0, 128
        %2497 = vxpose.xlu0.b32.cont [9/16] 0.0, 128
        %2498 = vxpose.xlu0.b32.cont [10/16] 0.0, 128
        %2499 = vxpose.xlu0.b32.cont [11/16] 0.0, 128
        %2500 = vxpose.xlu0.b32.cont [12/16] 0.0, 128
        %2501 = vxpose.xlu0.b32.cont [13/16] 0.0, 128
        %2502 = vxpose.xlu0.b32.cont [14/16] 0.0, 128
        %2503 = vxpose.xlu0.b32.cont [15/16] 0.0, 128
        %2504 = vxpose.xlu0.b32.end [16/16] 0.0, 128
        %v2505 = vpop.trf.xlu0
        %v2506 = vpop.trf.xlu0
        %v2507 = vpop.trf.xlu0
        %v2508 = vpop.trf.xlu0
        %v2509 = vpop.trf.xlu0
        %v2510 = vpop.trf.xlu0
        %v2511 = vpop.trf.xlu0
        %v2512 = vpop.trf.xlu0
        %v2513 = vpop.trf.xlu0
        %v2514 = vpop.trf.xlu0
        %v2515 = vpop.trf.xlu0
        %v2516 = vpop.trf.xlu0
        %v2517 = vpop.trf.xlu0
        %v2518 = vpop.trf.xlu0
        %v2519 = vpop.trf.xlu0
        %v2520 = vpop.trf.xlu0
        %2521 = vxpose.xlu0.b32.start [1/16] %v2406, 128
        %2522 = vxpose.xlu0.b32.cont [2/16] 0.0, 128
        %2523 = vxpose.xlu0.b32.cont [3/16] 0.0, 128
        %2524 = vxpose.xlu0.b32.cont [4/16] 0.0, 128
        %2525 = vxpose.xlu0.b32.cont [5/16] 0.0, 128
        %2526 = vxpose.xlu0.b32.cont [6/16] 0.0, 128
        %2527 = vxpose.xlu0.b32.cont [7/16] 0.0, 128
        %2528 = vxpose.xlu0.b32.cont [8/16] 0.0, 128
        %2529 = vxpose.xlu0.b32.cont [9/16] 0.0, 128
        %2530 = vxpose.xlu0.b32.cont [10/16] 0.0, 128
        %2531 = vxpose.xlu0.b32.cont [11/16] 0.0, 128
        %2532 = vxpose.xlu0.b32.cont [12/16] 0.0, 128
        %2533 = vxpose.xlu0.b32.cont [13/16] 0.0, 128
        %2534 = vxpose.xlu0.b32.cont [14/16] 0.0, 128
        %2535 = vxpose.xlu0.b32.cont [15/16] 0.0, 128
        %2536 = vxpose.xlu0.b32.end [16/16] 0.0, 128
        %v2537 = vpop.trf.xlu0
        %v2538 = vpop.trf.xlu0
        %v2539 = vpop.trf.xlu0
        %v2540 = vpop.trf.xlu0
        %v2541 = vpop.trf.xlu0
        %v2542 = vpop.trf.xlu0
        %v2543 = vpop.trf.xlu0
        %v2544 = vpop.trf.xlu0
        %v2545 = vpop.trf.xlu0
        %v2546 = vpop.trf.xlu0
        %v2547 = vpop.trf.xlu0
        %v2548 = vpop.trf.xlu0
        %v2549 = vpop.trf.xlu0
        %v2550 = vpop.trf.xlu0
        %v2551 = vpop.trf.xlu0
        %v2552 = vpop.trf.xlu0
        %2553 = vxpose.xlu0.b32.start [1/16] %v2452, 128
        %2554 = vxpose.xlu0.b32.cont [2/16] 0.0, 128
        %2555 = vxpose.xlu0.b32.cont [3/16] 0.0, 128
        %2556 = vxpose.xlu0.b32.cont [4/16] 0.0, 128
        %2557 = vxpose.xlu0.b32.cont [5/16] 0.0, 128
        %2558 = vxpose.xlu0.b32.cont [6/16] 0.0, 128
        %2559 = vxpose.xlu0.b32.cont [7/16] 0.0, 128
        %2560 = vxpose.xlu0.b32.cont [8/16] 0.0, 128
        %2561 = vxpose.xlu0.b32.cont [9/16] 0.0, 128
        %2562 = vxpose.xlu0.b32.cont [10/16] 0.0, 128
        %2563 = vxpose.xlu0.b32.cont [11/16] 0.0, 128
        %2564 = vxpose.xlu0.b32.cont [12/16] 0.0, 128
        %2565 = vxpose.xlu0.b32.cont [13/16] 0.0, 128
        %2566 = vxpose.xlu0.b32.cont [14/16] 0.0, 128
        %2567 = vxpose.xlu0.b32.cont [15/16] 0.0, 128
        %2568 = vxpose.xlu0.b32.end [16/16] 0.0, 128
        %v2569 = vpop.trf.xlu0
        %v2570 = vpop.trf.xlu0
        %v2571 = vpop.trf.xlu0
        %v2572 = vpop.trf.xlu0
        %v2573 = vpop.trf.xlu0
        %v2574 = vpop.trf.xlu0
        %v2575 = vpop.trf.xlu0
        %v2576 = vpop.trf.xlu0
        %v2577 = vpop.trf.xlu0
        %v2578 = vpop.trf.xlu0
        %v2579 = vpop.trf.xlu0
        %v2580 = vpop.trf.xlu0
        %v2581 = vpop.trf.xlu0
        %v2582 = vpop.trf.xlu0
        %v2583 = vpop.trf.xlu0
        %v2584 = vpop.trf.xlu0
        %v2585 = vcombine.low %v2473, %v2537
        %v2586 = vcombine.high %v2473, %v2537
        %v2588 = vunpack.c.l.s4 1983009808
        %v2589 = vunpack.c.0.s8 %v2588
        %v2590 = vlaneseq
        %v2591 = vshrl.u32 %v2590, 7
        %v2592 = vsub.s32 %v2589, %v2591
        %v2593 = vrot.slane %v2585, %v2592
        %v2595 = vunpack.c.l.s4 1983009808
        %v2596 = vunpack.c.0.s8 %v2595
        %v2597 = vlaneseq
        %v2598 = vshrl.u32 %v2597, 7
        %v2599 = vsub.s32 %v2596, %v2598
        %v2600 = vrot.slane %v2586, %v2599
        %v2601 = vcombine.low %v2505, %v2569
        %v2602 = vcombine.high %v2505, %v2569
        %v2604 = vunpack.c.l.s4 1983009808
        %v2605 = vunpack.c.0.s8 %v2604
        %v2606 = vlaneseq
        %v2607 = vshrl.u32 %v2606, 7
        %v2608 = vsub.s32 %v2605, %v2607
        %v2609 = vrot.slane %v2601, %v2608
        %v2611 = vunpack.c.l.s4 1983009808
        %v2612 = vunpack.c.0.s8 %v2611
        %v2613 = vlaneseq
        %v2614 = vshrl.u32 %v2613, 7
        %v2615 = vsub.s32 %v2612, %v2614
        %v2616 = vrot.slane %v2602, %v2615
        %v2617 = vcombine.low %v2593, %v2609
        %v2618 = vcombine.high %v2593, %v2609
        %v2620 = vunpack.c.l.s4 1934713408
        %v2621 = vunpack.c.0.s8 %v2620
        %v2622 = vlaneseq
        %v2623 = vshrl.u32 %v2622, 7
        %v2624 = vsub.s32 %v2621, %v2623
        %v2625 = vrot.slane %v2617, %v2624
        %v2627 = vunpack.c.l.s4 1934713408
        %v2628 = vunpack.c.0.s8 %v2627
        %v2629 = vlaneseq
        %v2630 = vshrl.u32 %v2629, 7
        %v2631 = vsub.s32 %v2628, %v2630
        %v2632 = vrot.slane %v2618, %v2631
        %v2633 = vcombine.low %v2600, %v2616
        %v2634 = vcombine.high %v2600, %v2616
        %v2636 = vunpack.c.l.s4 1934713408
        %v2637 = vunpack.c.0.s8 %v2636
        %v2638 = vlaneseq
        %v2639 = vshrl.u32 %v2638, 7
        %v2640 = vsub.s32 %v2637, %v2639
        %v2641 = vrot.slane %v2633, %v2640
        %v2643 = vunpack.c.l.s4 1934713408
        %v2644 = vunpack.c.0.s8 %v2643
        %v2645 = vlaneseq
        %v2646 = vshrl.u32 %v2645, 7
        %v2647 = vsub.s32 %v2644, %v2646
        %v2648 = vrot.slane %v2634, %v2647
        %v2649 = vcombine.high %v2625, 0.0
        %v2650 = vcombine.high %v2632, 0.0
        %v2651 = vcombine.high %v2641, 0.0
        %v2652 = vcombine.high %v2648, 0.0
        %v2653 = vcombine.low %v2625, %v2632
        %v2655 = vunpack.c.l.s4 1983009808
        %v2656 = vunpack.c.0.s8 %v2655
        %v2657 = vlaneseq
        %v2658 = vshrl.u32 %v2657, 7
        %v2659 = vsub.s32 %v2656, %v2658
        %v2660 = vrot.slane %v2653, %v2659
        %v2661 = vcombine.low %v2649, %v2650
        %v2663 = vunpack.c.l.s4 1983009808
        %v2664 = vunpack.c.0.s8 %v2663
        %v2665 = vlaneseq
        %v2666 = vshrl.u32 %v2665, 7
        %v2667 = vsub.s32 %v2664, %v2666
        %v2668 = vrot.slane %v2661, %v2667
        %v2669 = vcombine.low %v2641, %v2648
        %v2671 = vunpack.c.l.s4 1983009808
        %v2672 = vunpack.c.0.s8 %v2671
        %v2673 = vlaneseq
        %v2674 = vshrl.u32 %v2673, 7
        %v2675 = vsub.s32 %v2672, %v2674
        %v2676 = vrot.slane %v2669, %v2675
        %v2677 = vcombine.low %v2651, %v2652
        %v2679 = vunpack.c.l.s4 1983009808
        %v2680 = vunpack.c.0.s8 %v2679
        %v2681 = vlaneseq
        %v2682 = vshrl.u32 %v2681, 7
        %v2683 = vsub.s32 %v2680, %v2682
        %v2684 = vrot.slane %v2677, %v2683
        %v2685 = vcombine.low %v2660, %v2668
        %v2686 = vcombine.high %v2660, %v2668
        %v2688 = vunpack.c.l.s4 1934713408
        %v2689 = vunpack.c.0.s8 %v2688
        %v2690 = vlaneseq
        %v2691 = vshrl.u32 %v2690, 7
        %v2692 = vsub.s32 %v2689, %v2691
        %v2693 = vrot.slane %v2685, %v2692
        %v2695 = vunpack.c.l.s4 1934713408
        %v2696 = vunpack.c.0.s8 %v2695
        %v2697 = vlaneseq
        %v2698 = vshrl.u32 %v2697, 7
        %v2699 = vsub.s32 %v2696, %v2698
        %v2700 = vrot.slane %v2686, %v2699
        %v2701 = vcombine.low %v2676, %v2684
        %v2702 = vcombine.high %v2676, %v2684
        %v2704 = vunpack.c.l.s4 1934713408
        %v2705 = vunpack.c.0.s8 %v2704
        %v2706 = vlaneseq
        %v2707 = vshrl.u32 %v2706, 7
        %v2708 = vsub.s32 %v2705, %v2707
        %v2709 = vrot.slane %v2701, %v2708
        %v2711 = vunpack.c.l.s4 1934713408
        %v2712 = vunpack.c.0.s8 %v2711
        %v2713 = vlaneseq
        %v2714 = vshrl.u32 %v2713, 7
        %v2715 = vsub.s32 %v2712, %v2714
        %v2716 = vrot.slane %v2702, %v2715
        %v2717 = vcombine.low %v2693, %v2709
        %v2718 = vcombine.high %v2693, %v2709
        %v2719 = vcombine.low %v2700, %v2716
        %v2720 = vcombine.high %v2700, %v2716
        %2722 = vrot.lane.b32.xlu0 %v2718, 8
        %v2723 = vpop.permute.xlu0 %2722
        %2726 = vrot.lane.b32.xlu0 %v2719, 16
        %v2727 = vpop.permute.xlu0 %2726
        %2730 = vrot.lane.b32.xlu0 %v2720, 24
        %v2731 = vpop.permute.xlu0 %2730
        %v2733 = vsel %vm1621, %v2717, %v2723
        %vm2734 = vcmask 130048
        %v2735 = vsel %vm2734, %v2733, %v2727
        %vm2736 = vcmask 195584
        %v2737 = vsel %vm2736, %v2735, %v2731
        %v2738 = vpack.c.bf16 %v2737, %v2737
        %v2739 = vld [vmem:[#allocation15] sm:$0xf]
        %v2740 = vld [vmem:[#allocation15 + $0x4] sm:$0xf]
        %v2741 = vld [vmem:[#allocation15 + $0x8] sm:$0xf]
        %v2742 = vld [vmem:[#allocation15 + $0xc] sm:$0xf]
        %v2743 = vld [vmem:[#allocation16] sm:$0x1]
        %v2745 = vlaneseq
        %v2746 = vshrl.u32 %v2745, 7
        %v2747 = vsub.s32 0, %v2746
        %v2748 = vrot.slane %v2743, %v2747
        %v2754 = vunpack.c.l.b16 %v2739
        %v2755 = vunpack.c.l.b16 %v2740
        %v2756 = vunpack.c.l.b16 %v2741
        %v2757 = vunpack.c.l.b16 %v2742
        %v2758 = vpack.c.b16 %v2755, %v2754
        %v2759 = vpack.c.b16 %v2757, %v2756
        %v2763 = vsel %vm985, %v2738, 0
        %2765 = vmatprep.subr.bf16.mxu0 0
        %2766 = vmatpush1.bf16.msra.mxu0 %v2758
        %2767 = vmatprep.subr.bf16.mxu0 0
        %2768 = vmatpush1.bf16.msra.mxu0 %v2759
        %2769 = vmatprep.subr.bf16.mxu0 0
        %2770 = vmatpush1.bf16.msra.mxu0 0
        %2771 = vmatprep.subr.bf16.mxu0 0
        %2772 = vmatpush1.bf16.msra.mxu0 0
        %2773 = vmatprep.subr.bf16.mxu0 0
        %2774 = vmatpush1.bf16.msra.mxu0 0
        %2775 = vmatprep.subr.bf16.mxu0 0
        %2776 = vmatpush1.bf16.msra.mxu0 0
        %2777 = vmatprep.subr.bf16.mxu0 0
        %2778 = vmatpush1.bf16.msra.mxu0 0
        %2779 = vmatprep.subr.bf16.mxu0 0
        %2780 = vmatpush1.bf16.msra.mxu0 0
        %2781 = vmatprep.subr.bf16.mxu0 0
        %2782 = vmatpush1.bf16.msra.mxu0 0
        %2783 = vmatprep.subr.bf16.mxu0 0
        %2784 = vmatpush1.bf16.msra.mxu0 0
        %2785 = vmatprep.subr.bf16.mxu0 0
        %2786 = vmatpush1.bf16.msra.mxu0 0
        %2787 = vmatprep.subr.bf16.mxu0 0
        %2788 = vmatpush1.bf16.msra.mxu0 0
        %2789 = vmatprep.subr.bf16.mxu0 0
        %2790 = vmatpush1.bf16.msra.mxu0 0
        %2791 = vmatprep.subr.bf16.mxu0 0
        %2792 = vmatpush1.bf16.msra.mxu0 0
        %2793 = vmatprep.subr.bf16.mxu0 0
        %2794 = vmatpush1.bf16.msra.mxu0 0
        %2795 = vmatprep.subr.bf16.mxu0 0
        %2796 = vmatpush1.bf16.msra.mxu0 0
        %2797 = vmatprep.mubr.bf16.mxu0 0
        %2798 = vmatmul.mubr.bf16.gmra.mrb[0].mxu0 %v2763
        %v2799 = vpop.f32.mrb[0].mxu0
        %v2800 = vadd.f32 %v2748, %v2799
        %v2801 = vpop.f32.mrb[0].mxu0
        %v2802 = vpop.f32.mrb[0].mxu0
        %v2803 = vpop.f32.mrb[0].mxu0
        %2804 = vdwg.mxu0
        %v2805 = vadd.f32 %v2800, %v961
        %v2806 = vsel %vm985, %v2805, 0.0
        %2807 = vadd.xlane.f32.xlu0 %v2806
        %v2808 = vpop.xlane.xlu0 %2807
        %v2809 = vrcp.pop 32.0
        %v2810 = vmul.f32 %v2808, %v2809
        %v2811 = vsub.f32 %v2805, %v2810
        %v2812 = vmul.f32 %v2811, %v2811
        %v2813 = vsel %vm985, %v2812, 0.0
        %2814 = vadd.xlane.f32.xlu0 %v2813
        %v2815 = vpop.xlane.xlu0 %2814
        %v2816 = vmul.f32 %v2815, %v2809
        %v2817 = vadd.f32 %v2816, 1e-06
        %v2818 = vrsqrt.pop %v2817
        %v2819 = vmul.f32 %v2811, %v2818
        %v2820 = vld [vmem:[#allocation24] sm:$0x1]
        %v2822 = vlaneseq
        %v2823 = vshrl.u32 %v2822, 7
        %v2824 = vsub.s32 0, %v2823
        %v2825 = vrot.slane %v2820, %v2824
        %v2827 = vmul.f32 %v2819, %v2825
        %v2828 = vld [vmem:[#allocation25] sm:$0x1]
        %v2830 = vlaneseq
        %v2831 = vshrl.u32 %v2830, 7
        %v2832 = vsub.s32 0, %v2831
        %v2833 = vrot.slane %v2828, %v2832
        %v2835 = vadd.f32 %v2827, %v2833
        %v2836 = vpack.c.bf16 %v2835, %v2835
        %v2837 = vld [vmem:[#allocation18] sm:$0xf]
        %v2838 = vld [vmem:[#allocation18 + $0x4] sm:$0xf]
        %v2839 = vld [vmem:[#allocation18 + $0x8] sm:$0xf]
        %v2840 = vld [vmem:[#allocation18 + $0xc] sm:$0xf]
        %v2841 = vld [vmem:[#allocation19] sm:$0x1]
        %v2843 = vlaneseq
        %v2844 = vshrl.u32 %v2843, 7
        %v2845 = vsub.s32 0, %v2844
        %v2846 = vrot.slane %v2841, %v2845
        %v2852 = vunpack.c.l.b16 %v2837
        %v2853 = vunpack.c.l.b16 %v2838
        %v2854 = vunpack.c.l.b16 %v2839
        %v2855 = vunpack.c.l.b16 %v2840
        %v2856 = vpack.c.b16 %v2853, %v2852
        %v2857 = vpack.c.b16 %v2855, %v2854
        %v2861 = vsel %vm985, %v2836, 0
        %2863 = vmatprep.subr.bf16.mxu0 0
        %2864 = vmatpush1.bf16.msra.mxu0 %v2856
        %2865 = vmatprep.subr.bf16.mxu0 0
        %2866 = vmatpush1.bf16.msra.mxu0 %v2857
        %2867 = vmatprep.subr.bf16.mxu0 0
        %2868 = vmatpush1.bf16.msra.mxu0 0
        %2869 = vmatprep.subr.bf16.mxu0 0
        %2870 = vmatpush1.bf16.msra.mxu0 0
        %2871 = vmatprep.subr.bf16.mxu0 0
        %2872 = vmatpush1.bf16.msra.mxu0 0
        %2873 = vmatprep.subr.bf16.mxu0 0
        %2874 = vmatpush1.bf16.msra.mxu0 0
        %2875 = vmatprep.subr.bf16.mxu0 0
        %2876 = vmatpush1.bf16.msra.mxu0 0
        %2877 = vmatprep.subr.bf16.mxu0 0
        %2878 = vmatpush1.bf16.msra.mxu0 0
        %2879 = vmatprep.subr.bf16.mxu0 0
        %2880 = vmatpush1.bf16.msra.mxu0 0
        %2881 = vmatprep.subr.bf16.mxu0 0
        %2882 = vmatpush1.bf16.msra.mxu0 0
        %2883 = vmatprep.subr.bf16.mxu0 0
        %2884 = vmatpush1.bf16.msra.mxu0 0
        %2885 = vmatprep.subr.bf16.mxu0 0
        %2886 = vmatpush1.bf16.msra.mxu0 0
        %2887 = vmatprep.subr.bf16.mxu0 0
        %2888 = vmatpush1.bf16.msra.mxu0 0
        %2889 = vmatprep.subr.bf16.mxu0 0
        %2890 = vmatpush1.bf16.msra.mxu0 0
        %2891 = vmatprep.subr.bf16.mxu0 0
        %2892 = vmatpush1.bf16.msra.mxu0 0
        %2893 = vmatprep.subr.bf16.mxu0 0
        %2894 = vmatpush1.bf16.msra.mxu0 0
        %2895 = vmatprep.mubr.bf16.mxu0 0
        %2896 = vmatmul.mubr.bf16.gmra.mrb[0].mxu0 %v2861
        %v2897 = vpop.f32.mrb[0].mxu0
        %v2898 = vadd.f32 %v2846, %v2897
        %v2899 = vpop.f32.mrb[0].mxu0
        %v2900 = vpop.f32.mrb[0].mxu0
        %v2901 = vpop.f32.mrb[0].mxu0
        %2902 = vdwg.mxu0
        %v2903 = vmul.f32 %v2898, %v2898
        %v2904 = vmul.f32 %v2898, %v2903
        %v2905 = vmul.f32 %v2904, 0.044715
        %v2906 = vadd.f32 %v2898, %v2905
        %v2907 = vmul.f32 %v2906, 0.7978846
        %v2908 = vtanh.pop %v2907
        %v2909 = vadd.f32 %v2908, 1.0
        %v2910 = vmul.f32 %v2909, 0.5
        %v2911 = vmul.f32 %v2898, %v2910
        %v2912 = vpack.c.bf16 %v2911, %v2911
        %v2913 = vld [vmem:[#allocation21] sm:$0xf]
        %v2914 = vld [vmem:[#allocation21 + $0x4] sm:$0xf]
        %v2915 = vld [vmem:[#allocation21 + $0x8] sm:$0xf]
        %v2916 = vld [vmem:[#allocation21 + $0xc] sm:$0xf]
        %v2917 = vld [vmem:[#allocation21 + $0x10] sm:$0xf]
        %v2918 = vld [vmem:[#allocation21 + $0x14] sm:$0xf]
        %v2919 = vld [vmem:[#allocation21 + $0x18] sm:$0xf]
        %v2920 = vld [vmem:[#allocation21 + $0x1c] sm:$0xf]
        %v2921 = vld [vmem:[#allocation22] sm:$0x1]
        %v2923 = vlaneseq
        %v2924 = vshrl.u32 %v2923, 7
        %v2925 = vsub.s32 0, %v2924
        %v2926 = vrot.slane %v2921, %v2925
        %v2936 = vunpack.c.l.b16 %v2913
        %v2937 = vunpack.c.l.b16 %v2914
        %v2938 = vunpack.c.l.b16 %v2915
        %v2939 = vunpack.c.l.b16 %v2916
        %v2940 = vunpack.c.l.b16 %v2917
        %v2941 = vunpack.c.l.b16 %v2918
        %v2942 = vunpack.c.l.b16 %v2919
        %v2943 = vunpack.c.l.b16 %v2920
        %v2944 = vpack.c.b16 %v2937, %v2936
        %v2945 = vpack.c.b16 %v2939, %v2938
        %v2946 = vpack.c.b16 %v2941, %v2940
        %v2947 = vpack.c.b16 %v2943, %v2942
        %vm2952 = vcmask 523264
        %v2954 = vsel %vm2952, %v2912, 0
        %2956 = vmatprep.subr.bf16.mxu0 0
        %2957 = vmatpush1.bf16.msra.mxu0 %v2944
        %2958 = vmatprep.subr.bf16.mxu0 0
        %2959 = vmatpush1.bf16.msra.mxu0 %v2945
        %2960 = vmatprep.subr.bf16.mxu0 0
        %2961 = vmatpush1.bf16.msra.mxu0 %v2946
        %2962 = vmatprep.subr.bf16.mxu0 0
        %2963 = vmatpush1.bf16.msra.mxu0 %v2947
        %2964 = vmatprep.subr.bf16.mxu0 0
        %2965 = vmatpush1.bf16.msra.mxu0 0
        %2966 = vmatprep.subr.bf16.mxu0 0
        %2967 = vmatpush1.bf16.msra.mxu0 0
        %2968 = vmatprep.subr.bf16.mxu0 0
        %2969 = vmatpush1.bf16.msra.mxu0 0
        %2970 = vmatprep.subr.bf16.mxu0 0
        %2971 = vmatpush1.bf16.msra.mxu0 0
        %2972 = vmatprep.subr.bf16.mxu0 0
        %2973 = vmatpush1.bf16.msra.mxu0 0
        %2974 = vmatprep.subr.bf16.mxu0 0
        %2975 = vmatpush1.bf16.msra.mxu0 0
        %2976 = vmatprep.subr.bf16.mxu0 0
        %2977 = vmatpush1.bf16.msra.mxu0 0
        %2978 = vmatprep.subr.bf16.mxu0 0
        %2979 = vmatpush1.bf16.msra.mxu0 0
        %2980 = vmatprep.subr.bf16.mxu0 0
        %2981 = vmatpush1.bf16.msra.mxu0 0
        %2982 = vmatprep.subr.bf16.mxu0 0
        %2983 = vmatpush1.bf16.msra.mxu0 0
        %2984 = vmatprep.subr.bf16.mxu0 0
        %2985 = vmatpush1.bf16.msra.mxu0 0
        %2986 = vmatprep.subr.bf16.mxu0 0
        %2987 = vmatpush1.bf16.msra.mxu0 0
        %2988 = vmatprep.mubr.bf16.mxu0 0
        %2989 = vmatmul.mubr.bf16.gmra.mrb[0].mxu0 %v2954
        %v2990 = vpop.f32.mrb[0].mxu0
        %v2991 = vadd.f32 %v2926, %v2990
        %v2992 = vpop.f32.mrb[0].mxu0
        %v2993 = vpop.f32.mrb[0].mxu0
        %v2994 = vpop.f32.mrb[0].mxu0
        %2995 = vdwg.mxu0
        %v2996 = vadd.f32 %v2991, %v2835
        %v2997 = vsel %vm985, %v2996, 0.0
        %2998 = vadd.xlane.f32.xlu0 %v2997
        %v2999 = vpop.xlane.xlu0 %2998
        %v3000 = vmul.f32 %v2999, %v2809
        %v3001 = vsub.f32 %v2996, %v3000
        %v3002 = vmul.f32 %v3001, %v3001
        %v3003 = vsel %vm985, %v3002, 0.0
        %3004 = vadd.xlane.f32.xlu0 %v3003
        %v3005 = vpop.xlane.xlu0 %3004
        %v3006 = vmul.f32 %v3005, %v2809
        %v3007 = vadd.f32 %v3006, 1e-06
        %v3008 = vrsqrt.pop %v3007
        %v3009 = vmul.f32 %v3001, %v3008
        %v3010 = vmul.f32 %v3009, %v2825
        %v3011 = vadd.f32 %v3010, %v2833
        %v3012 = vpack.c.bf16 %v3011, %v3011
        %vm3013 = vcmask 257024
        %3014 = vst.msk [vmem:[%s690] sm:$0xf] %vm3013, %v3012
        %s3015 = sand.u32 %s366, 1
        %s3016 = scalar_lea.sflag [#allocation6], %s3015
        %s3017 = sand.u32 %s366, 1
        %s3018 = smul.addr %s3017, 4
        %s3019 = scalar_lea.vmem [#allocation27], %s3018
        // Predicated region
        $region137: #{tpu_custom_call.1} parent=75 // pred_check
          %p3020 = pneg %p376
        $region138: #{tpu_custom_call.1} parent=75 // pred_check_branch
          %3022 = sbr.rel (%p3020) target = $region140
        $region139: #{tpu_custom_call.1} parent=75 // pred_region
          %s3024 = ssub.s32 64, 64
          %3025 = vsyncadd %s3016, %s3024
          %s3026 = sadd.s32 %s45, %s44
          %s3027 = smul.addr %s3026, 64
          %s3028 = scalar_lea.hbm %s14, %s3027
          %s3030 = sshll.u32 %s3019, 4
          %s3031 = int_to_ptr.vmem [resolvable:$true] %s3030
          %3033 = dma.vmem_to_hbm [thread:$0]  %s3031, 64, %s3028, %s3016
        $region140: #{tpu_custom_call.1} parent=75 // pred_fallthru
          _
      $region76: #{tpu_custom_call.1} parent=5 // pred_fallthru
        _
      %p3034 = scmp.le.s32.totalorder 2, %s35
      // Predicated region
      $region141: #{tpu_custom_call.1} parent=5 // pred_check
        %p3035 = pneg %p3034
      $region142: #{tpu_custom_call.1} parent=5 // pred_check_branch
        %3037 = sbr.rel (%p3035) target = $region144
      $region143: #{tpu_custom_call.1} parent=5 // pred_region
        %s3038 = ssub.s32 %s35, 2
        // Predicated region
        $region145: #{tpu_custom_call.1} parent=143 // pred_check
          %p3039 = pneg %p382
        $region146: #{tpu_custom_call.1} parent=143 // pred_check_branch
          %3041 = sbr.rel (%p3039) target = $region148
        $region147: #{tpu_custom_call.1} parent=143 // pred_region
          %s3042 = sand.u32 %s367, 1
          %s3043 = scalar_lea.sflag [#allocation6], %s3042
          %s3044 = sand.u32 %s367, 1
          %s3045 = smul.addr %s3044, 4
          %s3046 = scalar_lea.vmem [#allocation27], %s3045
          %3047 = dma.done %s3043, 64
        $region148: #{tpu_custom_call.1} parent=143 // pred_fallthru
          _
      $region144: #{tpu_custom_call.1} parent=5 // pred_fallthru
        _
    $region6: #{tpu_custom_call.1} parent=1 // loop_footer
      %s39 = sadd.s32 1, %s35
    $region7: #{tpu_custom_call.1} parent=1 // loop_footer_branch
      %34 = sbr.rel target = $region3
    $region8: #{tpu_custom_call.1} parent=1 // loop_exit
      _
    %3048 = vsyncpa [#allocation5], 1
    %s3049 = scalar_lea.sflag [#allocation5], 1
    %3050 = vsyncpa %s3049, 1
    %3051 = vsyncpa [#allocation8], 1
    %s3052 = scalar_lea.sflag [#allocation8], 1
    %3053 = vsyncpa %s3052, 1
    %3054 = vsyncpa [#allocation11], 1
    %3055 = vsyncpa [#allocation14], 1
    %3056 = vsyncpa [#allocation17], 1
    %3057 = vsyncpa [#allocation20], 1
    %3058 = vsyncpa [#allocation23], 1
    %3059 = vsyncpa [#allocation26], 1
    %3060 = vsyncpa [#allocation6], 1
    %s3061 = scalar_lea.sflag [#allocation6], 1
    %3062 = vsyncpa %s3061, 1

</llo_original>
